<compile_context>
chip_gen: v6e
topology: v6e:2x2x1
jax: 0.10.0
libtpu: 0.0.40
codegen_flags: <defaults>
</compile_context>

<pallas_src>
import numpy as np

import jax
import jax.numpy as jnp
from jax import lax
from jax.experimental import pallas as pl
from jax.experimental.pallas import tpu as pltpu

KW = 4                       # conv kernel size (all layers)
PADW = 2                     # int(ceil((KW - 1) / 2))
NTAP = KW * KW
NEG_SLOPE = 0.2              # LeakyReLU slope
EPS = 1e-5                   # InstanceNorm eps (PyTorch default)
VMEM_LIMIT = 32 * 1024 * 1024


def _conv_out(n, stride):
    return (n + 2 * PADW - KW) // stride + 1


def _make_plan(h, w, channel, ngf):
    """Static per-layer geometry (PyTorch conv arithmetic)."""
    chans = [channel, ngf, ngf * 2, ngf * 4, ngf * 8, 1]
    strides = [2, 2, 2, 2, 1]
    plan = []
    for l in range(5):
        ho, wo = _conv_out(h, strides[l]), _conv_out(w, strides[l])
        plan.append(dict(cin=chans[l], cout=chans[l + 1], stride=strides[l],
                         hin=h, win=w, ho=ho, wo=wo,
                         p=ho * wo, k=chans[l] * NTAP))
        h, w = ho, wo
    return plan


def _gather_matrix(hin, win, ho, wo, stride):
    """Per-tap 0/1 gather matrices: (NTAP, ho*wo, hin*win).

    Row (oh*wo + ow) of tap (i, j) selects flat input position
    (stride*oh + i - PADW) * win + (stride*ow + j - PADW); taps that land in
    the zero padding are all-zero rows, so no padding logic is needed in-kernel.
    """
    g = np.zeros((NTAP, ho * wo, hin * win), np.float32)
    for i in range(KW):
        for j in range(KW):
            t = i * KW + j
            for oh in range(ho):
                hh = stride * oh + i - PADW
                if not (0 <= hh < hin):
                    continue
                for ow in range(wo):
                    ww = stride * ow + j - PADW
                    if 0 <= ww < win:
                        g[t, oh * wo + ow, hh * win + ww] = 1.0
    return g


# ------------------------------- Pallas kernel --------------------------------

def _patch_dis_kernel(p1_ref, g2_ref, g3_ref, g4_ref, g5_ref,
                      w1_ref, w2_ref, w3_ref, w4_ref, w5_ref,
                      b1_ref, b2_ref, b3_ref, b4_ref, b5_ref,
                      o1_ref, o2_ref, o3_ref, o4_ref, o5_ref,
                      s2_ref, s3_ref, s4_ref, s5_ref):
    """One batch element per grid step; conv1..conv5 entirely in VMEM."""

    def conv(patches, w_ref, b_ref, *, lrelu, inorm):
        # patches: (P, K) bf16.  Epilogue in f32 (v5e has no bf16 VPU/EUP).
        y = jnp.dot(patches, w_ref[...], preferred_element_type=jnp.float32)
        y = y + b_ref[...]
        if lrelu:
            y = jnp.where(y >= 0.0, y, NEG_SLOPE * y)
        if inorm:
            # Two-pass per-(batch, channel) InstanceNorm over the spatial axis.
            inv_p = 1.0 / y.shape[0]
            mean = jnp.sum(y, axis=0, keepdims=True) * inv_p
            cen = y - mean
            var = jnp.sum(cen * cen, axis=0, keepdims=True) * inv_p
            y = cen * lax.rsqrt(var + EPS)
        return y

    def im2col(g_ref, act, patch_ref):
        # act: (P_prev, C_prev) f32.  Each of the 16 taps is a 0/1 gather
        # matmul (exact selection of bf16 values, f32 accumulation), packed
        # tap-major / channel-minor into the bf16 patch scratch.
        a = act.astype(jnp.bfloat16)
        c = a.shape[1]
        for t in range(NTAP):
            z = jnp.dot(g_ref[t], a, preferred_element_type=jnp.float32)
            patch_ref[:, t * c:(t + 1) * c] = z.astype(jnp.bfloat16)
        return patch_ref[...]

    a1 = conv(p1_ref[0], w1_ref, b1_ref, lrelu=True, inorm=False)
    o1_ref[0] = a1
    a2 = conv(im2col(g2_ref, a1, s2_ref), w2_ref, b2_ref, lrelu=True, inorm=True)
    o2_ref[0] = a2
    a3 = conv(im2col(g3_ref, a2, s3_ref), w3_ref, b3_ref, lrelu=True, inorm=True)
    o3_ref[0] = a3
    a4 = conv(im2col(g4_ref, a3, s4_ref), w4_ref, b4_ref, lrelu=True, inorm=True)
    o4_ref[0] = a4
    a5 = conv(im2col(g5_ref, a4, s5_ref), w5_ref, b5_ref, lrelu=False, inorm=False)
    o5_ref[0] = a5


# ------------------------------ params / wrapper -------------------------------

def init_params(key, channel, ngf):
    """Deterministic synthetic init (normal(0, 0.02) weights, zero bias)."""
    # TODO(synk): ops.weights_init in the reference is unspecified; DCGAN-style
    # init is used as a stand-in.
    shapes = [
        (ngf, channel, KW, KW),
        (ngf * 2, ngf, KW, KW),
        (ngf * 4, ngf * 2, KW, KW),
        (ngf * 8, ngf * 4, KW, KW),
        (1, ngf * 8, KW, KW),
    ]
    params = {}
    keys = jax.random.split(key, len(shapes))
    for idx, (k, shp) in enumerate(zip(keys, shapes), start=1):
        params[f"w{idx}"] = 0.02 * jax.random.normal(k, shp, dtype=jnp.float32)
        params[f"b{idx}"] = jnp.zeros((shp[0],), dtype=jnp.float32)
    return params


def prepare_params(params, in_hw=(16, 16)):
    """One-time layout prep: bf16 (kh*kw*Cin, Cout) weight mats (tap-major K),
    f32 (1, Cout) biases, and bf16 gather matrices for layers 2-5."""
    channel = params["w1"].shape[1]
    ngf = params["w1"].shape[0]
    plan = _make_plan(in_hw[0], in_hw[1], channel, ngf)

    wmats, biases = [], []
    for l in range(5):
        w = params[f"w{l + 1}"]                       # (Cout, Cin, KW, KW)
        cout, cin = w.shape[0], w.shape[1]
        wmats.append(jnp.transpose(w, (2, 3, 1, 0))
                     .reshape(NTAP * cin, cout).astype(jnp.bfloat16))
        biases.append(params[f"b{l + 1}"].reshape(1, cout).astype(jnp.float32))

    gathers = []
    for l in range(1, 5):
        cfg = plan[l]
        g = _gather_matrix(cfg["hin"], cfg["win"], cfg["ho"], cfg["wo"], cfg["stride"])
        gathers.append(jnp.asarray(g, dtype=jnp.bfloat16))

    return dict(wmats=tuple(wmats), biases=tuple(biases), gathers=tuple(gathers))


def patch_dis_net_forward(x_nchw, prepared):
    wmats, biases, gathers = prepared["wmats"], prepared["biases"], prepared["gathers"]
    B, C, H, W = x_nchw.shape
    ngf = wmats[0].shape[1]
    plan = _make_plan(H, W, C, ngf)

    # Layer-1 im2col in the (tiny, one-off) XLA wrapper; K ordered tap-major /
    # channel-minor to match the in-kernel gathers and weight layout.
    cfg1 = plan[0]
    s, ho1, wo1 = cfg1["stride"], cfg1["ho"], cfg1["wo"]
    x = jnp.transpose(x_nchw, (0, 2, 3, 1))                       # NHWC
    xp = jnp.pad(x, ((0, 0), (PADW, PADW), (PADW, PADW), (0, 0)))
    taps = []
    for i in range(KW):
        for j in range(KW):
            taps.append(xp[:, i:i + s * (ho1 - 1) + 1:s,
                            j:j + s * (wo1 - 1) + 1:s, :])
    p1 = (jnp.concatenate(taps, axis=-1)
          .reshape(B, cfg1["p"], cfg1["k"]).astype(jnp.bfloat16))

    in_specs = [pl.BlockSpec((1, cfg1["p"], cfg1["k"]), lambda b: (b, 0, 0))]
    for g in gathers:
        in_specs.append(pl.BlockSpec(g.shape, lambda b: (0, 0, 0)))
    for wm in wmats:
        in_specs.append(pl.BlockSpec(wm.shape, lambda b: (0, 0)))
    for bv in biases:
        in_specs.append(pl.BlockSpec(bv.shape, lambda b: (0, 0)))

    out_shape = tuple(jax.ShapeDtypeStruct((B, plan[l]["p"], plan[l]["cout"]),
                                           jnp.float32) for l in range(5))
    out_specs = tuple(pl.BlockSpec((1, plan[l]["p"], plan[l]["cout"]),
                                   lambda b: (b, 0, 0)) for l in range(5))
    scratch_shapes = [pltpu.VMEM((plan[l]["p"], plan[l]["k"]), jnp.bfloat16)
                      for l in range(1, 5)]

    flops = 0
    for l in range(5):
        flops += 2 * B * plan[l]["p"] * plan[l]["k"] * plan[l]["cout"]
        if l > 0:
            flops += 2 * B * NTAP * plan[l]["p"] * plan[l - 1]["p"] * plan[l - 1]["cout"]
    bytes_accessed = (p1.size * 2 + sum(g.size * 2 for g in gathers)
                      + sum(w.size * 2 for w in wmats)
                      + sum(b.size * 4 for b in biases)
                      + sum(4 * B * plan[l]["p"] * plan[l]["cout"] for l in range(5)))
    ce = pl.CostEstimate(flops=flops,
                         transcendentals=B * sum(plan[l]["cout"] for l in (1, 2, 3)),
                         bytes_accessed=bytes_accessed)

    raw = pl.pallas_call(
        _patch_dis_kernel,
        out_shape=out_shape,
        grid_spec=pltpu.PrefetchScalarGridSpec(
            num_scalar_prefetch=0,
            grid=(B,),
            in_specs=in_specs,
            out_specs=out_specs,
            scratch_shapes=scratch_shapes),
        compiler_params=pltpu.CompilerParams(
            dimension_semantics=("parallel",),      # v7x: one batch element per TC
            vmem_limit_bytes=VMEM_LIMIT),
        cost_estimate=ce,
    )(p1, *gathers, *wmats, *biases)

    outs = []
    for l, o in enumerate(raw):
        cfg = plan[l]
        outs.append(jnp.transpose(
            o.reshape(B, cfg["ho"], cfg["wo"], cfg["cout"]), (0, 3, 1, 2)))
    return outs


# ----------------------------------- main --------------------------------------

if __name__ == "__main__":
    channel, ngf = 4, 8
    key = jax.random.PRNGKey(0)
    k_x, k_p = jax.random.split(key)

    x = jax.random.normal(k_x, (2, channel, 16, 16), dtype=jnp.float32)   # NCHW
    params = init_params(k_p, channel, ngf)
    prepared = prepare_params(params, in_hw=(16, 16))

    fwd = jax.jit(patch_dis_net_forward)
    outs = jax.block_until_ready(fwd(x, prepared))

    # Expected shapes from PyTorch conv arithmetic (k=4, pad=2).
    expected = [(2, 8, 9, 9), (2, 16, 5, 5), (2, 32, 3, 3), (2, 64, 2, 2), (2, 1, 3, 3)]
    assert [tuple(map(int, o.shape)) for o in outs] == expected, [o.shape for o in outs]
    assert all(bool(jnp.all(jnp.isfinite(o))) for o in outs)

    print("KERNEL_OK")
</pallas_src>

<mosaic_0001>
module attributes {stable_mosaic.version = 11 : i64} {
  func.func @_patch_dis_kernel(%arg0: i32, %arg1: memref<1x81x64xbf16, #tpu.memory_space<vmem>>, %arg2: memref<16x25x81xbf16, #tpu.memory_space<vmem>>, %arg3: memref<16x9x25xbf16, #tpu.memory_space<vmem>>, %arg4: memref<16x4x9xbf16, #tpu.memory_space<vmem>>, %arg5: memref<16x9x4xbf16, #tpu.memory_space<vmem>>, %arg6: memref<64x8xbf16, #tpu.memory_space<vmem>>, %arg7: memref<128x16xbf16, #tpu.memory_space<vmem>>, %arg8: memref<256x32xbf16, #tpu.memory_space<vmem>>, %arg9: memref<512x64xbf16, #tpu.memory_space<vmem>>, %arg10: memref<1024x1xbf16, #tpu.memory_space<vmem>>, %arg11: memref<1x8xf32, #tpu.memory_space<vmem>>, %arg12: memref<1x16xf32, #tpu.memory_space<vmem>>, %arg13: memref<1x32xf32, #tpu.memory_space<vmem>>, %arg14: memref<1x64xf32, #tpu.memory_space<vmem>>, %arg15: memref<1x1xf32, #tpu.memory_space<vmem>>, %arg16: memref<1x81x8xf32, #tpu.memory_space<vmem>>, %arg17: memref<1x25x16xf32, #tpu.memory_space<vmem>>, %arg18: memref<1x9x32xf32, #tpu.memory_space<vmem>>, %arg19: memref<1x4x64xf32, #tpu.memory_space<vmem>>, %arg20: memref<1x9x1xf32, #tpu.memory_space<vmem>>, %arg21: memref<25x128xbf16, #tpu.memory_space<vmem>>, %arg22: memref<9x256xbf16, #tpu.memory_space<vmem>>, %arg23: memref<4x512xbf16, #tpu.memory_space<vmem>>, %arg24: memref<9x1024xbf16, #tpu.memory_space<vmem>>) attributes {dimension_semantics = [#tpu.dimension_semantics<parallel>], iteration_bounds = array<i64: 2>, scalar_prefetch = 0 : i64, scratch_operands = 4 : i64, tpu.core_type = #tpu.core_type<tc>, window_params = [{transform_indices = @transform_0, window_bounds = array<i64: 1, 81, 64>}, {pipeline_mode = #tpu.pipeline_mode<synchronous>, transform_indices = @transform_1, window_bounds = array<i64: 16, 25, 81>}, {pipeline_mode = #tpu.pipeline_mode<synchronous>, transform_indices = @transform_2, window_bounds = array<i64: 16, 9, 25>}, {pipeline_mode = #tpu.pipeline_mode<synchronous>, transform_indices = @transform_3, window_bounds = array<i64: 16, 4, 9>}, {pipeline_mode = #tpu.pipeline_mode<synchronous>, transform_indices = @transform_4, window_bounds = array<i64: 16, 9, 4>}, {pipeline_mode = #tpu.pipeline_mode<synchronous>, transform_indices = @transform_5, window_bounds = array<i64: 64, 8>}, {pipeline_mode = #tpu.pipeline_mode<synchronous>, transform_indices = @transform_6, window_bounds = array<i64: 128, 16>}, {pipeline_mode = #tpu.pipeline_mode<synchronous>, transform_indices = @transform_7, window_bounds = array<i64: 256, 32>}, {pipeline_mode = #tpu.pipeline_mode<synchronous>, transform_indices = @transform_8, window_bounds = array<i64: 512, 64>}, {pipeline_mode = #tpu.pipeline_mode<synchronous>, transform_indices = @transform_9, window_bounds = array<i64: 1024, 1>}, {pipeline_mode = #tpu.pipeline_mode<synchronous>, transform_indices = @transform_10, window_bounds = array<i64: 1, 8>}, {pipeline_mode = #tpu.pipeline_mode<synchronous>, transform_indices = @transform_11, window_bounds = array<i64: 1, 16>}, {pipeline_mode = #tpu.pipeline_mode<synchronous>, transform_indices = @transform_12, window_bounds = array<i64: 1, 32>}, {pipeline_mode = #tpu.pipeline_mode<synchronous>, transform_indices = @transform_13, window_bounds = array<i64: 1, 64>}, {pipeline_mode = #tpu.pipeline_mode<synchronous>, transform_indices = @transform_14, window_bounds = array<i64: 1, 1>}, {transform_indices = @transform_15, window_bounds = array<i64: 1, 81, 8>}, {transform_indices = @transform_16, window_bounds = array<i64: 1, 25, 16>}, {transform_indices = @transform_17, window_bounds = array<i64: 1, 9, 32>}, {transform_indices = @transform_18, window_bounds = array<i64: 1, 4, 64>}, {transform_indices = @transform_19, window_bounds = array<i64: 1, 9, 1>}]} {
    %c0 = arith.constant 0 : index
    %c0_0 = arith.constant 0 : index
    %c0_1 = arith.constant 0 : index
    %0 = vector.load %arg1[%c0, %c0_0, %c0_1] : memref<1x81x64xbf16, #tpu.memory_space<vmem>>, vector<1x81x64xbf16>
    %1 = vector.shape_cast %0 : vector<1x81x64xbf16> to vector<81x64xbf16>
    %c0_2 = arith.constant 0 : index
    %c0_3 = arith.constant 0 : index
    %2 = vector.load %arg6[%c0_2, %c0_3] : memref<64x8xbf16, #tpu.memory_space<vmem>>, vector<64x8xbf16>
    %cst = arith.constant dense<0.000000e+00> : vector<81x8xf32>
    %3 = tpu.matmul %1, %2, %cst {dimension_numbers = #tpu.dot_dimension_numbers<[1], [0], [0], [1], [0, 0, 1, 1], [], []>} : vector<81x64xbf16>, vector<64x8xbf16>, vector<81x8xf32> -> vector<81x8xf32>
    %c0_4 = arith.constant 0 : index
    %c0_5 = arith.constant 0 : index
    %4 = vector.load %arg11[%c0_4, %c0_5] : memref<1x8xf32, #tpu.memory_space<vmem>>, vector<1x8xf32>
    %5 = vector.broadcast %4 : vector<1x8xf32> to vector<81x8xf32>
    %6 = arith.addf %3, %5 : vector<81x8xf32>
    %cst_6 = arith.constant 0.000000e+00 : f32
    %7 = vector.broadcast %cst_6 : f32 to vector<81x8xf32>
    %8 = arith.cmpf oge, %6, %7 : vector<81x8xf32>
    %cst_7 = arith.constant 2.000000e-01 : f32
    %9 = vector.broadcast %cst_7 : f32 to vector<81x8xf32>
    %10 = arith.mulf %9, %6 : vector<81x8xf32>
    %11 = arith.select %8, %6, %10 : vector<81x8xi1>, vector<81x8xf32>
    %c0_8 = arith.constant 0 : index
    %c0_9 = arith.constant 0 : index
    %c0_10 = arith.constant 0 : index
    %12 = vector.load %arg16[%c0_8, %c0_9, %c0_10] : memref<1x81x8xf32, #tpu.memory_space<vmem>>, vector<1x81x8xf32>
    %13 = vector.shape_cast %12 : vector<1x81x8xf32> to vector<81x8xf32>
    %14 = vector.shape_cast %11 : vector<81x8xf32> to vector<1x81x8xf32>
    tpu.vector_store %arg16[%c0_8, %c0_9, %c0_10], %14 {strides = array<i32>} : memref<1x81x8xf32, #tpu.memory_space<vmem>>, vector<1x81x8xf32>,
    %15 = arith.truncf %11 : vector<81x8xf32> to vector<81x8xbf16>
    %c0_11 = arith.constant 0 : index
    %c0_12 = arith.constant 0 : index
    %c0_13 = arith.constant 0 : index
    %16 = vector.load %arg2[%c0_11, %c0_12, %c0_13] : memref<16x25x81xbf16, #tpu.memory_space<vmem>>, vector<1x25x81xbf16>
    %17 = vector.shape_cast %16 : vector<1x25x81xbf16> to vector<25x81xbf16>
    %cst_14 = arith.constant dense<0.000000e+00> : vector<25x8xf32>
    %18 = tpu.matmul %17, %15, %cst_14 {dimension_numbers = #tpu.dot_dimension_numbers<[1], [0], [0], [1], [0, 0, 1, 1], [], []>} : vector<25x81xbf16>, vector<81x8xbf16>, vector<25x8xf32> -> vector<25x8xf32>
    %19 = arith.truncf %18 : vector<25x8xf32> to vector<25x8xbf16>
    %c0_15 = arith.constant 0 : index
    %c0_16 = arith.constant 0 : index
    %20 = vector.load %arg21[%c0_15, %c0_16] : memref<25x128xbf16, #tpu.memory_space<vmem>>, vector<25x8xbf16>
    tpu.vector_store %arg21[%c0_15, %c0_16], %19 {strides = array<i32>} : memref<25x128xbf16, #tpu.memory_space<vmem>>, vector<25x8xbf16>,
    %c1 = arith.constant 1 : index
    %c0_17 = arith.constant 0 : index
    %c0_18 = arith.constant 0 : index
    %21 = vector.load %arg2[%c1, %c0_17, %c0_18] : memref<16x25x81xbf16, #tpu.memory_space<vmem>>, vector<1x25x81xbf16>
    %22 = vector.shape_cast %21 : vector<1x25x81xbf16> to vector<25x81xbf16>
    %cst_19 = arith.constant dense<0.000000e+00> : vector<25x8xf32>
    %23 = tpu.matmul %22, %15, %cst_19 {dimension_numbers = #tpu.dot_dimension_numbers<[1], [0], [0], [1], [0, 0, 1, 1], [], []>} : vector<25x81xbf16>, vector<81x8xbf16>, vector<25x8xf32> -> vector<25x8xf32>
    %24 = arith.truncf %23 : vector<25x8xf32> to vector<25x8xbf16>
    %c0_20 = arith.constant 0 : index
    %c8 = arith.constant 8 : index
    %25 = vector.load %arg21[%c0_20, %c8] : memref<25x128xbf16, #tpu.memory_space<vmem>>, vector<25x8xbf16>
    tpu.vector_store %arg21[%c0_20, %c8], %24 {strides = array<i32>} : memref<25x128xbf16, #tpu.memory_space<vmem>>, vector<25x8xbf16>,
    %c2 = arith.constant 2 : index
    %c0_21 = arith.constant 0 : index
    %c0_22 = arith.constant 0 : index
    %26 = vector.load %arg2[%c2, %c0_21, %c0_22] : memref<16x25x81xbf16, #tpu.memory_space<vmem>>, vector<1x25x81xbf16>
    %27 = vector.shape_cast %26 : vector<1x25x81xbf16> to vector<25x81xbf16>
    %cst_23 = arith.constant dense<0.000000e+00> : vector<25x8xf32>
    %28 = tpu.matmul %27, %15, %cst_23 {dimension_numbers = #tpu.dot_dimension_numbers<[1], [0], [0], [1], [0, 0, 1, 1], [], []>} : vector<25x81xbf16>, vector<81x8xbf16>, vector<25x8xf32> -> vector<25x8xf32>
    %29 = arith.truncf %28 : vector<25x8xf32> to vector<25x8xbf16>
    %c0_24 = arith.constant 0 : index
    %c16 = arith.constant 16 : index
    %30 = vector.load %arg21[%c0_24, %c16] : memref<25x128xbf16, #tpu.memory_space<vmem>>, vector<25x8xbf16>
    tpu.vector_store %arg21[%c0_24, %c16], %29 {strides = array<i32>} : memref<25x128xbf16, #tpu.memory_space<vmem>>, vector<25x8xbf16>,
    %c3 = arith.constant 3 : index
    %c0_25 = arith.constant 0 : index
    %c0_26 = arith.constant 0 : index
    %31 = vector.load %arg2[%c3, %c0_25, %c0_26] : memref<16x25x81xbf16, #tpu.memory_space<vmem>>, vector<1x25x81xbf16>
    %32 = vector.shape_cast %31 : vector<1x25x81xbf16> to vector<25x81xbf16>
    %cst_27 = arith.constant dense<0.000000e+00> : vector<25x8xf32>
    %33 = tpu.matmul %32, %15, %cst_27 {dimension_numbers = #tpu.dot_dimension_numbers<[1], [0], [0], [1], [0, 0, 1, 1], [], []>} : vector<25x81xbf16>, vector<81x8xbf16>, vector<25x8xf32> -> vector<25x8xf32>
    %34 = arith.truncf %33 : vector<25x8xf32> to vector<25x8xbf16>
    %c0_28 = arith.constant 0 : index
    %c24 = arith.constant 24 : index
    %35 = vector.load %arg21[%c0_28, %c24] : memref<25x128xbf16, #tpu.memory_space<vmem>>, vector<25x8xbf16>
    tpu.vector_store %arg21[%c0_28, %c24], %34 {strides = array<i32>} : memref<25x128xbf16, #tpu.memory_space<vmem>>, vector<25x8xbf16>,
    %c4 = arith.constant 4 : index
    %c0_29 = arith.constant 0 : index
    %c0_30 = arith.constant 0 : index
    %36 = vector.load %arg2[%c4, %c0_29, %c0_30] : memref<16x25x81xbf16, #tpu.memory_space<vmem>>, vector<1x25x81xbf16>
    %37 = vector.shape_cast %36 : vector<1x25x81xbf16> to vector<25x81xbf16>
    %cst_31 = arith.constant dense<0.000000e+00> : vector<25x8xf32>
    %38 = tpu.matmul %37, %15, %cst_31 {dimension_numbers = #tpu.dot_dimension_numbers<[1], [0], [0], [1], [0, 0, 1, 1], [], []>} : vector<25x81xbf16>, vector<81x8xbf16>, vector<25x8xf32> -> vector<25x8xf32>
    %39 = arith.truncf %38 : vector<25x8xf32> to vector<25x8xbf16>
    %c0_32 = arith.constant 0 : index
    %c32 = arith.constant 32 : index
    %40 = vector.load %arg21[%c0_32, %c32] : memref<25x128xbf16, #tpu.memory_space<vmem>>, vector<25x8xbf16>
    tpu.vector_store %arg21[%c0_32, %c32], %39 {strides = array<i32>} : memref<25x128xbf16, #tpu.memory_space<vmem>>, vector<25x8xbf16>,
    %c5 = arith.constant 5 : index
    %c0_33 = arith.constant 0 : index
    %c0_34 = arith.constant 0 : index
    %41 = vector.load %arg2[%c5, %c0_33, %c0_34] : memref<16x25x81xbf16, #tpu.memory_space<vmem>>, vector<1x25x81xbf16>
    %42 = vector.shape_cast %41 : vector<1x25x81xbf16> to vector<25x81xbf16>
    %cst_35 = arith.constant dense<0.000000e+00> : vector<25x8xf32>
    %43 = tpu.matmul %42, %15, %cst_35 {dimension_numbers = #tpu.dot_dimension_numbers<[1], [0], [0], [1], [0, 0, 1, 1], [], []>} : vector<25x81xbf16>, vector<81x8xbf16>, vector<25x8xf32> -> vector<25x8xf32>
    %44 = arith.truncf %43 : vector<25x8xf32> to vector<25x8xbf16>
    %c0_36 = arith.constant 0 : index
    %c40 = arith.constant 40 : index
    %45 = vector.load %arg21[%c0_36, %c40] : memref<25x128xbf16, #tpu.memory_space<vmem>>, vector<25x8xbf16>
    tpu.vector_store %arg21[%c0_36, %c40], %44 {strides = array<i32>} : memref<25x128xbf16, #tpu.memory_space<vmem>>, vector<25x8xbf16>,
    %c6 = arith.constant 6 : index
    %c0_37 = arith.constant 0 : index
    %c0_38 = arith.constant 0 : index
    %46 = vector.load %arg2[%c6, %c0_37, %c0_38] : memref<16x25x81xbf16, #tpu.memory_space<vmem>>, vector<1x25x81xbf16>
    %47 = vector.shape_cast %46 : vector<1x25x81xbf16> to vector<25x81xbf16>
    %cst_39 = arith.constant dense<0.000000e+00> : vector<25x8xf32>
    %48 = tpu.matmul %47, %15, %cst_39 {dimension_numbers = #tpu.dot_dimension_numbers<[1], [0], [0], [1], [0, 0, 1, 1], [], []>} : vector<25x81xbf16>, vector<81x8xbf16>, vector<25x8xf32> -> vector<25x8xf32>
    %49 = arith.truncf %48 : vector<25x8xf32> to vector<25x8xbf16>
    %c0_40 = arith.constant 0 : index
    %c48 = arith.constant 48 : index
    %50 = vector.load %arg21[%c0_40, %c48] : memref<25x128xbf16, #tpu.memory_space<vmem>>, vector<25x8xbf16>
    tpu.vector_store %arg21[%c0_40, %c48], %49 {strides = array<i32>} : memref<25x128xbf16, #tpu.memory_space<vmem>>, vector<25x8xbf16>,
    %c7 = arith.constant 7 : index
    %c0_41 = arith.constant 0 : index
    %c0_42 = arith.constant 0 : index
    %51 = vector.load %arg2[%c7, %c0_41, %c0_42] : memref<16x25x81xbf16, #tpu.memory_space<vmem>>, vector<1x25x81xbf16>
    %52 = vector.shape_cast %51 : vector<1x25x81xbf16> to vector<25x81xbf16>
    %cst_43 = arith.constant dense<0.000000e+00> : vector<25x8xf32>
    %53 = tpu.matmul %52, %15, %cst_43 {dimension_numbers = #tpu.dot_dimension_numbers<[1], [0], [0], [1], [0, 0, 1, 1], [], []>} : vector<25x81xbf16>, vector<81x8xbf16>, vector<25x8xf32> -> vector<25x8xf32>
    %54 = arith.truncf %53 : vector<25x8xf32> to vector<25x8xbf16>
    %c0_44 = arith.constant 0 : index
    %c56 = arith.constant 56 : index
    %55 = vector.load %arg21[%c0_44, %c56] : memref<25x128xbf16, #tpu.memory_space<vmem>>, vector<25x8xbf16>
    tpu.vector_store %arg21[%c0_44, %c56], %54 {strides = array<i32>} : memref<25x128xbf16, #tpu.memory_space<vmem>>, vector<25x8xbf16>,
    %c8_45 = arith.constant 8 : index
    %c0_46 = arith.constant 0 : index
    %c0_47 = arith.constant 0 : index
    %56 = vector.load %arg2[%c8_45, %c0_46, %c0_47] : memref<16x25x81xbf16, #tpu.memory_space<vmem>>, vector<1x25x81xbf16>
    %57 = vector.shape_cast %56 : vector<1x25x81xbf16> to vector<25x81xbf16>
    %cst_48 = arith.constant dense<0.000000e+00> : vector<25x8xf32>
    %58 = tpu.matmul %57, %15, %cst_48 {dimension_numbers = #tpu.dot_dimension_numbers<[1], [0], [0], [1], [0, 0, 1, 1], [], []>} : vector<25x81xbf16>, vector<81x8xbf16>, vector<25x8xf32> -> vector<25x8xf32>
    %59 = arith.truncf %58 : vector<25x8xf32> to vector<25x8xbf16>
    %c0_49 = arith.constant 0 : index
    %c64 = arith.constant 64 : index
    %60 = vector.load %arg21[%c0_49, %c64] : memref<25x128xbf16, #tpu.memory_space<vmem>>, vector<25x8xbf16>
    tpu.vector_store %arg21[%c0_49, %c64], %59 {strides = array<i32>} : memref<25x128xbf16, #tpu.memory_space<vmem>>, vector<25x8xbf16>,
    %c9 = arith.constant 9 : index
    %c0_50 = arith.constant 0 : index
    %c0_51 = arith.constant 0 : index
    %61 = vector.load %arg2[%c9, %c0_50, %c0_51] : memref<16x25x81xbf16, #tpu.memory_space<vmem>>, vector<1x25x81xbf16>
    %62 = vector.shape_cast %61 : vector<1x25x81xbf16> to vector<25x81xbf16>
    %cst_52 = arith.constant dense<0.000000e+00> : vector<25x8xf32>
    %63 = tpu.matmul %62, %15, %cst_52 {dimension_numbers = #tpu.dot_dimension_numbers<[1], [0], [0], [1], [0, 0, 1, 1], [], []>} : vector<25x81xbf16>, vector<81x8xbf16>, vector<25x8xf32> -> vector<25x8xf32>
    %64 = arith.truncf %63 : vector<25x8xf32> to vector<25x8xbf16>
    %c0_53 = arith.constant 0 : index
    %c72 = arith.constant 72 : index
    %65 = vector.load %arg21[%c0_53, %c72] : memref<25x128xbf16, #tpu.memory_space<vmem>>, vector<25x8xbf16>
    tpu.vector_store %arg21[%c0_53, %c72], %64 {strides = array<i32>} : memref<25x128xbf16, #tpu.memory_space<vmem>>, vector<25x8xbf16>,
    %c10 = arith.constant 10 : index
    %c0_54 = arith.constant 0 : index
    %c0_55 = arith.constant 0 : index
    %66 = vector.load %arg2[%c10, %c0_54, %c0_55] : memref<16x25x81xbf16, #tpu.memory_space<vmem>>, vector<1x25x81xbf16>
    %67 = vector.shape_cast %66 : vector<1x25x81xbf16> to vector<25x81xbf16>
    %cst_56 = arith.constant dense<0.000000e+00> : vector<25x8xf32>
    %68 = tpu.matmul %67, %15, %cst_56 {dimension_numbers = #tpu.dot_dimension_numbers<[1], [0], [0], [1], [0, 0, 1, 1], [], []>} : vector<25x81xbf16>, vector<81x8xbf16>, vector<25x8xf32> -> vector<25x8xf32>
    %69 = arith.truncf %68 : vector<25x8xf32> to vector<25x8xbf16>
    %c0_57 = arith.constant 0 : index
    %c80 = arith.constant 80 : index
    %70 = vector.load %arg21[%c0_57, %c80] : memref<25x128xbf16, #tpu.memory_space<vmem>>, vector<25x8xbf16>
    tpu.vector_store %arg21[%c0_57, %c80], %69 {strides = array<i32>} : memref<25x128xbf16, #tpu.memory_space<vmem>>, vector<25x8xbf16>,
    %c11 = arith.constant 11 : index
    %c0_58 = arith.constant 0 : index
    %c0_59 = arith.constant 0 : index
    %71 = vector.load %arg2[%c11, %c0_58, %c0_59] : memref<16x25x81xbf16, #tpu.memory_space<vmem>>, vector<1x25x81xbf16>
    %72 = vector.shape_cast %71 : vector<1x25x81xbf16> to vector<25x81xbf16>
    %cst_60 = arith.constant dense<0.000000e+00> : vector<25x8xf32>
    %73 = tpu.matmul %72, %15, %cst_60 {dimension_numbers = #tpu.dot_dimension_numbers<[1], [0], [0], [1], [0, 0, 1, 1], [], []>} : vector<25x81xbf16>, vector<81x8xbf16>, vector<25x8xf32> -> vector<25x8xf32>
    %74 = arith.truncf %73 : vector<25x8xf32> to vector<25x8xbf16>
    %c0_61 = arith.constant 0 : index
    %c88 = arith.constant 88 : index
    %75 = vector.load %arg21[%c0_61, %c88] : memref<25x128xbf16, #tpu.memory_space<vmem>>, vector<25x8xbf16>
    tpu.vector_store %arg21[%c0_61, %c88], %74 {strides = array<i32>} : memref<25x128xbf16, #tpu.memory_space<vmem>>, vector<25x8xbf16>,
    %c12 = arith.constant 12 : index
    %c0_62 = arith.constant 0 : index
    %c0_63 = arith.constant 0 : index
    %76 = vector.load %arg2[%c12, %c0_62, %c0_63] : memref<16x25x81xbf16, #tpu.memory_space<vmem>>, vector<1x25x81xbf16>
    %77 = vector.shape_cast %76 : vector<1x25x81xbf16> to vector<25x81xbf16>
    %cst_64 = arith.constant dense<0.000000e+00> : vector<25x8xf32>
    %78 = tpu.matmul %77, %15, %cst_64 {dimension_numbers = #tpu.dot_dimension_numbers<[1], [0], [0], [1], [0, 0, 1, 1], [], []>} : vector<25x81xbf16>, vector<81x8xbf16>, vector<25x8xf32> -> vector<25x8xf32>
    %79 = arith.truncf %78 : vector<25x8xf32> to vector<25x8xbf16>
    %c0_65 = arith.constant 0 : index
    %c96 = arith.constant 96 : index
    %80 = vector.load %arg21[%c0_65, %c96] : memref<25x128xbf16, #tpu.memory_space<vmem>>, vector<25x8xbf16>
    tpu.vector_store %arg21[%c0_65, %c96], %79 {strides = array<i32>} : memref<25x128xbf16, #tpu.memory_space<vmem>>, vector<25x8xbf16>,
    %c13 = arith.constant 13 : index
    %c0_66 = arith.constant 0 : index
    %c0_67 = arith.constant 0 : index
    %81 = vector.load %arg2[%c13, %c0_66, %c0_67] : memref<16x25x81xbf16, #tpu.memory_space<vmem>>, vector<1x25x81xbf16>
    %82 = vector.shape_cast %81 : vector<1x25x81xbf16> to vector<25x81xbf16>
    %cst_68 = arith.constant dense<0.000000e+00> : vector<25x8xf32>
    %83 = tpu.matmul %82, %15, %cst_68 {dimension_numbers = #tpu.dot_dimension_numbers<[1], [0], [0], [1], [0, 0, 1, 1], [], []>} : vector<25x81xbf16>, vector<81x8xbf16>, vector<25x8xf32> -> vector<25x8xf32>
    %84 = arith.truncf %83 : vector<25x8xf32> to vector<25x8xbf16>
    %c0_69 = arith.constant 0 : index
    %c104 = arith.constant 104 : index
    %85 = vector.load %arg21[%c0_69, %c104] : memref<25x128xbf16, #tpu.memory_space<vmem>>, vector<25x8xbf16>
    tpu.vector_store %arg21[%c0_69, %c104], %84 {strides = array<i32>} : memref<25x128xbf16, #tpu.memory_space<vmem>>, vector<25x8xbf16>,
    %c14 = arith.constant 14 : index
    %c0_70 = arith.constant 0 : index
    %c0_71 = arith.constant 0 : index
    %86 = vector.load %arg2[%c14, %c0_70, %c0_71] : memref<16x25x81xbf16, #tpu.memory_space<vmem>>, vector<1x25x81xbf16>
    %87 = vector.shape_cast %86 : vector<1x25x81xbf16> to vector<25x81xbf16>
    %cst_72 = arith.constant dense<0.000000e+00> : vector<25x8xf32>
    %88 = tpu.matmul %87, %15, %cst_72 {dimension_numbers = #tpu.dot_dimension_numbers<[1], [0], [0], [1], [0, 0, 1, 1], [], []>} : vector<25x81xbf16>, vector<81x8xbf16>, vector<25x8xf32> -> vector<25x8xf32>
    %89 = arith.truncf %88 : vector<25x8xf32> to vector<25x8xbf16>
    %c0_73 = arith.constant 0 : index
    %c112 = arith.constant 112 : index
    %90 = vector.load %arg21[%c0_73, %c112] : memref<25x128xbf16, #tpu.memory_space<vmem>>, vector<25x8xbf16>
    tpu.vector_store %arg21[%c0_73, %c112], %89 {strides = array<i32>} : memref<25x128xbf16, #tpu.memory_space<vmem>>, vector<25x8xbf16>,
    %c15 = arith.constant 15 : index
    %c0_74 = arith.constant 0 : index
    %c0_75 = arith.constant 0 : index
    %91 = vector.load %arg2[%c15, %c0_74, %c0_75] : memref<16x25x81xbf16, #tpu.memory_space<vmem>>, vector<1x25x81xbf16>
    %92 = vector.shape_cast %91 : vector<1x25x81xbf16> to vector<25x81xbf16>
    %cst_76 = arith.constant dense<0.000000e+00> : vector<25x8xf32>
    %93 = tpu.matmul %92, %15, %cst_76 {dimension_numbers = #tpu.dot_dimension_numbers<[1], [0], [0], [1], [0, 0, 1, 1], [], []>} : vector<25x81xbf16>, vector<81x8xbf16>, vector<25x8xf32> -> vector<25x8xf32>
    %94 = arith.truncf %93 : vector<25x8xf32> to vector<25x8xbf16>
    %c0_77 = arith.constant 0 : index
    %c120 = arith.constant 120 : index
    %95 = vector.load %arg21[%c0_77, %c120] : memref<25x128xbf16, #tpu.memory_space<vmem>>, vector<25x8xbf16>
    tpu.vector_store %arg21[%c0_77, %c120], %94 {strides = array<i32>} : memref<25x128xbf16, #tpu.memory_space<vmem>>, vector<25x8xbf16>,
    %c0_78 = arith.constant 0 : index
    %c0_79 = arith.constant 0 : index
    %96 = vector.load %arg21[%c0_78, %c0_79] : memref<25x128xbf16, #tpu.memory_space<vmem>>, vector<25x128xbf16>
    %c0_80 = arith.constant 0 : index
    %c0_81 = arith.constant 0 : index
    %97 = vector.load %arg7[%c0_80, %c0_81] : memref<128x16xbf16, #tpu.memory_space<vmem>>, vector<128x16xbf16>
    %cst_82 = arith.constant dense<0.000000e+00> : vector<25x16xf32>
    %98 = tpu.matmul %96, %97, %cst_82 {dimension_numbers = #tpu.dot_dimension_numbers<[1], [0], [0], [1], [0, 0, 1, 1], [], []>} : vector<25x128xbf16>, vector<128x16xbf16>, vector<25x16xf32> -> vector<25x16xf32>
    %c0_83 = arith.constant 0 : index
    %c0_84 = arith.constant 0 : index
    %99 = vector.load %arg12[%c0_83, %c0_84] : memref<1x16xf32, #tpu.memory_space<vmem>>, vector<1x16xf32>
    %100 = vector.broadcast %99 : vector<1x16xf32> to vector<25x16xf32>
    %101 = arith.addf %98, %100 : vector<25x16xf32>
    %cst_85 = arith.constant 0.000000e+00 : f32
    %102 = vector.broadcast %cst_85 : f32 to vector<25x16xf32>
    %103 = arith.cmpf oge, %101, %102 : vector<25x16xf32>
    %cst_86 = arith.constant 2.000000e-01 : f32
    %104 = vector.broadcast %cst_86 : f32 to vector<25x16xf32>
    %105 = arith.mulf %104, %101 : vector<25x16xf32>
    %106 = arith.select %103, %101, %105 : vector<25x16xi1>, vector<25x16xf32>
    %cst_87 = arith.constant dense<0.000000e+00> : vector<16xf32>
    %107 = vector.multi_reduction <add>, %106, %cst_87 [0] : vector<25x16xf32> to vector<16xf32>
    %108 = vector.shape_cast %107 : vector<16xf32> to vector<1x16xf32>
    %cst_88 = arith.constant 4.000000e-02 : f32
    %109 = vector.broadcast %cst_88 : f32 to vector<1x16xf32>
    %110 = arith.mulf %108, %109 : vector<1x16xf32>
    %111 = vector.broadcast %110 : vector<1x16xf32> to vector<25x16xf32>
    %112 = arith.subf %106, %111 : vector<25x16xf32>
    %113 = arith.mulf %112, %112 : vector<25x16xf32>
    %cst_89 = arith.constant dense<0.000000e+00> : vector<16xf32>
    %114 = vector.multi_reduction <add>, %113, %cst_89 [0] : vector<25x16xf32> to vector<16xf32>
    %115 = vector.shape_cast %114 : vector<16xf32> to vector<1x16xf32>
    %cst_90 = arith.constant 4.000000e-02 : f32
    %116 = vector.broadcast %cst_90 : f32 to vector<1x16xf32>
    %117 = arith.mulf %115, %116 : vector<1x16xf32>
    %cst_91 = arith.constant 9.99999974E-6 : f32
    %118 = vector.broadcast %cst_91 : f32 to vector<1x16xf32>
    %119 = arith.addf %117, %118 : vector<1x16xf32>
    %120 = math.rsqrt %119 : vector<1x16xf32>
    %121 = vector.broadcast %120 : vector<1x16xf32> to vector<25x16xf32>
    %122 = arith.mulf %112, %121 : vector<25x16xf32>
    %c0_92 = arith.constant 0 : index
    %c0_93 = arith.constant 0 : index
    %c0_94 = arith.constant 0 : index
    %123 = vector.load %arg17[%c0_92, %c0_93, %c0_94] : memref<1x25x16xf32, #tpu.memory_space<vmem>>, vector<1x25x16xf32>
    %124 = vector.shape_cast %123 : vector<1x25x16xf32> to vector<25x16xf32>
    %125 = vector.shape_cast %122 : vector<25x16xf32> to vector<1x25x16xf32>
    tpu.vector_store %arg17[%c0_92, %c0_93, %c0_94], %125 {strides = array<i32>} : memref<1x25x16xf32, #tpu.memory_space<vmem>>, vector<1x25x16xf32>,
    %126 = arith.truncf %122 : vector<25x16xf32> to vector<25x16xbf16>
    %c0_95 = arith.constant 0 : index
    %c0_96 = arith.constant 0 : index
    %c0_97 = arith.constant 0 : index
    %127 = vector.load %arg3[%c0_95, %c0_96, %c0_97] : memref<16x9x25xbf16, #tpu.memory_space<vmem>>, vector<1x9x25xbf16>
    %128 = vector.shape_cast %127 : vector<1x9x25xbf16> to vector<9x25xbf16>
    %cst_98 = arith.constant dense<0.000000e+00> : vector<9x16xf32>
    %129 = tpu.matmul %128, %126, %cst_98 {dimension_numbers = #tpu.dot_dimension_numbers<[1], [0], [0], [1], [0, 0, 1, 1], [], []>} : vector<9x25xbf16>, vector<25x16xbf16>, vector<9x16xf32> -> vector<9x16xf32>
    %130 = arith.truncf %129 : vector<9x16xf32> to vector<9x16xbf16>
    %c0_99 = arith.constant 0 : index
    %c0_100 = arith.constant 0 : index
    %131 = vector.load %arg22[%c0_99, %c0_100] : memref<9x256xbf16, #tpu.memory_space<vmem>>, vector<9x16xbf16>
    tpu.vector_store %arg22[%c0_99, %c0_100], %130 {strides = array<i32>} : memref<9x256xbf16, #tpu.memory_space<vmem>>, vector<9x16xbf16>,
    %c1_101 = arith.constant 1 : index
    %c0_102 = arith.constant 0 : index
    %c0_103 = arith.constant 0 : index
    %132 = vector.load %arg3[%c1_101, %c0_102, %c0_103] : memref<16x9x25xbf16, #tpu.memory_space<vmem>>, vector<1x9x25xbf16>
    %133 = vector.shape_cast %132 : vector<1x9x25xbf16> to vector<9x25xbf16>
    %cst_104 = arith.constant dense<0.000000e+00> : vector<9x16xf32>
    %134 = tpu.matmul %133, %126, %cst_104 {dimension_numbers = #tpu.dot_dimension_numbers<[1], [0], [0], [1], [0, 0, 1, 1], [], []>} : vector<9x25xbf16>, vector<25x16xbf16>, vector<9x16xf32> -> vector<9x16xf32>
    %135 = arith.truncf %134 : vector<9x16xf32> to vector<9x16xbf16>
    %c0_105 = arith.constant 0 : index
    %c16_106 = arith.constant 16 : index
    %136 = vector.load %arg22[%c0_105, %c16_106] : memref<9x256xbf16, #tpu.memory_space<vmem>>, vector<9x16xbf16>
    tpu.vector_store %arg22[%c0_105, %c16_106], %135 {strides = array<i32>} : memref<9x256xbf16, #tpu.memory_space<vmem>>, vector<9x16xbf16>,
    %c2_107 = arith.constant 2 : index
    %c0_108 = arith.constant 0 : index
    %c0_109 = arith.constant 0 : index
    %137 = vector.load %arg3[%c2_107, %c0_108, %c0_109] : memref<16x9x25xbf16, #tpu.memory_space<vmem>>, vector<1x9x25xbf16>
    %138 = vector.shape_cast %137 : vector<1x9x25xbf16> to vector<9x25xbf16>
    %cst_110 = arith.constant dense<0.000000e+00> : vector<9x16xf32>
    %139 = tpu.matmul %138, %126, %cst_110 {dimension_numbers = #tpu.dot_dimension_numbers<[1], [0], [0], [1], [0, 0, 1, 1], [], []>} : vector<9x25xbf16>, vector<25x16xbf16>, vector<9x16xf32> -> vector<9x16xf32>
    %140 = arith.truncf %139 : vector<9x16xf32> to vector<9x16xbf16>
    %c0_111 = arith.constant 0 : index
    %c32_112 = arith.constant 32 : index
    %141 = vector.load %arg22[%c0_111, %c32_112] : memref<9x256xbf16, #tpu.memory_space<vmem>>, vector<9x16xbf16>
    tpu.vector_store %arg22[%c0_111, %c32_112], %140 {strides = array<i32>} : memref<9x256xbf16, #tpu.memory_space<vmem>>, vector<9x16xbf16>,
    %c3_113 = arith.constant 3 : index
    %c0_114 = arith.constant 0 : index
    %c0_115 = arith.constant 0 : index
    %142 = vector.load %arg3[%c3_113, %c0_114, %c0_115] : memref<16x9x25xbf16, #tpu.memory_space<vmem>>, vector<1x9x25xbf16>
    %143 = vector.shape_cast %142 : vector<1x9x25xbf16> to vector<9x25xbf16>
    %cst_116 = arith.constant dense<0.000000e+00> : vector<9x16xf32>
    %144 = tpu.matmul %143, %126, %cst_116 {dimension_numbers = #tpu.dot_dimension_numbers<[1], [0], [0], [1], [0, 0, 1, 1], [], []>} : vector<9x25xbf16>, vector<25x16xbf16>, vector<9x16xf32> -> vector<9x16xf32>
    %145 = arith.truncf %144 : vector<9x16xf32> to vector<9x16xbf16>
    %c0_117 = arith.constant 0 : index
    %c48_118 = arith.constant 48 : index
    %146 = vector.load %arg22[%c0_117, %c48_118] : memref<9x256xbf16, #tpu.memory_space<vmem>>, vector<9x16xbf16>
    tpu.vector_store %arg22[%c0_117, %c48_118], %145 {strides = array<i32>} : memref<9x256xbf16, #tpu.memory_space<vmem>>, vector<9x16xbf16>,
    %c4_119 = arith.constant 4 : index
    %c0_120 = arith.constant 0 : index
    %c0_121 = arith.constant 0 : index
    %147 = vector.load %arg3[%c4_119, %c0_120, %c0_121] : memref<16x9x25xbf16, #tpu.memory_space<vmem>>, vector<1x9x25xbf16>
    %148 = vector.shape_cast %147 : vector<1x9x25xbf16> to vector<9x25xbf16>
    %cst_122 = arith.constant dense<0.000000e+00> : vector<9x16xf32>
    %149 = tpu.matmul %148, %126, %cst_122 {dimension_numbers = #tpu.dot_dimension_numbers<[1], [0], [0], [1], [0, 0, 1, 1], [], []>} : vector<9x25xbf16>, vector<25x16xbf16>, vector<9x16xf32> -> vector<9x16xf32>
    %150 = arith.truncf %149 : vector<9x16xf32> to vector<9x16xbf16>
    %c0_123 = arith.constant 0 : index
    %c64_124 = arith.constant 64 : index
    %151 = vector.load %arg22[%c0_123, %c64_124] : memref<9x256xbf16, #tpu.memory_space<vmem>>, vector<9x16xbf16>
    tpu.vector_store %arg22[%c0_123, %c64_124], %150 {strides = array<i32>} : memref<9x256xbf16, #tpu.memory_space<vmem>>, vector<9x16xbf16>,
    %c5_125 = arith.constant 5 : index
    %c0_126 = arith.constant 0 : index
    %c0_127 = arith.constant 0 : index
    %152 = vector.load %arg3[%c5_125, %c0_126, %c0_127] : memref<16x9x25xbf16, #tpu.memory_space<vmem>>, vector<1x9x25xbf16>
    %153 = vector.shape_cast %152 : vector<1x9x25xbf16> to vector<9x25xbf16>
    %cst_128 = arith.constant dense<0.000000e+00> : vector<9x16xf32>
    %154 = tpu.matmul %153, %126, %cst_128 {dimension_numbers = #tpu.dot_dimension_numbers<[1], [0], [0], [1], [0, 0, 1, 1], [], []>} : vector<9x25xbf16>, vector<25x16xbf16>, vector<9x16xf32> -> vector<9x16xf32>
    %155 = arith.truncf %154 : vector<9x16xf32> to vector<9x16xbf16>
    %c0_129 = arith.constant 0 : index
    %c80_130 = arith.constant 80 : index
    %156 = vector.load %arg22[%c0_129, %c80_130] : memref<9x256xbf16, #tpu.memory_space<vmem>>, vector<9x16xbf16>
    tpu.vector_store %arg22[%c0_129, %c80_130], %155 {strides = array<i32>} : memref<9x256xbf16, #tpu.memory_space<vmem>>, vector<9x16xbf16>,
    %c6_131 = arith.constant 6 : index
    %c0_132 = arith.constant 0 : index
    %c0_133 = arith.constant 0 : index
    %157 = vector.load %arg3[%c6_131, %c0_132, %c0_133] : memref<16x9x25xbf16, #tpu.memory_space<vmem>>, vector<1x9x25xbf16>
    %158 = vector.shape_cast %157 : vector<1x9x25xbf16> to vector<9x25xbf16>
    %cst_134 = arith.constant dense<0.000000e+00> : vector<9x16xf32>
    %159 = tpu.matmul %158, %126, %cst_134 {dimension_numbers = #tpu.dot_dimension_numbers<[1], [0], [0], [1], [0, 0, 1, 1], [], []>} : vector<9x25xbf16>, vector<25x16xbf16>, vector<9x16xf32> -> vector<9x16xf32>
    %160 = arith.truncf %159 : vector<9x16xf32> to vector<9x16xbf16>
    %c0_135 = arith.constant 0 : index
    %c96_136 = arith.constant 96 : index
    %161 = vector.load %arg22[%c0_135, %c96_136] : memref<9x256xbf16, #tpu.memory_space<vmem>>, vector<9x16xbf16>
    tpu.vector_store %arg22[%c0_135, %c96_136], %160 {strides = array<i32>} : memref<9x256xbf16, #tpu.memory_space<vmem>>, vector<9x16xbf16>,
    %c7_137 = arith.constant 7 : index
    %c0_138 = arith.constant 0 : index
    %c0_139 = arith.constant 0 : index
    %162 = vector.load %arg3[%c7_137, %c0_138, %c0_139] : memref<16x9x25xbf16, #tpu.memory_space<vmem>>, vector<1x9x25xbf16>
    %163 = vector.shape_cast %162 : vector<1x9x25xbf16> to vector<9x25xbf16>
    %cst_140 = arith.constant dense<0.000000e+00> : vector<9x16xf32>
    %164 = tpu.matmul %163, %126, %cst_140 {dimension_numbers = #tpu.dot_dimension_numbers<[1], [0], [0], [1], [0, 0, 1, 1], [], []>} : vector<9x25xbf16>, vector<25x16xbf16>, vector<9x16xf32> -> vector<9x16xf32>
    %165 = arith.truncf %164 : vector<9x16xf32> to vector<9x16xbf16>
    %c0_141 = arith.constant 0 : index
    %c112_142 = arith.constant 112 : index
    %166 = vector.load %arg22[%c0_141, %c112_142] : memref<9x256xbf16, #tpu.memory_space<vmem>>, vector<9x16xbf16>
    tpu.vector_store %arg22[%c0_141, %c112_142], %165 {strides = array<i32>} : memref<9x256xbf16, #tpu.memory_space<vmem>>, vector<9x16xbf16>,
    %c8_143 = arith.constant 8 : index
    %c0_144 = arith.constant 0 : index
    %c0_145 = arith.constant 0 : index
    %167 = vector.load %arg3[%c8_143, %c0_144, %c0_145] : memref<16x9x25xbf16, #tpu.memory_space<vmem>>, vector<1x9x25xbf16>
    %168 = vector.shape_cast %167 : vector<1x9x25xbf16> to vector<9x25xbf16>
    %cst_146 = arith.constant dense<0.000000e+00> : vector<9x16xf32>
    %169 = tpu.matmul %168, %126, %cst_146 {dimension_numbers = #tpu.dot_dimension_numbers<[1], [0], [0], [1], [0, 0, 1, 1], [], []>} : vector<9x25xbf16>, vector<25x16xbf16>, vector<9x16xf32> -> vector<9x16xf32>
    %170 = arith.truncf %169 : vector<9x16xf32> to vector<9x16xbf16>
    %c0_147 = arith.constant 0 : index
    %c128 = arith.constant 128 : index
    %171 = vector.load %arg22[%c0_147, %c128] : memref<9x256xbf16, #tpu.memory_space<vmem>>, vector<9x16xbf16>
    tpu.vector_store %arg22[%c0_147, %c128], %170 {strides = array<i32>} : memref<9x256xbf16, #tpu.memory_space<vmem>>, vector<9x16xbf16>,
    %c9_148 = arith.constant 9 : index
    %c0_149 = arith.constant 0 : index
    %c0_150 = arith.constant 0 : index
    %172 = vector.load %arg3[%c9_148, %c0_149, %c0_150] : memref<16x9x25xbf16, #tpu.memory_space<vmem>>, vector<1x9x25xbf16>
    %173 = vector.shape_cast %172 : vector<1x9x25xbf16> to vector<9x25xbf16>
    %cst_151 = arith.constant dense<0.000000e+00> : vector<9x16xf32>
    %174 = tpu.matmul %173, %126, %cst_151 {dimension_numbers = #tpu.dot_dimension_numbers<[1], [0], [0], [1], [0, 0, 1, 1], [], []>} : vector<9x25xbf16>, vector<25x16xbf16>, vector<9x16xf32> -> vector<9x16xf32>
    %175 = arith.truncf %174 : vector<9x16xf32> to vector<9x16xbf16>
    %c0_152 = arith.constant 0 : index
    %c144 = arith.constant 144 : index
    %176 = vector.load %arg22[%c0_152, %c144] : memref<9x256xbf16, #tpu.memory_space<vmem>>, vector<9x16xbf16>
    tpu.vector_store %arg22[%c0_152, %c144], %175 {strides = array<i32>} : memref<9x256xbf16, #tpu.memory_space<vmem>>, vector<9x16xbf16>,
    %c10_153 = arith.constant 10 : index
    %c0_154 = arith.constant 0 : index
    %c0_155 = arith.constant 0 : index
    %177 = vector.load %arg3[%c10_153, %c0_154, %c0_155] : memref<16x9x25xbf16, #tpu.memory_space<vmem>>, vector<1x9x25xbf16>
    %178 = vector.shape_cast %177 : vector<1x9x25xbf16> to vector<9x25xbf16>
    %cst_156 = arith.constant dense<0.000000e+00> : vector<9x16xf32>
    %179 = tpu.matmul %178, %126, %cst_156 {dimension_numbers = #tpu.dot_dimension_numbers<[1], [0], [0], [1], [0, 0, 1, 1], [], []>} : vector<9x25xbf16>, vector<25x16xbf16>, vector<9x16xf32> -> vector<9x16xf32>
    %180 = arith.truncf %179 : vector<9x16xf32> to vector<9x16xbf16>
    %c0_157 = arith.constant 0 : index
    %c160 = arith.constant 160 : index
    %181 = vector.load %arg22[%c0_157, %c160] : memref<9x256xbf16, #tpu.memory_space<vmem>>, vector<9x16xbf16>
    tpu.vector_store %arg22[%c0_157, %c160], %180 {strides = array<i32>} : memref<9x256xbf16, #tpu.memory_space<vmem>>, vector<9x16xbf16>,
    %c11_158 = arith.constant 11 : index
    %c0_159 = arith.constant 0 : index
    %c0_160 = arith.constant 0 : index
    %182 = vector.load %arg3[%c11_158, %c0_159, %c0_160] : memref<16x9x25xbf16, #tpu.memory_space<vmem>>, vector<1x9x25xbf16>
    %183 = vector.shape_cast %182 : vector<1x9x25xbf16> to vector<9x25xbf16>
    %cst_161 = arith.constant dense<0.000000e+00> : vector<9x16xf32>
    %184 = tpu.matmul %183, %126, %cst_161 {dimension_numbers = #tpu.dot_dimension_numbers<[1], [0], [0], [1], [0, 0, 1, 1], [], []>} : vector<9x25xbf16>, vector<25x16xbf16>, vector<9x16xf32> -> vector<9x16xf32>
    %185 = arith.truncf %184 : vector<9x16xf32> to vector<9x16xbf16>
    %c0_162 = arith.constant 0 : index
    %c176 = arith.constant 176 : index
    %186 = vector.load %arg22[%c0_162, %c176] : memref<9x256xbf16, #tpu.memory_space<vmem>>, vector<9x16xbf16>
    tpu.vector_store %arg22[%c0_162, %c176], %185 {strides = array<i32>} : memref<9x256xbf16, #tpu.memory_space<vmem>>, vector<9x16xbf16>,
    %c12_163 = arith.constant 12 : index
    %c0_164 = arith.constant 0 : index
    %c0_165 = arith.constant 0 : index
    %187 = vector.load %arg3[%c12_163, %c0_164, %c0_165] : memref<16x9x25xbf16, #tpu.memory_space<vmem>>, vector<1x9x25xbf16>
    %188 = vector.shape_cast %187 : vector<1x9x25xbf16> to vector<9x25xbf16>
    %cst_166 = arith.constant dense<0.000000e+00> : vector<9x16xf32>
    %189 = tpu.matmul %188, %126, %cst_166 {dimension_numbers = #tpu.dot_dimension_numbers<[1], [0], [0], [1], [0, 0, 1, 1], [], []>} : vector<9x25xbf16>, vector<25x16xbf16>, vector<9x16xf32> -> vector<9x16xf32>
    %190 = arith.truncf %189 : vector<9x16xf32> to vector<9x16xbf16>
    %c0_167 = arith.constant 0 : index
    %c192 = arith.constant 192 : index
    %191 = vector.load %arg22[%c0_167, %c192] : memref<9x256xbf16, #tpu.memory_space<vmem>>, vector<9x16xbf16>
    tpu.vector_store %arg22[%c0_167, %c192], %190 {strides = array<i32>} : memref<9x256xbf16, #tpu.memory_space<vmem>>, vector<9x16xbf16>,
    %c13_168 = arith.constant 13 : index
    %c0_169 = arith.constant 0 : index
    %c0_170 = arith.constant 0 : index
    %192 = vector.load %arg3[%c13_168, %c0_169, %c0_170] : memref<16x9x25xbf16, #tpu.memory_space<vmem>>, vector<1x9x25xbf16>
    %193 = vector.shape_cast %192 : vector<1x9x25xbf16> to vector<9x25xbf16>
    %cst_171 = arith.constant dense<0.000000e+00> : vector<9x16xf32>
    %194 = tpu.matmul %193, %126, %cst_171 {dimension_numbers = #tpu.dot_dimension_numbers<[1], [0], [0], [1], [0, 0, 1, 1], [], []>} : vector<9x25xbf16>, vector<25x16xbf16>, vector<9x16xf32> -> vector<9x16xf32>
    %195 = arith.truncf %194 : vector<9x16xf32> to vector<9x16xbf16>
    %c0_172 = arith.constant 0 : index
    %c208 = arith.constant 208 : index
    %196 = vector.load %arg22[%c0_172, %c208] : memref<9x256xbf16, #tpu.memory_space<vmem>>, vector<9x16xbf16>
    tpu.vector_store %arg22[%c0_172, %c208], %195 {strides = array<i32>} : memref<9x256xbf16, #tpu.memory_space<vmem>>, vector<9x16xbf16>,
    %c14_173 = arith.constant 14 : index
    %c0_174 = arith.constant 0 : index
    %c0_175 = arith.constant 0 : index
    %197 = vector.load %arg3[%c14_173, %c0_174, %c0_175] : memref<16x9x25xbf16, #tpu.memory_space<vmem>>, vector<1x9x25xbf16>
    %198 = vector.shape_cast %197 : vector<1x9x25xbf16> to vector<9x25xbf16>
    %cst_176 = arith.constant dense<0.000000e+00> : vector<9x16xf32>
    %199 = tpu.matmul %198, %126, %cst_176 {dimension_numbers = #tpu.dot_dimension_numbers<[1], [0], [0], [1], [0, 0, 1, 1], [], []>} : vector<9x25xbf16>, vector<25x16xbf16>, vector<9x16xf32> -> vector<9x16xf32>
    %200 = arith.truncf %199 : vector<9x16xf32> to vector<9x16xbf16>
    %c0_177 = arith.constant 0 : index
    %c224 = arith.constant 224 : index
    %201 = vector.load %arg22[%c0_177, %c224] : memref<9x256xbf16, #tpu.memory_space<vmem>>, vector<9x16xbf16>
    tpu.vector_store %arg22[%c0_177, %c224], %200 {strides = array<i32>} : memref<9x256xbf16, #tpu.memory_space<vmem>>, vector<9x16xbf16>,
    %c15_178 = arith.constant 15 : index
    %c0_179 = arith.constant 0 : index
    %c0_180 = arith.constant 0 : index
    %202 = vector.load %arg3[%c15_178, %c0_179, %c0_180] : memref<16x9x25xbf16, #tpu.memory_space<vmem>>, vector<1x9x25xbf16>
    %203 = vector.shape_cast %202 : vector<1x9x25xbf16> to vector<9x25xbf16>
    %cst_181 = arith.constant dense<0.000000e+00> : vector<9x16xf32>
    %204 = tpu.matmul %203, %126, %cst_181 {dimension_numbers = #tpu.dot_dimension_numbers<[1], [0], [0], [1], [0, 0, 1, 1], [], []>} : vector<9x25xbf16>, vector<25x16xbf16>, vector<9x16xf32> -> vector<9x16xf32>
    %205 = arith.truncf %204 : vector<9x16xf32> to vector<9x16xbf16>
    %c0_182 = arith.constant 0 : index
    %c240 = arith.constant 240 : index
    %206 = vector.load %arg22[%c0_182, %c240] : memref<9x256xbf16, #tpu.memory_space<vmem>>, vector<9x16xbf16>
    tpu.vector_store %arg22[%c0_182, %c240], %205 {strides = array<i32>} : memref<9x256xbf16, #tpu.memory_space<vmem>>, vector<9x16xbf16>,
    %c0_183 = arith.constant 0 : index
    %c0_184 = arith.constant 0 : index
    %207 = vector.load %arg22[%c0_183, %c0_184] : memref<9x256xbf16, #tpu.memory_space<vmem>>, vector<9x256xbf16>
    %c0_185 = arith.constant 0 : index
    %c0_186 = arith.constant 0 : index
    %208 = vector.load %arg8[%c0_185, %c0_186] : memref<256x32xbf16, #tpu.memory_space<vmem>>, vector<256x32xbf16>
    %cst_187 = arith.constant dense<0.000000e+00> : vector<9x32xf32>
    %209 = tpu.matmul %207, %208, %cst_187 {dimension_numbers = #tpu.dot_dimension_numbers<[1], [0], [0], [1], [0, 0, 1, 1], [], []>} : vector<9x256xbf16>, vector<256x32xbf16>, vector<9x32xf32> -> vector<9x32xf32>
    %c0_188 = arith.constant 0 : index
    %c0_189 = arith.constant 0 : index
    %210 = vector.load %arg13[%c0_188, %c0_189] : memref<1x32xf32, #tpu.memory_space<vmem>>, vector<1x32xf32>
    %211 = vector.broadcast %210 : vector<1x32xf32> to vector<9x32xf32>
    %212 = arith.addf %209, %211 : vector<9x32xf32>
    %cst_190 = arith.constant 0.000000e+00 : f32
    %213 = vector.broadcast %cst_190 : f32 to vector<9x32xf32>
    %214 = arith.cmpf oge, %212, %213 : vector<9x32xf32>
    %cst_191 = arith.constant 2.000000e-01 : f32
    %215 = vector.broadcast %cst_191 : f32 to vector<9x32xf32>
    %216 = arith.mulf %215, %212 : vector<9x32xf32>
    %217 = arith.select %214, %212, %216 : vector<9x32xi1>, vector<9x32xf32>
    %cst_192 = arith.constant dense<0.000000e+00> : vector<32xf32>
    %218 = vector.multi_reduction <add>, %217, %cst_192 [0] : vector<9x32xf32> to vector<32xf32>
    %219 = vector.shape_cast %218 : vector<32xf32> to vector<1x32xf32>
    %cst_193 = arith.constant 0.111111112 : f32
    %220 = vector.broadcast %cst_193 : f32 to vector<1x32xf32>
    %221 = arith.mulf %219, %220 : vector<1x32xf32>
    %222 = vector.broadcast %221 : vector<1x32xf32> to vector<9x32xf32>
    %223 = arith.subf %217, %222 : vector<9x32xf32>
    %224 = arith.mulf %223, %223 : vector<9x32xf32>
    %cst_194 = arith.constant dense<0.000000e+00> : vector<32xf32>
    %225 = vector.multi_reduction <add>, %224, %cst_194 [0] : vector<9x32xf32> to vector<32xf32>
    %226 = vector.shape_cast %225 : vector<32xf32> to vector<1x32xf32>
    %cst_195 = arith.constant 0.111111112 : f32
    %227 = vector.broadcast %cst_195 : f32 to vector<1x32xf32>
    %228 = arith.mulf %226, %227 : vector<1x32xf32>
    %cst_196 = arith.constant 9.99999974E-6 : f32
    %229 = vector.broadcast %cst_196 : f32 to vector<1x32xf32>
    %230 = arith.addf %228, %229 : vector<1x32xf32>
    %231 = math.rsqrt %230 : vector<1x32xf32>
    %232 = vector.broadcast %231 : vector<1x32xf32> to vector<9x32xf32>
    %233 = arith.mulf %223, %232 : vector<9x32xf32>
    %c0_197 = arith.constant 0 : index
    %c0_198 = arith.constant 0 : index
    %c0_199 = arith.constant 0 : index
    %234 = vector.load %arg18[%c0_197, %c0_198, %c0_199] : memref<1x9x32xf32, #tpu.memory_space<vmem>>, vector<1x9x32xf32>
    %235 = vector.shape_cast %234 : vector<1x9x32xf32> to vector<9x32xf32>
    %236 = vector.shape_cast %233 : vector<9x32xf32> to vector<1x9x32xf32>
    tpu.vector_store %arg18[%c0_197, %c0_198, %c0_199], %236 {strides = array<i32>} : memref<1x9x32xf32, #tpu.memory_space<vmem>>, vector<1x9x32xf32>,
    %237 = arith.truncf %233 : vector<9x32xf32> to vector<9x32xbf16>
    %c0_200 = arith.constant 0 : index
    %c0_201 = arith.constant 0 : index
    %c0_202 = arith.constant 0 : index
    %238 = vector.load %arg4[%c0_200, %c0_201, %c0_202] : memref<16x4x9xbf16, #tpu.memory_space<vmem>>, vector<1x4x9xbf16>
    %239 = vector.shape_cast %238 : vector<1x4x9xbf16> to vector<4x9xbf16>
    %cst_203 = arith.constant dense<0.000000e+00> : vector<4x32xf32>
    %240 = tpu.matmul %239, %237, %cst_203 {dimension_numbers = #tpu.dot_dimension_numbers<[1], [0], [0], [1], [0, 0, 1, 1], [], []>} : vector<4x9xbf16>, vector<9x32xbf16>, vector<4x32xf32> -> vector<4x32xf32>
    %241 = arith.truncf %240 : vector<4x32xf32> to vector<4x32xbf16>
    %c0_204 = arith.constant 0 : index
    %c0_205 = arith.constant 0 : index
    %242 = vector.load %arg23[%c0_204, %c0_205] : memref<4x512xbf16, #tpu.memory_space<vmem>>, vector<4x32xbf16>
    tpu.vector_store %arg23[%c0_204, %c0_205], %241 {strides = array<i32>} : memref<4x512xbf16, #tpu.memory_space<vmem>>, vector<4x32xbf16>,
    %c1_206 = arith.constant 1 : index
    %c0_207 = arith.constant 0 : index
    %c0_208 = arith.constant 0 : index
    %243 = vector.load %arg4[%c1_206, %c0_207, %c0_208] : memref<16x4x9xbf16, #tpu.memory_space<vmem>>, vector<1x4x9xbf16>
    %244 = vector.shape_cast %243 : vector<1x4x9xbf16> to vector<4x9xbf16>
    %cst_209 = arith.constant dense<0.000000e+00> : vector<4x32xf32>
    %245 = tpu.matmul %244, %237, %cst_209 {dimension_numbers = #tpu.dot_dimension_numbers<[1], [0], [0], [1], [0, 0, 1, 1], [], []>} : vector<4x9xbf16>, vector<9x32xbf16>, vector<4x32xf32> -> vector<4x32xf32>
    %246 = arith.truncf %245 : vector<4x32xf32> to vector<4x32xbf16>
    %c0_210 = arith.constant 0 : index
    %c32_211 = arith.constant 32 : index
    %247 = vector.load %arg23[%c0_210, %c32_211] : memref<4x512xbf16, #tpu.memory_space<vmem>>, vector<4x32xbf16>
    tpu.vector_store %arg23[%c0_210, %c32_211], %246 {strides = array<i32>} : memref<4x512xbf16, #tpu.memory_space<vmem>>, vector<4x32xbf16>,
    %c2_212 = arith.constant 2 : index
    %c0_213 = arith.constant 0 : index
    %c0_214 = arith.constant 0 : index
    %248 = vector.load %arg4[%c2_212, %c0_213, %c0_214] : memref<16x4x9xbf16, #tpu.memory_space<vmem>>, vector<1x4x9xbf16>
    %249 = vector.shape_cast %248 : vector<1x4x9xbf16> to vector<4x9xbf16>
    %cst_215 = arith.constant dense<0.000000e+00> : vector<4x32xf32>
    %250 = tpu.matmul %249, %237, %cst_215 {dimension_numbers = #tpu.dot_dimension_numbers<[1], [0], [0], [1], [0, 0, 1, 1], [], []>} : vector<4x9xbf16>, vector<9x32xbf16>, vector<4x32xf32> -> vector<4x32xf32>
    %251 = arith.truncf %250 : vector<4x32xf32> to vector<4x32xbf16>
    %c0_216 = arith.constant 0 : index
    %c64_217 = arith.constant 64 : index
    %252 = vector.load %arg23[%c0_216, %c64_217] : memref<4x512xbf16, #tpu.memory_space<vmem>>, vector<4x32xbf16>
    tpu.vector_store %arg23[%c0_216, %c64_217], %251 {strides = array<i32>} : memref<4x512xbf16, #tpu.memory_space<vmem>>, vector<4x32xbf16>,
    %c3_218 = arith.constant 3 : index
    %c0_219 = arith.constant 0 : index
    %c0_220 = arith.constant 0 : index
    %253 = vector.load %arg4[%c3_218, %c0_219, %c0_220] : memref<16x4x9xbf16, #tpu.memory_space<vmem>>, vector<1x4x9xbf16>
    %254 = vector.shape_cast %253 : vector<1x4x9xbf16> to vector<4x9xbf16>
    %cst_221 = arith.constant dense<0.000000e+00> : vector<4x32xf32>
    %255 = tpu.matmul %254, %237, %cst_221 {dimension_numbers = #tpu.dot_dimension_numbers<[1], [0], [0], [1], [0, 0, 1, 1], [], []>} : vector<4x9xbf16>, vector<9x32xbf16>, vector<4x32xf32> -> vector<4x32xf32>
    %256 = arith.truncf %255 : vector<4x32xf32> to vector<4x32xbf16>
    %c0_222 = arith.constant 0 : index
    %c96_223 = arith.constant 96 : index
    %257 = vector.load %arg23[%c0_222, %c96_223] : memref<4x512xbf16, #tpu.memory_space<vmem>>, vector<4x32xbf16>
    tpu.vector_store %arg23[%c0_222, %c96_223], %256 {strides = array<i32>} : memref<4x512xbf16, #tpu.memory_space<vmem>>, vector<4x32xbf16>,
    %c4_224 = arith.constant 4 : index
    %c0_225 = arith.constant 0 : index
    %c0_226 = arith.constant 0 : index
    %258 = vector.load %arg4[%c4_224, %c0_225, %c0_226] : memref<16x4x9xbf16, #tpu.memory_space<vmem>>, vector<1x4x9xbf16>
    %259 = vector.shape_cast %258 : vector<1x4x9xbf16> to vector<4x9xbf16>
    %cst_227 = arith.constant dense<0.000000e+00> : vector<4x32xf32>
    %260 = tpu.matmul %259, %237, %cst_227 {dimension_numbers = #tpu.dot_dimension_numbers<[1], [0], [0], [1], [0, 0, 1, 1], [], []>} : vector<4x9xbf16>, vector<9x32xbf16>, vector<4x32xf32> -> vector<4x32xf32>
    %261 = arith.truncf %260 : vector<4x32xf32> to vector<4x32xbf16>
    %c0_228 = arith.constant 0 : index
    %c128_229 = arith.constant 128 : index
    %262 = vector.load %arg23[%c0_228, %c128_229] : memref<4x512xbf16, #tpu.memory_space<vmem>>, vector<4x32xbf16>
    tpu.vector_store %arg23[%c0_228, %c128_229], %261 {strides = array<i32>} : memref<4x512xbf16, #tpu.memory_space<vmem>>, vector<4x32xbf16>,
    %c5_230 = arith.constant 5 : index
    %c0_231 = arith.constant 0 : index
    %c0_232 = arith.constant 0 : index
    %263 = vector.load %arg4[%c5_230, %c0_231, %c0_232] : memref<16x4x9xbf16, #tpu.memory_space<vmem>>, vector<1x4x9xbf16>
    %264 = vector.shape_cast %263 : vector<1x4x9xbf16> to vector<4x9xbf16>
    %cst_233 = arith.constant dense<0.000000e+00> : vector<4x32xf32>
    %265 = tpu.matmul %264, %237, %cst_233 {dimension_numbers = #tpu.dot_dimension_numbers<[1], [0], [0], [1], [0, 0, 1, 1], [], []>} : vector<4x9xbf16>, vector<9x32xbf16>, vector<4x32xf32> -> vector<4x32xf32>
    %266 = arith.truncf %265 : vector<4x32xf32> to vector<4x32xbf16>
    %c0_234 = arith.constant 0 : index
    %c160_235 = arith.constant 160 : index
    %267 = vector.load %arg23[%c0_234, %c160_235] : memref<4x512xbf16, #tpu.memory_space<vmem>>, vector<4x32xbf16>
    tpu.vector_store %arg23[%c0_234, %c160_235], %266 {strides = array<i32>} : memref<4x512xbf16, #tpu.memory_space<vmem>>, vector<4x32xbf16>,
    %c6_236 = arith.constant 6 : index
    %c0_237 = arith.constant 0 : index
    %c0_238 = arith.constant 0 : index
    %268 = vector.load %arg4[%c6_236, %c0_237, %c0_238] : memref<16x4x9xbf16, #tpu.memory_space<vmem>>, vector<1x4x9xbf16>
    %269 = vector.shape_cast %268 : vector<1x4x9xbf16> to vector<4x9xbf16>
    %cst_239 = arith.constant dense<0.000000e+00> : vector<4x32xf32>
    %270 = tpu.matmul %269, %237, %cst_239 {dimension_numbers = #tpu.dot_dimension_numbers<[1], [0], [0], [1], [0, 0, 1, 1], [], []>} : vector<4x9xbf16>, vector<9x32xbf16>, vector<4x32xf32> -> vector<4x32xf32>
    %271 = arith.truncf %270 : vector<4x32xf32> to vector<4x32xbf16>
    %c0_240 = arith.constant 0 : index
    %c192_241 = arith.constant 192 : index
    %272 = vector.load %arg23[%c0_240, %c192_241] : memref<4x512xbf16, #tpu.memory_space<vmem>>, vector<4x32xbf16>
    tpu.vector_store %arg23[%c0_240, %c192_241], %271 {strides = array<i32>} : memref<4x512xbf16, #tpu.memory_space<vmem>>, vector<4x32xbf16>,
    %c7_242 = arith.constant 7 : index
    %c0_243 = arith.constant 0 : index
    %c0_244 = arith.constant 0 : index
    %273 = vector.load %arg4[%c7_242, %c0_243, %c0_244] : memref<16x4x9xbf16, #tpu.memory_space<vmem>>, vector<1x4x9xbf16>
    %274 = vector.shape_cast %273 : vector<1x4x9xbf16> to vector<4x9xbf16>
    %cst_245 = arith.constant dense<0.000000e+00> : vector<4x32xf32>
    %275 = tpu.matmul %274, %237, %cst_245 {dimension_numbers = #tpu.dot_dimension_numbers<[1], [0], [0], [1], [0, 0, 1, 1], [], []>} : vector<4x9xbf16>, vector<9x32xbf16>, vector<4x32xf32> -> vector<4x32xf32>
    %276 = arith.truncf %275 : vector<4x32xf32> to vector<4x32xbf16>
    %c0_246 = arith.constant 0 : index
    %c224_247 = arith.constant 224 : index
    %277 = vector.load %arg23[%c0_246, %c224_247] : memref<4x512xbf16, #tpu.memory_space<vmem>>, vector<4x32xbf16>
    tpu.vector_store %arg23[%c0_246, %c224_247], %276 {strides = array<i32>} : memref<4x512xbf16, #tpu.memory_space<vmem>>, vector<4x32xbf16>,
    %c8_248 = arith.constant 8 : index
    %c0_249 = arith.constant 0 : index
    %c0_250 = arith.constant 0 : index
    %278 = vector.load %arg4[%c8_248, %c0_249, %c0_250] : memref<16x4x9xbf16, #tpu.memory_space<vmem>>, vector<1x4x9xbf16>
    %279 = vector.shape_cast %278 : vector<1x4x9xbf16> to vector<4x9xbf16>
    %cst_251 = arith.constant dense<0.000000e+00> : vector<4x32xf32>
    %280 = tpu.matmul %279, %237, %cst_251 {dimension_numbers = #tpu.dot_dimension_numbers<[1], [0], [0], [1], [0, 0, 1, 1], [], []>} : vector<4x9xbf16>, vector<9x32xbf16>, vector<4x32xf32> -> vector<4x32xf32>
    %281 = arith.truncf %280 : vector<4x32xf32> to vector<4x32xbf16>
    %c0_252 = arith.constant 0 : index
    %c256 = arith.constant 256 : index
    %282 = vector.load %arg23[%c0_252, %c256] : memref<4x512xbf16, #tpu.memory_space<vmem>>, vector<4x32xbf16>
    tpu.vector_store %arg23[%c0_252, %c256], %281 {strides = array<i32>} : memref<4x512xbf16, #tpu.memory_space<vmem>>, vector<4x32xbf16>,
    %c9_253 = arith.constant 9 : index
    %c0_254 = arith.constant 0 : index
    %c0_255 = arith.constant 0 : index
    %283 = vector.load %arg4[%c9_253, %c0_254, %c0_255] : memref<16x4x9xbf16, #tpu.memory_space<vmem>>, vector<1x4x9xbf16>
    %284 = vector.shape_cast %283 : vector<1x4x9xbf16> to vector<4x9xbf16>
    %cst_256 = arith.constant dense<0.000000e+00> : vector<4x32xf32>
    %285 = tpu.matmul %284, %237, %cst_256 {dimension_numbers = #tpu.dot_dimension_numbers<[1], [0], [0], [1], [0, 0, 1, 1], [], []>} : vector<4x9xbf16>, vector<9x32xbf16>, vector<4x32xf32> -> vector<4x32xf32>
    %286 = arith.truncf %285 : vector<4x32xf32> to vector<4x32xbf16>
    %c0_257 = arith.constant 0 : index
    %c288 = arith.constant 288 : index
    %287 = vector.load %arg23[%c0_257, %c288] : memref<4x512xbf16, #tpu.memory_space<vmem>>, vector<4x32xbf16>
    tpu.vector_store %arg23[%c0_257, %c288], %286 {strides = array<i32>} : memref<4x512xbf16, #tpu.memory_space<vmem>>, vector<4x32xbf16>,
    %c10_258 = arith.constant 10 : index
    %c0_259 = arith.constant 0 : index
    %c0_260 = arith.constant 0 : index
    %288 = vector.load %arg4[%c10_258, %c0_259, %c0_260] : memref<16x4x9xbf16, #tpu.memory_space<vmem>>, vector<1x4x9xbf16>
    %289 = vector.shape_cast %288 : vector<1x4x9xbf16> to vector<4x9xbf16>
    %cst_261 = arith.constant dense<0.000000e+00> : vector<4x32xf32>
    %290 = tpu.matmul %289, %237, %cst_261 {dimension_numbers = #tpu.dot_dimension_numbers<[1], [0], [0], [1], [0, 0, 1, 1], [], []>} : vector<4x9xbf16>, vector<9x32xbf16>, vector<4x32xf32> -> vector<4x32xf32>
    %291 = arith.truncf %290 : vector<4x32xf32> to vector<4x32xbf16>
    %c0_262 = arith.constant 0 : index
    %c320 = arith.constant 320 : index
    %292 = vector.load %arg23[%c0_262, %c320] : memref<4x512xbf16, #tpu.memory_space<vmem>>, vector<4x32xbf16>
    tpu.vector_store %arg23[%c0_262, %c320], %291 {strides = array<i32>} : memref<4x512xbf16, #tpu.memory_space<vmem>>, vector<4x32xbf16>,
    %c11_263 = arith.constant 11 : index
    %c0_264 = arith.constant 0 : index
    %c0_265 = arith.constant 0 : index
    %293 = vector.load %arg4[%c11_263, %c0_264, %c0_265] : memref<16x4x9xbf16, #tpu.memory_space<vmem>>, vector<1x4x9xbf16>
    %294 = vector.shape_cast %293 : vector<1x4x9xbf16> to vector<4x9xbf16>
    %cst_266 = arith.constant dense<0.000000e+00> : vector<4x32xf32>
    %295 = tpu.matmul %294, %237, %cst_266 {dimension_numbers = #tpu.dot_dimension_numbers<[1], [0], [0], [1], [0, 0, 1, 1], [], []>} : vector<4x9xbf16>, vector<9x32xbf16>, vector<4x32xf32> -> vector<4x32xf32>
    %296 = arith.truncf %295 : vector<4x32xf32> to vector<4x32xbf16>
    %c0_267 = arith.constant 0 : index
    %c352 = arith.constant 352 : index
    %297 = vector.load %arg23[%c0_267, %c352] : memref<4x512xbf16, #tpu.memory_space<vmem>>, vector<4x32xbf16>
    tpu.vector_store %arg23[%c0_267, %c352], %296 {strides = array<i32>} : memref<4x512xbf16, #tpu.memory_space<vmem>>, vector<4x32xbf16>,
    %c12_268 = arith.constant 12 : index
    %c0_269 = arith.constant 0 : index
    %c0_270 = arith.constant 0 : index
    %298 = vector.load %arg4[%c12_268, %c0_269, %c0_270] : memref<16x4x9xbf16, #tpu.memory_space<vmem>>, vector<1x4x9xbf16>
    %299 = vector.shape_cast %298 : vector<1x4x9xbf16> to vector<4x9xbf16>
    %cst_271 = arith.constant dense<0.000000e+00> : vector<4x32xf32>
    %300 = tpu.matmul %299, %237, %cst_271 {dimension_numbers = #tpu.dot_dimension_numbers<[1], [0], [0], [1], [0, 0, 1, 1], [], []>} : vector<4x9xbf16>, vector<9x32xbf16>, vector<4x32xf32> -> vector<4x32xf32>
    %301 = arith.truncf %300 : vector<4x32xf32> to vector<4x32xbf16>
    %c0_272 = arith.constant 0 : index
    %c384 = arith.constant 384 : index
    %302 = vector.load %arg23[%c0_272, %c384] : memref<4x512xbf16, #tpu.memory_space<vmem>>, vector<4x32xbf16>
    tpu.vector_store %arg23[%c0_272, %c384], %301 {strides = array<i32>} : memref<4x512xbf16, #tpu.memory_space<vmem>>, vector<4x32xbf16>,
    %c13_273 = arith.constant 13 : index
    %c0_274 = arith.constant 0 : index
    %c0_275 = arith.constant 0 : index
    %303 = vector.load %arg4[%c13_273, %c0_274, %c0_275] : memref<16x4x9xbf16, #tpu.memory_space<vmem>>, vector<1x4x9xbf16>
    %304 = vector.shape_cast %303 : vector<1x4x9xbf16> to vector<4x9xbf16>
    %cst_276 = arith.constant dense<0.000000e+00> : vector<4x32xf32>
    %305 = tpu.matmul %304, %237, %cst_276 {dimension_numbers = #tpu.dot_dimension_numbers<[1], [0], [0], [1], [0, 0, 1, 1], [], []>} : vector<4x9xbf16>, vector<9x32xbf16>, vector<4x32xf32> -> vector<4x32xf32>
    %306 = arith.truncf %305 : vector<4x32xf32> to vector<4x32xbf16>
    %c0_277 = arith.constant 0 : index
    %c416 = arith.constant 416 : index
    %307 = vector.load %arg23[%c0_277, %c416] : memref<4x512xbf16, #tpu.memory_space<vmem>>, vector<4x32xbf16>
    tpu.vector_store %arg23[%c0_277, %c416], %306 {strides = array<i32>} : memref<4x512xbf16, #tpu.memory_space<vmem>>, vector<4x32xbf16>,
    %c14_278 = arith.constant 14 : index
    %c0_279 = arith.constant 0 : index
    %c0_280 = arith.constant 0 : index
    %308 = vector.load %arg4[%c14_278, %c0_279, %c0_280] : memref<16x4x9xbf16, #tpu.memory_space<vmem>>, vector<1x4x9xbf16>
    %309 = vector.shape_cast %308 : vector<1x4x9xbf16> to vector<4x9xbf16>
    %cst_281 = arith.constant dense<0.000000e+00> : vector<4x32xf32>
    %310 = tpu.matmul %309, %237, %cst_281 {dimension_numbers = #tpu.dot_dimension_numbers<[1], [0], [0], [1], [0, 0, 1, 1], [], []>} : vector<4x9xbf16>, vector<9x32xbf16>, vector<4x32xf32> -> vector<4x32xf32>
    %311 = arith.truncf %310 : vector<4x32xf32> to vector<4x32xbf16>
    %c0_282 = arith.constant 0 : index
    %c448 = arith.constant 448 : index
    %312 = vector.load %arg23[%c0_282, %c448] : memref<4x512xbf16, #tpu.memory_space<vmem>>, vector<4x32xbf16>
    tpu.vector_store %arg23[%c0_282, %c448], %311 {strides = array<i32>} : memref<4x512xbf16, #tpu.memory_space<vmem>>, vector<4x32xbf16>,
    %c15_283 = arith.constant 15 : index
    %c0_284 = arith.constant 0 : index
    %c0_285 = arith.constant 0 : index
    %313 = vector.load %arg4[%c15_283, %c0_284, %c0_285] : memref<16x4x9xbf16, #tpu.memory_space<vmem>>, vector<1x4x9xbf16>
    %314 = vector.shape_cast %313 : vector<1x4x9xbf16> to vector<4x9xbf16>
    %cst_286 = arith.constant dense<0.000000e+00> : vector<4x32xf32>
    %315 = tpu.matmul %314, %237, %cst_286 {dimension_numbers = #tpu.dot_dimension_numbers<[1], [0], [0], [1], [0, 0, 1, 1], [], []>} : vector<4x9xbf16>, vector<9x32xbf16>, vector<4x32xf32> -> vector<4x32xf32>
    %316 = arith.truncf %315 : vector<4x32xf32> to vector<4x32xbf16>
    %c0_287 = arith.constant 0 : index
    %c480 = arith.constant 480 : index
    %317 = vector.load %arg23[%c0_287, %c480] : memref<4x512xbf16, #tpu.memory_space<vmem>>, vector<4x32xbf16>
    tpu.vector_store %arg23[%c0_287, %c480], %316 {strides = array<i32>} : memref<4x512xbf16, #tpu.memory_space<vmem>>, vector<4x32xbf16>,
    %c0_288 = arith.constant 0 : index
    %c0_289 = arith.constant 0 : index
    %318 = vector.load %arg23[%c0_288, %c0_289] : memref<4x512xbf16, #tpu.memory_space<vmem>>, vector<4x512xbf16>
    %c0_290 = arith.constant 0 : index
    %c0_291 = arith.constant 0 : index
    %319 = vector.load %arg9[%c0_290, %c0_291] : memref<512x64xbf16, #tpu.memory_space<vmem>>, vector<512x64xbf16>
    %cst_292 = arith.constant dense<0.000000e+00> : vector<4x64xf32>
    %320 = tpu.matmul %318, %319, %cst_292 {dimension_numbers = #tpu.dot_dimension_numbers<[1], [0], [0], [1], [0, 0, 1, 1], [], []>} : vector<4x512xbf16>, vector<512x64xbf16>, vector<4x64xf32> -> vector<4x64xf32>
    %c0_293 = arith.constant 0 : index
    %c0_294 = arith.constant 0 : index
    %321 = vector.load %arg14[%c0_293, %c0_294] : memref<1x64xf32, #tpu.memory_space<vmem>>, vector<1x64xf32>
    %322 = vector.broadcast %321 : vector<1x64xf32> to vector<4x64xf32>
    %323 = arith.addf %320, %322 : vector<4x64xf32>
    %cst_295 = arith.constant 0.000000e+00 : f32
    %324 = vector.broadcast %cst_295 : f32 to vector<4x64xf32>
    %325 = arith.cmpf oge, %323, %324 : vector<4x64xf32>
    %cst_296 = arith.constant 2.000000e-01 : f32
    %326 = vector.broadcast %cst_296 : f32 to vector<4x64xf32>
    %327 = arith.mulf %326, %323 : vector<4x64xf32>
    %328 = arith.select %325, %323, %327 : vector<4x64xi1>, vector<4x64xf32>
    %cst_297 = arith.constant dense<0.000000e+00> : vector<64xf32>
    %329 = vector.multi_reduction <add>, %328, %cst_297 [0] : vector<4x64xf32> to vector<64xf32>
    %330 = vector.shape_cast %329 : vector<64xf32> to vector<1x64xf32>
    %cst_298 = arith.constant 2.500000e-01 : f32
    %331 = vector.broadcast %cst_298 : f32 to vector<1x64xf32>
    %332 = arith.mulf %330, %331 : vector<1x64xf32>
    %333 = vector.broadcast %332 : vector<1x64xf32> to vector<4x64xf32>
    %334 = arith.subf %328, %333 : vector<4x64xf32>
    %335 = arith.mulf %334, %334 : vector<4x64xf32>
    %cst_299 = arith.constant dense<0.000000e+00> : vector<64xf32>
    %336 = vector.multi_reduction <add>, %335, %cst_299 [0] : vector<4x64xf32> to vector<64xf32>
    %337 = vector.shape_cast %336 : vector<64xf32> to vector<1x64xf32>
    %cst_300 = arith.constant 2.500000e-01 : f32
    %338 = vector.broadcast %cst_300 : f32 to vector<1x64xf32>
    %339 = arith.mulf %337, %338 : vector<1x64xf32>
    %cst_301 = arith.constant 9.99999974E-6 : f32
    %340 = vector.broadcast %cst_301 : f32 to vector<1x64xf32>
    %341 = arith.addf %339, %340 : vector<1x64xf32>
    %342 = math.rsqrt %341 : vector<1x64xf32>
    %343 = vector.broadcast %342 : vector<1x64xf32> to vector<4x64xf32>
    %344 = arith.mulf %334, %343 : vector<4x64xf32>
    %c0_302 = arith.constant 0 : index
    %c0_303 = arith.constant 0 : index
    %c0_304 = arith.constant 0 : index
    %345 = vector.load %arg19[%c0_302, %c0_303, %c0_304] : memref<1x4x64xf32, #tpu.memory_space<vmem>>, vector<1x4x64xf32>
    %346 = vector.shape_cast %345 : vector<1x4x64xf32> to vector<4x64xf32>
    %347 = vector.shape_cast %344 : vector<4x64xf32> to vector<1x4x64xf32>
    tpu.vector_store %arg19[%c0_302, %c0_303, %c0_304], %347 {strides = array<i32>} : memref<1x4x64xf32, #tpu.memory_space<vmem>>, vector<1x4x64xf32>,
    %348 = arith.truncf %344 : vector<4x64xf32> to vector<4x64xbf16>
    %c0_305 = arith.constant 0 : index
    %c0_306 = arith.constant 0 : index
    %c0_307 = arith.constant 0 : index
    %349 = vector.load %arg5[%c0_305, %c0_306, %c0_307] : memref<16x9x4xbf16, #tpu.memory_space<vmem>>, vector<1x9x4xbf16>
    %350 = vector.shape_cast %349 : vector<1x9x4xbf16> to vector<9x4xbf16>
    %cst_308 = arith.constant dense<0.000000e+00> : vector<9x64xf32>
    %351 = tpu.matmul %350, %348, %cst_308 {dimension_numbers = #tpu.dot_dimension_numbers<[1], [0], [0], [1], [0, 0, 1, 1], [], []>} : vector<9x4xbf16>, vector<4x64xbf16>, vector<9x64xf32> -> vector<9x64xf32>
    %352 = arith.truncf %351 : vector<9x64xf32> to vector<9x64xbf16>
    %c0_309 = arith.constant 0 : index
    %c0_310 = arith.constant 0 : index
    %353 = vector.load %arg24[%c0_309, %c0_310] : memref<9x1024xbf16, #tpu.memory_space<vmem>>, vector<9x64xbf16>
    tpu.vector_store %arg24[%c0_309, %c0_310], %352 {strides = array<i32>} : memref<9x1024xbf16, #tpu.memory_space<vmem>>, vector<9x64xbf16>,
    %c1_311 = arith.constant 1 : index
    %c0_312 = arith.constant 0 : index
    %c0_313 = arith.constant 0 : index
    %354 = vector.load %arg5[%c1_311, %c0_312, %c0_313] : memref<16x9x4xbf16, #tpu.memory_space<vmem>>, vector<1x9x4xbf16>
    %355 = vector.shape_cast %354 : vector<1x9x4xbf16> to vector<9x4xbf16>
    %cst_314 = arith.constant dense<0.000000e+00> : vector<9x64xf32>
    %356 = tpu.matmul %355, %348, %cst_314 {dimension_numbers = #tpu.dot_dimension_numbers<[1], [0], [0], [1], [0, 0, 1, 1], [], []>} : vector<9x4xbf16>, vector<4x64xbf16>, vector<9x64xf32> -> vector<9x64xf32>
    %357 = arith.truncf %356 : vector<9x64xf32> to vector<9x64xbf16>
    %c0_315 = arith.constant 0 : index
    %c64_316 = arith.constant 64 : index
    %358 = vector.load %arg24[%c0_315, %c64_316] : memref<9x1024xbf16, #tpu.memory_space<vmem>>, vector<9x64xbf16>
    tpu.vector_store %arg24[%c0_315, %c64_316], %357 {strides = array<i32>} : memref<9x1024xbf16, #tpu.memory_space<vmem>>, vector<9x64xbf16>,
    %c2_317 = arith.constant 2 : index
    %c0_318 = arith.constant 0 : index
    %c0_319 = arith.constant 0 : index
    %359 = vector.load %arg5[%c2_317, %c0_318, %c0_319] : memref<16x9x4xbf16, #tpu.memory_space<vmem>>, vector<1x9x4xbf16>
    %360 = vector.shape_cast %359 : vector<1x9x4xbf16> to vector<9x4xbf16>
    %cst_320 = arith.constant dense<0.000000e+00> : vector<9x64xf32>
    %361 = tpu.matmul %360, %348, %cst_320 {dimension_numbers = #tpu.dot_dimension_numbers<[1], [0], [0], [1], [0, 0, 1, 1], [], []>} : vector<9x4xbf16>, vector<4x64xbf16>, vector<9x64xf32> -> vector<9x64xf32>
    %362 = arith.truncf %361 : vector<9x64xf32> to vector<9x64xbf16>
    %c0_321 = arith.constant 0 : index
    %c128_322 = arith.constant 128 : index
    %363 = vector.load %arg24[%c0_321, %c128_322] : memref<9x1024xbf16, #tpu.memory_space<vmem>>, vector<9x64xbf16>
    tpu.vector_store %arg24[%c0_321, %c128_322], %362 {strides = array<i32>} : memref<9x1024xbf16, #tpu.memory_space<vmem>>, vector<9x64xbf16>,
    %c3_323 = arith.constant 3 : index
    %c0_324 = arith.constant 0 : index
    %c0_325 = arith.constant 0 : index
    %364 = vector.load %arg5[%c3_323, %c0_324, %c0_325] : memref<16x9x4xbf16, #tpu.memory_space<vmem>>, vector<1x9x4xbf16>
    %365 = vector.shape_cast %364 : vector<1x9x4xbf16> to vector<9x4xbf16>
    %cst_326 = arith.constant dense<0.000000e+00> : vector<9x64xf32>
    %366 = tpu.matmul %365, %348, %cst_326 {dimension_numbers = #tpu.dot_dimension_numbers<[1], [0], [0], [1], [0, 0, 1, 1], [], []>} : vector<9x4xbf16>, vector<4x64xbf16>, vector<9x64xf32> -> vector<9x64xf32>
    %367 = arith.truncf %366 : vector<9x64xf32> to vector<9x64xbf16>
    %c0_327 = arith.constant 0 : index
    %c192_328 = arith.constant 192 : index
    %368 = vector.load %arg24[%c0_327, %c192_328] : memref<9x1024xbf16, #tpu.memory_space<vmem>>, vector<9x64xbf16>
    tpu.vector_store %arg24[%c0_327, %c192_328], %367 {strides = array<i32>} : memref<9x1024xbf16, #tpu.memory_space<vmem>>, vector<9x64xbf16>,
    %c4_329 = arith.constant 4 : index
    %c0_330 = arith.constant 0 : index
    %c0_331 = arith.constant 0 : index
    %369 = vector.load %arg5[%c4_329, %c0_330, %c0_331] : memref<16x9x4xbf16, #tpu.memory_space<vmem>>, vector<1x9x4xbf16>
    %370 = vector.shape_cast %369 : vector<1x9x4xbf16> to vector<9x4xbf16>
    %cst_332 = arith.constant dense<0.000000e+00> : vector<9x64xf32>
    %371 = tpu.matmul %370, %348, %cst_332 {dimension_numbers = #tpu.dot_dimension_numbers<[1], [0], [0], [1], [0, 0, 1, 1], [], []>} : vector<9x4xbf16>, vector<4x64xbf16>, vector<9x64xf32> -> vector<9x64xf32>
    %372 = arith.truncf %371 : vector<9x64xf32> to vector<9x64xbf16>
    %c0_333 = arith.constant 0 : index
    %c256_334 = arith.constant 256 : index
    %373 = vector.load %arg24[%c0_333, %c256_334] : memref<9x1024xbf16, #tpu.memory_space<vmem>>, vector<9x64xbf16>
    tpu.vector_store %arg24[%c0_333, %c256_334], %372 {strides = array<i32>} : memref<9x1024xbf16, #tpu.memory_space<vmem>>, vector<9x64xbf16>,
    %c5_335 = arith.constant 5 : index
    %c0_336 = arith.constant 0 : index
    %c0_337 = arith.constant 0 : index
    %374 = vector.load %arg5[%c5_335, %c0_336, %c0_337] : memref<16x9x4xbf16, #tpu.memory_space<vmem>>, vector<1x9x4xbf16>
    %375 = vector.shape_cast %374 : vector<1x9x4xbf16> to vector<9x4xbf16>
    %cst_338 = arith.constant dense<0.000000e+00> : vector<9x64xf32>
    %376 = tpu.matmul %375, %348, %cst_338 {dimension_numbers = #tpu.dot_dimension_numbers<[1], [0], [0], [1], [0, 0, 1, 1], [], []>} : vector<9x4xbf16>, vector<4x64xbf16>, vector<9x64xf32> -> vector<9x64xf32>
    %377 = arith.truncf %376 : vector<9x64xf32> to vector<9x64xbf16>
    %c0_339 = arith.constant 0 : index
    %c320_340 = arith.constant 320 : index
    %378 = vector.load %arg24[%c0_339, %c320_340] : memref<9x1024xbf16, #tpu.memory_space<vmem>>, vector<9x64xbf16>
    tpu.vector_store %arg24[%c0_339, %c320_340], %377 {strides = array<i32>} : memref<9x1024xbf16, #tpu.memory_space<vmem>>, vector<9x64xbf16>,
    %c6_341 = arith.constant 6 : index
    %c0_342 = arith.constant 0 : index
    %c0_343 = arith.constant 0 : index
    %379 = vector.load %arg5[%c6_341, %c0_342, %c0_343] : memref<16x9x4xbf16, #tpu.memory_space<vmem>>, vector<1x9x4xbf16>
    %380 = vector.shape_cast %379 : vector<1x9x4xbf16> to vector<9x4xbf16>
    %cst_344 = arith.constant dense<0.000000e+00> : vector<9x64xf32>
    %381 = tpu.matmul %380, %348, %cst_344 {dimension_numbers = #tpu.dot_dimension_numbers<[1], [0], [0], [1], [0, 0, 1, 1], [], []>} : vector<9x4xbf16>, vector<4x64xbf16>, vector<9x64xf32> -> vector<9x64xf32>
    %382 = arith.truncf %381 : vector<9x64xf32> to vector<9x64xbf16>
    %c0_345 = arith.constant 0 : index
    %c384_346 = arith.constant 384 : index
    %383 = vector.load %arg24[%c0_345, %c384_346] : memref<9x1024xbf16, #tpu.memory_space<vmem>>, vector<9x64xbf16>
    tpu.vector_store %arg24[%c0_345, %c384_346], %382 {strides = array<i32>} : memref<9x1024xbf16, #tpu.memory_space<vmem>>, vector<9x64xbf16>,
    %c7_347 = arith.constant 7 : index
    %c0_348 = arith.constant 0 : index
    %c0_349 = arith.constant 0 : index
    %384 = vector.load %arg5[%c7_347, %c0_348, %c0_349] : memref<16x9x4xbf16, #tpu.memory_space<vmem>>, vector<1x9x4xbf16>
    %385 = vector.shape_cast %384 : vector<1x9x4xbf16> to vector<9x4xbf16>
    %cst_350 = arith.constant dense<0.000000e+00> : vector<9x64xf32>
    %386 = tpu.matmul %385, %348, %cst_350 {dimension_numbers = #tpu.dot_dimension_numbers<[1], [0], [0], [1], [0, 0, 1, 1], [], []>} : vector<9x4xbf16>, vector<4x64xbf16>, vector<9x64xf32> -> vector<9x64xf32>
    %387 = arith.truncf %386 : vector<9x64xf32> to vector<9x64xbf16>
    %c0_351 = arith.constant 0 : index
    %c448_352 = arith.constant 448 : index
    %388 = vector.load %arg24[%c0_351, %c448_352] : memref<9x1024xbf16, #tpu.memory_space<vmem>>, vector<9x64xbf16>
    tpu.vector_store %arg24[%c0_351, %c448_352], %387 {strides = array<i32>} : memref<9x1024xbf16, #tpu.memory_space<vmem>>, vector<9x64xbf16>,
    %c8_353 = arith.constant 8 : index
    %c0_354 = arith.constant 0 : index
    %c0_355 = arith.constant 0 : index
    %389 = vector.load %arg5[%c8_353, %c0_354, %c0_355] : memref<16x9x4xbf16, #tpu.memory_space<vmem>>, vector<1x9x4xbf16>
    %390 = vector.shape_cast %389 : vector<1x9x4xbf16> to vector<9x4xbf16>
    %cst_356 = arith.constant dense<0.000000e+00> : vector<9x64xf32>
    %391 = tpu.matmul %390, %348, %cst_356 {dimension_numbers = #tpu.dot_dimension_numbers<[1], [0], [0], [1], [0, 0, 1, 1], [], []>} : vector<9x4xbf16>, vector<4x64xbf16>, vector<9x64xf32> -> vector<9x64xf32>
    %392 = arith.truncf %391 : vector<9x64xf32> to vector<9x64xbf16>
    %c0_357 = arith.constant 0 : index
    %c512 = arith.constant 512 : index
    %393 = vector.load %arg24[%c0_357, %c512] : memref<9x1024xbf16, #tpu.memory_space<vmem>>, vector<9x64xbf16>
    tpu.vector_store %arg24[%c0_357, %c512], %392 {strides = array<i32>} : memref<9x1024xbf16, #tpu.memory_space<vmem>>, vector<9x64xbf16>,
    %c9_358 = arith.constant 9 : index
    %c0_359 = arith.constant 0 : index
    %c0_360 = arith.constant 0 : index
    %394 = vector.load %arg5[%c9_358, %c0_359, %c0_360] : memref<16x9x4xbf16, #tpu.memory_space<vmem>>, vector<1x9x4xbf16>
    %395 = vector.shape_cast %394 : vector<1x9x4xbf16> to vector<9x4xbf16>
    %cst_361 = arith.constant dense<0.000000e+00> : vector<9x64xf32>
    %396 = tpu.matmul %395, %348, %cst_361 {dimension_numbers = #tpu.dot_dimension_numbers<[1], [0], [0], [1], [0, 0, 1, 1], [], []>} : vector<9x4xbf16>, vector<4x64xbf16>, vector<9x64xf32> -> vector<9x64xf32>
    %397 = arith.truncf %396 : vector<9x64xf32> to vector<9x64xbf16>
    %c0_362 = arith.constant 0 : index
    %c576 = arith.constant 576 : index
    %398 = vector.load %arg24[%c0_362, %c576] : memref<9x1024xbf16, #tpu.memory_space<vmem>>, vector<9x64xbf16>
    tpu.vector_store %arg24[%c0_362, %c576], %397 {strides = array<i32>} : memref<9x1024xbf16, #tpu.memory_space<vmem>>, vector<9x64xbf16>,
    %c10_363 = arith.constant 10 : index
    %c0_364 = arith.constant 0 : index
    %c0_365 = arith.constant 0 : index
    %399 = vector.load %arg5[%c10_363, %c0_364, %c0_365] : memref<16x9x4xbf16, #tpu.memory_space<vmem>>, vector<1x9x4xbf16>
    %400 = vector.shape_cast %399 : vector<1x9x4xbf16> to vector<9x4xbf16>
    %cst_366 = arith.constant dense<0.000000e+00> : vector<9x64xf32>
    %401 = tpu.matmul %400, %348, %cst_366 {dimension_numbers = #tpu.dot_dimension_numbers<[1], [0], [0], [1], [0, 0, 1, 1], [], []>} : vector<9x4xbf16>, vector<4x64xbf16>, vector<9x64xf32> -> vector<9x64xf32>
    %402 = arith.truncf %401 : vector<9x64xf32> to vector<9x64xbf16>
    %c0_367 = arith.constant 0 : index
    %c640 = arith.constant 640 : index
    %403 = vector.load %arg24[%c0_367, %c640] : memref<9x1024xbf16, #tpu.memory_space<vmem>>, vector<9x64xbf16>
    tpu.vector_store %arg24[%c0_367, %c640], %402 {strides = array<i32>} : memref<9x1024xbf16, #tpu.memory_space<vmem>>, vector<9x64xbf16>,
    %c11_368 = arith.constant 11 : index
    %c0_369 = arith.constant 0 : index
    %c0_370 = arith.constant 0 : index
    %404 = vector.load %arg5[%c11_368, %c0_369, %c0_370] : memref<16x9x4xbf16, #tpu.memory_space<vmem>>, vector<1x9x4xbf16>
    %405 = vector.shape_cast %404 : vector<1x9x4xbf16> to vector<9x4xbf16>
    %cst_371 = arith.constant dense<0.000000e+00> : vector<9x64xf32>
    %406 = tpu.matmul %405, %348, %cst_371 {dimension_numbers = #tpu.dot_dimension_numbers<[1], [0], [0], [1], [0, 0, 1, 1], [], []>} : vector<9x4xbf16>, vector<4x64xbf16>, vector<9x64xf32> -> vector<9x64xf32>
    %407 = arith.truncf %406 : vector<9x64xf32> to vector<9x64xbf16>
    %c0_372 = arith.constant 0 : index
    %c704 = arith.constant 704 : index
    %408 = vector.load %arg24[%c0_372, %c704] : memref<9x1024xbf16, #tpu.memory_space<vmem>>, vector<9x64xbf16>
    tpu.vector_store %arg24[%c0_372, %c704], %407 {strides = array<i32>} : memref<9x1024xbf16, #tpu.memory_space<vmem>>, vector<9x64xbf16>,
    %c12_373 = arith.constant 12 : index
    %c0_374 = arith.constant 0 : index
    %c0_375 = arith.constant 0 : index
    %409 = vector.load %arg5[%c12_373, %c0_374, %c0_375] : memref<16x9x4xbf16, #tpu.memory_space<vmem>>, vector<1x9x4xbf16>
    %410 = vector.shape_cast %409 : vector<1x9x4xbf16> to vector<9x4xbf16>
    %cst_376 = arith.constant dense<0.000000e+00> : vector<9x64xf32>
    %411 = tpu.matmul %410, %348, %cst_376 {dimension_numbers = #tpu.dot_dimension_numbers<[1], [0], [0], [1], [0, 0, 1, 1], [], []>} : vector<9x4xbf16>, vector<4x64xbf16>, vector<9x64xf32> -> vector<9x64xf32>
    %412 = arith.truncf %411 : vector<9x64xf32> to vector<9x64xbf16>
    %c0_377 = arith.constant 0 : index
    %c768 = arith.constant 768 : index
    %413 = vector.load %arg24[%c0_377, %c768] : memref<9x1024xbf16, #tpu.memory_space<vmem>>, vector<9x64xbf16>
    tpu.vector_store %arg24[%c0_377, %c768], %412 {strides = array<i32>} : memref<9x1024xbf16, #tpu.memory_space<vmem>>, vector<9x64xbf16>,
    %c13_378 = arith.constant 13 : index
    %c0_379 = arith.constant 0 : index
    %c0_380 = arith.constant 0 : index
    %414 = vector.load %arg5[%c13_378, %c0_379, %c0_380] : memref<16x9x4xbf16, #tpu.memory_space<vmem>>, vector<1x9x4xbf16>
    %415 = vector.shape_cast %414 : vector<1x9x4xbf16> to vector<9x4xbf16>
    %cst_381 = arith.constant dense<0.000000e+00> : vector<9x64xf32>
    %416 = tpu.matmul %415, %348, %cst_381 {dimension_numbers = #tpu.dot_dimension_numbers<[1], [0], [0], [1], [0, 0, 1, 1], [], []>} : vector<9x4xbf16>, vector<4x64xbf16>, vector<9x64xf32> -> vector<9x64xf32>
    %417 = arith.truncf %416 : vector<9x64xf32> to vector<9x64xbf16>
    %c0_382 = arith.constant 0 : index
    %c832 = arith.constant 832 : index
    %418 = vector.load %arg24[%c0_382, %c832] : memref<9x1024xbf16, #tpu.memory_space<vmem>>, vector<9x64xbf16>
    tpu.vector_store %arg24[%c0_382, %c832], %417 {strides = array<i32>} : memref<9x1024xbf16, #tpu.memory_space<vmem>>, vector<9x64xbf16>,
    %c14_383 = arith.constant 14 : index
    %c0_384 = arith.constant 0 : index
    %c0_385 = arith.constant 0 : index
    %419 = vector.load %arg5[%c14_383, %c0_384, %c0_385] : memref<16x9x4xbf16, #tpu.memory_space<vmem>>, vector<1x9x4xbf16>
    %420 = vector.shape_cast %419 : vector<1x9x4xbf16> to vector<9x4xbf16>
    %cst_386 = arith.constant dense<0.000000e+00> : vector<9x64xf32>
    %421 = tpu.matmul %420, %348, %cst_386 {dimension_numbers = #tpu.dot_dimension_numbers<[1], [0], [0], [1], [0, 0, 1, 1], [], []>} : vector<9x4xbf16>, vector<4x64xbf16>, vector<9x64xf32> -> vector<9x64xf32>
    %422 = arith.truncf %421 : vector<9x64xf32> to vector<9x64xbf16>
    %c0_387 = arith.constant 0 : index
    %c896 = arith.constant 896 : index
    %423 = vector.load %arg24[%c0_387, %c896] : memref<9x1024xbf16, #tpu.memory_space<vmem>>, vector<9x64xbf16>
    tpu.vector_store %arg24[%c0_387, %c896], %422 {strides = array<i32>} : memref<9x1024xbf16, #tpu.memory_space<vmem>>, vector<9x64xbf16>,
    %c15_388 = arith.constant 15 : index
    %c0_389 = arith.constant 0 : index
    %c0_390 = arith.constant 0 : index
    %424 = vector.load %arg5[%c15_388, %c0_389, %c0_390] : memref<16x9x4xbf16, #tpu.memory_space<vmem>>, vector<1x9x4xbf16>
    %425 = vector.shape_cast %424 : vector<1x9x4xbf16> to vector<9x4xbf16>
    %cst_391 = arith.constant dense<0.000000e+00> : vector<9x64xf32>
    %426 = tpu.matmul %425, %348, %cst_391 {dimension_numbers = #tpu.dot_dimension_numbers<[1], [0], [0], [1], [0, 0, 1, 1], [], []>} : vector<9x4xbf16>, vector<4x64xbf16>, vector<9x64xf32> -> vector<9x64xf32>
    %427 = arith.truncf %426 : vector<9x64xf32> to vector<9x64xbf16>
    %c0_392 = arith.constant 0 : index
    %c960 = arith.constant 960 : index
    %428 = vector.load %arg24[%c0_392, %c960] : memref<9x1024xbf16, #tpu.memory_space<vmem>>, vector<9x64xbf16>
    tpu.vector_store %arg24[%c0_392, %c960], %427 {strides = array<i32>} : memref<9x1024xbf16, #tpu.memory_space<vmem>>, vector<9x64xbf16>,
    %c0_393 = arith.constant 0 : index
    %c0_394 = arith.constant 0 : index
    %429 = vector.load %arg24[%c0_393, %c0_394] : memref<9x1024xbf16, #tpu.memory_space<vmem>>, vector<9x1024xbf16>
    %c0_395 = arith.constant 0 : index
    %c0_396 = arith.constant 0 : index
    %430 = vector.load %arg10[%c0_395, %c0_396] : memref<1024x1xbf16, #tpu.memory_space<vmem>>, vector<1024x1xbf16>
    %cst_397 = arith.constant dense<0.000000e+00> : vector<9x1xf32>
    %431 = tpu.matmul %429, %430, %cst_397 {dimension_numbers = #tpu.dot_dimension_numbers<[1], [0], [0], [1], [0, 0, 1, 1], [], []>} : vector<9x1024xbf16>, vector<1024x1xbf16>, vector<9x1xf32> -> vector<9x1xf32>
    %c0_398 = arith.constant 0 : index
    %c0_399 = arith.constant 0 : index
    %432 = vector.load %arg15[%c0_398, %c0_399] : memref<1x1xf32, #tpu.memory_space<vmem>>, vector<1x1xf32>
    %433 = vector.broadcast %432 : vector<1x1xf32> to vector<9x1xf32>
    %434 = arith.addf %431, %433 : vector<9x1xf32>
    %c0_400 = arith.constant 0 : index
    %c0_401 = arith.constant 0 : index
    %c0_402 = arith.constant 0 : index
    %435 = vector.load %arg20[%c0_400, %c0_401, %c0_402] : memref<1x9x1xf32, #tpu.memory_space<vmem>>, vector<1x9x1xf32>
    %436 = vector.shape_cast %435 : vector<1x9x1xf32> to vector<9x1xf32>
    %437 = vector.shape_cast %434 : vector<9x1xf32> to vector<1x9x1xf32>
    tpu.vector_store %arg20[%c0_400, %c0_401, %c0_402], %437 {strides = array<i32>} : memref<1x9x1xf32, #tpu.memory_space<vmem>>, vector<1x9x1xf32>,
    return
  }
  func.func @transform_0(%arg0: i32) -> (i32, i32, i32) {
    %c0_i32 = arith.constant 0 : i32
    %c0_i32_0 = arith.constant 0 : i32
    %c0_i32_1 = arith.constant 0 : i32
    return %arg0, %c0_i32, %c0_i32_0 : i32, i32, i32
  }
  func.func @transform_1(%arg0: i32) -> (i32, i32, i32) {
    %c0_i32 = arith.constant 0 : i32
    %c0_i32_0 = arith.constant 0 : i32
    %c0_i32_1 = arith.constant 0 : i32
    %c0_i32_2 = arith.constant 0 : i32
    return %c0_i32, %c0_i32_0, %c0_i32_1 : i32, i32, i32
  }
  func.func @transform_2(%arg0: i32) -> (i32, i32, i32) {
    %c0_i32 = arith.constant 0 : i32
    %c0_i32_0 = arith.constant 0 : i32
    %c0_i32_1 = arith.constant 0 : i32
    %c0_i32_2 = arith.constant 0 : i32
    return %c0_i32, %c0_i32_0, %c0_i32_1 : i32, i32, i32
  }
  func.func @transform_3(%arg0: i32) -> (i32, i32, i32) {
    %c0_i32 = arith.constant 0 : i32
    %c0_i32_0 = arith.constant 0 : i32
    %c0_i32_1 = arith.constant 0 : i32
    %c0_i32_2 = arith.constant 0 : i32
    return %c0_i32, %c0_i32_0, %c0_i32_1 : i32, i32, i32
  }
  func.func @transform_4(%arg0: i32) -> (i32, i32, i32) {
    %c0_i32 = arith.constant 0 : i32
    %c0_i32_0 = arith.constant 0 : i32
    %c0_i32_1 = arith.constant 0 : i32
    %c0_i32_2 = arith.constant 0 : i32
    return %c0_i32, %c0_i32_0, %c0_i32_1 : i32, i32, i32
  }
  func.func @transform_5(%arg0: i32) -> (i32, i32) {
    %c0_i32 = arith.constant 0 : i32
    %c0_i32_0 = arith.constant 0 : i32
    %c0_i32_1 = arith.constant 0 : i32
    return %c0_i32, %c0_i32_0 : i32, i32
  }
  func.func @transform_6(%arg0: i32) -> (i32, i32) {
    %c0_i32 = arith.constant 0 : i32
    %c0_i32_0 = arith.constant 0 : i32
    %c0_i32_1 = arith.constant 0 : i32
    return %c0_i32, %c0_i32_0 : i32, i32
  }
  func.func @transform_7(%arg0: i32) -> (i32, i32) {
    %c0_i32 = arith.constant 0 : i32
    %c0_i32_0 = arith.constant 0 : i32
    %c0_i32_1 = arith.constant 0 : i32
    return %c0_i32, %c0_i32_0 : i32, i32
  }
  func.func @transform_8(%arg0: i32) -> (i32, i32) {
    %c0_i32 = arith.constant 0 : i32
    %c0_i32_0 = arith.constant 0 : i32
    %c0_i32_1 = arith.constant 0 : i32
    return %c0_i32, %c0_i32_0 : i32, i32
  }
  func.func @transform_9(%arg0: i32) -> (i32, i32) {
    %c0_i32 = arith.constant 0 : i32
    %c0_i32_0 = arith.constant 0 : i32
    %c0_i32_1 = arith.constant 0 : i32
    return %c0_i32, %c0_i32_0 : i32, i32
  }
  func.func @transform_10(%arg0: i32) -> (i32, i32) {
    %c0_i32 = arith.constant 0 : i32
    %c0_i32_0 = arith.constant 0 : i32
    %c0_i32_1 = arith.constant 0 : i32
    return %c0_i32, %c0_i32_0 : i32, i32
  }
  func.func @transform_11(%arg0: i32) -> (i32, i32) {
    %c0_i32 = arith.constant 0 : i32
    %c0_i32_0 = arith.constant 0 : i32
    %c0_i32_1 = arith.constant 0 : i32
    return %c0_i32, %c0_i32_0 : i32, i32
  }
  func.func @transform_12(%arg0: i32) -> (i32, i32) {
    %c0_i32 = arith.constant 0 : i32
    %c0_i32_0 = arith.constant 0 : i32
    %c0_i32_1 = arith.constant 0 : i32
    return %c0_i32, %c0_i32_0 : i32, i32
  }
  func.func @transform_13(%arg0: i32) -> (i32, i32) {
    %c0_i32 = arith.constant 0 : i32
    %c0_i32_0 = arith.constant 0 : i32
    %c0_i32_1 = arith.constant 0 : i32
    return %c0_i32, %c0_i32_0 : i32, i32
  }
  func.func @transform_14(%arg0: i32) -> (i32, i32) {
    %c0_i32 = arith.constant 0 : i32
    %c0_i32_0 = arith.constant 0 : i32
    %c0_i32_1 = arith.constant 0 : i32
    return %c0_i32, %c0_i32_0 : i32, i32
  }
  func.func @transform_15(%arg0: i32) -> (i32, i32, i32) {
    %c0_i32 = arith.constant 0 : i32
    %c0_i32_0 = arith.constant 0 : i32
    %c0_i32_1 = arith.constant 0 : i32
    return %arg0, %c0_i32, %c0_i32_0 : i32, i32, i32
  }
  func.func @transform_16(%arg0: i32) -> (i32, i32, i32) {
    %c0_i32 = arith.constant 0 : i32
    %c0_i32_0 = arith.constant 0 : i32
    %c0_i32_1 = arith.constant 0 : i32
    return %arg0, %c0_i32, %c0_i32_0 : i32, i32, i32
  }
  func.func @transform_17(%arg0: i32) -> (i32, i32, i32) {
    %c0_i32 = arith.constant 0 : i32
    %c0_i32_0 = arith.constant 0 : i32
    %c0_i32_1 = arith.constant 0 : i32
    return %arg0, %c0_i32, %c0_i32_0 : i32, i32, i32
  }
  func.func @transform_18(%arg0: i32) -> (i32, i32, i32) {
    %c0_i32 = arith.constant 0 : i32
    %c0_i32_0 = arith.constant 0 : i32
    %c0_i32_1 = arith.constant 0 : i32
    return %arg0, %c0_i32, %c0_i32_0 : i32, i32, i32
  }
  func.func @transform_19(%arg0: i32) -> (i32, i32, i32) {
    %c0_i32 = arith.constant 0 : i32
    %c0_i32_0 = arith.constant 0 : i32
    %c0_i32_1 = arith.constant 0 : i32
    return %arg0, %c0_i32, %c0_i32_0 : i32, i32, i32
  }
}

</mosaic_0001>

<llo_original>
// kernel: patch_dis_net_forward.1
$region0: #{patch_dis_net_forward.1}
  #allocation0 [shape = 'u32[]', space=smem, size = 0x4, offset = 0x4, fixed_abs, tag = 'smem constant byte address 0x4 - core index']
  #allocation1 [shape = 'u32[144,128]{1,0:T(1,128)}', space=vmem, size = 0x12000, scoped, tag = 'internal scratch']
  #allocation2 [shape = 'bf16[25,128]{1,0:T(8,128)(2,1)}', space=vmem, size = 0x2000, scoped, tag = 'scratch operand']
  #allocation3 [shape = 'bf16[9,256]{1,0:T(8,128)(2,1)}', space=vmem, size = 0x2000, scoped, tag = 'scratch operand']
  #allocation4 [shape = 'bf16[4,512]{1,0:T(4,128)(2,1)}', space=vmem, size = 0x1000, scoped, tag = 'scratch operand']
  #allocation5 [shape = 'bf16[9,1024]{1,0:T(8,128)(2,1)}', space=vmem, size = 0x8000, scoped, tag = 'scratch operand']
  #allocation6 [shape = 'f32[1,1]{1,0:T(1,128)S(1)}', space=vmem, size = 0x200, scoped, tag = 'scoped memory for patch_dis_net_forward.1']
  %s0 = inlined_call_operand.vmem [shape: bf16[2,81,64], index: 0, kind: input, shape index: {}]
  %s1 = inlined_call_operand.vmem [shape: bf16[16,25,81], index: 1, kind: input, shape index: {}]
  %s2 = inlined_call_operand.vmem [shape: bf16[16,9,25], index: 2, kind: input, shape index: {}]
  %s3 = inlined_call_operand.vmem [shape: bf16[16,4,9], index: 3, kind: input, shape index: {}]
  %s4 = inlined_call_operand.vmem [shape: bf16[16,9,4], index: 4, kind: input, shape index: {}]
  %s5 = inlined_call_operand.vmem [shape: bf16[64,8], index: 5, kind: input, shape index: {}]
  %s6 = inlined_call_operand.vmem [shape: bf16[128,16], index: 6, kind: input, shape index: {}]
  %s7 = inlined_call_operand.vmem [shape: bf16[256,32], index: 7, kind: input, shape index: {}]
  %s8 = inlined_call_operand.vmem [shape: bf16[512,64], index: 8, kind: input, shape index: {}]
  %s9 = inlined_call_operand.vmem [shape: bf16[1024,1], index: 9, kind: input, shape index: {}]
  %s10 = inlined_call_operand.vmem [shape: f32[1,8], index: 10, kind: input, shape index: {}]
  %s11 = inlined_call_operand.vmem [shape: f32[1,16], index: 11, kind: input, shape index: {}]
  %s12 = inlined_call_operand.vmem [shape: f32[1,32], index: 12, kind: input, shape index: {}]
  %s13 = inlined_call_operand.vmem [shape: f32[1,64], index: 13, kind: input, shape index: {}]
  %s14 = inlined_call_operand.<no memory space> [shape: f32[1,1], index: 14, kind: input, shape index: {}]
  %s15 = inlined_call_operand.vmem [shape: f32[2,81,8], index: 15, kind: output, shape index: {0}]
  %s16 = inlined_call_operand.vmem [shape: f32[2,25,16], index: 16, kind: output, shape index: {1}]
  %s17 = inlined_call_operand.vmem [shape: f32[2,9,32], index: 17, kind: output, shape index: {2}]
  %s18 = inlined_call_operand.hbm [shape: f32[2,4,64], index: 18, kind: output, shape index: {3}]
  %s19 = inlined_call_operand.vmem [shape: f32[2,9,1], index: 19, kind: output, shape index: {4}]
  %20 = xla_tuple %s15, %s16, %s17, %s18, %s19
  %s21 = sld [smem:[#allocation0]]
  $region125: #{patch_dis_net_forward.1} parent=0
    _
  %s23 = ssub.s32 1, %s21
  %s24 = scalar_select 0, %s23, %s21
  %v25 = vstv %s14
  %26 = vst [vmem:[#allocation6] sm:$0x1] %v25
  $region1: #{patch_dis_net_forward.1} parent=0
    #allocation7 [shape = 'u8[4096]{0}', space=vmem, size = 0x1000, scoped, tag = 'output window, operand 3']
    #allocation8 [shape = 's32[2]{0}', space=sflag, size = 0x8, scoped, tag = 'scoped memory for patch_dis_net_forward.1']
    %27 = vsyncpa [#allocation8], 0
    %s28 = scalar_lea.sflag [#allocation8], 1
    %29 = vsyncpa %s28, 0
    loop: start=0, step=1, limit=4
    $region2: #{patch_dis_net_forward.1} parent=1 // loop_pre_header
      _
    $region3: #{patch_dis_net_forward.1} parent=1 // loop_header
      %s31 = sphi 0, %s35
      %p32 = scmp.ge.s32.totalorder %s31, 4
      %s41 = sphi 0, %s43
      %s44 = sphi 0, %s41
      %s45 = sphi 0, %s44
      %s61 = sphi 0, %s45
      %s65 = sphi 0, %s65
      %s67 = sphi 0, %s65
      %s68 = sphi 0, %s67
      %s82 = sphi 0, %s68
      %s86 = sphi 0, %s86
      %s88 = sphi 0, %s86
      %s89 = sphi 0, %s88
      %s103 = sphi 0, %s89
      %s107 = sphi 0, %s107
      %s109 = sphi 0, %s107
      %s110 = sphi 0, %s109
      %s124 = sphi 0, %s110
      %s128 = sphi 0, %s128
      %s130 = sphi 0, %s128
      %s131 = sphi 0, %s130
      %s145 = sphi 0, %s131
      %s149 = sphi 0, %s149
      %s151 = sphi 0, %s149
      %s152 = sphi 0, %s151
      %s166 = sphi 0, %s152
      %s170 = sphi 0, %s170
      %s172 = sphi 0, %s170
      %s173 = sphi 0, %s172
      %s187 = sphi 0, %s173
      %s191 = sphi 0, %s191
      %s193 = sphi 0, %s191
      %s194 = sphi 0, %s193
      %s208 = sphi 0, %s194
      %s212 = sphi 0, %s212
      %s214 = sphi 0, %s212
      %s215 = sphi 0, %s214
      %s229 = sphi 0, %s215
      %s233 = sphi 0, %s233
      %s235 = sphi 0, %s233
      %s236 = sphi 0, %s235
      %s250 = sphi 0, %s236
      %s254 = sphi 0, %s254
      %s256 = sphi 0, %s254
      %s257 = sphi 0, %s256
      %s271 = sphi 0, %s257
      %s275 = sphi 0, %s275
      %s277 = sphi 0, %s275
      %s278 = sphi 0, %s277
      %s292 = sphi 0, %s278
      %s296 = sphi 0, %s296
      %s298 = sphi 0, %s296
      %s299 = sphi 0, %s298
      %s313 = sphi 0, %s299
      %s317 = sphi 0, %s317
      %s319 = sphi 0, %s317
      %s320 = sphi 0, %s319
      %s334 = sphi 0, %s320
      %s338 = sphi 0, %s338
      %s340 = sphi 0, %s338
      %s341 = sphi 0, %s340
      %s355 = sphi 0, %s341
      %s361 = sphi 0, %s363
      %s364 = sphi 0, %s361
      %s365 = sphi 0, %s364
      %s381 = sphi 0, %s365
      %s387 = sphi 0, %s389
      %s390 = sphi 0, %s387
      %s391 = sphi 0, %s390
      %s407 = sphi 0, %s391
      %s413 = sphi 0, %s415
      %s416 = sphi 0, %s413
      %s417 = sphi 0, %s416
      %s433 = sphi 0, %s417
      %s439 = sphi 0, %s441
      %s442 = sphi 0, %s439
      %s443 = sphi 0, %s442
      %s459 = sphi 0, %s443
      %s465 = sphi 0, %s467
      %s468 = sphi 0, %s465
      %s469 = sphi 0, %s468
      %s485 = sphi 0, %s469
    $region4: #{patch_dis_net_forward.1} parent=1 // loop_header_branch
      %34 = sbr.rel (%p32) target = $region8
    $region5: #{patch_dis_net_forward.1} parent=1 // loop_body
      %s36 = ssub.s32 %s31, 1
      %s37 = ssub.s32 %s31, 2
      %s38 = sadd.s32 %s31, 1
      %s39 = ssub.s32 %s31, %s38
      %p40 = scmp.eq.s32.totalorder %s39, 0
      %s42 = sadd.s32 %s41, 1
      %s43 = scalar_select %p40, %s41, %s42
      %p46 = pneg %p40
      %p47 = scmp.eq.s32.totalorder %s31, 1
      %p48 = por %p46, %p47
      %p49 = scmp.ne.s32.totalorder %s41, %s44
      %p50 = scmp.eq.s32.totalorder %s31, 0
      %p51 = por %p49, %p50
      %p52 = scmp.ne.s32.totalorder %s41, %s44
      %p53 = scmp.eq.s32.totalorder %s36, 1
      %p54 = por %p52, %p53
      %p55 = scmp.ne.s32.totalorder %s44, %s45
      %p56 = scmp.eq.s32.totalorder %s36, 0
      %p57 = por %p55, %p56
      %p58 = scmp.ne.s32.totalorder %s44, %s45
      %p59 = scmp.eq.s32.totalorder %s37, 1
      %p60 = por %p58, %p59
      %p62 = scmp.ne.s32.totalorder %s45, %s61
      %p63 = scmp.eq.s32.totalorder %s37, 0
      %p64 = por %p62, %p63
      %s66 = sadd.s32 %s65, 1
      %p69 = scmp.eq.s32.totalorder %s31, 1
      %p70 = scmp.ne.s32.totalorder %s65, %s67
      %p71 = scmp.eq.s32.totalorder %s31, 0
      %p72 = por %p70, %p71
      %p73 = scmp.ne.s32.totalorder %s65, %s67
      %p74 = scmp.eq.s32.totalorder %s36, 1
      %p75 = por %p73, %p74
      %p76 = scmp.ne.s32.totalorder %s67, %s68
      %p77 = scmp.eq.s32.totalorder %s36, 0
      %p78 = por %p76, %p77
      %p79 = scmp.ne.s32.totalorder %s67, %s68
      %p80 = scmp.eq.s32.totalorder %s37, 1
      %p81 = por %p79, %p80
      %p83 = scmp.ne.s32.totalorder %s68, %s82
      %p84 = scmp.eq.s32.totalorder %s37, 0
      %p85 = por %p83, %p84
      %s87 = sadd.s32 %s86, 1
      %p90 = scmp.eq.s32.totalorder %s31, 1
      %p91 = scmp.ne.s32.totalorder %s86, %s88
      %p92 = scmp.eq.s32.totalorder %s31, 0
      %p93 = por %p91, %p92
      %p94 = scmp.ne.s32.totalorder %s86, %s88
      %p95 = scmp.eq.s32.totalorder %s36, 1
      %p96 = por %p94, %p95
      %p97 = scmp.ne.s32.totalorder %s88, %s89
      %p98 = scmp.eq.s32.totalorder %s36, 0
      %p99 = por %p97, %p98
      %p100 = scmp.ne.s32.totalorder %s88, %s89
      %p101 = scmp.eq.s32.totalorder %s37, 1
      %p102 = por %p100, %p101
      %p104 = scmp.ne.s32.totalorder %s89, %s103
      %p105 = scmp.eq.s32.totalorder %s37, 0
      %p106 = por %p104, %p105
      %s108 = sadd.s32 %s107, 1
      %p111 = scmp.eq.s32.totalorder %s31, 1
      %p112 = scmp.ne.s32.totalorder %s107, %s109
      %p113 = scmp.eq.s32.totalorder %s31, 0
      %p114 = por %p112, %p113
      %p115 = scmp.ne.s32.totalorder %s107, %s109
      %p116 = scmp.eq.s32.totalorder %s36, 1
      %p117 = por %p115, %p116
      %p118 = scmp.ne.s32.totalorder %s109, %s110
      %p119 = scmp.eq.s32.totalorder %s36, 0
      %p120 = por %p118, %p119
      %p121 = scmp.ne.s32.totalorder %s109, %s110
      %p122 = scmp.eq.s32.totalorder %s37, 1
      %p123 = por %p121, %p122
      %p125 = scmp.ne.s32.totalorder %s110, %s124
      %p126 = scmp.eq.s32.totalorder %s37, 0
      %p127 = por %p125, %p126
      %s129 = sadd.s32 %s128, 1
      %p132 = scmp.eq.s32.totalorder %s31, 1
      %p133 = scmp.ne.s32.totalorder %s128, %s130
      %p134 = scmp.eq.s32.totalorder %s31, 0
      %p135 = por %p133, %p134
      %p136 = scmp.ne.s32.totalorder %s128, %s130
      %p137 = scmp.eq.s32.totalorder %s36, 1
      %p138 = por %p136, %p137
      %p139 = scmp.ne.s32.totalorder %s130, %s131
      %p140 = scmp.eq.s32.totalorder %s36, 0
      %p141 = por %p139, %p140
      %p142 = scmp.ne.s32.totalorder %s130, %s131
      %p143 = scmp.eq.s32.totalorder %s37, 1
      %p144 = por %p142, %p143
      %p146 = scmp.ne.s32.totalorder %s131, %s145
      %p147 = scmp.eq.s32.totalorder %s37, 0
      %p148 = por %p146, %p147
      %s150 = sadd.s32 %s149, 1
      %p153 = scmp.eq.s32.totalorder %s31, 1
      %p154 = scmp.ne.s32.totalorder %s149, %s151
      %p155 = scmp.eq.s32.totalorder %s31, 0
      %p156 = por %p154, %p155
      %p157 = scmp.ne.s32.totalorder %s149, %s151
      %p158 = scmp.eq.s32.totalorder %s36, 1
      %p159 = por %p157, %p158
      %p160 = scmp.ne.s32.totalorder %s151, %s152
      %p161 = scmp.eq.s32.totalorder %s36, 0
      %p162 = por %p160, %p161
      %p163 = scmp.ne.s32.totalorder %s151, %s152
      %p164 = scmp.eq.s32.totalorder %s37, 1
      %p165 = por %p163, %p164
      %p167 = scmp.ne.s32.totalorder %s152, %s166
      %p168 = scmp.eq.s32.totalorder %s37, 0
      %p169 = por %p167, %p168
      %s171 = sadd.s32 %s170, 1
      %p174 = scmp.eq.s32.totalorder %s31, 1
      %p175 = scmp.ne.s32.totalorder %s170, %s172
      %p176 = scmp.eq.s32.totalorder %s31, 0
      %p177 = por %p175, %p176
      %p178 = scmp.ne.s32.totalorder %s170, %s172
      %p179 = scmp.eq.s32.totalorder %s36, 1
      %p180 = por %p178, %p179
      %p181 = scmp.ne.s32.totalorder %s172, %s173
      %p182 = scmp.eq.s32.totalorder %s36, 0
      %p183 = por %p181, %p182
      %p184 = scmp.ne.s32.totalorder %s172, %s173
      %p185 = scmp.eq.s32.totalorder %s37, 1
      %p186 = por %p184, %p185
      %p188 = scmp.ne.s32.totalorder %s173, %s187
      %p189 = scmp.eq.s32.totalorder %s37, 0
      %p190 = por %p188, %p189
      %s192 = sadd.s32 %s191, 1
      %p195 = scmp.eq.s32.totalorder %s31, 1
      %p196 = scmp.ne.s32.totalorder %s191, %s193
      %p197 = scmp.eq.s32.totalorder %s31, 0
      %p198 = por %p196, %p197
      %p199 = scmp.ne.s32.totalorder %s191, %s193
      %p200 = scmp.eq.s32.totalorder %s36, 1
      %p201 = por %p199, %p200
      %p202 = scmp.ne.s32.totalorder %s193, %s194
      %p203 = scmp.eq.s32.totalorder %s36, 0
      %p204 = por %p202, %p203
      %p205 = scmp.ne.s32.totalorder %s193, %s194
      %p206 = scmp.eq.s32.totalorder %s37, 1
      %p207 = por %p205, %p206
      %p209 = scmp.ne.s32.totalorder %s194, %s208
      %p210 = scmp.eq.s32.totalorder %s37, 0
      %p211 = por %p209, %p210
      %s213 = sadd.s32 %s212, 1
      %p216 = scmp.eq.s32.totalorder %s31, 1
      %p217 = scmp.ne.s32.totalorder %s212, %s214
      %p218 = scmp.eq.s32.totalorder %s31, 0
      %p219 = por %p217, %p218
      %p220 = scmp.ne.s32.totalorder %s212, %s214
      %p221 = scmp.eq.s32.totalorder %s36, 1
      %p222 = por %p220, %p221
      %p223 = scmp.ne.s32.totalorder %s214, %s215
      %p224 = scmp.eq.s32.totalorder %s36, 0
      %p225 = por %p223, %p224
      %p226 = scmp.ne.s32.totalorder %s214, %s215
      %p227 = scmp.eq.s32.totalorder %s37, 1
      %p228 = por %p226, %p227
      %p230 = scmp.ne.s32.totalorder %s215, %s229
      %p231 = scmp.eq.s32.totalorder %s37, 0
      %p232 = por %p230, %p231
      %s234 = sadd.s32 %s233, 1
      %p237 = scmp.eq.s32.totalorder %s31, 1
      %p238 = scmp.ne.s32.totalorder %s233, %s235
      %p239 = scmp.eq.s32.totalorder %s31, 0
      %p240 = por %p238, %p239
      %p241 = scmp.ne.s32.totalorder %s233, %s235
      %p242 = scmp.eq.s32.totalorder %s36, 1
      %p243 = por %p241, %p242
      %p244 = scmp.ne.s32.totalorder %s235, %s236
      %p245 = scmp.eq.s32.totalorder %s36, 0
      %p246 = por %p244, %p245
      %p247 = scmp.ne.s32.totalorder %s235, %s236
      %p248 = scmp.eq.s32.totalorder %s37, 1
      %p249 = por %p247, %p248
      %p251 = scmp.ne.s32.totalorder %s236, %s250
      %p252 = scmp.eq.s32.totalorder %s37, 0
      %p253 = por %p251, %p252
      %s255 = sadd.s32 %s254, 1
      %p258 = scmp.eq.s32.totalorder %s31, 1
      %p259 = scmp.ne.s32.totalorder %s254, %s256
      %p260 = scmp.eq.s32.totalorder %s31, 0
      %p261 = por %p259, %p260
      %p262 = scmp.ne.s32.totalorder %s254, %s256
      %p263 = scmp.eq.s32.totalorder %s36, 1
      %p264 = por %p262, %p263
      %p265 = scmp.ne.s32.totalorder %s256, %s257
      %p266 = scmp.eq.s32.totalorder %s36, 0
      %p267 = por %p265, %p266
      %p268 = scmp.ne.s32.totalorder %s256, %s257
      %p269 = scmp.eq.s32.totalorder %s37, 1
      %p270 = por %p268, %p269
      %p272 = scmp.ne.s32.totalorder %s257, %s271
      %p273 = scmp.eq.s32.totalorder %s37, 0
      %p274 = por %p272, %p273
      %s276 = sadd.s32 %s275, 1
      %p279 = scmp.eq.s32.totalorder %s31, 1
      %p280 = scmp.ne.s32.totalorder %s275, %s277
      %p281 = scmp.eq.s32.totalorder %s31, 0
      %p282 = por %p280, %p281
      %p283 = scmp.ne.s32.totalorder %s275, %s277
      %p284 = scmp.eq.s32.totalorder %s36, 1
      %p285 = por %p283, %p284
      %p286 = scmp.ne.s32.totalorder %s277, %s278
      %p287 = scmp.eq.s32.totalorder %s36, 0
      %p288 = por %p286, %p287
      %p289 = scmp.ne.s32.totalorder %s277, %s278
      %p290 = scmp.eq.s32.totalorder %s37, 1
      %p291 = por %p289, %p290
      %p293 = scmp.ne.s32.totalorder %s278, %s292
      %p294 = scmp.eq.s32.totalorder %s37, 0
      %p295 = por %p293, %p294
      %s297 = sadd.s32 %s296, 1
      %p300 = scmp.eq.s32.totalorder %s31, 1
      %p301 = scmp.ne.s32.totalorder %s296, %s298
      %p302 = scmp.eq.s32.totalorder %s31, 0
      %p303 = por %p301, %p302
      %p304 = scmp.ne.s32.totalorder %s296, %s298
      %p305 = scmp.eq.s32.totalorder %s36, 1
      %p306 = por %p304, %p305
      %p307 = scmp.ne.s32.totalorder %s298, %s299
      %p308 = scmp.eq.s32.totalorder %s36, 0
      %p309 = por %p307, %p308
      %p310 = scmp.ne.s32.totalorder %s298, %s299
      %p311 = scmp.eq.s32.totalorder %s37, 1
      %p312 = por %p310, %p311
      %p314 = scmp.ne.s32.totalorder %s299, %s313
      %p315 = scmp.eq.s32.totalorder %s37, 0
      %p316 = por %p314, %p315
      %s318 = sadd.s32 %s317, 1
      %p321 = scmp.eq.s32.totalorder %s31, 1
      %p322 = scmp.ne.s32.totalorder %s317, %s319
      %p323 = scmp.eq.s32.totalorder %s31, 0
      %p324 = por %p322, %p323
      %p325 = scmp.ne.s32.totalorder %s317, %s319
      %p326 = scmp.eq.s32.totalorder %s36, 1
      %p327 = por %p325, %p326
      %p328 = scmp.ne.s32.totalorder %s319, %s320
      %p329 = scmp.eq.s32.totalorder %s36, 0
      %p330 = por %p328, %p329
      %p331 = scmp.ne.s32.totalorder %s319, %s320
      %p332 = scmp.eq.s32.totalorder %s37, 1
      %p333 = por %p331, %p332
      %p335 = scmp.ne.s32.totalorder %s320, %s334
      %p336 = scmp.eq.s32.totalorder %s37, 0
      %p337 = por %p335, %p336
      %s339 = sadd.s32 %s338, 1
      %p342 = scmp.eq.s32.totalorder %s31, 1
      %p343 = scmp.ne.s32.totalorder %s338, %s340
      %p344 = scmp.eq.s32.totalorder %s31, 0
      %p345 = por %p343, %p344
      %p346 = scmp.ne.s32.totalorder %s338, %s340
      %p347 = scmp.eq.s32.totalorder %s36, 1
      %p348 = por %p346, %p347
      %p349 = scmp.ne.s32.totalorder %s340, %s341
      %p350 = scmp.eq.s32.totalorder %s36, 0
      %p351 = por %p349, %p350
      %p352 = scmp.ne.s32.totalorder %s340, %s341
      %p353 = scmp.eq.s32.totalorder %s37, 1
      %p354 = por %p352, %p353
      %p356 = scmp.ne.s32.totalorder %s341, %s355
      %p357 = scmp.eq.s32.totalorder %s37, 0
      %p358 = por %p356, %p357
      %s359 = ssub.s32 %s31, %s38
      %p360 = scmp.eq.s32.totalorder %s359, 0
      %s362 = sadd.s32 %s361, 1
      %s363 = scalar_select %p360, %s361, %s362
      %p366 = pneg %p360
      %p367 = scmp.eq.s32.totalorder %s31, 1
      %p368 = por %p366, %p367
      %p369 = scmp.ne.s32.totalorder %s361, %s364
      %p370 = scmp.eq.s32.totalorder %s31, 0
      %p371 = por %p369, %p370
      %p372 = scmp.ne.s32.totalorder %s361, %s364
      %p373 = scmp.eq.s32.totalorder %s36, 1
      %p374 = por %p372, %p373
      %p375 = scmp.ne.s32.totalorder %s364, %s365
      %p376 = scmp.eq.s32.totalorder %s36, 0
      %p377 = por %p375, %p376
      %p378 = scmp.ne.s32.totalorder %s364, %s365
      %p379 = scmp.eq.s32.totalorder %s37, 1
      %p380 = por %p378, %p379
      %p382 = scmp.ne.s32.totalorder %s365, %s381
      %p383 = scmp.eq.s32.totalorder %s37, 0
      %p384 = por %p382, %p383
      %s385 = ssub.s32 %s31, %s38
      %p386 = scmp.eq.s32.totalorder %s385, 0
      %s388 = sadd.s32 %s387, 1
      %s389 = scalar_select %p386, %s387, %s388
      %p392 = pneg %p386
      %p393 = scmp.eq.s32.totalorder %s31, 1
      %p394 = por %p392, %p393
      %p395 = scmp.ne.s32.totalorder %s387, %s390
      %p396 = scmp.eq.s32.totalorder %s31, 0
      %p397 = por %p395, %p396
      %p398 = scmp.ne.s32.totalorder %s387, %s390
      %p399 = scmp.eq.s32.totalorder %s36, 1
      %p400 = por %p398, %p399
      %p401 = scmp.ne.s32.totalorder %s390, %s391
      %p402 = scmp.eq.s32.totalorder %s36, 0
      %p403 = por %p401, %p402
      %p404 = scmp.ne.s32.totalorder %s390, %s391
      %p405 = scmp.eq.s32.totalorder %s37, 1
      %p406 = por %p404, %p405
      %p408 = scmp.ne.s32.totalorder %s391, %s407
      %p409 = scmp.eq.s32.totalorder %s37, 0
      %p410 = por %p408, %p409
      %s411 = ssub.s32 %s31, %s38
      %p412 = scmp.eq.s32.totalorder %s411, 0
      %s414 = sadd.s32 %s413, 1
      %s415 = scalar_select %p412, %s413, %s414
      %p418 = pneg %p412
      %p419 = scmp.eq.s32.totalorder %s31, 1
      %p420 = por %p418, %p419
      %p421 = scmp.ne.s32.totalorder %s413, %s416
      %p422 = scmp.eq.s32.totalorder %s31, 0
      %p423 = por %p421, %p422
      %p424 = scmp.ne.s32.totalorder %s413, %s416
      %p425 = scmp.eq.s32.totalorder %s36, 1
      %p426 = por %p424, %p425
      %p427 = scmp.ne.s32.totalorder %s416, %s417
      %p428 = scmp.eq.s32.totalorder %s36, 0
      %p429 = por %p427, %p428
      %p430 = scmp.ne.s32.totalorder %s416, %s417
      %p431 = scmp.eq.s32.totalorder %s37, 1
      %p432 = por %p430, %p431
      %p434 = scmp.ne.s32.totalorder %s417, %s433
      %p435 = scmp.eq.s32.totalorder %s37, 0
      %p436 = por %p434, %p435
      %s437 = ssub.s32 %s31, %s38
      %p438 = scmp.eq.s32.totalorder %s437, 0
      %s440 = sadd.s32 %s439, 1
      %s441 = scalar_select %p438, %s439, %s440
      %p444 = pneg %p438
      %p445 = scmp.eq.s32.totalorder %s31, 1
      %p446 = por %p444, %p445
      %p447 = scmp.ne.s32.totalorder %s439, %s442
      %p448 = scmp.eq.s32.totalorder %s31, 0
      %p449 = por %p447, %p448
      %p450 = scmp.ne.s32.totalorder %s439, %s442
      %p451 = scmp.eq.s32.totalorder %s36, 1
      %p452 = por %p450, %p451
      %p453 = scmp.ne.s32.totalorder %s442, %s443
      %p454 = scmp.eq.s32.totalorder %s36, 0
      %p455 = por %p453, %p454
      %p456 = scmp.ne.s32.totalorder %s442, %s443
      %p457 = scmp.eq.s32.totalorder %s37, 1
      %p458 = por %p456, %p457
      %p460 = scmp.ne.s32.totalorder %s443, %s459
      %p461 = scmp.eq.s32.totalorder %s37, 0
      %p462 = por %p460, %p461
      %s463 = ssub.s32 %s31, %s38
      %p464 = scmp.eq.s32.totalorder %s463, 0
      %s466 = sadd.s32 %s465, 1
      %s467 = scalar_select %p464, %s465, %s466
      %p470 = pneg %p464
      %p471 = scmp.eq.s32.totalorder %s31, 1
      %p472 = por %p470, %p471
      %p473 = scmp.ne.s32.totalorder %s465, %s468
      %p474 = scmp.eq.s32.totalorder %s31, 0
      %p475 = por %p473, %p474
      %p476 = scmp.ne.s32.totalorder %s465, %s468
      %p477 = scmp.eq.s32.totalorder %s36, 1
      %p478 = por %p476, %p477
      %p479 = scmp.ne.s32.totalorder %s468, %s469
      %p480 = scmp.eq.s32.totalorder %s36, 0
      %p481 = por %p479, %p480
      %p482 = scmp.ne.s32.totalorder %s468, %s469
      %p483 = scmp.eq.s32.totalorder %s37, 1
      %p484 = por %p482, %p483
      %p486 = scmp.ne.s32.totalorder %s469, %s485
      %p487 = scmp.eq.s32.totalorder %s37, 0
      %p488 = por %p486, %p487
      %p489 = scmp.le.s32.totalorder 1, %s31
      %p490 = scmp.lt.s32.totalorder %s31, 3
      %p491 = pnand %p489, %p490
      %p492 = pneg %p491
      // Predicated region
      $region9: #{patch_dis_net_forward.1} parent=5 // pred_check
        _
      $region10: #{patch_dis_net_forward.1} parent=5 // pred_check_branch
        %494 = sbr.rel (%p491) target = $region12
      $region11: #{patch_dis_net_forward.1} parent=5 // pred_region
        %s495 = ssub.s32 %s31, 1
        // Predicated region
        $region13: #{patch_dis_net_forward.1} parent=11 // pred_check
          %p496 = pneg %p78
        $region14: #{patch_dis_net_forward.1} parent=11 // pred_check_branch
          %498 = sbr.rel (%p496) target = $region16
        $region15: #{patch_dis_net_forward.1} parent=11 // pred_region
          _
        $region16: #{patch_dis_net_forward.1} parent=11 // pred_fallthru
          _
        // Predicated region
        $region17: #{patch_dis_net_forward.1} parent=11 // pred_check
          %p499 = pneg %p99
        $region18: #{patch_dis_net_forward.1} parent=11 // pred_check_branch
          %501 = sbr.rel (%p499) target = $region20
        $region19: #{patch_dis_net_forward.1} parent=11 // pred_region
          _
        $region20: #{patch_dis_net_forward.1} parent=11 // pred_fallthru
          _
        // Predicated region
        $region21: #{patch_dis_net_forward.1} parent=11 // pred_check
          %p502 = pneg %p120
        $region22: #{patch_dis_net_forward.1} parent=11 // pred_check_branch
          %504 = sbr.rel (%p502) target = $region24
        $region23: #{patch_dis_net_forward.1} parent=11 // pred_region
          _
        $region24: #{patch_dis_net_forward.1} parent=11 // pred_fallthru
          _
        // Predicated region
        $region25: #{patch_dis_net_forward.1} parent=11 // pred_check
          %p505 = pneg %p141
        $region26: #{patch_dis_net_forward.1} parent=11 // pred_check_branch
          %507 = sbr.rel (%p505) target = $region28
        $region27: #{patch_dis_net_forward.1} parent=11 // pred_region
          _
        $region28: #{patch_dis_net_forward.1} parent=11 // pred_fallthru
          _
        // Predicated region
        $region29: #{patch_dis_net_forward.1} parent=11 // pred_check
          %p508 = pneg %p162
        $region30: #{patch_dis_net_forward.1} parent=11 // pred_check_branch
          %510 = sbr.rel (%p508) target = $region32
        $region31: #{patch_dis_net_forward.1} parent=11 // pred_region
          _
        $region32: #{patch_dis_net_forward.1} parent=11 // pred_fallthru
          _
        // Predicated region
        $region33: #{patch_dis_net_forward.1} parent=11 // pred_check
          %p511 = pneg %p183
        $region34: #{patch_dis_net_forward.1} parent=11 // pred_check_branch
          %513 = sbr.rel (%p511) target = $region36
        $region35: #{patch_dis_net_forward.1} parent=11 // pred_region
          _
        $region36: #{patch_dis_net_forward.1} parent=11 // pred_fallthru
          _
        // Predicated region
        $region37: #{patch_dis_net_forward.1} parent=11 // pred_check
          %p514 = pneg %p204
        $region38: #{patch_dis_net_forward.1} parent=11 // pred_check_branch
          %516 = sbr.rel (%p514) target = $region40
        $region39: #{patch_dis_net_forward.1} parent=11 // pred_region
          _
        $region40: #{patch_dis_net_forward.1} parent=11 // pred_fallthru
          _
        // Predicated region
        $region41: #{patch_dis_net_forward.1} parent=11 // pred_check
          %p517 = pneg %p225
        $region42: #{patch_dis_net_forward.1} parent=11 // pred_check_branch
          %519 = sbr.rel (%p517) target = $region44
        $region43: #{patch_dis_net_forward.1} parent=11 // pred_region
          _
        $region44: #{patch_dis_net_forward.1} parent=11 // pred_fallthru
          _
        // Predicated region
        $region45: #{patch_dis_net_forward.1} parent=11 // pred_check
          %p520 = pneg %p246
        $region46: #{patch_dis_net_forward.1} parent=11 // pred_check_branch
          %522 = sbr.rel (%p520) target = $region48
        $region47: #{patch_dis_net_forward.1} parent=11 // pred_region
          _
        $region48: #{patch_dis_net_forward.1} parent=11 // pred_fallthru
          _
        // Predicated region
        $region49: #{patch_dis_net_forward.1} parent=11 // pred_check
          %p523 = pneg %p267
        $region50: #{patch_dis_net_forward.1} parent=11 // pred_check_branch
          %525 = sbr.rel (%p523) target = $region52
        $region51: #{patch_dis_net_forward.1} parent=11 // pred_region
          _
        $region52: #{patch_dis_net_forward.1} parent=11 // pred_fallthru
          _
        // Predicated region
        $region53: #{patch_dis_net_forward.1} parent=11 // pred_check
          %p526 = pneg %p288
        $region54: #{patch_dis_net_forward.1} parent=11 // pred_check_branch
          %528 = sbr.rel (%p526) target = $region56
        $region55: #{patch_dis_net_forward.1} parent=11 // pred_region
          _
        $region56: #{patch_dis_net_forward.1} parent=11 // pred_fallthru
          _
        // Predicated region
        $region57: #{patch_dis_net_forward.1} parent=11 // pred_check
          %p529 = pneg %p309
        $region58: #{patch_dis_net_forward.1} parent=11 // pred_check_branch
          %531 = sbr.rel (%p529) target = $region60
        $region59: #{patch_dis_net_forward.1} parent=11 // pred_region
          _
        $region60: #{patch_dis_net_forward.1} parent=11 // pred_fallthru
          _
        // Predicated region
        $region61: #{patch_dis_net_forward.1} parent=11 // pred_check
          %p532 = pneg %p330
        $region62: #{patch_dis_net_forward.1} parent=11 // pred_check_branch
          %534 = sbr.rel (%p532) target = $region64
        $region63: #{patch_dis_net_forward.1} parent=11 // pred_region
          _
        $region64: #{patch_dis_net_forward.1} parent=11 // pred_fallthru
          _
        // Predicated region
        $region65: #{patch_dis_net_forward.1} parent=11 // pred_check
          %p535 = pneg %p351
        $region66: #{patch_dis_net_forward.1} parent=11 // pred_check_branch
          %537 = sbr.rel (%p535) target = $region68
        $region67: #{patch_dis_net_forward.1} parent=11 // pred_region
          _
        $region68: #{patch_dis_net_forward.1} parent=11 // pred_fallthru
          _
      $region12: #{patch_dis_net_forward.1} parent=5 // pred_fallthru
        _
      %p538 = scmp.lt.s32.totalorder %s31, 2
      // Predicated region
      $region69: #{patch_dis_net_forward.1} parent=5 // pred_check
        %p539 = pneg %p538
      $region70: #{patch_dis_net_forward.1} parent=5 // pred_check_branch
        %541 = sbr.rel (%p539) target = $region72
      $region71: #{patch_dis_net_forward.1} parent=5 // pred_region
        // Predicated region
        $region73: #{patch_dis_net_forward.1} parent=71 // pred_check
          %p542 = pneg %p51
        $region74: #{patch_dis_net_forward.1} parent=71 // pred_check_branch
          %544 = sbr.rel (%p542) target = $region76
        $region75: #{patch_dis_net_forward.1} parent=71 // pred_region
          %p545 = scmp.lt.s32.totalorder %s31, 1
          %s546 = scalar_select %p545, %s31, 1
          %s547 = smul.addr %s546, 11
          %s548 = smul.addr %s547, 4
          %s549 = scalar_lea.vmem %s0, %s548
        $region76: #{patch_dis_net_forward.1} parent=71 // pred_fallthru
          _
      $region72: #{patch_dis_net_forward.1} parent=5 // pred_fallthru
        _
      %p550 = scmp.le.s32.totalorder 1, %s31
      %p551 = scmp.lt.s32.totalorder %s31, 3
      %p552 = pnand %p550, %p551
      %p553 = pneg %p552
      // Predicated region
      $region77: #{patch_dis_net_forward.1} parent=5 // pred_check
        _
      $region78: #{patch_dis_net_forward.1} parent=5 // pred_check_branch
        %555 = sbr.rel (%p552) target = $region80
      $region79: #{patch_dis_net_forward.1} parent=5 // pred_region
        %s556 = ssub.s32 %s31, 1
        %p557 = scmp.lt.s32.totalorder %s36, 1
        %s558 = scalar_select %p557, %s36, 1
        %s559 = smul.addr %s558, 11
        %s560 = smul.addr %s559, 4
        %s561 = scalar_lea.vmem %s0, %s560
        %p562 = pneg %p57
        %p563 = pneg %p54
        %p564 = pneg %p78
        %p565 = pneg %p75
        %p566 = pneg %p99
        %p567 = pneg %p96
        %p568 = pneg %p120
        %p569 = pneg %p117
        %p570 = pneg %p141
        %p571 = pneg %p138
        %p572 = pneg %p162
        %p573 = pneg %p159
        %p574 = pneg %p183
        %p575 = pneg %p180
        %p576 = pneg %p204
        %p577 = pneg %p201
        %p578 = pneg %p225
        %p579 = pneg %p222
        %p580 = pneg %p246
        %p581 = pneg %p243
        %p582 = pneg %p267
        %p583 = pneg %p264
        %p584 = pneg %p288
        %p585 = pneg %p285
        %p586 = pneg %p309
        %p587 = pneg %p306
        %p588 = pneg %p330
        %p589 = pneg %p327
        %p590 = pneg %p351
        %p591 = pneg %p348
        %p592 = pneg %p377
        %p593 = pneg %p374
        %p594 = scmp.lt.s32.totalorder %s36, 1
        %s595 = scalar_select %p594, %s36, 1
        %s596 = smul.addr %s595, 11
        %s597 = smul.addr %s596, 8
        %s598 = scalar_lea.vmem %s15, %s597
        %p599 = pneg %p403
        %p600 = pneg %p400
        %p601 = scmp.lt.s32.totalorder %s36, 1
        %s602 = scalar_select %p601, %s36, 1
        %s603 = smul.addr %s602, 4
        %s604 = smul.addr %s603, 8
        %s605 = scalar_lea.vmem %s16, %s604
        %p606 = pneg %p429
        %p607 = pneg %p426
        %p608 = scmp.lt.s32.totalorder %s36, 1
        %s609 = scalar_select %p608, %s36, 1
        %s610 = smul.addr %s609, 2
        %s611 = smul.addr %s610, 8
        %s612 = scalar_lea.vmem %s17, %s611
        %p613 = pneg %p455
        %p614 = pneg %p452
        %s615 = sand.u32 %s442, 1
        %s616 = scalar_lea.sflag [#allocation8], %s615
        %s617 = sand.u32 %s442, 1
        %s618 = smul.addr %s617, 4
        %s619 = scalar_lea.vmem [#allocation7], %s618
        %p620 = pneg %p481
        %p621 = pneg %p478
        %p622 = scmp.lt.s32.totalorder %s36, 1
        %s623 = scalar_select %p622, %s36, 1
        %s624 = smul.addr %s623, 2
        %s625 = smul.addr %s624, 8
        %s626 = scalar_lea.vmem %s19, %s625
        %p627 = scmp.lt.s32.totalorder %s36, 1
        %s628 = scalar_select %p627, %s36, 1
        %s629 = smul.addr %s628, 11
        %s630 = smul.addr %s629, 4
        %s631 = scalar_lea.vmem %s0, %s630
        %p632 = scmp.lt.s32.totalorder %s36, 1
        %s633 = scalar_select %p632, %s36, 1
        %s634 = smul.addr %s633, 11
        %s635 = smul.addr %s634, 8
        %s636 = scalar_lea.vmem %s15, %s635
        %p637 = scmp.lt.s32.totalorder %s36, 1
        %s638 = scalar_select %p637, %s36, 1
        %s639 = smul.addr %s638, 4
        %s640 = smul.addr %s639, 8
        %s641 = scalar_lea.vmem %s16, %s640
        %p642 = scmp.lt.s32.totalorder %s36, 1
        %s643 = scalar_select %p642, %s36, 1
        %s644 = smul.addr %s643, 2
        %s645 = smul.addr %s644, 8
        %s646 = scalar_lea.vmem %s17, %s645
        %p647 = scmp.lt.s32.totalorder %s36, 1
        %s648 = scalar_select %p647, %s36, 1
        %s649 = smul.addr %s648, 2
        %s650 = smul.addr %s649, 8
        %s651 = scalar_lea.vmem %s19, %s650
        %v653 = vld [vmem:[%s631] sm:$0xf]
        %v654 = vld [vmem:[%s631 + $0x4] sm:$0xf]
        %v655 = vld [vmem:[%s631 + $0x8] sm:$0xf]
        %v656 = vld [vmem:[%s631 + $0xc] sm:$0xf]
        %v657 = vld [vmem:[%s631 + $0x10] sm:$0xf]
        %v658 = vld [vmem:[%s631 + $0x14] sm:$0xf]
        %v659 = vld [vmem:[%s631 + $0x18] sm:$0xf]
        %v660 = vld [vmem:[%s631 + $0x1c] sm:$0xf]
        %v661 = vld [vmem:[%s631 + $0x20] sm:$0xf]
        %v662 = vld [vmem:[%s631 + $0x24] sm:$0xf]
        %v663 = vld [vmem:[%s631 + $0x28] sm:$0x1]
        %v664 = vld [vmem:[%s5] sm:$0xf]
        %v665 = vld [vmem:[%s5 + $0x4] sm:$0xf]
        %v666 = vld [vmem:[%s5 + $0x8] sm:$0xf]
        %v667 = vld [vmem:[%s5 + $0xc] sm:$0xf]
        %v668 = vld [vmem:[%s5 + $0x10] sm:$0xf]
        %v669 = vld [vmem:[%s5 + $0x14] sm:$0xf]
        %v670 = vld [vmem:[%s5 + $0x18] sm:$0xf]
        %v671 = vld [vmem:[%s5 + $0x1c] sm:$0xf]
        %v672 = vld [vmem:[%s10] sm:$0x1]
        %v674 = vlaneseq
        %v675 = vshrl.u32 %v674, 7
        %v676 = vsub.s32 0, %v675
        %v677 = vrot.slane %v672, %v676
        %v690 = vunpack.c.l.b16 %v653
        %v691 = vunpack.c.l.b16 %v654
        %v692 = vunpack.c.l.b16 %v655
        %v693 = vunpack.c.l.b16 %v656
        %v694 = vunpack.c.l.b16 %v657
        %v695 = vunpack.c.l.b16 %v658
        %v696 = vunpack.c.l.b16 %v659
        %v697 = vunpack.c.l.b16 %v660
        %v698 = vunpack.c.l.b16 %v661
        %v699 = vunpack.c.l.b16 %v662
        %v700 = vunpack.c.l.b16 %v663
        %v701 = vpack.c.b16 %v691, %v690
        %v702 = vpack.c.b16 %v693, %v692
        %v703 = vpack.c.b16 %v695, %v694
        %v704 = vpack.c.b16 %v697, %v696
        %v705 = vpack.c.b16 %v699, %v698
        %v706 = vpack.c.b16 %v700, %v700
        %v715 = vunpack.c.l.b16 %v664
        %v716 = vunpack.c.l.b16 %v665
        %v717 = vunpack.c.l.b16 %v666
        %v718 = vunpack.c.l.b16 %v667
        %v719 = vunpack.c.l.b16 %v668
        %v720 = vunpack.c.l.b16 %v669
        %v721 = vunpack.c.l.b16 %v670
        %v722 = vunpack.c.l.b16 %v671
        %v723 = vpack.c.b16 %v716, %v715
        %v724 = vpack.c.b16 %v718, %v717
        %v725 = vpack.c.b16 %v720, %v719
        %v726 = vpack.c.b16 %v722, %v721
        %vm731 = vcmask 523264
        %v733 = vsel %vm731, %v701, 0
        %v736 = vsel %vm731, %v702, 0
        %v739 = vsel %vm731, %v703, 0
        %v742 = vsel %vm731, %v704, 0
        %v745 = vsel %vm731, %v705, 0
        %v748 = vsel %vm731, %v706, 0
        %750 = vmatprep.subr.bf16.mxu0 0
        %751 = vmatpush1.bf16.msra.mxu0 0
        %752 = vmatprep.subr.bf16.mxu0 0
        %753 = vmatpush1.bf16.msra.mxu0 0
        %754 = vmatprep.subr.bf16.mxu0 0
        %755 = vmatpush1.bf16.msra.mxu0 0
        %756 = vmatprep.subr.bf16.mxu0 0
        %757 = vmatpush1.bf16.msra.mxu0 0
        %758 = vmatprep.subr.bf16.mxu0 0
        %759 = vmatpush1.bf16.msra.mxu0 %v726
        %760 = vmatprep.subr.bf16.mxu0 0
        %761 = vmatpush1.bf16.msra.mxu0 %v725
        %762 = vmatprep.subr.bf16.mxu0 0
        %763 = vmatpush1.bf16.msra.mxu0 %v724
        %764 = vmatprep.subr.bf16.mxu0 0
        %765 = vmatpush1.bf16.msra.mxu0 %v723
        %766 = vmatprep.subr.bf16.mxu0 0
        %767 = vmatpush2.bf16.msra.mxu0 0
        %768 = vmatprep.subr.bf16.mxu0 0
        %769 = vmatpush2.bf16.msra.mxu0 0
        %770 = vmatprep.subr.bf16.mxu0 0
        %771 = vmatpush2.bf16.msra.mxu0 0
        %772 = vmatprep.subr.bf16.mxu0 0
        %773 = vmatpush2.bf16.msra.mxu0 0
        %774 = vmatprep.subr.bf16.mxu0 0
        %775 = vmatpush2.bf16.msra.mxu0 0
        %776 = vmatprep.subr.bf16.mxu0 0
        %777 = vmatpush2.bf16.msra.mxu0 0
        %778 = vmatprep.subr.bf16.mxu0 0
        %779 = vmatpush2.bf16.msra.mxu0 0
        %780 = vmatprep.subr.bf16.mxu0 0
        %781 = vmatpush2.bf16.msra.mxu0 0
        %782 = vmatprep.mubr.bf16.mxu0 0
        %783 = vmatmul.mubr.bf16.gmra.mxu0 %v733
        %v784 = vpop.f32.mrf.mxu0
        %v785 = vadd.f32 %v677, %v784
        %v786 = vpop.f32.mrf.mxu0
        %v787 = vpop.f32.mrf.mxu0
        %v788 = vadd.f32 %v677, %v787
        %v789 = vpop.f32.mrf.mxu0
        %790 = vmatprep.mubr.bf16.mxu0 0
        %791 = vmatmul.mubr.bf16.gmra.mxu0 %v736
        %v792 = vpop.f32.mrf.mxu0
        %v793 = vadd.f32 %v677, %v792
        %v794 = vpop.f32.mrf.mxu0
        %v795 = vpop.f32.mrf.mxu0
        %v796 = vadd.f32 %v677, %v795
        %v797 = vpop.f32.mrf.mxu0
        %798 = vmatprep.mubr.bf16.mxu0 0
        %799 = vmatmul.mubr.bf16.gmra.mxu0 %v739
        %v800 = vpop.f32.mrf.mxu0
        %v801 = vadd.f32 %v677, %v800
        %v802 = vpop.f32.mrf.mxu0
        %v803 = vpop.f32.mrf.mxu0
        %v804 = vadd.f32 %v677, %v803
        %v805 = vpop.f32.mrf.mxu0
        %806 = vmatprep.mubr.bf16.mxu0 0
        %807 = vmatmul.mubr.bf16.gmra.mxu0 %v742
        %v808 = vpop.f32.mrf.mxu0
        %v809 = vadd.f32 %v677, %v808
        %v810 = vpop.f32.mrf.mxu0
        %v811 = vpop.f32.mrf.mxu0
        %v812 = vadd.f32 %v677, %v811
        %v813 = vpop.f32.mrf.mxu0
        %814 = vmatprep.mubr.bf16.mxu0 0
        %815 = vmatmul.mubr.bf16.gmra.mxu0 %v745
        %v816 = vpop.f32.mrf.mxu0
        %v817 = vadd.f32 %v677, %v816
        %v818 = vpop.f32.mrf.mxu0
        %v819 = vpop.f32.mrf.mxu0
        %v820 = vadd.f32 %v677, %v819
        %v821 = vpop.f32.mrf.mxu0
        %822 = vmatprep.mubr.bf16.mxu0 0
        %823 = vmatmul.mubr.bf16.gmra.mxu0 %v748
        %v824 = vpop.f32.mrf.mxu0
        %v825 = vadd.f32 %v677, %v824
        %v826 = vpop.f32.mrf.mxu0
        %v827 = vpop.f32.mrf.mxu0
        %v828 = vpop.f32.mrf.mxu0
        %829 = vdwg.mxu0
        %vm830 = vcmp.ge.f32.partialorder %v785, 0.0
        %vm831 = vcmp.ge.f32.partialorder %v788, 0.0
        %vm832 = vcmp.ge.f32.partialorder %v793, 0.0
        %vm833 = vcmp.ge.f32.partialorder %v796, 0.0
        %vm834 = vcmp.ge.f32.partialorder %v801, 0.0
        %vm835 = vcmp.ge.f32.partialorder %v804, 0.0
        %vm836 = vcmp.ge.f32.partialorder %v809, 0.0
        %vm837 = vcmp.ge.f32.partialorder %v812, 0.0
        %vm838 = vcmp.ge.f32.partialorder %v817, 0.0
        %vm839 = vcmp.ge.f32.partialorder %v820, 0.0
        %vm840 = vcmp.ge.f32.partialorder %v825, 0.0
        %v841 = vmul.f32 %v785, 0.2
        %v842 = vmul.f32 %v788, 0.2
        %v843 = vmul.f32 %v793, 0.2
        %v844 = vmul.f32 %v796, 0.2
        %v845 = vmul.f32 %v801, 0.2
        %v846 = vmul.f32 %v804, 0.2
        %v847 = vmul.f32 %v809, 0.2
        %v848 = vmul.f32 %v812, 0.2
        %v849 = vmul.f32 %v817, 0.2
        %v850 = vmul.f32 %v820, 0.2
        %v851 = vmul.f32 %v825, 0.2
        %v852 = vsel %vm830, %v785, %v841
        %v853 = vsel %vm831, %v788, %v842
        %v854 = vsel %vm832, %v793, %v843
        %v855 = vsel %vm833, %v796, %v844
        %v856 = vsel %vm834, %v801, %v845
        %v857 = vsel %vm835, %v804, %v846
        %v858 = vsel %vm836, %v809, %v847
        %v859 = vsel %vm837, %v812, %v848
        %v860 = vsel %vm838, %v817, %v849
        %v861 = vsel %vm839, %v820, %v850
        %v862 = vsel %vm840, %v825, %v851
        %vm863 = vcmask 64512
        %864 = vst.msk [vmem:[%s636] sm:$0xff] %vm863, %v852
        %865 = vst.msk [vmem:[%s636 + $0x8] sm:$0xff] %vm863, %v853
        %866 = vst.msk [vmem:[%s636 + $0x10] sm:$0xff] %vm863, %v854
        %867 = vst.msk [vmem:[%s636 + $0x18] sm:$0xff] %vm863, %v855
        %868 = vst.msk [vmem:[%s636 + $0x20] sm:$0xff] %vm863, %v856
        %869 = vst.msk [vmem:[%s636 + $0x28] sm:$0xff] %vm863, %v857
        %870 = vst.msk [vmem:[%s636 + $0x30] sm:$0xff] %vm863, %v858
        %871 = vst.msk [vmem:[%s636 + $0x38] sm:$0xff] %vm863, %v859
        %872 = vst.msk [vmem:[%s636 + $0x40] sm:$0xff] %vm863, %v860
        %873 = vst.msk [vmem:[%s636 + $0x48] sm:$0xff] %vm863, %v861
        %vm874 = vcmask 57344
        %875 = vst.msk [vmem:[%s636 + $0x50] sm:$0x1] %vm874, %v862
        %v876 = vpack.c.bf16 %v853, %v852
        %v877 = vpack.c.bf16 %v855, %v854
        %v878 = vpack.c.bf16 %v857, %v856
        %v879 = vpack.c.bf16 %v859, %v858
        %v880 = vpack.c.bf16 %v861, %v860
        %v881 = vpack.c.bf16 %v862, %v862
        %v882 = vld [vmem:[%s1] sm:$0xf]
        %v883 = vld [vmem:[%s1 + $0x4] sm:$0xf]
        %v884 = vld [vmem:[%s1 + $0x8] sm:$0xf]
        %v885 = vld [vmem:[%s1 + $0xc] sm:$0x1]
        %v890 = vunpack.c.l.b16 %v882
        %v891 = vunpack.c.l.b16 %v883
        %v892 = vunpack.c.l.b16 %v884
        %v893 = vunpack.c.l.b16 %v885
        %v894 = vpack.c.b16 %v891, %v890
        %v895 = vpack.c.b16 %v893, %v892
        %vm896 = vcmask 662528
        %v898 = vsel %vm896, %v894, 0
        %v901 = vsel %vm896, %v895, 0
        %vm903 = vcmask 1040384
        %v904 = vsel 0, 4294967295, 65535
        %v905 = vsel %vm903, %v904, 0
        %v907 = vand.u32 %v881, %v905
        %909 = vmatprep.subr.bf16.mxu0 0
        %910 = vmatpush1.bf16.msra.mxu0 0
        %911 = vmatprep.subr.bf16.mxu0 0
        %912 = vmatpush1.bf16.msra.mxu0 0
        %913 = vmatprep.subr.bf16.mxu0 0
        %914 = vmatpush1.bf16.msra.mxu0 %v907
        %915 = vmatprep.subr.bf16.mxu0 0
        %916 = vmatpush1.bf16.msra.mxu0 %v880
        %917 = vmatprep.subr.bf16.mxu0 0
        %918 = vmatpush1.bf16.msra.mxu0 %v879
        %919 = vmatprep.subr.bf16.mxu0 0
        %920 = vmatpush1.bf16.msra.mxu0 %v878
        %921 = vmatprep.subr.bf16.mxu0 0
        %922 = vmatpush1.bf16.msra.mxu0 %v877
        %923 = vmatprep.subr.bf16.mxu0 0
        %924 = vmatpush1.bf16.msra.mxu0 %v876
        %925 = vmatprep.subr.bf16.mxu0 0
        %926 = vmatpush2.bf16.msra.mxu0 0
        %927 = vmatprep.subr.bf16.mxu0 0
        %928 = vmatpush2.bf16.msra.mxu0 0
        %929 = vmatprep.subr.bf16.mxu0 0
        %930 = vmatpush2.bf16.msra.mxu0 0
        %931 = vmatprep.subr.bf16.mxu0 0
        %932 = vmatpush2.bf16.msra.mxu0 0
        %933 = vmatprep.subr.bf16.mxu0 0
        %934 = vmatpush2.bf16.msra.mxu0 0
        %935 = vmatprep.subr.bf16.mxu0 0
        %936 = vmatpush2.bf16.msra.mxu0 0
        %937 = vmatprep.subr.bf16.mxu0 0
        %938 = vmatpush2.bf16.msra.mxu0 0
        %939 = vmatprep.subr.bf16.mxu0 0
        %940 = vmatpush2.bf16.msra.mxu0 0
        %941 = vmatprep.mubr.bf16.mxu0 0
        %942 = vmatmul.mubr.bf16.gmra.mxu0 %v898
        %v943 = vpop.f32.mrf.mxu0
        %v944 = vadd.f32 0.0, %v943
        %v945 = vpop.f32.mrf.mxu0
        %v946 = vpop.f32.mrf.mxu0
        %v947 = vadd.f32 0.0, %v946
        %v948 = vpop.f32.mrf.mxu0
        %949 = vmatprep.mubr.bf16.mxu0 0
        %950 = vmatmul.mubr.bf16.gmra.mxu0 %v901
        %v951 = vpop.f32.mrf.mxu0
        %v952 = vadd.f32 0.0, %v951
        %v953 = vpop.f32.mrf.mxu0
        %v954 = vpop.f32.mrf.mxu0
        %v955 = vadd.f32 0.0, %v954
        %v956 = vpop.f32.mrf.mxu0
        %957 = vdwg.mxu0
        %v958 = vpack.c.bf16 %v947, %v944
        %v959 = vpack.c.bf16 %v955, %v952
        %v962 = vunpack.c.l.b16 %v958
        %v963 = vunpack.c.h.b16 %v958
        %v964 = vunpack.c.l.b16 %v959
        %v965 = vunpack.c.h.b16 %v959
        %v966 = vpack.c.b16 %v962, %v962
        %v967 = vpack.c.b16 %v963, %v963
        %v968 = vpack.c.b16 %v964, %v964
        %v969 = vpack.c.b16 %v965, %v965
        %vm974 = vcmask 60416
        %975 = vst.msk [vmem:[#allocation2] sm:$0xf] %vm974, %v966
        %976 = vst.msk [vmem:[#allocation2 + $0x4] sm:$0xf] %vm974, %v967
        %977 = vst.msk [vmem:[#allocation2 + $0x8] sm:$0xf] %vm974, %v968
        %vm978 = vcmask 57344
        %vm979 = vsmask.f32 256
        %vm980 = vmand %vm978, %vm979
        %v981 = vld [vmem:[#allocation2 + $0xc] sm:$0x1]
        %v982 = vsel %vm980, %v969, %v981
        %983 = vst [vmem:[#allocation2 + $0xc] sm:$0x1] %v982
        %s984 = scalar_lea.vmem %s1, 16
        %v985 = vld [vmem:[%s984] sm:$0xf]
        %v986 = vld [vmem:[%s984 + $0x4] sm:$0xf]
        %v987 = vld [vmem:[%s984 + $0x8] sm:$0xf]
        %v988 = vld [vmem:[%s984 + $0xc] sm:$0x1]
        %v993 = vunpack.c.l.b16 %v985
        %v994 = vunpack.c.l.b16 %v986
        %v995 = vunpack.c.l.b16 %v987
        %v996 = vunpack.c.l.b16 %v988
        %v997 = vpack.c.b16 %v994, %v993
        %v998 = vpack.c.b16 %v996, %v995
        %v1000 = vsel %vm896, %v997, 0
        %v1003 = vsel %vm896, %v998, 0
        %1005 = vmatprep.subr.bf16.mxu0 0
        %1006 = vmatpush1.bf16.msra.mxu0 0
        %1007 = vmatprep.subr.bf16.mxu0 0
        %1008 = vmatpush1.bf16.msra.mxu0 0
        %1009 = vmatprep.subr.bf16.mxu0 0
        %1010 = vmatpush1.bf16.msra.mxu0 %v907
        %1011 = vmatprep.subr.bf16.mxu0 0
        %1012 = vmatpush1.bf16.msra.mxu0 %v880
        %1013 = vmatprep.subr.bf16.mxu0 0
        %1014 = vmatpush1.bf16.msra.mxu0 %v879
        %1015 = vmatprep.subr.bf16.mxu0 0
        %1016 = vmatpush1.bf16.msra.mxu0 %v878
        %1017 = vmatprep.subr.bf16.mxu0 0
        %1018 = vmatpush1.bf16.msra.mxu0 %v877
        %1019 = vmatprep.subr.bf16.mxu0 0
        %1020 = vmatpush1.bf16.msra.mxu0 %v876
        %1021 = vmatprep.subr.bf16.mxu0 0
        %1022 = vmatpush2.bf16.msra.mxu0 0
        %1023 = vmatprep.subr.bf16.mxu0 0
        %1024 = vmatpush2.bf16.msra.mxu0 0
        %1025 = vmatprep.subr.bf16.mxu0 0
        %1026 = vmatpush2.bf16.msra.mxu0 0
        %1027 = vmatprep.subr.bf16.mxu0 0
        %1028 = vmatpush2.bf16.msra.mxu0 0
        %1029 = vmatprep.subr.bf16.mxu0 0
        %1030 = vmatpush2.bf16.msra.mxu0 0
        %1031 = vmatprep.subr.bf16.mxu0 0
        %1032 = vmatpush2.bf16.msra.mxu0 0
        %1033 = vmatprep.subr.bf16.mxu0 0
        %1034 = vmatpush2.bf16.msra.mxu0 0
        %1035 = vmatprep.subr.bf16.mxu0 0
        %1036 = vmatpush2.bf16.msra.mxu0 0
        %1037 = vmatprep.mubr.bf16.mxu0 0
        %1038 = vmatmul.mubr.bf16.gmra.mxu0 %v1000
        %v1039 = vpop.f32.mrf.mxu0
        %v1040 = vadd.f32 0.0, %v1039
        %v1041 = vpop.f32.mrf.mxu0
        %v1042 = vpop.f32.mrf.mxu0
        %v1043 = vadd.f32 0.0, %v1042
        %v1044 = vpop.f32.mrf.mxu0
        %1045 = vmatprep.mubr.bf16.mxu0 0
        %1046 = vmatmul.mubr.bf16.gmra.mxu0 %v1003
        %v1047 = vpop.f32.mrf.mxu0
        %v1048 = vadd.f32 0.0, %v1047
        %v1049 = vpop.f32.mrf.mxu0
        %v1050 = vpop.f32.mrf.mxu0
        %v1051 = vadd.f32 0.0, %v1050
        %v1052 = vpop.f32.mrf.mxu0
        %1053 = vdwg.mxu0
        %v1054 = vpack.c.bf16 %v1043, %v1040
        %v1055 = vpack.c.bf16 %v1051, %v1048
        %v1058 = vunpack.c.l.b16 %v1054
        %v1059 = vunpack.c.h.b16 %v1054
        %v1060 = vunpack.c.l.b16 %v1055
        %v1061 = vunpack.c.h.b16 %v1055
        %v1062 = vpack.c.b16 %v1058, %v1058
        %v1063 = vpack.c.b16 %v1059, %v1059
        %v1064 = vpack.c.b16 %v1060, %v1060
        %v1065 = vpack.c.b16 %v1061, %v1061
        %1066 = vrot.lane.b32.xlu0 %v1062, 8
        %v1067 = vpop.permute.xlu0 %1066
        %1068 = vrot.lane.b32.xlu0 %v1063, 8
        %v1069 = vpop.permute.xlu0 %1068
        %1070 = vrot.lane.b32.xlu0 %v1064, 8
        %v1071 = vpop.permute.xlu0 %1070
        %1072 = vrot.lane.b32.xlu0 %v1065, 8
        %v1073 = vpop.permute.xlu0 %1072
        %vm1078 = vcmask 126016
        %1079 = vst.msk [vmem:[#allocation2] sm:$0xf] %vm1078, %v1067
        %1080 = vst.msk [vmem:[#allocation2 + $0x4] sm:$0xf] %vm1078, %v1069
        %1081 = vst.msk [vmem:[#allocation2 + $0x8] sm:$0xf] %vm1078, %v1071
        %vm1082 = vcmask 122944
        %vm1083 = vmand %vm1082, %vm979
        %v1084 = vld [vmem:[#allocation2 + $0xc] sm:$0x1]
        %v1085 = vsel %vm1083, %v1073, %v1084
        %1086 = vst [vmem:[#allocation2 + $0xc] sm:$0x1] %v1085
        %s1087 = scalar_lea.vmem %s1, 32
        %v1088 = vld [vmem:[%s1087] sm:$0xf]
        %v1089 = vld [vmem:[%s1087 + $0x4] sm:$0xf]
        %v1090 = vld [vmem:[%s1087 + $0x8] sm:$0xf]
        %v1091 = vld [vmem:[%s1087 + $0xc] sm:$0x1]
        %v1096 = vunpack.c.l.b16 %v1088
        %v1097 = vunpack.c.l.b16 %v1089
        %v1098 = vunpack.c.l.b16 %v1090
        %v1099 = vunpack.c.l.b16 %v1091
        %v1100 = vpack.c.b16 %v1097, %v1096
        %v1101 = vpack.c.b16 %v1099, %v1098
        %v1103 = vsel %vm896, %v1100, 0
        %v1106 = vsel %vm896, %v1101, 0
        %1108 = vmatprep.subr.bf16.mxu0 0
        %1109 = vmatpush1.bf16.msra.mxu0 0
        %1110 = vmatprep.subr.bf16.mxu0 0
        %1111 = vmatpush1.bf16.msra.mxu0 0
        %1112 = vmatprep.subr.bf16.mxu0 0
        %1113 = vmatpush1.bf16.msra.mxu0 %v907
        %1114 = vmatprep.subr.bf16.mxu0 0
        %1115 = vmatpush1.bf16.msra.mxu0 %v880
        %1116 = vmatprep.subr.bf16.mxu0 0
        %1117 = vmatpush1.bf16.msra.mxu0 %v879
        %1118 = vmatprep.subr.bf16.mxu0 0
        %1119 = vmatpush1.bf16.msra.mxu0 %v878
        %1120 = vmatprep.subr.bf16.mxu0 0
        %1121 = vmatpush1.bf16.msra.mxu0 %v877
        %1122 = vmatprep.subr.bf16.mxu0 0
        %1123 = vmatpush1.bf16.msra.mxu0 %v876
        %1124 = vmatprep.subr.bf16.mxu0 0
        %1125 = vmatpush2.bf16.msra.mxu0 0
        %1126 = vmatprep.subr.bf16.mxu0 0
        %1127 = vmatpush2.bf16.msra.mxu0 0
        %1128 = vmatprep.subr.bf16.mxu0 0
        %1129 = vmatpush2.bf16.msra.mxu0 0
        %1130 = vmatprep.subr.bf16.mxu0 0
        %1131 = vmatpush2.bf16.msra.mxu0 0
        %1132 = vmatprep.subr.bf16.mxu0 0
        %1133 = vmatpush2.bf16.msra.mxu0 0
        %1134 = vmatprep.subr.bf16.mxu0 0
        %1135 = vmatpush2.bf16.msra.mxu0 0
        %1136 = vmatprep.subr.bf16.mxu0 0
        %1137 = vmatpush2.bf16.msra.mxu0 0
        %1138 = vmatprep.subr.bf16.mxu0 0
        %1139 = vmatpush2.bf16.msra.mxu0 0
        %1140 = vmatprep.mubr.bf16.mxu0 0
        %1141 = vmatmul.mubr.bf16.gmra.mxu0 %v1103
        %v1142 = vpop.f32.mrf.mxu0
        %v1143 = vadd.f32 0.0, %v1142
        %v1144 = vpop.f32.mrf.mxu0
        %v1145 = vpop.f32.mrf.mxu0
        %v1146 = vadd.f32 0.0, %v1145
        %v1147 = vpop.f32.mrf.mxu0
        %1148 = vmatprep.mubr.bf16.mxu0 0
        %1149 = vmatmul.mubr.bf16.gmra.mxu0 %v1106
        %v1150 = vpop.f32.mrf.mxu0
        %v1151 = vadd.f32 0.0, %v1150
        %v1152 = vpop.f32.mrf.mxu0
        %v1153 = vpop.f32.mrf.mxu0
        %v1154 = vadd.f32 0.0, %v1153
        %v1155 = vpop.f32.mrf.mxu0
        %1156 = vdwg.mxu0
        %v1157 = vpack.c.bf16 %v1146, %v1143
        %v1158 = vpack.c.bf16 %v1154, %v1151
        %v1161 = vunpack.c.l.b16 %v1157
        %v1162 = vunpack.c.h.b16 %v1157
        %v1163 = vunpack.c.l.b16 %v1158
        %v1164 = vunpack.c.h.b16 %v1158
        %v1165 = vpack.c.b16 %v1161, %v1161
        %v1166 = vpack.c.b16 %v1162, %v1162
        %v1167 = vpack.c.b16 %v1163, %v1163
        %v1168 = vpack.c.b16 %v1164, %v1164
        %1169 = vrot.lane.b32.xlu0 %v1165, 16
        %v1170 = vpop.permute.xlu0 %1169
        %1171 = vrot.lane.b32.xlu0 %v1166, 16
        %v1172 = vpop.permute.xlu0 %1171
        %1173 = vrot.lane.b32.xlu0 %v1167, 16
        %v1174 = vpop.permute.xlu0 %1173
        %1175 = vrot.lane.b32.xlu0 %v1168, 16
        %v1176 = vpop.permute.xlu0 %1175
        %vm1181 = vcmask 191616
        %1182 = vst.msk [vmem:[#allocation2] sm:$0xf] %vm1181, %v1170
        %1183 = vst.msk [vmem:[#allocation2 + $0x4] sm:$0xf] %vm1181, %v1172
        %1184 = vst.msk [vmem:[#allocation2 + $0x8] sm:$0xf] %vm1181, %v1174
        %vm1185 = vcmask 188544
        %vm1186 = vmand %vm1185, %vm979
        %v1187 = vld [vmem:[#allocation2 + $0xc] sm:$0x1]
        %v1188 = vsel %vm1186, %v1176, %v1187
        %1189 = vst [vmem:[#allocation2 + $0xc] sm:$0x1] %v1188
        %s1190 = scalar_lea.vmem %s1, 48
        %v1191 = vld [vmem:[%s1190] sm:$0xf]
        %v1192 = vld [vmem:[%s1190 + $0x4] sm:$0xf]
        %v1193 = vld [vmem:[%s1190 + $0x8] sm:$0xf]
        %v1194 = vld [vmem:[%s1190 + $0xc] sm:$0x1]
        %v1199 = vunpack.c.l.b16 %v1191
        %v1200 = vunpack.c.l.b16 %v1192
        %v1201 = vunpack.c.l.b16 %v1193
        %v1202 = vunpack.c.l.b16 %v1194
        %v1203 = vpack.c.b16 %v1200, %v1199
        %v1204 = vpack.c.b16 %v1202, %v1201
        %v1206 = vsel %vm896, %v1203, 0
        %v1209 = vsel %vm896, %v1204, 0
        %1211 = vmatprep.subr.bf16.mxu0 0
        %1212 = vmatpush1.bf16.msra.mxu0 0
        %1213 = vmatprep.subr.bf16.mxu0 0
        %1214 = vmatpush1.bf16.msra.mxu0 0
        %1215 = vmatprep.subr.bf16.mxu0 0
        %1216 = vmatpush1.bf16.msra.mxu0 %v907
        %1217 = vmatprep.subr.bf16.mxu0 0
        %1218 = vmatpush1.bf16.msra.mxu0 %v880
        %1219 = vmatprep.subr.bf16.mxu0 0
        %1220 = vmatpush1.bf16.msra.mxu0 %v879
        %1221 = vmatprep.subr.bf16.mxu0 0
        %1222 = vmatpush1.bf16.msra.mxu0 %v878
        %1223 = vmatprep.subr.bf16.mxu0 0
        %1224 = vmatpush1.bf16.msra.mxu0 %v877
        %1225 = vmatprep.subr.bf16.mxu0 0
        %1226 = vmatpush1.bf16.msra.mxu0 %v876
        %1227 = vmatprep.subr.bf16.mxu0 0
        %1228 = vmatpush2.bf16.msra.mxu0 0
        %1229 = vmatprep.subr.bf16.mxu0 0
        %1230 = vmatpush2.bf16.msra.mxu0 0
        %1231 = vmatprep.subr.bf16.mxu0 0
        %1232 = vmatpush2.bf16.msra.mxu0 0
        %1233 = vmatprep.subr.bf16.mxu0 0
        %1234 = vmatpush2.bf16.msra.mxu0 0
        %1235 = vmatprep.subr.bf16.mxu0 0
        %1236 = vmatpush2.bf16.msra.mxu0 0
        %1237 = vmatprep.subr.bf16.mxu0 0
        %1238 = vmatpush2.bf16.msra.mxu0 0
        %1239 = vmatprep.subr.bf16.mxu0 0
        %1240 = vmatpush2.bf16.msra.mxu0 0
        %1241 = vmatprep.subr.bf16.mxu0 0
        %1242 = vmatpush2.bf16.msra.mxu0 0
        %1243 = vmatprep.mubr.bf16.mxu0 0
        %1244 = vmatmul.mubr.bf16.gmra.mxu0 %v1206
        %v1245 = vpop.f32.mrf.mxu0
        %v1246 = vadd.f32 0.0, %v1245
        %v1247 = vpop.f32.mrf.mxu0
        %v1248 = vpop.f32.mrf.mxu0
        %v1249 = vadd.f32 0.0, %v1248
        %v1250 = vpop.f32.mrf.mxu0
        %1251 = vmatprep.mubr.bf16.mxu0 0
        %1252 = vmatmul.mubr.bf16.gmra.mxu0 %v1209
        %v1253 = vpop.f32.mrf.mxu0
        %v1254 = vadd.f32 0.0, %v1253
        %v1255 = vpop.f32.mrf.mxu0
        %v1256 = vpop.f32.mrf.mxu0
        %v1257 = vadd.f32 0.0, %v1256
        %v1258 = vpop.f32.mrf.mxu0
        %1259 = vdwg.mxu0
        %v1260 = vpack.c.bf16 %v1249, %v1246
        %v1261 = vpack.c.bf16 %v1257, %v1254
        %v1264 = vunpack.c.l.b16 %v1260
        %v1265 = vunpack.c.h.b16 %v1260
        %v1266 = vunpack.c.l.b16 %v1261
        %v1267 = vunpack.c.h.b16 %v1261
        %v1268 = vpack.c.b16 %v1264, %v1264
        %v1269 = vpack.c.b16 %v1265, %v1265
        %v1270 = vpack.c.b16 %v1266, %v1266
        %v1271 = vpack.c.b16 %v1267, %v1267
        %1272 = vrot.lane.b32.xlu0 %v1268, 24
        %v1273 = vpop.permute.xlu0 %1272
        %1274 = vrot.lane.b32.xlu0 %v1269, 24
        %v1275 = vpop.permute.xlu0 %1274
        %1276 = vrot.lane.b32.xlu0 %v1270, 24
        %v1277 = vpop.permute.xlu0 %1276
        %1278 = vrot.lane.b32.xlu0 %v1271, 24
        %v1279 = vpop.permute.xlu0 %1278
        %vm1284 = vcmask 257216
        %1285 = vst.msk [vmem:[#allocation2] sm:$0xf] %vm1284, %v1273
        %1286 = vst.msk [vmem:[#allocation2 + $0x4] sm:$0xf] %vm1284, %v1275
        %1287 = vst.msk [vmem:[#allocation2 + $0x8] sm:$0xf] %vm1284, %v1277
        %vm1288 = vcmask 254144
        %vm1289 = vmand %vm1288, %vm979
        %v1290 = vld [vmem:[#allocation2 + $0xc] sm:$0x1]
        %v1291 = vsel %vm1289, %v1279, %v1290
        %1292 = vst [vmem:[#allocation2 + $0xc] sm:$0x1] %v1291
        %s1293 = scalar_lea.vmem %s1, 64
        %v1294 = vld [vmem:[%s1293] sm:$0xf]
        %v1295 = vld [vmem:[%s1293 + $0x4] sm:$0xf]
        %v1296 = vld [vmem:[%s1293 + $0x8] sm:$0xf]
        %v1297 = vld [vmem:[%s1293 + $0xc] sm:$0x1]
        %v1302 = vunpack.c.l.b16 %v1294
        %v1303 = vunpack.c.l.b16 %v1295
        %v1304 = vunpack.c.l.b16 %v1296
        %v1305 = vunpack.c.l.b16 %v1297
        %v1306 = vpack.c.b16 %v1303, %v1302
        %v1307 = vpack.c.b16 %v1305, %v1304
        %v1309 = vsel %vm896, %v1306, 0
        %v1312 = vsel %vm896, %v1307, 0
        %1314 = vmatprep.subr.bf16.mxu0 0
        %1315 = vmatpush1.bf16.msra.mxu0 0
        %1316 = vmatprep.subr.bf16.mxu0 0
        %1317 = vmatpush1.bf16.msra.mxu0 0
        %1318 = vmatprep.subr.bf16.mxu0 0
        %1319 = vmatpush1.bf16.msra.mxu0 %v907
        %1320 = vmatprep.subr.bf16.mxu0 0
        %1321 = vmatpush1.bf16.msra.mxu0 %v880
        %1322 = vmatprep.subr.bf16.mxu0 0
        %1323 = vmatpush1.bf16.msra.mxu0 %v879
        %1324 = vmatprep.subr.bf16.mxu0 0
        %1325 = vmatpush1.bf16.msra.mxu0 %v878
        %1326 = vmatprep.subr.bf16.mxu0 0
        %1327 = vmatpush1.bf16.msra.mxu0 %v877
        %1328 = vmatprep.subr.bf16.mxu0 0
        %1329 = vmatpush1.bf16.msra.mxu0 %v876
        %1330 = vmatprep.subr.bf16.mxu0 0
        %1331 = vmatpush2.bf16.msra.mxu0 0
        %1332 = vmatprep.subr.bf16.mxu0 0
        %1333 = vmatpush2.bf16.msra.mxu0 0
        %1334 = vmatprep.subr.bf16.mxu0 0
        %1335 = vmatpush2.bf16.msra.mxu0 0
        %1336 = vmatprep.subr.bf16.mxu0 0
        %1337 = vmatpush2.bf16.msra.mxu0 0
        %1338 = vmatprep.subr.bf16.mxu0 0
        %1339 = vmatpush2.bf16.msra.mxu0 0
        %1340 = vmatprep.subr.bf16.mxu0 0
        %1341 = vmatpush2.bf16.msra.mxu0 0
        %1342 = vmatprep.subr.bf16.mxu0 0
        %1343 = vmatpush2.bf16.msra.mxu0 0
        %1344 = vmatprep.subr.bf16.mxu0 0
        %1345 = vmatpush2.bf16.msra.mxu0 0
        %1346 = vmatprep.mubr.bf16.mxu0 0
        %1347 = vmatmul.mubr.bf16.gmra.mxu0 %v1309
        %v1348 = vpop.f32.mrf.mxu0
        %v1349 = vadd.f32 0.0, %v1348
        %v1350 = vpop.f32.mrf.mxu0
        %v1351 = vpop.f32.mrf.mxu0
        %v1352 = vadd.f32 0.0, %v1351
        %v1353 = vpop.f32.mrf.mxu0
        %1354 = vmatprep.mubr.bf16.mxu0 0
        %1355 = vmatmul.mubr.bf16.gmra.mxu0 %v1312
        %v1356 = vpop.f32.mrf.mxu0
        %v1357 = vadd.f32 0.0, %v1356
        %v1358 = vpop.f32.mrf.mxu0
        %v1359 = vpop.f32.mrf.mxu0
        %v1360 = vadd.f32 0.0, %v1359
        %v1361 = vpop.f32.mrf.mxu0
        %1362 = vdwg.mxu0
        %v1363 = vpack.c.bf16 %v1352, %v1349
        %v1364 = vpack.c.bf16 %v1360, %v1357
        %v1367 = vunpack.c.l.b16 %v1363
        %v1368 = vunpack.c.h.b16 %v1363
        %v1369 = vunpack.c.l.b16 %v1364
        %v1370 = vunpack.c.h.b16 %v1364
        %v1371 = vpack.c.b16 %v1367, %v1367
        %v1372 = vpack.c.b16 %v1368, %v1368
        %v1373 = vpack.c.b16 %v1369, %v1369
        %v1374 = vpack.c.b16 %v1370, %v1370
        %1375 = vrot.lane.b32.xlu0 %v1371, 32
        %v1376 = vpop.permute.xlu0 %1375
        %1377 = vrot.lane.b32.xlu0 %v1372, 32
        %v1378 = vpop.permute.xlu0 %1377
        %1379 = vrot.lane.b32.xlu0 %v1373, 32
        %v1380 = vpop.permute.xlu0 %1379
        %1381 = vrot.lane.b32.xlu0 %v1374, 32
        %v1382 = vpop.permute.xlu0 %1381
        %vm1387 = vcmask 322816
        %1388 = vst.msk [vmem:[#allocation2] sm:$0xf] %vm1387, %v1376
        %1389 = vst.msk [vmem:[#allocation2 + $0x4] sm:$0xf] %vm1387, %v1378
        %1390 = vst.msk [vmem:[#allocation2 + $0x8] sm:$0xf] %vm1387, %v1380
        %vm1391 = vcmask 319744
        %vm1392 = vmand %vm1391, %vm979
        %v1393 = vld [vmem:[#allocation2 + $0xc] sm:$0x1]
        %v1394 = vsel %vm1392, %v1382, %v1393
        %1395 = vst [vmem:[#allocation2 + $0xc] sm:$0x1] %v1394
        %s1396 = scalar_lea.vmem %s1, 80
        %v1397 = vld [vmem:[%s1396] sm:$0xf]
        %v1398 = vld [vmem:[%s1396 + $0x4] sm:$0xf]
        %v1399 = vld [vmem:[%s1396 + $0x8] sm:$0xf]
        %v1400 = vld [vmem:[%s1396 + $0xc] sm:$0x1]
        %v1405 = vunpack.c.l.b16 %v1397
        %v1406 = vunpack.c.l.b16 %v1398
        %v1407 = vunpack.c.l.b16 %v1399
        %v1408 = vunpack.c.l.b16 %v1400
        %v1409 = vpack.c.b16 %v1406, %v1405
        %v1410 = vpack.c.b16 %v1408, %v1407
        %v1412 = vsel %vm896, %v1409, 0
        %v1415 = vsel %vm896, %v1410, 0
        %1417 = vmatprep.subr.bf16.mxu0 0
        %1418 = vmatpush1.bf16.msra.mxu0 0
        %1419 = vmatprep.subr.bf16.mxu0 0
        %1420 = vmatpush1.bf16.msra.mxu0 0
        %1421 = vmatprep.subr.bf16.mxu0 0
        %1422 = vmatpush1.bf16.msra.mxu0 %v907
        %1423 = vmatprep.subr.bf16.mxu0 0
        %1424 = vmatpush1.bf16.msra.mxu0 %v880
        %1425 = vmatprep.subr.bf16.mxu0 0
        %1426 = vmatpush1.bf16.msra.mxu0 %v879
        %1427 = vmatprep.subr.bf16.mxu0 0
        %1428 = vmatpush1.bf16.msra.mxu0 %v878
        %1429 = vmatprep.subr.bf16.mxu0 0
        %1430 = vmatpush1.bf16.msra.mxu0 %v877
        %1431 = vmatprep.subr.bf16.mxu0 0
        %1432 = vmatpush1.bf16.msra.mxu0 %v876
        %1433 = vmatprep.subr.bf16.mxu0 0
        %1434 = vmatpush2.bf16.msra.mxu0 0
        %1435 = vmatprep.subr.bf16.mxu0 0
        %1436 = vmatpush2.bf16.msra.mxu0 0
        %1437 = vmatprep.subr.bf16.mxu0 0
        %1438 = vmatpush2.bf16.msra.mxu0 0
        %1439 = vmatprep.subr.bf16.mxu0 0
        %1440 = vmatpush2.bf16.msra.mxu0 0
        %1441 = vmatprep.subr.bf16.mxu0 0
        %1442 = vmatpush2.bf16.msra.mxu0 0
        %1443 = vmatprep.subr.bf16.mxu0 0
        %1444 = vmatpush2.bf16.msra.mxu0 0
        %1445 = vmatprep.subr.bf16.mxu0 0
        %1446 = vmatpush2.bf16.msra.mxu0 0
        %1447 = vmatprep.subr.bf16.mxu0 0
        %1448 = vmatpush2.bf16.msra.mxu0 0
        %1449 = vmatprep.mubr.bf16.mxu0 0
        %1450 = vmatmul.mubr.bf16.gmra.mxu0 %v1412
        %v1451 = vpop.f32.mrf.mxu0
        %v1452 = vadd.f32 0.0, %v1451
        %v1453 = vpop.f32.mrf.mxu0
        %v1454 = vpop.f32.mrf.mxu0
        %v1455 = vadd.f32 0.0, %v1454
        %v1456 = vpop.f32.mrf.mxu0
        %1457 = vmatprep.mubr.bf16.mxu0 0
        %1458 = vmatmul.mubr.bf16.gmra.mxu0 %v1415
        %v1459 = vpop.f32.mrf.mxu0
        %v1460 = vadd.f32 0.0, %v1459
        %v1461 = vpop.f32.mrf.mxu0
        %v1462 = vpop.f32.mrf.mxu0
        %v1463 = vadd.f32 0.0, %v1462
        %v1464 = vpop.f32.mrf.mxu0
        %1465 = vdwg.mxu0
        %v1466 = vpack.c.bf16 %v1455, %v1452
        %v1467 = vpack.c.bf16 %v1463, %v1460
        %v1470 = vunpack.c.l.b16 %v1466
        %v1471 = vunpack.c.h.b16 %v1466
        %v1472 = vunpack.c.l.b16 %v1467
        %v1473 = vunpack.c.h.b16 %v1467
        %v1474 = vpack.c.b16 %v1470, %v1470
        %v1475 = vpack.c.b16 %v1471, %v1471
        %v1476 = vpack.c.b16 %v1472, %v1472
        %v1477 = vpack.c.b16 %v1473, %v1473
        %1478 = vrot.lane.b32.xlu0 %v1474, 40
        %v1479 = vpop.permute.xlu0 %1478
        %1480 = vrot.lane.b32.xlu0 %v1475, 40
        %v1481 = vpop.permute.xlu0 %1480
        %1482 = vrot.lane.b32.xlu0 %v1476, 40
        %v1483 = vpop.permute.xlu0 %1482
        %1484 = vrot.lane.b32.xlu0 %v1477, 40
        %v1485 = vpop.permute.xlu0 %1484
        %vm1490 = vcmask 388416
        %1491 = vst.msk [vmem:[#allocation2] sm:$0xf] %vm1490, %v1479
        %1492 = vst.msk [vmem:[#allocation2 + $0x4] sm:$0xf] %vm1490, %v1481
        %1493 = vst.msk [vmem:[#allocation2 + $0x8] sm:$0xf] %vm1490, %v1483
        %vm1494 = vcmask 385344
        %vm1495 = vmand %vm1494, %vm979
        %v1496 = vld [vmem:[#allocation2 + $0xc] sm:$0x1]
        %v1497 = vsel %vm1495, %v1485, %v1496
        %1498 = vst [vmem:[#allocation2 + $0xc] sm:$0x1] %v1497
        %s1499 = scalar_lea.vmem %s1, 96
        %v1500 = vld [vmem:[%s1499] sm:$0xf]
        %v1501 = vld [vmem:[%s1499 + $0x4] sm:$0xf]
        %v1502 = vld [vmem:[%s1499 + $0x8] sm:$0xf]
        %v1503 = vld [vmem:[%s1499 + $0xc] sm:$0x1]
        %v1508 = vunpack.c.l.b16 %v1500
        %v1509 = vunpack.c.l.b16 %v1501
        %v1510 = vunpack.c.l.b16 %v1502
        %v1511 = vunpack.c.l.b16 %v1503
        %v1512 = vpack.c.b16 %v1509, %v1508
        %v1513 = vpack.c.b16 %v1511, %v1510
        %v1515 = vsel %vm896, %v1512, 0
        %v1518 = vsel %vm896, %v1513, 0
        %1520 = vmatprep.subr.bf16.mxu0 0
        %1521 = vmatpush1.bf16.msra.mxu0 0
        %1522 = vmatprep.subr.bf16.mxu0 0
        %1523 = vmatpush1.bf16.msra.mxu0 0
        %1524 = vmatprep.subr.bf16.mxu0 0
        %1525 = vmatpush1.bf16.msra.mxu0 %v907
        %1526 = vmatprep.subr.bf16.mxu0 0
        %1527 = vmatpush1.bf16.msra.mxu0 %v880
        %1528 = vmatprep.subr.bf16.mxu0 0
        %1529 = vmatpush1.bf16.msra.mxu0 %v879
        %1530 = vmatprep.subr.bf16.mxu0 0
        %1531 = vmatpush1.bf16.msra.mxu0 %v878
        %1532 = vmatprep.subr.bf16.mxu0 0
        %1533 = vmatpush1.bf16.msra.mxu0 %v877
        %1534 = vmatprep.subr.bf16.mxu0 0
        %1535 = vmatpush1.bf16.msra.mxu0 %v876
        %1536 = vmatprep.subr.bf16.mxu0 0
        %1537 = vmatpush2.bf16.msra.mxu0 0
        %1538 = vmatprep.subr.bf16.mxu0 0
        %1539 = vmatpush2.bf16.msra.mxu0 0
        %1540 = vmatprep.subr.bf16.mxu0 0
        %1541 = vmatpush2.bf16.msra.mxu0 0
        %1542 = vmatprep.subr.bf16.mxu0 0
        %1543 = vmatpush2.bf16.msra.mxu0 0
        %1544 = vmatprep.subr.bf16.mxu0 0
        %1545 = vmatpush2.bf16.msra.mxu0 0
        %1546 = vmatprep.subr.bf16.mxu0 0
        %1547 = vmatpush2.bf16.msra.mxu0 0
        %1548 = vmatprep.subr.bf16.mxu0 0
        %1549 = vmatpush2.bf16.msra.mxu0 0
        %1550 = vmatprep.subr.bf16.mxu0 0
        %1551 = vmatpush2.bf16.msra.mxu0 0
        %1552 = vmatprep.mubr.bf16.mxu0 0
        %1553 = vmatmul.mubr.bf16.gmra.mxu0 %v1515
        %v1554 = vpop.f32.mrf.mxu0
        %v1555 = vadd.f32 0.0, %v1554
        %v1556 = vpop.f32.mrf.mxu0
        %v1557 = vpop.f32.mrf.mxu0
        %v1558 = vadd.f32 0.0, %v1557
        %v1559 = vpop.f32.mrf.mxu0
        %1560 = vmatprep.mubr.bf16.mxu0 0
        %1561 = vmatmul.mubr.bf16.gmra.mxu0 %v1518
        %v1562 = vpop.f32.mrf.mxu0
        %v1563 = vadd.f32 0.0, %v1562
        %v1564 = vpop.f32.mrf.mxu0
        %v1565 = vpop.f32.mrf.mxu0
        %v1566 = vadd.f32 0.0, %v1565
        %v1567 = vpop.f32.mrf.mxu0
        %1568 = vdwg.mxu0
        %v1569 = vpack.c.bf16 %v1558, %v1555
        %v1570 = vpack.c.bf16 %v1566, %v1563
        %v1573 = vunpack.c.l.b16 %v1569
        %v1574 = vunpack.c.h.b16 %v1569
        %v1575 = vunpack.c.l.b16 %v1570
        %v1576 = vunpack.c.h.b16 %v1570
        %v1577 = vpack.c.b16 %v1573, %v1573
        %v1578 = vpack.c.b16 %v1574, %v1574
        %v1579 = vpack.c.b16 %v1575, %v1575
        %v1580 = vpack.c.b16 %v1576, %v1576
        %1581 = vrot.lane.b32.xlu0 %v1577, 48
        %v1582 = vpop.permute.xlu0 %1581
        %1583 = vrot.lane.b32.xlu0 %v1578, 48
        %v1584 = vpop.permute.xlu0 %1583
        %1585 = vrot.lane.b32.xlu0 %v1579, 48
        %v1586 = vpop.permute.xlu0 %1585
        %1587 = vrot.lane.b32.xlu0 %v1580, 48
        %v1588 = vpop.permute.xlu0 %1587
        %vm1593 = vcmask 454016
        %1594 = vst.msk [vmem:[#allocation2] sm:$0xf] %vm1593, %v1582
        %1595 = vst.msk [vmem:[#allocation2 + $0x4] sm:$0xf] %vm1593, %v1584
        %1596 = vst.msk [vmem:[#allocation2 + $0x8] sm:$0xf] %vm1593, %v1586
        %vm1597 = vcmask 450944
        %vm1598 = vmand %vm1597, %vm979
        %v1599 = vld [vmem:[#allocation2 + $0xc] sm:$0x1]
        %v1600 = vsel %vm1598, %v1588, %v1599
        %1601 = vst [vmem:[#allocation2 + $0xc] sm:$0x1] %v1600
        %s1602 = scalar_lea.vmem %s1, 112
        %v1603 = vld [vmem:[%s1602] sm:$0xf]
        %v1604 = vld [vmem:[%s1602 + $0x4] sm:$0xf]
        %v1605 = vld [vmem:[%s1602 + $0x8] sm:$0xf]
        %v1606 = vld [vmem:[%s1602 + $0xc] sm:$0x1]
        %v1611 = vunpack.c.l.b16 %v1603
        %v1612 = vunpack.c.l.b16 %v1604
        %v1613 = vunpack.c.l.b16 %v1605
        %v1614 = vunpack.c.l.b16 %v1606
        %v1615 = vpack.c.b16 %v1612, %v1611
        %v1616 = vpack.c.b16 %v1614, %v1613
        %v1618 = vsel %vm896, %v1615, 0
        %v1621 = vsel %vm896, %v1616, 0
        %1623 = vmatprep.subr.bf16.mxu0 0
        %1624 = vmatpush1.bf16.msra.mxu0 0
        %1625 = vmatprep.subr.bf16.mxu0 0
        %1626 = vmatpush1.bf16.msra.mxu0 0
        %1627 = vmatprep.subr.bf16.mxu0 0
        %1628 = vmatpush1.bf16.msra.mxu0 %v907
        %1629 = vmatprep.subr.bf16.mxu0 0
        %1630 = vmatpush1.bf16.msra.mxu0 %v880
        %1631 = vmatprep.subr.bf16.mxu0 0
        %1632 = vmatpush1.bf16.msra.mxu0 %v879
        %1633 = vmatprep.subr.bf16.mxu0 0
        %1634 = vmatpush1.bf16.msra.mxu0 %v878
        %1635 = vmatprep.subr.bf16.mxu0 0
        %1636 = vmatpush1.bf16.msra.mxu0 %v877
        %1637 = vmatprep.subr.bf16.mxu0 0
        %1638 = vmatpush1.bf16.msra.mxu0 %v876
        %1639 = vmatprep.subr.bf16.mxu0 0
        %1640 = vmatpush2.bf16.msra.mxu0 0
        %1641 = vmatprep.subr.bf16.mxu0 0
        %1642 = vmatpush2.bf16.msra.mxu0 0
        %1643 = vmatprep.subr.bf16.mxu0 0
        %1644 = vmatpush2.bf16.msra.mxu0 0
        %1645 = vmatprep.subr.bf16.mxu0 0
        %1646 = vmatpush2.bf16.msra.mxu0 0
        %1647 = vmatprep.subr.bf16.mxu0 0
        %1648 = vmatpush2.bf16.msra.mxu0 0
        %1649 = vmatprep.subr.bf16.mxu0 0
        %1650 = vmatpush2.bf16.msra.mxu0 0
        %1651 = vmatprep.subr.bf16.mxu0 0
        %1652 = vmatpush2.bf16.msra.mxu0 0
        %1653 = vmatprep.subr.bf16.mxu0 0
        %1654 = vmatpush2.bf16.msra.mxu0 0
        %1655 = vmatprep.mubr.bf16.mxu0 0
        %1656 = vmatmul.mubr.bf16.gmra.mxu0 %v1618
        %v1657 = vpop.f32.mrf.mxu0
        %v1658 = vadd.f32 0.0, %v1657
        %v1659 = vpop.f32.mrf.mxu0
        %v1660 = vpop.f32.mrf.mxu0
        %v1661 = vadd.f32 0.0, %v1660
        %v1662 = vpop.f32.mrf.mxu0
        %1663 = vmatprep.mubr.bf16.mxu0 0
        %1664 = vmatmul.mubr.bf16.gmra.mxu0 %v1621
        %v1665 = vpop.f32.mrf.mxu0
        %v1666 = vadd.f32 0.0, %v1665
        %v1667 = vpop.f32.mrf.mxu0
        %v1668 = vpop.f32.mrf.mxu0
        %v1669 = vadd.f32 0.0, %v1668
        %v1670 = vpop.f32.mrf.mxu0
        %1671 = vdwg.mxu0
        %v1672 = vpack.c.bf16 %v1661, %v1658
        %v1673 = vpack.c.bf16 %v1669, %v1666
        %v1676 = vunpack.c.l.b16 %v1672
        %v1677 = vunpack.c.h.b16 %v1672
        %v1678 = vunpack.c.l.b16 %v1673
        %v1679 = vunpack.c.h.b16 %v1673
        %v1680 = vpack.c.b16 %v1676, %v1676
        %v1681 = vpack.c.b16 %v1677, %v1677
        %v1682 = vpack.c.b16 %v1678, %v1678
        %v1683 = vpack.c.b16 %v1679, %v1679
        %1684 = vrot.lane.b32.xlu0 %v1680, 56
        %v1685 = vpop.permute.xlu0 %1684
        %1686 = vrot.lane.b32.xlu0 %v1681, 56
        %v1687 = vpop.permute.xlu0 %1686
        %1688 = vrot.lane.b32.xlu0 %v1682, 56
        %v1689 = vpop.permute.xlu0 %1688
        %1690 = vrot.lane.b32.xlu0 %v1683, 56
        %v1691 = vpop.permute.xlu0 %1690
        %vm1696 = vcmask 519616
        %1697 = vst.msk [vmem:[#allocation2] sm:$0xf] %vm1696, %v1685
        %1698 = vst.msk [vmem:[#allocation2 + $0x4] sm:$0xf] %vm1696, %v1687
        %1699 = vst.msk [vmem:[#allocation2 + $0x8] sm:$0xf] %vm1696, %v1689
        %vm1700 = vcmask 516544
        %vm1701 = vmand %vm1700, %vm979
        %v1702 = vld [vmem:[#allocation2 + $0xc] sm:$0x1]
        %v1703 = vsel %vm1701, %v1691, %v1702
        %1704 = vst [vmem:[#allocation2 + $0xc] sm:$0x1] %v1703
        %s1705 = scalar_lea.vmem %s1, 128
        %v1706 = vld [vmem:[%s1705] sm:$0xf]
        %v1707 = vld [vmem:[%s1705 + $0x4] sm:$0xf]
        %v1708 = vld [vmem:[%s1705 + $0x8] sm:$0xf]
        %v1709 = vld [vmem:[%s1705 + $0xc] sm:$0x1]
        %v1714 = vunpack.c.l.b16 %v1706
        %v1715 = vunpack.c.l.b16 %v1707
        %v1716 = vunpack.c.l.b16 %v1708
        %v1717 = vunpack.c.l.b16 %v1709
        %v1718 = vpack.c.b16 %v1715, %v1714
        %v1719 = vpack.c.b16 %v1717, %v1716
        %v1721 = vsel %vm896, %v1718, 0
        %v1724 = vsel %vm896, %v1719, 0
        %1726 = vmatprep.subr.bf16.mxu0 0
        %1727 = vmatpush1.bf16.msra.mxu0 0
        %1728 = vmatprep.subr.bf16.mxu0 0
        %1729 = vmatpush1.bf16.msra.mxu0 0
        %1730 = vmatprep.subr.bf16.mxu0 0
        %1731 = vmatpush1.bf16.msra.mxu0 %v907
        %1732 = vmatprep.subr.bf16.mxu0 0
        %1733 = vmatpush1.bf16.msra.mxu0 %v880
        %1734 = vmatprep.subr.bf16.mxu0 0
        %1735 = vmatpush1.bf16.msra.mxu0 %v879
        %1736 = vmatprep.subr.bf16.mxu0 0
        %1737 = vmatpush1.bf16.msra.mxu0 %v878
        %1738 = vmatprep.subr.bf16.mxu0 0
        %1739 = vmatpush1.bf16.msra.mxu0 %v877
        %1740 = vmatprep.subr.bf16.mxu0 0
        %1741 = vmatpush1.bf16.msra.mxu0 %v876
        %1742 = vmatprep.subr.bf16.mxu0 0
        %1743 = vmatpush2.bf16.msra.mxu0 0
        %1744 = vmatprep.subr.bf16.mxu0 0
        %1745 = vmatpush2.bf16.msra.mxu0 0
        %1746 = vmatprep.subr.bf16.mxu0 0
        %1747 = vmatpush2.bf16.msra.mxu0 0
        %1748 = vmatprep.subr.bf16.mxu0 0
        %1749 = vmatpush2.bf16.msra.mxu0 0
        %1750 = vmatprep.subr.bf16.mxu0 0
        %1751 = vmatpush2.bf16.msra.mxu0 0
        %1752 = vmatprep.subr.bf16.mxu0 0
        %1753 = vmatpush2.bf16.msra.mxu0 0
        %1754 = vmatprep.subr.bf16.mxu0 0
        %1755 = vmatpush2.bf16.msra.mxu0 0
        %1756 = vmatprep.subr.bf16.mxu0 0
        %1757 = vmatpush2.bf16.msra.mxu0 0
        %1758 = vmatprep.mubr.bf16.mxu0 0
        %1759 = vmatmul.mubr.bf16.gmra.mxu0 %v1721
        %v1760 = vpop.f32.mrf.mxu0
        %v1761 = vadd.f32 0.0, %v1760
        %v1762 = vpop.f32.mrf.mxu0
        %v1763 = vpop.f32.mrf.mxu0
        %v1764 = vadd.f32 0.0, %v1763
        %v1765 = vpop.f32.mrf.mxu0
        %1766 = vmatprep.mubr.bf16.mxu0 0
        %1767 = vmatmul.mubr.bf16.gmra.mxu0 %v1724
        %v1768 = vpop.f32.mrf.mxu0
        %v1769 = vadd.f32 0.0, %v1768
        %v1770 = vpop.f32.mrf.mxu0
        %v1771 = vpop.f32.mrf.mxu0
        %v1772 = vadd.f32 0.0, %v1771
        %v1773 = vpop.f32.mrf.mxu0
        %1774 = vdwg.mxu0
        %v1775 = vpack.c.bf16 %v1764, %v1761
        %v1776 = vpack.c.bf16 %v1772, %v1769
        %v1779 = vunpack.c.l.b16 %v1775
        %v1780 = vunpack.c.h.b16 %v1775
        %v1781 = vunpack.c.l.b16 %v1776
        %v1782 = vunpack.c.h.b16 %v1776
        %v1783 = vpack.c.b16 %v1779, %v1779
        %v1784 = vpack.c.b16 %v1780, %v1780
        %v1785 = vpack.c.b16 %v1781, %v1781
        %v1786 = vpack.c.b16 %v1782, %v1782
        %1787 = vrot.lane.b32.xlu0 %v1783, 64
        %v1788 = vpop.permute.xlu0 %1787
        %1789 = vrot.lane.b32.xlu0 %v1784, 64
        %v1790 = vpop.permute.xlu0 %1789
        %1791 = vrot.lane.b32.xlu0 %v1785, 64
        %v1792 = vpop.permute.xlu0 %1791
        %1793 = vrot.lane.b32.xlu0 %v1786, 64
        %v1794 = vpop.permute.xlu0 %1793
        %vm1799 = vcmask 585216
        %1800 = vst.msk [vmem:[#allocation2] sm:$0xf] %vm1799, %v1788
        %1801 = vst.msk [vmem:[#allocation2 + $0x4] sm:$0xf] %vm1799, %v1790
        %1802 = vst.msk [vmem:[#allocation2 + $0x8] sm:$0xf] %vm1799, %v1792
        %vm1803 = vcmask 582144
        %vm1804 = vmand %vm1803, %vm979
        %v1805 = vld [vmem:[#allocation2 + $0xc] sm:$0x1]
        %v1806 = vsel %vm1804, %v1794, %v1805
        %1807 = vst [vmem:[#allocation2 + $0xc] sm:$0x1] %v1806
        %s1808 = scalar_lea.vmem %s1, 144
        %v1809 = vld [vmem:[%s1808] sm:$0xf]
        %v1810 = vld [vmem:[%s1808 + $0x4] sm:$0xf]
        %v1811 = vld [vmem:[%s1808 + $0x8] sm:$0xf]
        %v1812 = vld [vmem:[%s1808 + $0xc] sm:$0x1]
        %v1817 = vunpack.c.l.b16 %v1809
        %v1818 = vunpack.c.l.b16 %v1810
        %v1819 = vunpack.c.l.b16 %v1811
        %v1820 = vunpack.c.l.b16 %v1812
        %v1821 = vpack.c.b16 %v1818, %v1817
        %v1822 = vpack.c.b16 %v1820, %v1819
        %v1824 = vsel %vm896, %v1821, 0
        %v1827 = vsel %vm896, %v1822, 0
        %1829 = vmatprep.subr.bf16.mxu0 0
        %1830 = vmatpush1.bf16.msra.mxu0 0
        %1831 = vmatprep.subr.bf16.mxu0 0
        %1832 = vmatpush1.bf16.msra.mxu0 0
        %1833 = vmatprep.subr.bf16.mxu0 0
        %1834 = vmatpush1.bf16.msra.mxu0 %v907
        %1835 = vmatprep.subr.bf16.mxu0 0
        %1836 = vmatpush1.bf16.msra.mxu0 %v880
        %1837 = vmatprep.subr.bf16.mxu0 0
        %1838 = vmatpush1.bf16.msra.mxu0 %v879
        %1839 = vmatprep.subr.bf16.mxu0 0
        %1840 = vmatpush1.bf16.msra.mxu0 %v878
        %1841 = vmatprep.subr.bf16.mxu0 0
        %1842 = vmatpush1.bf16.msra.mxu0 %v877
        %1843 = vmatprep.subr.bf16.mxu0 0
        %1844 = vmatpush1.bf16.msra.mxu0 %v876
        %1845 = vmatprep.subr.bf16.mxu0 0
        %1846 = vmatpush2.bf16.msra.mxu0 0
        %1847 = vmatprep.subr.bf16.mxu0 0
        %1848 = vmatpush2.bf16.msra.mxu0 0
        %1849 = vmatprep.subr.bf16.mxu0 0
        %1850 = vmatpush2.bf16.msra.mxu0 0
        %1851 = vmatprep.subr.bf16.mxu0 0
        %1852 = vmatpush2.bf16.msra.mxu0 0
        %1853 = vmatprep.subr.bf16.mxu0 0
        %1854 = vmatpush2.bf16.msra.mxu0 0
        %1855 = vmatprep.subr.bf16.mxu0 0
        %1856 = vmatpush2.bf16.msra.mxu0 0
        %1857 = vmatprep.subr.bf16.mxu0 0
        %1858 = vmatpush2.bf16.msra.mxu0 0
        %1859 = vmatprep.subr.bf16.mxu0 0
        %1860 = vmatpush2.bf16.msra.mxu0 0
        %1861 = vmatprep.mubr.bf16.mxu0 0
        %1862 = vmatmul.mubr.bf16.gmra.mxu0 %v1824
        %v1863 = vpop.f32.mrf.mxu0
        %v1864 = vadd.f32 0.0, %v1863
        %v1865 = vpop.f32.mrf.mxu0
        %v1866 = vpop.f32.mrf.mxu0
        %v1867 = vadd.f32 0.0, %v1866
        %v1868 = vpop.f32.mrf.mxu0
        %1869 = vmatprep.mubr.bf16.mxu0 0
        %1870 = vmatmul.mubr.bf16.gmra.mxu0 %v1827
        %v1871 = vpop.f32.mrf.mxu0
        %v1872 = vadd.f32 0.0, %v1871
        %v1873 = vpop.f32.mrf.mxu0
        %v1874 = vpop.f32.mrf.mxu0
        %v1875 = vadd.f32 0.0, %v1874
        %v1876 = vpop.f32.mrf.mxu0
        %1877 = vdwg.mxu0
        %v1878 = vpack.c.bf16 %v1867, %v1864
        %v1879 = vpack.c.bf16 %v1875, %v1872
        %v1882 = vunpack.c.l.b16 %v1878
        %v1883 = vunpack.c.h.b16 %v1878
        %v1884 = vunpack.c.l.b16 %v1879
        %v1885 = vunpack.c.h.b16 %v1879
        %v1886 = vpack.c.b16 %v1882, %v1882
        %v1887 = vpack.c.b16 %v1883, %v1883
        %v1888 = vpack.c.b16 %v1884, %v1884
        %v1889 = vpack.c.b16 %v1885, %v1885
        %1890 = vrot.lane.b32.xlu0 %v1886, 72
        %v1891 = vpop.permute.xlu0 %1890
        %1892 = vrot.lane.b32.xlu0 %v1887, 72
        %v1893 = vpop.permute.xlu0 %1892
        %1894 = vrot.lane.b32.xlu0 %v1888, 72
        %v1895 = vpop.permute.xlu0 %1894
        %1896 = vrot.lane.b32.xlu0 %v1889, 72
        %v1897 = vpop.permute.xlu0 %1896
        %vm1902 = vcmask 650816
        %1903 = vst.msk [vmem:[#allocation2] sm:$0xf] %vm1902, %v1891
        %1904 = vst.msk [vmem:[#allocation2 + $0x4] sm:$0xf] %vm1902, %v1893
        %1905 = vst.msk [vmem:[#allocation2 + $0x8] sm:$0xf] %vm1902, %v1895
        %vm1906 = vcmask 647744
        %vm1907 = vmand %vm1906, %vm979
        %v1908 = vld [vmem:[#allocation2 + $0xc] sm:$0x1]
        %v1909 = vsel %vm1907, %v1897, %v1908
        %1910 = vst [vmem:[#allocation2 + $0xc] sm:$0x1] %v1909
        %s1911 = scalar_lea.vmem %s1, 160
        %v1912 = vld [vmem:[%s1911] sm:$0xf]
        %v1913 = vld [vmem:[%s1911 + $0x4] sm:$0xf]
        %v1914 = vld [vmem:[%s1911 + $0x8] sm:$0xf]
        %v1915 = vld [vmem:[%s1911 + $0xc] sm:$0x1]
        %v1920 = vunpack.c.l.b16 %v1912
        %v1921 = vunpack.c.l.b16 %v1913
        %v1922 = vunpack.c.l.b16 %v1914
        %v1923 = vunpack.c.l.b16 %v1915
        %v1924 = vpack.c.b16 %v1921, %v1920
        %v1925 = vpack.c.b16 %v1923, %v1922
        %v1927 = vsel %vm896, %v1924, 0
        %v1930 = vsel %vm896, %v1925, 0
        %1932 = vmatprep.subr.bf16.mxu0 0
        %1933 = vmatpush1.bf16.msra.mxu0 0
        %1934 = vmatprep.subr.bf16.mxu0 0
        %1935 = vmatpush1.bf16.msra.mxu0 0
        %1936 = vmatprep.subr.bf16.mxu0 0
        %1937 = vmatpush1.bf16.msra.mxu0 %v907
        %1938 = vmatprep.subr.bf16.mxu0 0
        %1939 = vmatpush1.bf16.msra.mxu0 %v880
        %1940 = vmatprep.subr.bf16.mxu0 0
        %1941 = vmatpush1.bf16.msra.mxu0 %v879
        %1942 = vmatprep.subr.bf16.mxu0 0
        %1943 = vmatpush1.bf16.msra.mxu0 %v878
        %1944 = vmatprep.subr.bf16.mxu0 0
        %1945 = vmatpush1.bf16.msra.mxu0 %v877
        %1946 = vmatprep.subr.bf16.mxu0 0
        %1947 = vmatpush1.bf16.msra.mxu0 %v876
        %1948 = vmatprep.subr.bf16.mxu0 0
        %1949 = vmatpush2.bf16.msra.mxu0 0
        %1950 = vmatprep.subr.bf16.mxu0 0
        %1951 = vmatpush2.bf16.msra.mxu0 0
        %1952 = vmatprep.subr.bf16.mxu0 0
        %1953 = vmatpush2.bf16.msra.mxu0 0
        %1954 = vmatprep.subr.bf16.mxu0 0
        %1955 = vmatpush2.bf16.msra.mxu0 0
        %1956 = vmatprep.subr.bf16.mxu0 0
        %1957 = vmatpush2.bf16.msra.mxu0 0
        %1958 = vmatprep.subr.bf16.mxu0 0
        %1959 = vmatpush2.bf16.msra.mxu0 0
        %1960 = vmatprep.subr.bf16.mxu0 0
        %1961 = vmatpush2.bf16.msra.mxu0 0
        %1962 = vmatprep.subr.bf16.mxu0 0
        %1963 = vmatpush2.bf16.msra.mxu0 0
        %1964 = vmatprep.mubr.bf16.mxu0 0
        %1965 = vmatmul.mubr.bf16.gmra.mxu0 %v1927
        %v1966 = vpop.f32.mrf.mxu0
        %v1967 = vadd.f32 0.0, %v1966
        %v1968 = vpop.f32.mrf.mxu0
        %v1969 = vpop.f32.mrf.mxu0
        %v1970 = vadd.f32 0.0, %v1969
        %v1971 = vpop.f32.mrf.mxu0
        %1972 = vmatprep.mubr.bf16.mxu0 0
        %1973 = vmatmul.mubr.bf16.gmra.mxu0 %v1930
        %v1974 = vpop.f32.mrf.mxu0
        %v1975 = vadd.f32 0.0, %v1974
        %v1976 = vpop.f32.mrf.mxu0
        %v1977 = vpop.f32.mrf.mxu0
        %v1978 = vadd.f32 0.0, %v1977
        %v1979 = vpop.f32.mrf.mxu0
        %1980 = vdwg.mxu0
        %v1981 = vpack.c.bf16 %v1970, %v1967
        %v1982 = vpack.c.bf16 %v1978, %v1975
        %v1985 = vunpack.c.l.b16 %v1981
        %v1986 = vunpack.c.h.b16 %v1981
        %v1987 = vunpack.c.l.b16 %v1982
        %v1988 = vunpack.c.h.b16 %v1982
        %v1989 = vpack.c.b16 %v1985, %v1985
        %v1990 = vpack.c.b16 %v1986, %v1986
        %v1991 = vpack.c.b16 %v1987, %v1987
        %v1992 = vpack.c.b16 %v1988, %v1988
        %1993 = vrot.lane.b32.xlu0 %v1989, 80
        %v1994 = vpop.permute.xlu0 %1993
        %1995 = vrot.lane.b32.xlu0 %v1990, 80
        %v1996 = vpop.permute.xlu0 %1995
        %1997 = vrot.lane.b32.xlu0 %v1991, 80
        %v1998 = vpop.permute.xlu0 %1997
        %1999 = vrot.lane.b32.xlu0 %v1992, 80
        %v2000 = vpop.permute.xlu0 %1999
        %vm2005 = vcmask 716416
        %2006 = vst.msk [vmem:[#allocation2] sm:$0xf] %vm2005, %v1994
        %2007 = vst.msk [vmem:[#allocation2 + $0x4] sm:$0xf] %vm2005, %v1996
        %2008 = vst.msk [vmem:[#allocation2 + $0x8] sm:$0xf] %vm2005, %v1998
        %vm2009 = vcmask 713344
        %vm2010 = vmand %vm2009, %vm979
        %v2011 = vld [vmem:[#allocation2 + $0xc] sm:$0x1]
        %v2012 = vsel %vm2010, %v2000, %v2011
        %2013 = vst [vmem:[#allocation2 + $0xc] sm:$0x1] %v2012
        %s2014 = scalar_lea.vmem %s1, 176
        %v2015 = vld [vmem:[%s2014] sm:$0xf]
        %v2016 = vld [vmem:[%s2014 + $0x4] sm:$0xf]
        %v2017 = vld [vmem:[%s2014 + $0x8] sm:$0xf]
        %v2018 = vld [vmem:[%s2014 + $0xc] sm:$0x1]
        %v2023 = vunpack.c.l.b16 %v2015
        %v2024 = vunpack.c.l.b16 %v2016
        %v2025 = vunpack.c.l.b16 %v2017
        %v2026 = vunpack.c.l.b16 %v2018
        %v2027 = vpack.c.b16 %v2024, %v2023
        %v2028 = vpack.c.b16 %v2026, %v2025
        %v2030 = vsel %vm896, %v2027, 0
        %v2033 = vsel %vm896, %v2028, 0
        %2035 = vmatprep.subr.bf16.mxu0 0
        %2036 = vmatpush1.bf16.msra.mxu0 0
        %2037 = vmatprep.subr.bf16.mxu0 0
        %2038 = vmatpush1.bf16.msra.mxu0 0
        %2039 = vmatprep.subr.bf16.mxu0 0
        %2040 = vmatpush1.bf16.msra.mxu0 %v907
        %2041 = vmatprep.subr.bf16.mxu0 0
        %2042 = vmatpush1.bf16.msra.mxu0 %v880
        %2043 = vmatprep.subr.bf16.mxu0 0
        %2044 = vmatpush1.bf16.msra.mxu0 %v879
        %2045 = vmatprep.subr.bf16.mxu0 0
        %2046 = vmatpush1.bf16.msra.mxu0 %v878
        %2047 = vmatprep.subr.bf16.mxu0 0
        %2048 = vmatpush1.bf16.msra.mxu0 %v877
        %2049 = vmatprep.subr.bf16.mxu0 0
        %2050 = vmatpush1.bf16.msra.mxu0 %v876
        %2051 = vmatprep.subr.bf16.mxu0 0
        %2052 = vmatpush2.bf16.msra.mxu0 0
        %2053 = vmatprep.subr.bf16.mxu0 0
        %2054 = vmatpush2.bf16.msra.mxu0 0
        %2055 = vmatprep.subr.bf16.mxu0 0
        %2056 = vmatpush2.bf16.msra.mxu0 0
        %2057 = vmatprep.subr.bf16.mxu0 0
        %2058 = vmatpush2.bf16.msra.mxu0 0
        %2059 = vmatprep.subr.bf16.mxu0 0
        %2060 = vmatpush2.bf16.msra.mxu0 0
        %2061 = vmatprep.subr.bf16.mxu0 0
        %2062 = vmatpush2.bf16.msra.mxu0 0
        %2063 = vmatprep.subr.bf16.mxu0 0
        %2064 = vmatpush2.bf16.msra.mxu0 0
        %2065 = vmatprep.subr.bf16.mxu0 0
        %2066 = vmatpush2.bf16.msra.mxu0 0
        %2067 = vmatprep.mubr.bf16.mxu0 0
        %2068 = vmatmul.mubr.bf16.gmra.mxu0 %v2030
        %v2069 = vpop.f32.mrf.mxu0
        %v2070 = vadd.f32 0.0, %v2069
        %v2071 = vpop.f32.mrf.mxu0
        %v2072 = vpop.f32.mrf.mxu0
        %v2073 = vadd.f32 0.0, %v2072
        %v2074 = vpop.f32.mrf.mxu0
        %2075 = vmatprep.mubr.bf16.mxu0 0
        %2076 = vmatmul.mubr.bf16.gmra.mxu0 %v2033
        %v2077 = vpop.f32.mrf.mxu0
        %v2078 = vadd.f32 0.0, %v2077
        %v2079 = vpop.f32.mrf.mxu0
        %v2080 = vpop.f32.mrf.mxu0
        %v2081 = vadd.f32 0.0, %v2080
        %v2082 = vpop.f32.mrf.mxu0
        %2083 = vdwg.mxu0
        %v2084 = vpack.c.bf16 %v2073, %v2070
        %v2085 = vpack.c.bf16 %v2081, %v2078
        %v2088 = vunpack.c.l.b16 %v2084
        %v2089 = vunpack.c.h.b16 %v2084
        %v2090 = vunpack.c.l.b16 %v2085
        %v2091 = vunpack.c.h.b16 %v2085
        %v2092 = vpack.c.b16 %v2088, %v2088
        %v2093 = vpack.c.b16 %v2089, %v2089
        %v2094 = vpack.c.b16 %v2090, %v2090
        %v2095 = vpack.c.b16 %v2091, %v2091
        %2096 = vrot.lane.b32.xlu0 %v2092, 88
        %v2097 = vpop.permute.xlu0 %2096
        %2098 = vrot.lane.b32.xlu0 %v2093, 88
        %v2099 = vpop.permute.xlu0 %2098
        %2100 = vrot.lane.b32.xlu0 %v2094, 88
        %v2101 = vpop.permute.xlu0 %2100
        %2102 = vrot.lane.b32.xlu0 %v2095, 88
        %v2103 = vpop.permute.xlu0 %2102
        %vm2108 = vcmask 782016
        %2109 = vst.msk [vmem:[#allocation2] sm:$0xf] %vm2108, %v2097
        %2110 = vst.msk [vmem:[#allocation2 + $0x4] sm:$0xf] %vm2108, %v2099
        %2111 = vst.msk [vmem:[#allocation2 + $0x8] sm:$0xf] %vm2108, %v2101
        %vm2112 = vcmask 778944
        %vm2113 = vmand %vm2112, %vm979
        %v2114 = vld [vmem:[#allocation2 + $0xc] sm:$0x1]
        %v2115 = vsel %vm2113, %v2103, %v2114
        %2116 = vst [vmem:[#allocation2 + $0xc] sm:$0x1] %v2115
        %s2117 = scalar_lea.vmem %s1, 192
        %v2118 = vld [vmem:[%s2117] sm:$0xf]
        %v2119 = vld [vmem:[%s2117 + $0x4] sm:$0xf]
        %v2120 = vld [vmem:[%s2117 + $0x8] sm:$0xf]
        %v2121 = vld [vmem:[%s2117 + $0xc] sm:$0x1]
        %v2126 = vunpack.c.l.b16 %v2118
        %v2127 = vunpack.c.l.b16 %v2119
        %v2128 = vunpack.c.l.b16 %v2120
        %v2129 = vunpack.c.l.b16 %v2121
        %v2130 = vpack.c.b16 %v2127, %v2126
        %v2131 = vpack.c.b16 %v2129, %v2128
        %v2133 = vsel %vm896, %v2130, 0
        %v2136 = vsel %vm896, %v2131, 0
        %2138 = vmatprep.subr.bf16.mxu0 0
        %2139 = vmatpush1.bf16.msra.mxu0 0
        %2140 = vmatprep.subr.bf16.mxu0 0
        %2141 = vmatpush1.bf16.msra.mxu0 0
        %2142 = vmatprep.subr.bf16.mxu0 0
        %2143 = vmatpush1.bf16.msra.mxu0 %v907
        %2144 = vmatprep.subr.bf16.mxu0 0
        %2145 = vmatpush1.bf16.msra.mxu0 %v880
        %2146 = vmatprep.subr.bf16.mxu0 0
        %2147 = vmatpush1.bf16.msra.mxu0 %v879
        %2148 = vmatprep.subr.bf16.mxu0 0
        %2149 = vmatpush1.bf16.msra.mxu0 %v878
        %2150 = vmatprep.subr.bf16.mxu0 0
        %2151 = vmatpush1.bf16.msra.mxu0 %v877
        %2152 = vmatprep.subr.bf16.mxu0 0
        %2153 = vmatpush1.bf16.msra.mxu0 %v876
        %2154 = vmatprep.subr.bf16.mxu0 0
        %2155 = vmatpush2.bf16.msra.mxu0 0
        %2156 = vmatprep.subr.bf16.mxu0 0
        %2157 = vmatpush2.bf16.msra.mxu0 0
        %2158 = vmatprep.subr.bf16.mxu0 0
        %2159 = vmatpush2.bf16.msra.mxu0 0
        %2160 = vmatprep.subr.bf16.mxu0 0
        %2161 = vmatpush2.bf16.msra.mxu0 0
        %2162 = vmatprep.subr.bf16.mxu0 0
        %2163 = vmatpush2.bf16.msra.mxu0 0
        %2164 = vmatprep.subr.bf16.mxu0 0
        %2165 = vmatpush2.bf16.msra.mxu0 0
        %2166 = vmatprep.subr.bf16.mxu0 0
        %2167 = vmatpush2.bf16.msra.mxu0 0
        %2168 = vmatprep.subr.bf16.mxu0 0
        %2169 = vmatpush2.bf16.msra.mxu0 0
        %2170 = vmatprep.mubr.bf16.mxu0 0
        %2171 = vmatmul.mubr.bf16.gmra.mxu0 %v2133
        %v2172 = vpop.f32.mrf.mxu0
        %v2173 = vadd.f32 0.0, %v2172
        %v2174 = vpop.f32.mrf.mxu0
        %v2175 = vpop.f32.mrf.mxu0
        %v2176 = vadd.f32 0.0, %v2175
        %v2177 = vpop.f32.mrf.mxu0
        %2178 = vmatprep.mubr.bf16.mxu0 0
        %2179 = vmatmul.mubr.bf16.gmra.mxu0 %v2136
        %v2180 = vpop.f32.mrf.mxu0
        %v2181 = vadd.f32 0.0, %v2180
        %v2182 = vpop.f32.mrf.mxu0
        %v2183 = vpop.f32.mrf.mxu0
        %v2184 = vadd.f32 0.0, %v2183
        %v2185 = vpop.f32.mrf.mxu0
        %2186 = vdwg.mxu0
        %v2187 = vpack.c.bf16 %v2176, %v2173
        %v2188 = vpack.c.bf16 %v2184, %v2181
        %v2191 = vunpack.c.l.b16 %v2187
        %v2192 = vunpack.c.h.b16 %v2187
        %v2193 = vunpack.c.l.b16 %v2188
        %v2194 = vunpack.c.h.b16 %v2188
        %v2195 = vpack.c.b16 %v2191, %v2191
        %v2196 = vpack.c.b16 %v2192, %v2192
        %v2197 = vpack.c.b16 %v2193, %v2193
        %v2198 = vpack.c.b16 %v2194, %v2194
        %2199 = vrot.lane.b32.xlu0 %v2195, 96
        %v2200 = vpop.permute.xlu0 %2199
        %2201 = vrot.lane.b32.xlu0 %v2196, 96
        %v2202 = vpop.permute.xlu0 %2201
        %2203 = vrot.lane.b32.xlu0 %v2197, 96
        %v2204 = vpop.permute.xlu0 %2203
        %2205 = vrot.lane.b32.xlu0 %v2198, 96
        %v2206 = vpop.permute.xlu0 %2205
        %vm2211 = vcmask 847616
        %2212 = vst.msk [vmem:[#allocation2] sm:$0xf] %vm2211, %v2200
        %2213 = vst.msk [vmem:[#allocation2 + $0x4] sm:$0xf] %vm2211, %v2202
        %2214 = vst.msk [vmem:[#allocation2 + $0x8] sm:$0xf] %vm2211, %v2204
        %vm2215 = vcmask 844544
        %vm2216 = vmand %vm2215, %vm979
        %v2217 = vld [vmem:[#allocation2 + $0xc] sm:$0x1]
        %v2218 = vsel %vm2216, %v2206, %v2217
        %2219 = vst [vmem:[#allocation2 + $0xc] sm:$0x1] %v2218
        %s2220 = scalar_lea.vmem %s1, 208
        %v2221 = vld [vmem:[%s2220] sm:$0xf]
        %v2222 = vld [vmem:[%s2220 + $0x4] sm:$0xf]
        %v2223 = vld [vmem:[%s2220 + $0x8] sm:$0xf]
        %v2224 = vld [vmem:[%s2220 + $0xc] sm:$0x1]
        %v2229 = vunpack.c.l.b16 %v2221
        %v2230 = vunpack.c.l.b16 %v2222
        %v2231 = vunpack.c.l.b16 %v2223
        %v2232 = vunpack.c.l.b16 %v2224
        %v2233 = vpack.c.b16 %v2230, %v2229
        %v2234 = vpack.c.b16 %v2232, %v2231
        %v2236 = vsel %vm896, %v2233, 0
        %v2239 = vsel %vm896, %v2234, 0
        %2241 = vmatprep.subr.bf16.mxu0 0
        %2242 = vmatpush1.bf16.msra.mxu0 0
        %2243 = vmatprep.subr.bf16.mxu0 0
        %2244 = vmatpush1.bf16.msra.mxu0 0
        %2245 = vmatprep.subr.bf16.mxu0 0
        %2246 = vmatpush1.bf16.msra.mxu0 %v907
        %2247 = vmatprep.subr.bf16.mxu0 0
        %2248 = vmatpush1.bf16.msra.mxu0 %v880
        %2249 = vmatprep.subr.bf16.mxu0 0
        %2250 = vmatpush1.bf16.msra.mxu0 %v879
        %2251 = vmatprep.subr.bf16.mxu0 0
        %2252 = vmatpush1.bf16.msra.mxu0 %v878
        %2253 = vmatprep.subr.bf16.mxu0 0
        %2254 = vmatpush1.bf16.msra.mxu0 %v877
        %2255 = vmatprep.subr.bf16.mxu0 0
        %2256 = vmatpush1.bf16.msra.mxu0 %v876
        %2257 = vmatprep.subr.bf16.mxu0 0
        %2258 = vmatpush2.bf16.msra.mxu0 0
        %2259 = vmatprep.subr.bf16.mxu0 0
        %2260 = vmatpush2.bf16.msra.mxu0 0
        %2261 = vmatprep.subr.bf16.mxu0 0
        %2262 = vmatpush2.bf16.msra.mxu0 0
        %2263 = vmatprep.subr.bf16.mxu0 0
        %2264 = vmatpush2.bf16.msra.mxu0 0
        %2265 = vmatprep.subr.bf16.mxu0 0
        %2266 = vmatpush2.bf16.msra.mxu0 0
        %2267 = vmatprep.subr.bf16.mxu0 0
        %2268 = vmatpush2.bf16.msra.mxu0 0
        %2269 = vmatprep.subr.bf16.mxu0 0
        %2270 = vmatpush2.bf16.msra.mxu0 0
        %2271 = vmatprep.subr.bf16.mxu0 0
        %2272 = vmatpush2.bf16.msra.mxu0 0
        %2273 = vmatprep.mubr.bf16.mxu0 0
        %2274 = vmatmul.mubr.bf16.gmra.mxu0 %v2236
        %v2275 = vpop.f32.mrf.mxu0
        %v2276 = vadd.f32 0.0, %v2275
        %v2277 = vpop.f32.mrf.mxu0
        %v2278 = vpop.f32.mrf.mxu0
        %v2279 = vadd.f32 0.0, %v2278
        %v2280 = vpop.f32.mrf.mxu0
        %2281 = vmatprep.mubr.bf16.mxu0 0
        %2282 = vmatmul.mubr.bf16.gmra.mxu0 %v2239
        %v2283 = vpop.f32.mrf.mxu0
        %v2284 = vadd.f32 0.0, %v2283
        %v2285 = vpop.f32.mrf.mxu0
        %v2286 = vpop.f32.mrf.mxu0
        %v2287 = vadd.f32 0.0, %v2286
        %v2288 = vpop.f32.mrf.mxu0
        %2289 = vdwg.mxu0
        %v2290 = vpack.c.bf16 %v2279, %v2276
        %v2291 = vpack.c.bf16 %v2287, %v2284
        %v2294 = vunpack.c.l.b16 %v2290
        %v2295 = vunpack.c.h.b16 %v2290
        %v2296 = vunpack.c.l.b16 %v2291
        %v2297 = vunpack.c.h.b16 %v2291
        %v2298 = vpack.c.b16 %v2294, %v2294
        %v2299 = vpack.c.b16 %v2295, %v2295
        %v2300 = vpack.c.b16 %v2296, %v2296
        %v2301 = vpack.c.b16 %v2297, %v2297
        %2302 = vrot.lane.b32.xlu0 %v2298, 104
        %v2303 = vpop.permute.xlu0 %2302
        %2304 = vrot.lane.b32.xlu0 %v2299, 104
        %v2305 = vpop.permute.xlu0 %2304
        %2306 = vrot.lane.b32.xlu0 %v2300, 104
        %v2307 = vpop.permute.xlu0 %2306
        %2308 = vrot.lane.b32.xlu0 %v2301, 104
        %v2309 = vpop.permute.xlu0 %2308
        %vm2314 = vcmask 913216
        %2315 = vst.msk [vmem:[#allocation2] sm:$0xf] %vm2314, %v2303
        %2316 = vst.msk [vmem:[#allocation2 + $0x4] sm:$0xf] %vm2314, %v2305
        %2317 = vst.msk [vmem:[#allocation2 + $0x8] sm:$0xf] %vm2314, %v2307
        %vm2318 = vcmask 910144
        %vm2319 = vmand %vm2318, %vm979
        %v2320 = vld [vmem:[#allocation2 + $0xc] sm:$0x1]
        %v2321 = vsel %vm2319, %v2309, %v2320
        %2322 = vst [vmem:[#allocation2 + $0xc] sm:$0x1] %v2321
        %s2323 = scalar_lea.vmem %s1, 224
        %v2324 = vld [vmem:[%s2323] sm:$0xf]
        %v2325 = vld [vmem:[%s2323 + $0x4] sm:$0xf]
        %v2326 = vld [vmem:[%s2323 + $0x8] sm:$0xf]
        %v2327 = vld [vmem:[%s2323 + $0xc] sm:$0x1]
        %v2332 = vunpack.c.l.b16 %v2324
        %v2333 = vunpack.c.l.b16 %v2325
        %v2334 = vunpack.c.l.b16 %v2326
        %v2335 = vunpack.c.l.b16 %v2327
        %v2336 = vpack.c.b16 %v2333, %v2332
        %v2337 = vpack.c.b16 %v2335, %v2334
        %v2339 = vsel %vm896, %v2336, 0
        %v2342 = vsel %vm896, %v2337, 0
        %2344 = vmatprep.subr.bf16.mxu0 0
        %2345 = vmatpush1.bf16.msra.mxu0 0
        %2346 = vmatprep.subr.bf16.mxu0 0
        %2347 = vmatpush1.bf16.msra.mxu0 0
        %2348 = vmatprep.subr.bf16.mxu0 0
        %2349 = vmatpush1.bf16.msra.mxu0 %v907
        %2350 = vmatprep.subr.bf16.mxu0 0
        %2351 = vmatpush1.bf16.msra.mxu0 %v880
        %2352 = vmatprep.subr.bf16.mxu0 0
        %2353 = vmatpush1.bf16.msra.mxu0 %v879
        %2354 = vmatprep.subr.bf16.mxu0 0
        %2355 = vmatpush1.bf16.msra.mxu0 %v878
        %2356 = vmatprep.subr.bf16.mxu0 0
        %2357 = vmatpush1.bf16.msra.mxu0 %v877
        %2358 = vmatprep.subr.bf16.mxu0 0
        %2359 = vmatpush1.bf16.msra.mxu0 %v876
        %2360 = vmatprep.subr.bf16.mxu0 0
        %2361 = vmatpush2.bf16.msra.mxu0 0
        %2362 = vmatprep.subr.bf16.mxu0 0
        %2363 = vmatpush2.bf16.msra.mxu0 0
        %2364 = vmatprep.subr.bf16.mxu0 0
        %2365 = vmatpush2.bf16.msra.mxu0 0
        %2366 = vmatprep.subr.bf16.mxu0 0
        %2367 = vmatpush2.bf16.msra.mxu0 0
        %2368 = vmatprep.subr.bf16.mxu0 0
        %2369 = vmatpush2.bf16.msra.mxu0 0
        %2370 = vmatprep.subr.bf16.mxu0 0
        %2371 = vmatpush2.bf16.msra.mxu0 0
        %2372 = vmatprep.subr.bf16.mxu0 0
        %2373 = vmatpush2.bf16.msra.mxu0 0
        %2374 = vmatprep.subr.bf16.mxu0 0
        %2375 = vmatpush2.bf16.msra.mxu0 0
        %2376 = vmatprep.mubr.bf16.mxu0 0
        %2377 = vmatmul.mubr.bf16.gmra.mxu0 %v2339
        %v2378 = vpop.f32.mrf.mxu0
        %v2379 = vadd.f32 0.0, %v2378
        %v2380 = vpop.f32.mrf.mxu0
        %v2381 = vpop.f32.mrf.mxu0
        %v2382 = vadd.f32 0.0, %v2381
        %v2383 = vpop.f32.mrf.mxu0
        %2384 = vmatprep.mubr.bf16.mxu0 0
        %2385 = vmatmul.mubr.bf16.gmra.mxu0 %v2342
        %v2386 = vpop.f32.mrf.mxu0
        %v2387 = vadd.f32 0.0, %v2386
        %v2388 = vpop.f32.mrf.mxu0
        %v2389 = vpop.f32.mrf.mxu0
        %v2390 = vadd.f32 0.0, %v2389
        %v2391 = vpop.f32.mrf.mxu0
        %2392 = vdwg.mxu0
        %v2393 = vpack.c.bf16 %v2382, %v2379
        %v2394 = vpack.c.bf16 %v2390, %v2387
        %v2397 = vunpack.c.l.b16 %v2393
        %v2398 = vunpack.c.h.b16 %v2393
        %v2399 = vunpack.c.l.b16 %v2394
        %v2400 = vunpack.c.h.b16 %v2394
        %v2401 = vpack.c.b16 %v2397, %v2397
        %v2402 = vpack.c.b16 %v2398, %v2398
        %v2403 = vpack.c.b16 %v2399, %v2399
        %v2404 = vpack.c.b16 %v2400, %v2400
        %2405 = vrot.lane.b32.xlu0 %v2401, 112
        %v2406 = vpop.permute.xlu0 %2405
        %2407 = vrot.lane.b32.xlu0 %v2402, 112
        %v2408 = vpop.permute.xlu0 %2407
        %2409 = vrot.lane.b32.xlu0 %v2403, 112
        %v2410 = vpop.permute.xlu0 %2409
        %2411 = vrot.lane.b32.xlu0 %v2404, 112
        %v2412 = vpop.permute.xlu0 %2411
        %vm2417 = vcmask 978816
        %2418 = vst.msk [vmem:[#allocation2] sm:$0xf] %vm2417, %v2406
        %2419 = vst.msk [vmem:[#allocation2 + $0x4] sm:$0xf] %vm2417, %v2408
        %2420 = vst.msk [vmem:[#allocation2 + $0x8] sm:$0xf] %vm2417, %v2410
        %vm2421 = vcmask 975744
        %vm2422 = vmand %vm2421, %vm979
        %v2423 = vld [vmem:[#allocation2 + $0xc] sm:$0x1]
        %v2424 = vsel %vm2422, %v2412, %v2423
        %2425 = vst [vmem:[#allocation2 + $0xc] sm:$0x1] %v2424
        %s2426 = scalar_lea.vmem %s1, 240
        %v2427 = vld [vmem:[%s2426] sm:$0xf]
        %v2428 = vld [vmem:[%s2426 + $0x4] sm:$0xf]
        %v2429 = vld [vmem:[%s2426 + $0x8] sm:$0xf]
        %v2430 = vld [vmem:[%s2426 + $0xc] sm:$0x1]
        %v2435 = vunpack.c.l.b16 %v2427
        %v2436 = vunpack.c.l.b16 %v2428
        %v2437 = vunpack.c.l.b16 %v2429
        %v2438 = vunpack.c.l.b16 %v2430
        %v2439 = vpack.c.b16 %v2436, %v2435
        %v2440 = vpack.c.b16 %v2438, %v2437
        %v2442 = vsel %vm896, %v2439, 0
        %v2445 = vsel %vm896, %v2440, 0
        %2447 = vmatprep.subr.bf16.mxu0 0
        %2448 = vmatpush1.bf16.msra.mxu0 0
        %2449 = vmatprep.subr.bf16.mxu0 0
        %2450 = vmatpush1.bf16.msra.mxu0 0
        %2451 = vmatprep.subr.bf16.mxu0 0
        %2452 = vmatpush1.bf16.msra.mxu0 %v907
        %2453 = vmatprep.subr.bf16.mxu0 0
        %2454 = vmatpush1.bf16.msra.mxu0 %v880
        %2455 = vmatprep.subr.bf16.mxu0 0
        %2456 = vmatpush1.bf16.msra.mxu0 %v879
        %2457 = vmatprep.subr.bf16.mxu0 0
        %2458 = vmatpush1.bf16.msra.mxu0 %v878
        %2459 = vmatprep.subr.bf16.mxu0 0
        %2460 = vmatpush1.bf16.msra.mxu0 %v877
        %2461 = vmatprep.subr.bf16.mxu0 0
        %2462 = vmatpush1.bf16.msra.mxu0 %v876
        %2463 = vmatprep.subr.bf16.mxu0 0
        %2464 = vmatpush2.bf16.msra.mxu0 0
        %2465 = vmatprep.subr.bf16.mxu0 0
        %2466 = vmatpush2.bf16.msra.mxu0 0
        %2467 = vmatprep.subr.bf16.mxu0 0
        %2468 = vmatpush2.bf16.msra.mxu0 0
        %2469 = vmatprep.subr.bf16.mxu0 0
        %2470 = vmatpush2.bf16.msra.mxu0 0
        %2471 = vmatprep.subr.bf16.mxu0 0
        %2472 = vmatpush2.bf16.msra.mxu0 0
        %2473 = vmatprep.subr.bf16.mxu0 0
        %2474 = vmatpush2.bf16.msra.mxu0 0
        %2475 = vmatprep.subr.bf16.mxu0 0
        %2476 = vmatpush2.bf16.msra.mxu0 0
        %2477 = vmatprep.subr.bf16.mxu0 0
        %2478 = vmatpush2.bf16.msra.mxu0 0
        %2479 = vmatprep.mubr.bf16.mxu0 0
        %2480 = vmatmul.mubr.bf16.gmra.mxu0 %v2442
        %v2481 = vpop.f32.mrf.mxu0
        %v2482 = vadd.f32 0.0, %v2481
        %v2483 = vpop.f32.mrf.mxu0
        %v2484 = vpop.f32.mrf.mxu0
        %v2485 = vadd.f32 0.0, %v2484
        %v2486 = vpop.f32.mrf.mxu0
        %2487 = vmatprep.mubr.bf16.mxu0 0
        %2488 = vmatmul.mubr.bf16.gmra.mxu0 %v2445
        %v2489 = vpop.f32.mrf.mxu0
        %v2490 = vadd.f32 0.0, %v2489
        %v2491 = vpop.f32.mrf.mxu0
        %v2492 = vpop.f32.mrf.mxu0
        %v2493 = vadd.f32 0.0, %v2492
        %v2494 = vpop.f32.mrf.mxu0
        %2495 = vdwg.mxu0
        %v2496 = vpack.c.bf16 %v2485, %v2482
        %v2497 = vpack.c.bf16 %v2493, %v2490
        %v2500 = vunpack.c.l.b16 %v2496
        %v2501 = vunpack.c.h.b16 %v2496
        %v2502 = vunpack.c.l.b16 %v2497
        %v2503 = vunpack.c.h.b16 %v2497
        %v2504 = vpack.c.b16 %v2500, %v2500
        %v2505 = vpack.c.b16 %v2501, %v2501
        %v2506 = vpack.c.b16 %v2502, %v2502
        %v2507 = vpack.c.b16 %v2503, %v2503
        %2508 = vrot.lane.b32.xlu0 %v2504, 120
        %v2509 = vpop.permute.xlu0 %2508
        %2510 = vrot.lane.b32.xlu0 %v2505, 120
        %v2511 = vpop.permute.xlu0 %2510
        %2512 = vrot.lane.b32.xlu0 %v2506, 120
        %v2513 = vpop.permute.xlu0 %2512
        %2514 = vrot.lane.b32.xlu0 %v2507, 120
        %v2515 = vpop.permute.xlu0 %2514
        %vm2520 = vcmask 1044416
        %2521 = vst.msk [vmem:[#allocation2] sm:$0xf] %vm2520, %v2509
        %2522 = vst.msk [vmem:[#allocation2 + $0x4] sm:$0xf] %vm2520, %v2511
        %2523 = vst.msk [vmem:[#allocation2 + $0x8] sm:$0xf] %vm2520, %v2513
        %vm2524 = vcmask 1041344
        %vm2525 = vmand %vm2524, %vm979
        %v2526 = vld [vmem:[#allocation2 + $0xc] sm:$0x1]
        %v2527 = vsel %vm2525, %v2515, %v2526
        %2528 = vst [vmem:[#allocation2 + $0xc] sm:$0x1] %v2527
        %v2529 = vld [vmem:[#allocation2] sm:$0xf]
        %v2530 = vld [vmem:[#allocation2 + $0x4] sm:$0xf]
        %v2531 = vld [vmem:[#allocation2 + $0x8] sm:$0xf]
        %v2532 = vld [vmem:[#allocation2 + $0xc] sm:$0x1]
        %v2533 = vld [vmem:[%s6] sm:$0xf]
        %v2534 = vld [vmem:[%s6 + $0x4] sm:$0xf]
        %v2535 = vld [vmem:[%s6 + $0x8] sm:$0xf]
        %v2536 = vld [vmem:[%s6 + $0xc] sm:$0xf]
        %v2537 = vld [vmem:[%s6 + $0x10] sm:$0xf]
        %v2538 = vld [vmem:[%s6 + $0x14] sm:$0xf]
        %v2539 = vld [vmem:[%s6 + $0x18] sm:$0xf]
        %v2540 = vld [vmem:[%s6 + $0x1c] sm:$0xf]
        %v2541 = vld [vmem:[%s6 + $0x20] sm:$0xf]
        %v2542 = vld [vmem:[%s6 + $0x24] sm:$0xf]
        %v2543 = vld [vmem:[%s6 + $0x28] sm:$0xf]
        %v2544 = vld [vmem:[%s6 + $0x2c] sm:$0xf]
        %v2545 = vld [vmem:[%s6 + $0x30] sm:$0xf]
        %v2546 = vld [vmem:[%s6 + $0x34] sm:$0xf]
        %v2547 = vld [vmem:[%s6 + $0x38] sm:$0xf]
        %v2548 = vld [vmem:[%s6 + $0x3c] sm:$0xf]
        %v2549 = vld [vmem:[%s11] sm:$0x1]
        %v2551 = vlaneseq
        %v2552 = vshrl.u32 %v2551, 7
        %v2553 = vsub.s32 0, %v2552
        %v2554 = vrot.slane %v2549, %v2553
        %v2560 = vunpack.c.l.b16 %v2529
        %v2561 = vunpack.c.l.b16 %v2530
        %v2562 = vunpack.c.l.b16 %v2531
        %v2563 = vunpack.c.l.b16 %v2532
        %v2564 = vpack.c.b16 %v2561, %v2560
        %v2565 = vpack.c.b16 %v2563, %v2562
        %v2584 = vunpack.c.l.b16 %v2533
        %v2585 = vunpack.c.l.b16 %v2534
        %v2586 = vunpack.c.l.b16 %v2535
        %v2587 = vunpack.c.l.b16 %v2536
        %v2588 = vunpack.c.l.b16 %v2537
        %v2589 = vunpack.c.l.b16 %v2538
        %v2590 = vunpack.c.l.b16 %v2539
        %v2591 = vunpack.c.l.b16 %v2540
        %v2592 = vunpack.c.l.b16 %v2541
        %v2593 = vunpack.c.l.b16 %v2542
        %v2594 = vunpack.c.l.b16 %v2543
        %v2595 = vunpack.c.l.b16 %v2544
        %v2596 = vunpack.c.l.b16 %v2545
        %v2597 = vunpack.c.l.b16 %v2546
        %v2598 = vunpack.c.l.b16 %v2547
        %v2599 = vunpack.c.l.b16 %v2548
        %v2600 = vpack.c.b16 %v2585, %v2584
        %v2601 = vpack.c.b16 %v2587, %v2586
        %v2602 = vpack.c.b16 %v2589, %v2588
        %v2603 = vpack.c.b16 %v2591, %v2590
        %v2604 = vpack.c.b16 %v2593, %v2592
        %v2605 = vpack.c.b16 %v2595, %v2594
        %v2606 = vpack.c.b16 %v2597, %v2596
        %v2607 = vpack.c.b16 %v2599, %v2598
        %2616 = vmatprep.subr.bf16.mxu0 0
        %2617 = vmatpush1.bf16.msra.mxu0 %v2607
        %2618 = vmatprep.subr.bf16.mxu0 0
        %2619 = vmatpush1.bf16.msra.mxu0 %v2606
        %2620 = vmatprep.subr.bf16.mxu0 0
        %2621 = vmatpush1.bf16.msra.mxu0 %v2605
        %2622 = vmatprep.subr.bf16.mxu0 0
        %2623 = vmatpush1.bf16.msra.mxu0 %v2604
        %2624 = vmatprep.subr.bf16.mxu0 0
        %2625 = vmatpush1.bf16.msra.mxu0 %v2603
        %2626 = vmatprep.subr.bf16.mxu0 0
        %2627 = vmatpush1.bf16.msra.mxu0 %v2602
        %2628 = vmatprep.subr.bf16.mxu0 0
        %2629 = vmatpush1.bf16.msra.mxu0 %v2601
        %2630 = vmatprep.subr.bf16.mxu0 0
        %2631 = vmatpush1.bf16.msra.mxu0 %v2600
        %2632 = vmatprep.subr.bf16.mxu0 0
        %2633 = vmatpush2.bf16.msra.mxu0 0
        %2634 = vmatprep.subr.bf16.mxu0 0
        %2635 = vmatpush2.bf16.msra.mxu0 0
        %2636 = vmatprep.subr.bf16.mxu0 0
        %2637 = vmatpush2.bf16.msra.mxu0 0
        %2638 = vmatprep.subr.bf16.mxu0 0
        %2639 = vmatpush2.bf16.msra.mxu0 0
        %2640 = vmatprep.subr.bf16.mxu0 0
        %2641 = vmatpush2.bf16.msra.mxu0 0
        %2642 = vmatprep.subr.bf16.mxu0 0
        %2643 = vmatpush2.bf16.msra.mxu0 0
        %2644 = vmatprep.subr.bf16.mxu0 0
        %2645 = vmatpush2.bf16.msra.mxu0 0
        %2646 = vmatprep.subr.bf16.mxu0 0
        %2647 = vmatpush2.bf16.msra.mxu0 0
        %2648 = vmatprep.mubr.bf16.mxu0 0
        %2649 = vmatmul.mubr.bf16.gmra.mxu0 %v2564
        %v2650 = vpop.f32.mrf.mxu0
        %v2651 = vadd.f32 %v2554, %v2650
        %v2652 = vpop.f32.mrf.mxu0
        %v2653 = vpop.f32.mrf.mxu0
        %v2654 = vadd.f32 %v2554, %v2653
        %v2655 = vpop.f32.mrf.mxu0
        %2656 = vmatprep.mubr.bf16.mxu0 0
        %2657 = vmatmul.mubr.bf16.gmra.mxu0 %v2565
        %v2658 = vpop.f32.mrf.mxu0
        %v2659 = vadd.f32 %v2554, %v2658
        %v2660 = vpop.f32.mrf.mxu0
        %v2661 = vpop.f32.mrf.mxu0
        %v2662 = vadd.f32 %v2554, %v2661
        %v2663 = vpop.f32.mrf.mxu0
        %2664 = vdwg.mxu0
        %vm2665 = vcmp.ge.f32.partialorder %v2651, 0.0
        %vm2666 = vcmp.ge.f32.partialorder %v2654, 0.0
        %vm2667 = vcmp.ge.f32.partialorder %v2659, 0.0
        %vm2668 = vcmp.ge.f32.partialorder %v2662, 0.0
        %v2669 = vmul.f32 %v2651, 0.2
        %v2670 = vmul.f32 %v2654, 0.2
        %v2671 = vmul.f32 %v2659, 0.2
        %v2672 = vmul.f32 %v2662, 0.2
        %v2673 = vsel %vm2665, %v2651, %v2669
        %v2674 = vsel %vm2666, %v2654, %v2670
        %v2675 = vsel %vm2667, %v2659, %v2671
        %v2676 = vsel %vm2668, %v2662, %v2672
        %vm2677 = vcmask 130048
        %v2678 = vsel %vm2677, %v2673, 0.0
        %v2679 = vsel %vm2677, %v2674, 0.0
        %v2680 = vadd.f32 %v2678, %v2679
        %v2681 = vsel %vm2677, %v2675, 0.0
        %v2682 = vadd.f32 %v2680, %v2681
        %vm2683 = vcmask 122880
        %v2684 = vsel %vm2683, %v2676, 0.0
        %v2685 = vadd.f32 %v2682, %v2684
        %v2686 = vrot.slane %v2685, 4
        %v2687 = vadd.f32 %v2685, %v2686
        %v2688 = vrot.slane %v2687, 2
        %v2689 = vadd.f32 %v2687, %v2688
        %v2690 = vrot.slane %v2689, 1
        %v2691 = vadd.f32 %v2689, %v2690
        %v2692 = vmul.f32 %v2691, 0.04
        %v2693 = vsub.f32 %v2673, %v2692
        %v2694 = vsub.f32 %v2674, %v2692
        %v2695 = vsub.f32 %v2675, %v2692
        %v2696 = vsub.f32 %v2676, %v2692
        %v2697 = vmul.f32 %v2693, %v2693
        %v2698 = vmul.f32 %v2694, %v2694
        %v2699 = vmul.f32 %v2695, %v2695
        %v2700 = vmul.f32 %v2696, %v2696
        %v2701 = vsel %vm2677, %v2697, 0.0
        %v2702 = vsel %vm2677, %v2698, 0.0
        %v2703 = vadd.f32 %v2701, %v2702
        %v2704 = vsel %vm2677, %v2699, 0.0
        %v2705 = vadd.f32 %v2703, %v2704
        %v2706 = vsel %vm2683, %v2700, 0.0
        %v2707 = vadd.f32 %v2705, %v2706
        %v2708 = vrot.slane %v2707, 4
        %v2709 = vadd.f32 %v2707, %v2708
        %v2710 = vrot.slane %v2709, 2
        %v2711 = vadd.f32 %v2709, %v2710
        %v2712 = vrot.slane %v2711, 1
        %v2713 = vadd.f32 %v2711, %v2712
        %v2714 = vmul.f32 %v2713, 0.04
        %v2715 = vadd.f32 %v2714, 1e-05
        %v2716 = vrsqrt.pop %v2715
        %v2717 = vmul.f32 %v2693, %v2716
        %v2718 = vmul.f32 %v2694, %v2716
        %v2719 = vmul.f32 %v2695, %v2716
        %v2720 = vmul.f32 %v2696, %v2716
        %2721 = vst.msk [vmem:[%s641] sm:$0xff] %vm2677, %v2717
        %2722 = vst.msk [vmem:[%s641 + $0x8] sm:$0xff] %vm2677, %v2718
        %2723 = vst.msk [vmem:[%s641 + $0x10] sm:$0xff] %vm2677, %v2719
        %2724 = vst.msk [vmem:[%s641 + $0x18] sm:$0x1] %vm2683, %v2720
        %v2725 = vpack.c.bf16 %v2718, %v2717
        %v2726 = vpack.c.bf16 %v2720, %v2719
        %v2727 = vld [vmem:[%s2] sm:$0xf]
        %v2728 = vld [vmem:[%s2 + $0x4] sm:$0x1]
        %v2731 = vunpack.c.l.b16 %v2727
        %v2732 = vunpack.c.l.b16 %v2728
        %v2733 = vpack.c.b16 %v2732, %v2731
        %vm2734 = vcmask 203776
        %v2736 = vsel %vm2734, %v2733, 0
        %vm2738 = vcmask 1043456
        %vm2739 = vcmask 1044480
        %v2740 = vsel %vm2738, 4294967295, 65535
        %v2741 = vsel %vm2739, %v2740, 0
        %v2743 = vand.u32 %v2726, %v2741
        %2745 = vmatprep.subr.bf16.mxu0 0
        %2746 = vmatpush1.bf16.msra.mxu0 0
        %2747 = vmatprep.subr.bf16.mxu0 0
        %2748 = vmatpush1.bf16.msra.mxu0 0
        %2749 = vmatprep.subr.bf16.mxu0 0
        %2750 = vmatpush1.bf16.msra.mxu0 0
        %2751 = vmatprep.subr.bf16.mxu0 0
        %2752 = vmatpush1.bf16.msra.mxu0 0
        %2753 = vmatprep.subr.bf16.mxu0 0
        %2754 = vmatpush1.bf16.msra.mxu0 0
        %2755 = vmatprep.subr.bf16.mxu0 0
        %2756 = vmatpush1.bf16.msra.mxu0 0
        %2757 = vmatprep.subr.bf16.mxu0 0
        %2758 = vmatpush1.bf16.msra.mxu0 %v2743
        %2759 = vmatprep.subr.bf16.mxu0 0
        %2760 = vmatpush1.bf16.msra.mxu0 %v2725
        %2761 = vmatprep.subr.bf16.mxu0 0
        %2762 = vmatpush2.bf16.msra.mxu0 0
        %2763 = vmatprep.subr.bf16.mxu0 0
        %2764 = vmatpush2.bf16.msra.mxu0 0
        %2765 = vmatprep.subr.bf16.mxu0 0
        %2766 = vmatpush2.bf16.msra.mxu0 0
        %2767 = vmatprep.subr.bf16.mxu0 0
        %2768 = vmatpush2.bf16.msra.mxu0 0
        %2769 = vmatprep.subr.bf16.mxu0 0
        %2770 = vmatpush2.bf16.msra.mxu0 0
        %2771 = vmatprep.subr.bf16.mxu0 0
        %2772 = vmatpush2.bf16.msra.mxu0 0
        %2773 = vmatprep.subr.bf16.mxu0 0
        %2774 = vmatpush2.bf16.msra.mxu0 0
        %2775 = vmatprep.subr.bf16.mxu0 0
        %2776 = vmatpush2.bf16.msra.mxu0 0
        %2777 = vmatprep.mubr.bf16.mxu0 0
        %2778 = vmatmul.mubr.bf16.gmra.mxu0 %v2736
        %v2779 = vpop.f32.mrf.mxu0
        %v2780 = vadd.f32 0.0, %v2779
        %v2781 = vpop.f32.mrf.mxu0
        %v2782 = vpop.f32.mrf.mxu0
        %v2783 = vadd.f32 0.0, %v2782
        %v2784 = vpop.f32.mrf.mxu0
        %2785 = vdwg.mxu0
        %v2786 = vpack.c.bf16 %v2783, %v2780
        %v2788 = vunpack.c.l.b16 %v2786
        %v2789 = vunpack.c.h.b16 %v2786
        %v2790 = vpack.c.b16 %v2788, %v2788
        %v2791 = vpack.c.b16 %v2789, %v2789
        %vm2794 = vcmask 125952
        %2795 = vst.msk [vmem:[#allocation3] sm:$0xf] %vm2794, %v2790
        %vm2796 = vcmask 122880
        %vm2797 = vmand %vm2796, %vm979
        %v2798 = vld [vmem:[#allocation3 + $0x8] sm:$0x1]
        %v2799 = vsel %vm2797, %v2791, %v2798
        %2800 = vst [vmem:[#allocation3 + $0x8] sm:$0x1] %v2799
        %s2801 = scalar_lea.vmem %s2, 8
        %v2802 = vld [vmem:[%s2801] sm:$0xf]
        %v2803 = vld [vmem:[%s2801 + $0x4] sm:$0x1]
        %v2806 = vunpack.c.l.b16 %v2802
        %v2807 = vunpack.c.l.b16 %v2803
        %v2808 = vpack.c.b16 %v2807, %v2806
        %v2810 = vsel %vm2734, %v2808, 0
        %2812 = vmatprep.subr.bf16.mxu0 0
        %2813 = vmatpush1.bf16.msra.mxu0 0
        %2814 = vmatprep.subr.bf16.mxu0 0
        %2815 = vmatpush1.bf16.msra.mxu0 0
        %2816 = vmatprep.subr.bf16.mxu0 0
        %2817 = vmatpush1.bf16.msra.mxu0 0
        %2818 = vmatprep.subr.bf16.mxu0 0
        %2819 = vmatpush1.bf16.msra.mxu0 0
        %2820 = vmatprep.subr.bf16.mxu0 0
        %2821 = vmatpush1.bf16.msra.mxu0 0
        %2822 = vmatprep.subr.bf16.mxu0 0
        %2823 = vmatpush1.bf16.msra.mxu0 0
        %2824 = vmatprep.subr.bf16.mxu0 0
        %2825 = vmatpush1.bf16.msra.mxu0 %v2743
        %2826 = vmatprep.subr.bf16.mxu0 0
        %2827 = vmatpush1.bf16.msra.mxu0 %v2725
        %2828 = vmatprep.subr.bf16.mxu0 0
        %2829 = vmatpush2.bf16.msra.mxu0 0
        %2830 = vmatprep.subr.bf16.mxu0 0
        %2831 = vmatpush2.bf16.msra.mxu0 0
        %2832 = vmatprep.subr.bf16.mxu0 0
        %2833 = vmatpush2.bf16.msra.mxu0 0
        %2834 = vmatprep.subr.bf16.mxu0 0
        %2835 = vmatpush2.bf16.msra.mxu0 0
        %2836 = vmatprep.subr.bf16.mxu0 0
        %2837 = vmatpush2.bf16.msra.mxu0 0
        %2838 = vmatprep.subr.bf16.mxu0 0
        %2839 = vmatpush2.bf16.msra.mxu0 0
        %2840 = vmatprep.subr.bf16.mxu0 0
        %2841 = vmatpush2.bf16.msra.mxu0 0
        %2842 = vmatprep.subr.bf16.mxu0 0
        %2843 = vmatpush2.bf16.msra.mxu0 0
        %2844 = vmatprep.mubr.bf16.mxu0 0
        %2845 = vmatmul.mubr.bf16.gmra.mxu0 %v2810
        %v2846 = vpop.f32.mrf.mxu0
        %v2847 = vadd.f32 0.0, %v2846
        %v2848 = vpop.f32.mrf.mxu0
        %v2849 = vpop.f32.mrf.mxu0
        %v2850 = vadd.f32 0.0, %v2849
        %v2851 = vpop.f32.mrf.mxu0
        %2852 = vdwg.mxu0
        %v2853 = vpack.c.bf16 %v2850, %v2847
        %v2855 = vunpack.c.l.b16 %v2853
        %v2856 = vunpack.c.h.b16 %v2853
        %v2857 = vpack.c.b16 %v2855, %v2855
        %v2858 = vpack.c.b16 %v2856, %v2856
        %2859 = vrot.lane.b32.xlu0 %v2857, 16
        %v2860 = vpop.permute.xlu0 %2859
        %2861 = vrot.lane.b32.xlu0 %v2858, 16
        %v2862 = vpop.permute.xlu0 %2861
        %vm2865 = vcmask 257152
        %2866 = vst.msk [vmem:[#allocation3] sm:$0xf] %vm2865, %v2860
        %vm2867 = vcmask 254080
        %vm2868 = vmand %vm2867, %vm979
        %v2869 = vld [vmem:[#allocation3 + $0x8] sm:$0x1]
        %v2870 = vsel %vm2868, %v2862, %v2869
        %2871 = vst [vmem:[#allocation3 + $0x8] sm:$0x1] %v2870
        %s2872 = scalar_lea.vmem %s2, 16
        %v2873 = vld [vmem:[%s2872] sm:$0xf]
        %v2874 = vld [vmem:[%s2872 + $0x4] sm:$0x1]
        %v2877 = vunpack.c.l.b16 %v2873
        %v2878 = vunpack.c.l.b16 %v2874
        %v2879 = vpack.c.b16 %v2878, %v2877
        %v2881 = vsel %vm2734, %v2879, 0
        %2883 = vmatprep.subr.bf16.mxu0 0
        %2884 = vmatpush1.bf16.msra.mxu0 0
        %2885 = vmatprep.subr.bf16.mxu0 0
        %2886 = vmatpush1.bf16.msra.mxu0 0
        %2887 = vmatprep.subr.bf16.mxu0 0
        %2888 = vmatpush1.bf16.msra.mxu0 0
        %2889 = vmatprep.subr.bf16.mxu0 0
        %2890 = vmatpush1.bf16.msra.mxu0 0
        %2891 = vmatprep.subr.bf16.mxu0 0
        %2892 = vmatpush1.bf16.msra.mxu0 0
        %2893 = vmatprep.subr.bf16.mxu0 0
        %2894 = vmatpush1.bf16.msra.mxu0 0
        %2895 = vmatprep.subr.bf16.mxu0 0
        %2896 = vmatpush1.bf16.msra.mxu0 %v2743
        %2897 = vmatprep.subr.bf16.mxu0 0
        %2898 = vmatpush1.bf16.msra.mxu0 %v2725
        %2899 = vmatprep.subr.bf16.mxu0 0
        %2900 = vmatpush2.bf16.msra.mxu0 0
        %2901 = vmatprep.subr.bf16.mxu0 0
        %2902 = vmatpush2.bf16.msra.mxu0 0
        %2903 = vmatprep.subr.bf16.mxu0 0
        %2904 = vmatpush2.bf16.msra.mxu0 0
        %2905 = vmatprep.subr.bf16.mxu0 0
        %2906 = vmatpush2.bf16.msra.mxu0 0
        %2907 = vmatprep.subr.bf16.mxu0 0
        %2908 = vmatpush2.bf16.msra.mxu0 0
        %2909 = vmatprep.subr.bf16.mxu0 0
        %2910 = vmatpush2.bf16.msra.mxu0 0
        %2911 = vmatprep.subr.bf16.mxu0 0
        %2912 = vmatpush2.bf16.msra.mxu0 0
        %2913 = vmatprep.subr.bf16.mxu0 0
        %2914 = vmatpush2.bf16.msra.mxu0 0
        %2915 = vmatprep.mubr.bf16.mxu0 0
        %2916 = vmatmul.mubr.bf16.gmra.mxu0 %v2881
        %v2917 = vpop.f32.mrf.mxu0
        %v2918 = vadd.f32 0.0, %v2917
        %v2919 = vpop.f32.mrf.mxu0
        %v2920 = vpop.f32.mrf.mxu0
        %v2921 = vadd.f32 0.0, %v2920
        %v2922 = vpop.f32.mrf.mxu0
        %2923 = vdwg.mxu0
        %v2924 = vpack.c.bf16 %v2921, %v2918
        %v2926 = vunpack.c.l.b16 %v2924
        %v2927 = vunpack.c.h.b16 %v2924
        %v2928 = vpack.c.b16 %v2926, %v2926
        %v2929 = vpack.c.b16 %v2927, %v2927
        %2930 = vrot.lane.b32.xlu0 %v2928, 32
        %v2931 = vpop.permute.xlu0 %2930
        %2932 = vrot.lane.b32.xlu0 %v2929, 32
        %v2933 = vpop.permute.xlu0 %2932
        %vm2936 = vcmask 388352
        %2937 = vst.msk [vmem:[#allocation3] sm:$0xf] %vm2936, %v2931
        %vm2938 = vcmask 385280
        %vm2939 = vmand %vm2938, %vm979
        %v2940 = vld [vmem:[#allocation3 + $0x8] sm:$0x1]
        %v2941 = vsel %vm2939, %v2933, %v2940
        %2942 = vst [vmem:[#allocation3 + $0x8] sm:$0x1] %v2941
        %s2943 = scalar_lea.vmem %s2, 24
        %v2944 = vld [vmem:[%s2943] sm:$0xf]
        %v2945 = vld [vmem:[%s2943 + $0x4] sm:$0x1]
        %v2948 = vunpack.c.l.b16 %v2944
        %v2949 = vunpack.c.l.b16 %v2945
        %v2950 = vpack.c.b16 %v2949, %v2948
        %v2952 = vsel %vm2734, %v2950, 0
        %2954 = vmatprep.subr.bf16.mxu0 0
        %2955 = vmatpush1.bf16.msra.mxu0 0
        %2956 = vmatprep.subr.bf16.mxu0 0
        %2957 = vmatpush1.bf16.msra.mxu0 0
        %2958 = vmatprep.subr.bf16.mxu0 0
        %2959 = vmatpush1.bf16.msra.mxu0 0
        %2960 = vmatprep.subr.bf16.mxu0 0
        %2961 = vmatpush1.bf16.msra.mxu0 0
        %2962 = vmatprep.subr.bf16.mxu0 0
        %2963 = vmatpush1.bf16.msra.mxu0 0
        %2964 = vmatprep.subr.bf16.mxu0 0
        %2965 = vmatpush1.bf16.msra.mxu0 0
        %2966 = vmatprep.subr.bf16.mxu0 0
        %2967 = vmatpush1.bf16.msra.mxu0 %v2743
        %2968 = vmatprep.subr.bf16.mxu0 0
        %2969 = vmatpush1.bf16.msra.mxu0 %v2725
        %2970 = vmatprep.subr.bf16.mxu0 0
        %2971 = vmatpush2.bf16.msra.mxu0 0
        %2972 = vmatprep.subr.bf16.mxu0 0
        %2973 = vmatpush2.bf16.msra.mxu0 0
        %2974 = vmatprep.subr.bf16.mxu0 0
        %2975 = vmatpush2.bf16.msra.mxu0 0
        %2976 = vmatprep.subr.bf16.mxu0 0
        %2977 = vmatpush2.bf16.msra.mxu0 0
        %2978 = vmatprep.subr.bf16.mxu0 0
        %2979 = vmatpush2.bf16.msra.mxu0 0
        %2980 = vmatprep.subr.bf16.mxu0 0
        %2981 = vmatpush2.bf16.msra.mxu0 0
        %2982 = vmatprep.subr.bf16.mxu0 0
        %2983 = vmatpush2.bf16.msra.mxu0 0
        %2984 = vmatprep.subr.bf16.mxu0 0
        %2985 = vmatpush2.bf16.msra.mxu0 0
        %2986 = vmatprep.mubr.bf16.mxu0 0
        %2987 = vmatmul.mubr.bf16.gmra.mxu0 %v2952
        %v2988 = vpop.f32.mrf.mxu0
        %v2989 = vadd.f32 0.0, %v2988
        %v2990 = vpop.f32.mrf.mxu0
        %v2991 = vpop.f32.mrf.mxu0
        %v2992 = vadd.f32 0.0, %v2991
        %v2993 = vpop.f32.mrf.mxu0
        %2994 = vdwg.mxu0
        %v2995 = vpack.c.bf16 %v2992, %v2989
        %v2997 = vunpack.c.l.b16 %v2995
        %v2998 = vunpack.c.h.b16 %v2995
        %v2999 = vpack.c.b16 %v2997, %v2997
        %v3000 = vpack.c.b16 %v2998, %v2998
        %3001 = vrot.lane.b32.xlu0 %v2999, 48
        %v3002 = vpop.permute.xlu0 %3001
        %3003 = vrot.lane.b32.xlu0 %v3000, 48
        %v3004 = vpop.permute.xlu0 %3003
        %vm3007 = vcmask 519552
        %3008 = vst.msk [vmem:[#allocation3] sm:$0xf] %vm3007, %v3002
        %vm3009 = vcmask 516480
        %vm3010 = vmand %vm3009, %vm979
        %v3011 = vld [vmem:[#allocation3 + $0x8] sm:$0x1]
        %v3012 = vsel %vm3010, %v3004, %v3011
        %3013 = vst [vmem:[#allocation3 + $0x8] sm:$0x1] %v3012
        %s3014 = scalar_lea.vmem %s2, 32
        %v3015 = vld [vmem:[%s3014] sm:$0xf]
        %v3016 = vld [vmem:[%s3014 + $0x4] sm:$0x1]
        %v3019 = vunpack.c.l.b16 %v3015
        %v3020 = vunpack.c.l.b16 %v3016
        %v3021 = vpack.c.b16 %v3020, %v3019
        %v3023 = vsel %vm2734, %v3021, 0
        %3025 = vmatprep.subr.bf16.mxu0 0
        %3026 = vmatpush1.bf16.msra.mxu0 0
        %3027 = vmatprep.subr.bf16.mxu0 0
        %3028 = vmatpush1.bf16.msra.mxu0 0
        %3029 = vmatprep.subr.bf16.mxu0 0
        %3030 = vmatpush1.bf16.msra.mxu0 0
        %3031 = vmatprep.subr.bf16.mxu0 0
        %3032 = vmatpush1.bf16.msra.mxu0 0
        %3033 = vmatprep.subr.bf16.mxu0 0
        %3034 = vmatpush1.bf16.msra.mxu0 0
        %3035 = vmatprep.subr.bf16.mxu0 0
        %3036 = vmatpush1.bf16.msra.mxu0 0
        %3037 = vmatprep.subr.bf16.mxu0 0
        %3038 = vmatpush1.bf16.msra.mxu0 %v2743
        %3039 = vmatprep.subr.bf16.mxu0 0
        %3040 = vmatpush1.bf16.msra.mxu0 %v2725
        %3041 = vmatprep.subr.bf16.mxu0 0
        %3042 = vmatpush2.bf16.msra.mxu0 0
        %3043 = vmatprep.subr.bf16.mxu0 0
        %3044 = vmatpush2.bf16.msra.mxu0 0
        %3045 = vmatprep.subr.bf16.mxu0 0
        %3046 = vmatpush2.bf16.msra.mxu0 0
        %3047 = vmatprep.subr.bf16.mxu0 0
        %3048 = vmatpush2.bf16.msra.mxu0 0
        %3049 = vmatprep.subr.bf16.mxu0 0
        %3050 = vmatpush2.bf16.msra.mxu0 0
        %3051 = vmatprep.subr.bf16.mxu0 0
        %3052 = vmatpush2.bf16.msra.mxu0 0
        %3053 = vmatprep.subr.bf16.mxu0 0
        %3054 = vmatpush2.bf16.msra.mxu0 0
        %3055 = vmatprep.subr.bf16.mxu0 0
        %3056 = vmatpush2.bf16.msra.mxu0 0
        %3057 = vmatprep.mubr.bf16.mxu0 0
        %3058 = vmatmul.mubr.bf16.gmra.mxu0 %v3023
        %v3059 = vpop.f32.mrf.mxu0
        %v3060 = vadd.f32 0.0, %v3059
        %v3061 = vpop.f32.mrf.mxu0
        %v3062 = vpop.f32.mrf.mxu0
        %v3063 = vadd.f32 0.0, %v3062
        %v3064 = vpop.f32.mrf.mxu0
        %3065 = vdwg.mxu0
        %v3066 = vpack.c.bf16 %v3063, %v3060
        %v3068 = vunpack.c.l.b16 %v3066
        %v3069 = vunpack.c.h.b16 %v3066
        %v3070 = vpack.c.b16 %v3068, %v3068
        %v3071 = vpack.c.b16 %v3069, %v3069
        %3072 = vrot.lane.b32.xlu0 %v3070, 64
        %v3073 = vpop.permute.xlu0 %3072
        %3074 = vrot.lane.b32.xlu0 %v3071, 64
        %v3075 = vpop.permute.xlu0 %3074
        %vm3078 = vcmask 650752
        %3079 = vst.msk [vmem:[#allocation3] sm:$0xf] %vm3078, %v3073
        %vm3080 = vcmask 647680
        %vm3081 = vmand %vm3080, %vm979
        %v3082 = vld [vmem:[#allocation3 + $0x8] sm:$0x1]
        %v3083 = vsel %vm3081, %v3075, %v3082
        %3084 = vst [vmem:[#allocation3 + $0x8] sm:$0x1] %v3083
        %s3085 = scalar_lea.vmem %s2, 40
        %v3086 = vld [vmem:[%s3085] sm:$0xf]
        %v3087 = vld [vmem:[%s3085 + $0x4] sm:$0x1]
        %v3090 = vunpack.c.l.b16 %v3086
        %v3091 = vunpack.c.l.b16 %v3087
        %v3092 = vpack.c.b16 %v3091, %v3090
        %v3094 = vsel %vm2734, %v3092, 0
        %3096 = vmatprep.subr.bf16.mxu0 0
        %3097 = vmatpush1.bf16.msra.mxu0 0
        %3098 = vmatprep.subr.bf16.mxu0 0
        %3099 = vmatpush1.bf16.msra.mxu0 0
        %3100 = vmatprep.subr.bf16.mxu0 0
        %3101 = vmatpush1.bf16.msra.mxu0 0
        %3102 = vmatprep.subr.bf16.mxu0 0
        %3103 = vmatpush1.bf16.msra.mxu0 0
        %3104 = vmatprep.subr.bf16.mxu0 0
        %3105 = vmatpush1.bf16.msra.mxu0 0
        %3106 = vmatprep.subr.bf16.mxu0 0
        %3107 = vmatpush1.bf16.msra.mxu0 0
        %3108 = vmatprep.subr.bf16.mxu0 0
        %3109 = vmatpush1.bf16.msra.mxu0 %v2743
        %3110 = vmatprep.subr.bf16.mxu0 0
        %3111 = vmatpush1.bf16.msra.mxu0 %v2725
        %3112 = vmatprep.subr.bf16.mxu0 0
        %3113 = vmatpush2.bf16.msra.mxu0 0
        %3114 = vmatprep.subr.bf16.mxu0 0
        %3115 = vmatpush2.bf16.msra.mxu0 0
        %3116 = vmatprep.subr.bf16.mxu0 0
        %3117 = vmatpush2.bf16.msra.mxu0 0
        %3118 = vmatprep.subr.bf16.mxu0 0
        %3119 = vmatpush2.bf16.msra.mxu0 0
        %3120 = vmatprep.subr.bf16.mxu0 0
        %3121 = vmatpush2.bf16.msra.mxu0 0
        %3122 = vmatprep.subr.bf16.mxu0 0
        %3123 = vmatpush2.bf16.msra.mxu0 0
        %3124 = vmatprep.subr.bf16.mxu0 0
        %3125 = vmatpush2.bf16.msra.mxu0 0
        %3126 = vmatprep.subr.bf16.mxu0 0
        %3127 = vmatpush2.bf16.msra.mxu0 0
        %3128 = vmatprep.mubr.bf16.mxu0 0
        %3129 = vmatmul.mubr.bf16.gmra.mxu0 %v3094
        %v3130 = vpop.f32.mrf.mxu0
        %v3131 = vadd.f32 0.0, %v3130
        %v3132 = vpop.f32.mrf.mxu0
        %v3133 = vpop.f32.mrf.mxu0
        %v3134 = vadd.f32 0.0, %v3133
        %v3135 = vpop.f32.mrf.mxu0
        %3136 = vdwg.mxu0
        %v3137 = vpack.c.bf16 %v3134, %v3131
        %v3139 = vunpack.c.l.b16 %v3137
        %v3140 = vunpack.c.h.b16 %v3137
        %v3141 = vpack.c.b16 %v3139, %v3139
        %v3142 = vpack.c.b16 %v3140, %v3140
        %3143 = vrot.lane.b32.xlu0 %v3141, 80
        %v3144 = vpop.permute.xlu0 %3143
        %3145 = vrot.lane.b32.xlu0 %v3142, 80
        %v3146 = vpop.permute.xlu0 %3145
        %vm3149 = vcmask 781952
        %3150 = vst.msk [vmem:[#allocation3] sm:$0xf] %vm3149, %v3144
        %vm3151 = vcmask 778880
        %vm3152 = vmand %vm3151, %vm979
        %v3153 = vld [vmem:[#allocation3 + $0x8] sm:$0x1]
        %v3154 = vsel %vm3152, %v3146, %v3153
        %3155 = vst [vmem:[#allocation3 + $0x8] sm:$0x1] %v3154
        %s3156 = scalar_lea.vmem %s2, 48
        %v3157 = vld [vmem:[%s3156] sm:$0xf]
        %v3158 = vld [vmem:[%s3156 + $0x4] sm:$0x1]
        %v3161 = vunpack.c.l.b16 %v3157
        %v3162 = vunpack.c.l.b16 %v3158
        %v3163 = vpack.c.b16 %v3162, %v3161
        %v3165 = vsel %vm2734, %v3163, 0
        %3167 = vmatprep.subr.bf16.mxu0 0
        %3168 = vmatpush1.bf16.msra.mxu0 0
        %3169 = vmatprep.subr.bf16.mxu0 0
        %3170 = vmatpush1.bf16.msra.mxu0 0
        %3171 = vmatprep.subr.bf16.mxu0 0
        %3172 = vmatpush1.bf16.msra.mxu0 0
        %3173 = vmatprep.subr.bf16.mxu0 0
        %3174 = vmatpush1.bf16.msra.mxu0 0
        %3175 = vmatprep.subr.bf16.mxu0 0
        %3176 = vmatpush1.bf16.msra.mxu0 0
        %3177 = vmatprep.subr.bf16.mxu0 0
        %3178 = vmatpush1.bf16.msra.mxu0 0
        %3179 = vmatprep.subr.bf16.mxu0 0
        %3180 = vmatpush1.bf16.msra.mxu0 %v2743
        %3181 = vmatprep.subr.bf16.mxu0 0
        %3182 = vmatpush1.bf16.msra.mxu0 %v2725
        %3183 = vmatprep.subr.bf16.mxu0 0
        %3184 = vmatpush2.bf16.msra.mxu0 0
        %3185 = vmatprep.subr.bf16.mxu0 0
        %3186 = vmatpush2.bf16.msra.mxu0 0
        %3187 = vmatprep.subr.bf16.mxu0 0
        %3188 = vmatpush2.bf16.msra.mxu0 0
        %3189 = vmatprep.subr.bf16.mxu0 0
        %3190 = vmatpush2.bf16.msra.mxu0 0
        %3191 = vmatprep.subr.bf16.mxu0 0
        %3192 = vmatpush2.bf16.msra.mxu0 0
        %3193 = vmatprep.subr.bf16.mxu0 0
        %3194 = vmatpush2.bf16.msra.mxu0 0
        %3195 = vmatprep.subr.bf16.mxu0 0
        %3196 = vmatpush2.bf16.msra.mxu0 0
        %3197 = vmatprep.subr.bf16.mxu0 0
        %3198 = vmatpush2.bf16.msra.mxu0 0
        %3199 = vmatprep.mubr.bf16.mxu0 0
        %3200 = vmatmul.mubr.bf16.gmra.mxu0 %v3165
        %v3201 = vpop.f32.mrf.mxu0
        %v3202 = vadd.f32 0.0, %v3201
        %v3203 = vpop.f32.mrf.mxu0
        %v3204 = vpop.f32.mrf.mxu0
        %v3205 = vadd.f32 0.0, %v3204
        %v3206 = vpop.f32.mrf.mxu0
        %3207 = vdwg.mxu0
        %v3208 = vpack.c.bf16 %v3205, %v3202
        %v3210 = vunpack.c.l.b16 %v3208
        %v3211 = vunpack.c.h.b16 %v3208
        %v3212 = vpack.c.b16 %v3210, %v3210
        %v3213 = vpack.c.b16 %v3211, %v3211
        %3214 = vrot.lane.b32.xlu0 %v3212, 96
        %v3215 = vpop.permute.xlu0 %3214
        %3216 = vrot.lane.b32.xlu0 %v3213, 96
        %v3217 = vpop.permute.xlu0 %3216
        %vm3220 = vcmask 913152
        %3221 = vst.msk [vmem:[#allocation3] sm:$0xf] %vm3220, %v3215
        %vm3222 = vcmask 910080
        %vm3223 = vmand %vm3222, %vm979
        %v3224 = vld [vmem:[#allocation3 + $0x8] sm:$0x1]
        %v3225 = vsel %vm3223, %v3217, %v3224
        %3226 = vst [vmem:[#allocation3 + $0x8] sm:$0x1] %v3225
        %s3227 = scalar_lea.vmem %s2, 56
        %v3228 = vld [vmem:[%s3227] sm:$0xf]
        %v3229 = vld [vmem:[%s3227 + $0x4] sm:$0x1]
        %v3232 = vunpack.c.l.b16 %v3228
        %v3233 = vunpack.c.l.b16 %v3229
        %v3234 = vpack.c.b16 %v3233, %v3232
        %v3236 = vsel %vm2734, %v3234, 0
        %3238 = vmatprep.subr.bf16.mxu0 0
        %3239 = vmatpush1.bf16.msra.mxu0 0
        %3240 = vmatprep.subr.bf16.mxu0 0
        %3241 = vmatpush1.bf16.msra.mxu0 0
        %3242 = vmatprep.subr.bf16.mxu0 0
        %3243 = vmatpush1.bf16.msra.mxu0 0
        %3244 = vmatprep.subr.bf16.mxu0 0
        %3245 = vmatpush1.bf16.msra.mxu0 0
        %3246 = vmatprep.subr.bf16.mxu0 0
        %3247 = vmatpush1.bf16.msra.mxu0 0
        %3248 = vmatprep.subr.bf16.mxu0 0
        %3249 = vmatpush1.bf16.msra.mxu0 0
        %3250 = vmatprep.subr.bf16.mxu0 0
        %3251 = vmatpush1.bf16.msra.mxu0 %v2743
        %3252 = vmatprep.subr.bf16.mxu0 0
        %3253 = vmatpush1.bf16.msra.mxu0 %v2725
        %3254 = vmatprep.subr.bf16.mxu0 0
        %3255 = vmatpush2.bf16.msra.mxu0 0
        %3256 = vmatprep.subr.bf16.mxu0 0
        %3257 = vmatpush2.bf16.msra.mxu0 0
        %3258 = vmatprep.subr.bf16.mxu0 0
        %3259 = vmatpush2.bf16.msra.mxu0 0
        %3260 = vmatprep.subr.bf16.mxu0 0
        %3261 = vmatpush2.bf16.msra.mxu0 0
        %3262 = vmatprep.subr.bf16.mxu0 0
        %3263 = vmatpush2.bf16.msra.mxu0 0
        %3264 = vmatprep.subr.bf16.mxu0 0
        %3265 = vmatpush2.bf16.msra.mxu0 0
        %3266 = vmatprep.subr.bf16.mxu0 0
        %3267 = vmatpush2.bf16.msra.mxu0 0
        %3268 = vmatprep.subr.bf16.mxu0 0
        %3269 = vmatpush2.bf16.msra.mxu0 0
        %3270 = vmatprep.mubr.bf16.mxu0 0
        %3271 = vmatmul.mubr.bf16.gmra.mxu0 %v3236
        %v3272 = vpop.f32.mrf.mxu0
        %v3273 = vadd.f32 0.0, %v3272
        %v3274 = vpop.f32.mrf.mxu0
        %v3275 = vpop.f32.mrf.mxu0
        %v3276 = vadd.f32 0.0, %v3275
        %v3277 = vpop.f32.mrf.mxu0
        %3278 = vdwg.mxu0
        %v3279 = vpack.c.bf16 %v3276, %v3273
        %v3281 = vunpack.c.l.b16 %v3279
        %v3282 = vunpack.c.h.b16 %v3279
        %v3283 = vpack.c.b16 %v3281, %v3281
        %v3284 = vpack.c.b16 %v3282, %v3282
        %3285 = vrot.lane.b32.xlu0 %v3283, 112
        %v3286 = vpop.permute.xlu0 %3285
        %3287 = vrot.lane.b32.xlu0 %v3284, 112
        %v3288 = vpop.permute.xlu0 %3287
        %vm3291 = vcmask 1044352
        %3292 = vst.msk [vmem:[#allocation3] sm:$0xf] %vm3291, %v3286
        %vm3293 = vcmask 1041280
        %vm3294 = vmand %vm3293, %vm979
        %v3295 = vld [vmem:[#allocation3 + $0x8] sm:$0x1]
        %v3296 = vsel %vm3294, %v3288, %v3295
        %3297 = vst [vmem:[#allocation3 + $0x8] sm:$0x1] %v3296
        %s3298 = scalar_lea.vmem %s2, 64
        %v3299 = vld [vmem:[%s3298] sm:$0xf]
        %v3300 = vld [vmem:[%s3298 + $0x4] sm:$0x1]
        %v3303 = vunpack.c.l.b16 %v3299
        %v3304 = vunpack.c.l.b16 %v3300
        %v3305 = vpack.c.b16 %v3304, %v3303
        %v3307 = vsel %vm2734, %v3305, 0
        %3309 = vmatprep.subr.bf16.mxu0 0
        %3310 = vmatpush1.bf16.msra.mxu0 0
        %3311 = vmatprep.subr.bf16.mxu0 0
        %3312 = vmatpush1.bf16.msra.mxu0 0
        %3313 = vmatprep.subr.bf16.mxu0 0
        %3314 = vmatpush1.bf16.msra.mxu0 0
        %3315 = vmatprep.subr.bf16.mxu0 0
        %3316 = vmatpush1.bf16.msra.mxu0 0
        %3317 = vmatprep.subr.bf16.mxu0 0
        %3318 = vmatpush1.bf16.msra.mxu0 0
        %3319 = vmatprep.subr.bf16.mxu0 0
        %3320 = vmatpush1.bf16.msra.mxu0 0
        %3321 = vmatprep.subr.bf16.mxu0 0
        %3322 = vmatpush1.bf16.msra.mxu0 %v2743
        %3323 = vmatprep.subr.bf16.mxu0 0
        %3324 = vmatpush1.bf16.msra.mxu0 %v2725
        %3325 = vmatprep.subr.bf16.mxu0 0
        %3326 = vmatpush2.bf16.msra.mxu0 0
        %3327 = vmatprep.subr.bf16.mxu0 0
        %3328 = vmatpush2.bf16.msra.mxu0 0
        %3329 = vmatprep.subr.bf16.mxu0 0
        %3330 = vmatpush2.bf16.msra.mxu0 0
        %3331 = vmatprep.subr.bf16.mxu0 0
        %3332 = vmatpush2.bf16.msra.mxu0 0
        %3333 = vmatprep.subr.bf16.mxu0 0
        %3334 = vmatpush2.bf16.msra.mxu0 0
        %3335 = vmatprep.subr.bf16.mxu0 0
        %3336 = vmatpush2.bf16.msra.mxu0 0
        %3337 = vmatprep.subr.bf16.mxu0 0
        %3338 = vmatpush2.bf16.msra.mxu0 0
        %3339 = vmatprep.subr.bf16.mxu0 0
        %3340 = vmatpush2.bf16.msra.mxu0 0
        %3341 = vmatprep.mubr.bf16.mxu0 0
        %3342 = vmatmul.mubr.bf16.gmra.mxu0 %v3307
        %v3343 = vpop.f32.mrf.mxu0
        %v3344 = vadd.f32 0.0, %v3343
        %v3345 = vpop.f32.mrf.mxu0
        %v3346 = vpop.f32.mrf.mxu0
        %v3347 = vadd.f32 0.0, %v3346
        %v3348 = vpop.f32.mrf.mxu0
        %3349 = vdwg.mxu0
        %v3350 = vpack.c.bf16 %v3347, %v3344
        %v3352 = vunpack.c.l.b16 %v3350
        %v3353 = vunpack.c.h.b16 %v3350
        %v3354 = vpack.c.b16 %v3352, %v3352
        %v3355 = vpack.c.b16 %v3353, %v3353
        %3358 = vst.msk [vmem:[#allocation3 + $0x4] sm:$0xf] %vm2794, %v3354
        %v3359 = vld [vmem:[#allocation3 + $0xc] sm:$0x1]
        %v3360 = vsel %vm2797, %v3355, %v3359
        %3361 = vst [vmem:[#allocation3 + $0xc] sm:$0x1] %v3360
        %s3362 = scalar_lea.vmem %s2, 72
        %v3363 = vld [vmem:[%s3362] sm:$0xf]
        %v3364 = vld [vmem:[%s3362 + $0x4] sm:$0x1]
        %v3367 = vunpack.c.l.b16 %v3363
        %v3368 = vunpack.c.l.b16 %v3364
        %v3369 = vpack.c.b16 %v3368, %v3367
        %v3371 = vsel %vm2734, %v3369, 0
        %3373 = vmatprep.subr.bf16.mxu0 0
        %3374 = vmatpush1.bf16.msra.mxu0 0
        %3375 = vmatprep.subr.bf16.mxu0 0
        %3376 = vmatpush1.bf16.msra.mxu0 0
        %3377 = vmatprep.subr.bf16.mxu0 0
        %3378 = vmatpush1.bf16.msra.mxu0 0
        %3379 = vmatprep.subr.bf16.mxu0 0
        %3380 = vmatpush1.bf16.msra.mxu0 0
        %3381 = vmatprep.subr.bf16.mxu0 0
        %3382 = vmatpush1.bf16.msra.mxu0 0
        %3383 = vmatprep.subr.bf16.mxu0 0
        %3384 = vmatpush1.bf16.msra.mxu0 0
        %3385 = vmatprep.subr.bf16.mxu0 0
        %3386 = vmatpush1.bf16.msra.mxu0 %v2743
        %3387 = vmatprep.subr.bf16.mxu0 0
        %3388 = vmatpush1.bf16.msra.mxu0 %v2725
        %3389 = vmatprep.subr.bf16.mxu0 0
        %3390 = vmatpush2.bf16.msra.mxu0 0
        %3391 = vmatprep.subr.bf16.mxu0 0
        %3392 = vmatpush2.bf16.msra.mxu0 0
        %3393 = vmatprep.subr.bf16.mxu0 0
        %3394 = vmatpush2.bf16.msra.mxu0 0
        %3395 = vmatprep.subr.bf16.mxu0 0
        %3396 = vmatpush2.bf16.msra.mxu0 0
        %3397 = vmatprep.subr.bf16.mxu0 0
        %3398 = vmatpush2.bf16.msra.mxu0 0
        %3399 = vmatprep.subr.bf16.mxu0 0
        %3400 = vmatpush2.bf16.msra.mxu0 0
        %3401 = vmatprep.subr.bf16.mxu0 0
        %3402 = vmatpush2.bf16.msra.mxu0 0
        %3403 = vmatprep.subr.bf16.mxu0 0
        %3404 = vmatpush2.bf16.msra.mxu0 0
        %3405 = vmatprep.mubr.bf16.mxu0 0
        %3406 = vmatmul.mubr.bf16.gmra.mxu0 %v3371
        %v3407 = vpop.f32.mrf.mxu0
        %v3408 = vadd.f32 0.0, %v3407
        %v3409 = vpop.f32.mrf.mxu0
        %v3410 = vpop.f32.mrf.mxu0
        %v3411 = vadd.f32 0.0, %v3410
        %v3412 = vpop.f32.mrf.mxu0
        %3413 = vdwg.mxu0
        %v3414 = vpack.c.bf16 %v3411, %v3408
        %v3416 = vunpack.c.l.b16 %v3414
        %v3417 = vunpack.c.h.b16 %v3414
        %v3418 = vpack.c.b16 %v3416, %v3416
        %v3419 = vpack.c.b16 %v3417, %v3417
        %3420 = vrot.lane.b32.xlu0 %v3418, 16
        %v3421 = vpop.permute.xlu0 %3420
        %3422 = vrot.lane.b32.xlu0 %v3419, 16
        %v3423 = vpop.permute.xlu0 %3422
        %3426 = vst.msk [vmem:[#allocation3 + $0x4] sm:$0xf] %vm2865, %v3421
        %v3427 = vld [vmem:[#allocation3 + $0xc] sm:$0x1]
        %v3428 = vsel %vm2868, %v3423, %v3427
        %3429 = vst [vmem:[#allocation3 + $0xc] sm:$0x1] %v3428
        %s3430 = scalar_lea.vmem %s2, 80
        %v3431 = vld [vmem:[%s3430] sm:$0xf]
        %v3432 = vld [vmem:[%s3430 + $0x4] sm:$0x1]
        %v3435 = vunpack.c.l.b16 %v3431
        %v3436 = vunpack.c.l.b16 %v3432
        %v3437 = vpack.c.b16 %v3436, %v3435
        %v3439 = vsel %vm2734, %v3437, 0
        %3441 = vmatprep.subr.bf16.mxu0 0
        %3442 = vmatpush1.bf16.msra.mxu0 0
        %3443 = vmatprep.subr.bf16.mxu0 0
        %3444 = vmatpush1.bf16.msra.mxu0 0
        %3445 = vmatprep.subr.bf16.mxu0 0
        %3446 = vmatpush1.bf16.msra.mxu0 0
        %3447 = vmatprep.subr.bf16.mxu0 0
        %3448 = vmatpush1.bf16.msra.mxu0 0
        %3449 = vmatprep.subr.bf16.mxu0 0
        %3450 = vmatpush1.bf16.msra.mxu0 0
        %3451 = vmatprep.subr.bf16.mxu0 0
        %3452 = vmatpush1.bf16.msra.mxu0 0
        %3453 = vmatprep.subr.bf16.mxu0 0
        %3454 = vmatpush1.bf16.msra.mxu0 %v2743
        %3455 = vmatprep.subr.bf16.mxu0 0
        %3456 = vmatpush1.bf16.msra.mxu0 %v2725
        %3457 = vmatprep.subr.bf16.mxu0 0
        %3458 = vmatpush2.bf16.msra.mxu0 0
        %3459 = vmatprep.subr.bf16.mxu0 0
        %3460 = vmatpush2.bf16.msra.mxu0 0
        %3461 = vmatprep.subr.bf16.mxu0 0
        %3462 = vmatpush2.bf16.msra.mxu0 0
        %3463 = vmatprep.subr.bf16.mxu0 0
        %3464 = vmatpush2.bf16.msra.mxu0 0
        %3465 = vmatprep.subr.bf16.mxu0 0
        %3466 = vmatpush2.bf16.msra.mxu0 0
        %3467 = vmatprep.subr.bf16.mxu0 0
        %3468 = vmatpush2.bf16.msra.mxu0 0
        %3469 = vmatprep.subr.bf16.mxu0 0
        %3470 = vmatpush2.bf16.msra.mxu0 0
        %3471 = vmatprep.subr.bf16.mxu0 0
        %3472 = vmatpush2.bf16.msra.mxu0 0
        %3473 = vmatprep.mubr.bf16.mxu0 0
        %3474 = vmatmul.mubr.bf16.gmra.mxu0 %v3439
        %v3475 = vpop.f32.mrf.mxu0
        %v3476 = vadd.f32 0.0, %v3475
        %v3477 = vpop.f32.mrf.mxu0
        %v3478 = vpop.f32.mrf.mxu0
        %v3479 = vadd.f32 0.0, %v3478
        %v3480 = vpop.f32.mrf.mxu0
        %3481 = vdwg.mxu0
        %v3482 = vpack.c.bf16 %v3479, %v3476
        %v3484 = vunpack.c.l.b16 %v3482
        %v3485 = vunpack.c.h.b16 %v3482
        %v3486 = vpack.c.b16 %v3484, %v3484
        %v3487 = vpack.c.b16 %v3485, %v3485
        %3488 = vrot.lane.b32.xlu0 %v3486, 32
        %v3489 = vpop.permute.xlu0 %3488
        %3490 = vrot.lane.b32.xlu0 %v3487, 32
        %v3491 = vpop.permute.xlu0 %3490
        %3494 = vst.msk [vmem:[#allocation3 + $0x4] sm:$0xf] %vm2936, %v3489
        %v3495 = vld [vmem:[#allocation3 + $0xc] sm:$0x1]
        %v3496 = vsel %vm2939, %v3491, %v3495
        %3497 = vst [vmem:[#allocation3 + $0xc] sm:$0x1] %v3496
        %s3498 = scalar_lea.vmem %s2, 88
        %v3499 = vld [vmem:[%s3498] sm:$0xf]
        %v3500 = vld [vmem:[%s3498 + $0x4] sm:$0x1]
        %v3503 = vunpack.c.l.b16 %v3499
        %v3504 = vunpack.c.l.b16 %v3500
        %v3505 = vpack.c.b16 %v3504, %v3503
        %v3507 = vsel %vm2734, %v3505, 0
        %3509 = vmatprep.subr.bf16.mxu0 0
        %3510 = vmatpush1.bf16.msra.mxu0 0
        %3511 = vmatprep.subr.bf16.mxu0 0
        %3512 = vmatpush1.bf16.msra.mxu0 0
        %3513 = vmatprep.subr.bf16.mxu0 0
        %3514 = vmatpush1.bf16.msra.mxu0 0
        %3515 = vmatprep.subr.bf16.mxu0 0
        %3516 = vmatpush1.bf16.msra.mxu0 0
        %3517 = vmatprep.subr.bf16.mxu0 0
        %3518 = vmatpush1.bf16.msra.mxu0 0
        %3519 = vmatprep.subr.bf16.mxu0 0
        %3520 = vmatpush1.bf16.msra.mxu0 0
        %3521 = vmatprep.subr.bf16.mxu0 0
        %3522 = vmatpush1.bf16.msra.mxu0 %v2743
        %3523 = vmatprep.subr.bf16.mxu0 0
        %3524 = vmatpush1.bf16.msra.mxu0 %v2725
        %3525 = vmatprep.subr.bf16.mxu0 0
        %3526 = vmatpush2.bf16.msra.mxu0 0
        %3527 = vmatprep.subr.bf16.mxu0 0
        %3528 = vmatpush2.bf16.msra.mxu0 0
        %3529 = vmatprep.subr.bf16.mxu0 0
        %3530 = vmatpush2.bf16.msra.mxu0 0
        %3531 = vmatprep.subr.bf16.mxu0 0
        %3532 = vmatpush2.bf16.msra.mxu0 0
        %3533 = vmatprep.subr.bf16.mxu0 0
        %3534 = vmatpush2.bf16.msra.mxu0 0
        %3535 = vmatprep.subr.bf16.mxu0 0
        %3536 = vmatpush2.bf16.msra.mxu0 0
        %3537 = vmatprep.subr.bf16.mxu0 0
        %3538 = vmatpush2.bf16.msra.mxu0 0
        %3539 = vmatprep.subr.bf16.mxu0 0
        %3540 = vmatpush2.bf16.msra.mxu0 0
        %3541 = vmatprep.mubr.bf16.mxu0 0
        %3542 = vmatmul.mubr.bf16.gmra.mxu0 %v3507
        %v3543 = vpop.f32.mrf.mxu0
        %v3544 = vadd.f32 0.0, %v3543
        %v3545 = vpop.f32.mrf.mxu0
        %v3546 = vpop.f32.mrf.mxu0
        %v3547 = vadd.f32 0.0, %v3546
        %v3548 = vpop.f32.mrf.mxu0
        %3549 = vdwg.mxu0
        %v3550 = vpack.c.bf16 %v3547, %v3544
        %v3552 = vunpack.c.l.b16 %v3550
        %v3553 = vunpack.c.h.b16 %v3550
        %v3554 = vpack.c.b16 %v3552, %v3552
        %v3555 = vpack.c.b16 %v3553, %v3553
        %3556 = vrot.lane.b32.xlu0 %v3554, 48
        %v3557 = vpop.permute.xlu0 %3556
        %3558 = vrot.lane.b32.xlu0 %v3555, 48
        %v3559 = vpop.permute.xlu0 %3558
        %3562 = vst.msk [vmem:[#allocation3 + $0x4] sm:$0xf] %vm3007, %v3557
        %v3563 = vld [vmem:[#allocation3 + $0xc] sm:$0x1]
        %v3564 = vsel %vm3010, %v3559, %v3563
        %3565 = vst [vmem:[#allocation3 + $0xc] sm:$0x1] %v3564
        %s3566 = scalar_lea.vmem %s2, 96
        %v3567 = vld [vmem:[%s3566] sm:$0xf]
        %v3568 = vld [vmem:[%s3566 + $0x4] sm:$0x1]
        %v3571 = vunpack.c.l.b16 %v3567
        %v3572 = vunpack.c.l.b16 %v3568
        %v3573 = vpack.c.b16 %v3572, %v3571
        %v3575 = vsel %vm2734, %v3573, 0
        %3577 = vmatprep.subr.bf16.mxu0 0
        %3578 = vmatpush1.bf16.msra.mxu0 0
        %3579 = vmatprep.subr.bf16.mxu0 0
        %3580 = vmatpush1.bf16.msra.mxu0 0
        %3581 = vmatprep.subr.bf16.mxu0 0
        %3582 = vmatpush1.bf16.msra.mxu0 0
        %3583 = vmatprep.subr.bf16.mxu0 0
        %3584 = vmatpush1.bf16.msra.mxu0 0
        %3585 = vmatprep.subr.bf16.mxu0 0
        %3586 = vmatpush1.bf16.msra.mxu0 0
        %3587 = vmatprep.subr.bf16.mxu0 0
        %3588 = vmatpush1.bf16.msra.mxu0 0
        %3589 = vmatprep.subr.bf16.mxu0 0
        %3590 = vmatpush1.bf16.msra.mxu0 %v2743
        %3591 = vmatprep.subr.bf16.mxu0 0
        %3592 = vmatpush1.bf16.msra.mxu0 %v2725
        %3593 = vmatprep.subr.bf16.mxu0 0
        %3594 = vmatpush2.bf16.msra.mxu0 0
        %3595 = vmatprep.subr.bf16.mxu0 0
        %3596 = vmatpush2.bf16.msra.mxu0 0
        %3597 = vmatprep.subr.bf16.mxu0 0
        %3598 = vmatpush2.bf16.msra.mxu0 0
        %3599 = vmatprep.subr.bf16.mxu0 0
        %3600 = vmatpush2.bf16.msra.mxu0 0
        %3601 = vmatprep.subr.bf16.mxu0 0
        %3602 = vmatpush2.bf16.msra.mxu0 0
        %3603 = vmatprep.subr.bf16.mxu0 0
        %3604 = vmatpush2.bf16.msra.mxu0 0
        %3605 = vmatprep.subr.bf16.mxu0 0
        %3606 = vmatpush2.bf16.msra.mxu0 0
        %3607 = vmatprep.subr.bf16.mxu0 0
        %3608 = vmatpush2.bf16.msra.mxu0 0
        %3609 = vmatprep.mubr.bf16.mxu0 0
        %3610 = vmatmul.mubr.bf16.gmra.mxu0 %v3575
        %v3611 = vpop.f32.mrf.mxu0
        %v3612 = vadd.f32 0.0, %v3611
        %v3613 = vpop.f32.mrf.mxu0
        %v3614 = vpop.f32.mrf.mxu0
        %v3615 = vadd.f32 0.0, %v3614
        %v3616 = vpop.f32.mrf.mxu0
        %3617 = vdwg.mxu0
        %v3618 = vpack.c.bf16 %v3615, %v3612
        %v3620 = vunpack.c.l.b16 %v3618
        %v3621 = vunpack.c.h.b16 %v3618
        %v3622 = vpack.c.b16 %v3620, %v3620
        %v3623 = vpack.c.b16 %v3621, %v3621
        %3624 = vrot.lane.b32.xlu0 %v3622, 64
        %v3625 = vpop.permute.xlu0 %3624
        %3626 = vrot.lane.b32.xlu0 %v3623, 64
        %v3627 = vpop.permute.xlu0 %3626
        %3630 = vst.msk [vmem:[#allocation3 + $0x4] sm:$0xf] %vm3078, %v3625
        %v3631 = vld [vmem:[#allocation3 + $0xc] sm:$0x1]
        %v3632 = vsel %vm3081, %v3627, %v3631
        %3633 = vst [vmem:[#allocation3 + $0xc] sm:$0x1] %v3632
        %s3634 = scalar_lea.vmem %s2, 104
        %v3635 = vld [vmem:[%s3634] sm:$0xf]
        %v3636 = vld [vmem:[%s3634 + $0x4] sm:$0x1]
        %v3639 = vunpack.c.l.b16 %v3635
        %v3640 = vunpack.c.l.b16 %v3636
        %v3641 = vpack.c.b16 %v3640, %v3639
        %v3643 = vsel %vm2734, %v3641, 0
        %3645 = vmatprep.subr.bf16.mxu0 0
        %3646 = vmatpush1.bf16.msra.mxu0 0
        %3647 = vmatprep.subr.bf16.mxu0 0
        %3648 = vmatpush1.bf16.msra.mxu0 0
        %3649 = vmatprep.subr.bf16.mxu0 0
        %3650 = vmatpush1.bf16.msra.mxu0 0
        %3651 = vmatprep.subr.bf16.mxu0 0
        %3652 = vmatpush1.bf16.msra.mxu0 0
        %3653 = vmatprep.subr.bf16.mxu0 0
        %3654 = vmatpush1.bf16.msra.mxu0 0
        %3655 = vmatprep.subr.bf16.mxu0 0
        %3656 = vmatpush1.bf16.msra.mxu0 0
        %3657 = vmatprep.subr.bf16.mxu0 0
        %3658 = vmatpush1.bf16.msra.mxu0 %v2743
        %3659 = vmatprep.subr.bf16.mxu0 0
        %3660 = vmatpush1.bf16.msra.mxu0 %v2725
        %3661 = vmatprep.subr.bf16.mxu0 0
        %3662 = vmatpush2.bf16.msra.mxu0 0
        %3663 = vmatprep.subr.bf16.mxu0 0
        %3664 = vmatpush2.bf16.msra.mxu0 0
        %3665 = vmatprep.subr.bf16.mxu0 0
        %3666 = vmatpush2.bf16.msra.mxu0 0
        %3667 = vmatprep.subr.bf16.mxu0 0
        %3668 = vmatpush2.bf16.msra.mxu0 0
        %3669 = vmatprep.subr.bf16.mxu0 0
        %3670 = vmatpush2.bf16.msra.mxu0 0
        %3671 = vmatprep.subr.bf16.mxu0 0
        %3672 = vmatpush2.bf16.msra.mxu0 0
        %3673 = vmatprep.subr.bf16.mxu0 0
        %3674 = vmatpush2.bf16.msra.mxu0 0
        %3675 = vmatprep.subr.bf16.mxu0 0
        %3676 = vmatpush2.bf16.msra.mxu0 0
        %3677 = vmatprep.mubr.bf16.mxu0 0
        %3678 = vmatmul.mubr.bf16.gmra.mxu0 %v3643
        %v3679 = vpop.f32.mrf.mxu0
        %v3680 = vadd.f32 0.0, %v3679
        %v3681 = vpop.f32.mrf.mxu0
        %v3682 = vpop.f32.mrf.mxu0
        %v3683 = vadd.f32 0.0, %v3682
        %v3684 = vpop.f32.mrf.mxu0
        %3685 = vdwg.mxu0
        %v3686 = vpack.c.bf16 %v3683, %v3680
        %v3688 = vunpack.c.l.b16 %v3686
        %v3689 = vunpack.c.h.b16 %v3686
        %v3690 = vpack.c.b16 %v3688, %v3688
        %v3691 = vpack.c.b16 %v3689, %v3689
        %3692 = vrot.lane.b32.xlu0 %v3690, 80
        %v3693 = vpop.permute.xlu0 %3692
        %3694 = vrot.lane.b32.xlu0 %v3691, 80
        %v3695 = vpop.permute.xlu0 %3694
        %3698 = vst.msk [vmem:[#allocation3 + $0x4] sm:$0xf] %vm3149, %v3693
        %v3699 = vld [vmem:[#allocation3 + $0xc] sm:$0x1]
        %v3700 = vsel %vm3152, %v3695, %v3699
        %3701 = vst [vmem:[#allocation3 + $0xc] sm:$0x1] %v3700
        %s3702 = scalar_lea.vmem %s2, 112
        %v3703 = vld [vmem:[%s3702] sm:$0xf]
        %v3704 = vld [vmem:[%s3702 + $0x4] sm:$0x1]
        %v3707 = vunpack.c.l.b16 %v3703
        %v3708 = vunpack.c.l.b16 %v3704
        %v3709 = vpack.c.b16 %v3708, %v3707
        %v3711 = vsel %vm2734, %v3709, 0
        %3713 = vmatprep.subr.bf16.mxu0 0
        %3714 = vmatpush1.bf16.msra.mxu0 0
        %3715 = vmatprep.subr.bf16.mxu0 0
        %3716 = vmatpush1.bf16.msra.mxu0 0
        %3717 = vmatprep.subr.bf16.mxu0 0
        %3718 = vmatpush1.bf16.msra.mxu0 0
        %3719 = vmatprep.subr.bf16.mxu0 0
        %3720 = vmatpush1.bf16.msra.mxu0 0
        %3721 = vmatprep.subr.bf16.mxu0 0
        %3722 = vmatpush1.bf16.msra.mxu0 0
        %3723 = vmatprep.subr.bf16.mxu0 0
        %3724 = vmatpush1.bf16.msra.mxu0 0
        %3725 = vmatprep.subr.bf16.mxu0 0
        %3726 = vmatpush1.bf16.msra.mxu0 %v2743
        %3727 = vmatprep.subr.bf16.mxu0 0
        %3728 = vmatpush1.bf16.msra.mxu0 %v2725
        %3729 = vmatprep.subr.bf16.mxu0 0
        %3730 = vmatpush2.bf16.msra.mxu0 0
        %3731 = vmatprep.subr.bf16.mxu0 0
        %3732 = vmatpush2.bf16.msra.mxu0 0
        %3733 = vmatprep.subr.bf16.mxu0 0
        %3734 = vmatpush2.bf16.msra.mxu0 0
        %3735 = vmatprep.subr.bf16.mxu0 0
        %3736 = vmatpush2.bf16.msra.mxu0 0
        %3737 = vmatprep.subr.bf16.mxu0 0
        %3738 = vmatpush2.bf16.msra.mxu0 0
        %3739 = vmatprep.subr.bf16.mxu0 0
        %3740 = vmatpush2.bf16.msra.mxu0 0
        %3741 = vmatprep.subr.bf16.mxu0 0
        %3742 = vmatpush2.bf16.msra.mxu0 0
        %3743 = vmatprep.subr.bf16.mxu0 0
        %3744 = vmatpush2.bf16.msra.mxu0 0
        %3745 = vmatprep.mubr.bf16.mxu0 0
        %3746 = vmatmul.mubr.bf16.gmra.mxu0 %v3711
        %v3747 = vpop.f32.mrf.mxu0
        %v3748 = vadd.f32 0.0, %v3747
        %v3749 = vpop.f32.mrf.mxu0
        %v3750 = vpop.f32.mrf.mxu0
        %v3751 = vadd.f32 0.0, %v3750
        %v3752 = vpop.f32.mrf.mxu0
        %3753 = vdwg.mxu0
        %v3754 = vpack.c.bf16 %v3751, %v3748
        %v3756 = vunpack.c.l.b16 %v3754
        %v3757 = vunpack.c.h.b16 %v3754
        %v3758 = vpack.c.b16 %v3756, %v3756
        %v3759 = vpack.c.b16 %v3757, %v3757
        %3760 = vrot.lane.b32.xlu0 %v3758, 96
        %v3761 = vpop.permute.xlu0 %3760
        %3762 = vrot.lane.b32.xlu0 %v3759, 96
        %v3763 = vpop.permute.xlu0 %3762
        %3766 = vst.msk [vmem:[#allocation3 + $0x4] sm:$0xf] %vm3220, %v3761
        %v3767 = vld [vmem:[#allocation3 + $0xc] sm:$0x1]
        %v3768 = vsel %vm3223, %v3763, %v3767
        %3769 = vst [vmem:[#allocation3 + $0xc] sm:$0x1] %v3768
        %s3770 = scalar_lea.vmem %s2, 120
        %v3771 = vld [vmem:[%s3770] sm:$0xf]
        %v3772 = vld [vmem:[%s3770 + $0x4] sm:$0x1]
        %v3775 = vunpack.c.l.b16 %v3771
        %v3776 = vunpack.c.l.b16 %v3772
        %v3777 = vpack.c.b16 %v3776, %v3775
        %v3779 = vsel %vm2734, %v3777, 0
        %3781 = vmatprep.subr.bf16.mxu0 0
        %3782 = vmatpush1.bf16.msra.mxu0 0
        %3783 = vmatprep.subr.bf16.mxu0 0
        %3784 = vmatpush1.bf16.msra.mxu0 0
        %3785 = vmatprep.subr.bf16.mxu0 0
        %3786 = vmatpush1.bf16.msra.mxu0 0
        %3787 = vmatprep.subr.bf16.mxu0 0
        %3788 = vmatpush1.bf16.msra.mxu0 0
        %3789 = vmatprep.subr.bf16.mxu0 0
        %3790 = vmatpush1.bf16.msra.mxu0 0
        %3791 = vmatprep.subr.bf16.mxu0 0
        %3792 = vmatpush1.bf16.msra.mxu0 0
        %3793 = vmatprep.subr.bf16.mxu0 0
        %3794 = vmatpush1.bf16.msra.mxu0 %v2743
        %3795 = vmatprep.subr.bf16.mxu0 0
        %3796 = vmatpush1.bf16.msra.mxu0 %v2725
        %3797 = vmatprep.subr.bf16.mxu0 0
        %3798 = vmatpush2.bf16.msra.mxu0 0
        %3799 = vmatprep.subr.bf16.mxu0 0
        %3800 = vmatpush2.bf16.msra.mxu0 0
        %3801 = vmatprep.subr.bf16.mxu0 0
        %3802 = vmatpush2.bf16.msra.mxu0 0
        %3803 = vmatprep.subr.bf16.mxu0 0
        %3804 = vmatpush2.bf16.msra.mxu0 0
        %3805 = vmatprep.subr.bf16.mxu0 0
        %3806 = vmatpush2.bf16.msra.mxu0 0
        %3807 = vmatprep.subr.bf16.mxu0 0
        %3808 = vmatpush2.bf16.msra.mxu0 0
        %3809 = vmatprep.subr.bf16.mxu0 0
        %3810 = vmatpush2.bf16.msra.mxu0 0
        %3811 = vmatprep.subr.bf16.mxu0 0
        %3812 = vmatpush2.bf16.msra.mxu0 0
        %3813 = vmatprep.mubr.bf16.mxu0 0
        %3814 = vmatmul.mubr.bf16.gmra.mxu0 %v3779
        %v3815 = vpop.f32.mrf.mxu0
        %v3816 = vadd.f32 0.0, %v3815
        %v3817 = vpop.f32.mrf.mxu0
        %v3818 = vpop.f32.mrf.mxu0
        %v3819 = vadd.f32 0.0, %v3818
        %v3820 = vpop.f32.mrf.mxu0
        %3821 = vdwg.mxu0
        %v3822 = vpack.c.bf16 %v3819, %v3816
        %v3824 = vunpack.c.l.b16 %v3822
        %v3825 = vunpack.c.h.b16 %v3822
        %v3826 = vpack.c.b16 %v3824, %v3824
        %v3827 = vpack.c.b16 %v3825, %v3825
        %3828 = vrot.lane.b32.xlu0 %v3826, 112
        %v3829 = vpop.permute.xlu0 %3828
        %3830 = vrot.lane.b32.xlu0 %v3827, 112
        %v3831 = vpop.permute.xlu0 %3830
        %3834 = vst.msk [vmem:[#allocation3 + $0x4] sm:$0xf] %vm3291, %v3829
        %v3835 = vld [vmem:[#allocation3 + $0xc] sm:$0x1]
        %v3836 = vsel %vm3294, %v3831, %v3835
        %3837 = vst [vmem:[#allocation3 + $0xc] sm:$0x1] %v3836
        %v3838 = vld [vmem:[#allocation3] sm:$0xff]
        %v3839 = vld [vmem:[#allocation3 + $0x8] sm:$0x11]
        %v3840 = vld [vmem:[%s7] sm:$0xf]
        %v3841 = vld [vmem:[%s7 + $0x4] sm:$0xf]
        %v3842 = vld [vmem:[%s7 + $0x8] sm:$0xf]
        %v3843 = vld [vmem:[%s7 + $0xc] sm:$0xf]
        %v3844 = vld [vmem:[%s7 + $0x10] sm:$0xf]
        %v3845 = vld [vmem:[%s7 + $0x14] sm:$0xf]
        %v3846 = vld [vmem:[%s7 + $0x18] sm:$0xf]
        %v3847 = vld [vmem:[%s7 + $0x1c] sm:$0xf]
        %v3848 = vld [vmem:[%s7 + $0x20] sm:$0xf]
        %v3849 = vld [vmem:[%s7 + $0x24] sm:$0xf]
        %v3850 = vld [vmem:[%s7 + $0x28] sm:$0xf]
        %v3851 = vld [vmem:[%s7 + $0x2c] sm:$0xf]
        %v3852 = vld [vmem:[%s7 + $0x30] sm:$0xf]
        %v3853 = vld [vmem:[%s7 + $0x34] sm:$0xf]
        %v3854 = vld [vmem:[%s7 + $0x38] sm:$0xf]
        %v3855 = vld [vmem:[%s7 + $0x3c] sm:$0xf]
        %v3856 = vld [vmem:[%s7 + $0x40] sm:$0xf]
        %v3857 = vld [vmem:[%s7 + $0x44] sm:$0xf]
        %v3858 = vld [vmem:[%s7 + $0x48] sm:$0xf]
        %v3859 = vld [vmem:[%s7 + $0x4c] sm:$0xf]
        %v3860 = vld [vmem:[%s7 + $0x50] sm:$0xf]
        %v3861 = vld [vmem:[%s7 + $0x54] sm:$0xf]
        %v3862 = vld [vmem:[%s7 + $0x58] sm:$0xf]
        %v3863 = vld [vmem:[%s7 + $0x5c] sm:$0xf]
        %v3864 = vld [vmem:[%s7 + $0x60] sm:$0xf]
        %v3865 = vld [vmem:[%s7 + $0x64] sm:$0xf]
        %v3866 = vld [vmem:[%s7 + $0x68] sm:$0xf]
        %v3867 = vld [vmem:[%s7 + $0x6c] sm:$0xf]
        %v3868 = vld [vmem:[%s7 + $0x70] sm:$0xf]
        %v3869 = vld [vmem:[%s7 + $0x74] sm:$0xf]
        %v3870 = vld [vmem:[%s7 + $0x78] sm:$0xf]
        %v3871 = vld [vmem:[%s7 + $0x7c] sm:$0xf]
        %v3872 = vld [vmem:[%s12] sm:$0x1]
        %v3874 = vlaneseq
        %v3875 = vshrl.u32 %v3874, 7
        %v3876 = vsub.s32 0, %v3875
        %v3877 = vrot.slane %v3872, %v3876
        %v3881 = vunpack.c.l.b16 %v3838
        %v3882 = vunpack.c.h.b16 %v3838
        %v3883 = vunpack.c.l.b16 %v3839
        %v3884 = vunpack.c.h.b16 %v3839
        %v3885 = vpack.c.b16 %v3883, %v3881
        %v3886 = vpack.c.b16 %v3884, %v3882
        %v3921 = vunpack.c.l.b16 %v3840
        %v3922 = vunpack.c.l.b16 %v3841
        %v3923 = vunpack.c.l.b16 %v3842
        %v3924 = vunpack.c.l.b16 %v3843
        %v3925 = vunpack.c.l.b16 %v3844
        %v3926 = vunpack.c.l.b16 %v3845
        %v3927 = vunpack.c.l.b16 %v3846
        %v3928 = vunpack.c.l.b16 %v3847
        %v3929 = vunpack.c.l.b16 %v3848
        %v3930 = vunpack.c.l.b16 %v3849
        %v3931 = vunpack.c.l.b16 %v3850
        %v3932 = vunpack.c.l.b16 %v3851
        %v3933 = vunpack.c.l.b16 %v3852
        %v3934 = vunpack.c.l.b16 %v3853
        %v3935 = vunpack.c.l.b16 %v3854
        %v3936 = vunpack.c.l.b16 %v3855
        %v3937 = vunpack.c.l.b16 %v3856
        %v3938 = vunpack.c.l.b16 %v3857
        %v3939 = vunpack.c.l.b16 %v3858
        %v3940 = vunpack.c.l.b16 %v3859
        %v3941 = vunpack.c.l.b16 %v3860
        %v3942 = vunpack.c.l.b16 %v3861
        %v3943 = vunpack.c.l.b16 %v3862
        %v3944 = vunpack.c.l.b16 %v3863
        %v3945 = vunpack.c.l.b16 %v3864
        %v3946 = vunpack.c.l.b16 %v3865
        %v3947 = vunpack.c.l.b16 %v3866
        %v3948 = vunpack.c.l.b16 %v3867
        %v3949 = vunpack.c.l.b16 %v3868
        %v3950 = vunpack.c.l.b16 %v3869
        %v3951 = vunpack.c.l.b16 %v3870
        %v3952 = vunpack.c.l.b16 %v3871
        %v3953 = vpack.c.b16 %v3922, %v3921
        %v3954 = vpack.c.b16 %v3924, %v3923
        %v3955 = vpack.c.b16 %v3926, %v3925
        %v3956 = vpack.c.b16 %v3928, %v3927
        %v3957 = vpack.c.b16 %v3930, %v3929
        %v3958 = vpack.c.b16 %v3932, %v3931
        %v3959 = vpack.c.b16 %v3934, %v3933
        %v3960 = vpack.c.b16 %v3936, %v3935
        %v3961 = vpack.c.b16 %v3938, %v3937
        %v3962 = vpack.c.b16 %v3940, %v3939
        %v3963 = vpack.c.b16 %v3942, %v3941
        %v3964 = vpack.c.b16 %v3944, %v3943
        %v3965 = vpack.c.b16 %v3946, %v3945
        %v3966 = vpack.c.b16 %v3948, %v3947
        %v3967 = vpack.c.b16 %v3950, %v3949
        %v3968 = vpack.c.b16 %v3952, %v3951
        %3985 = vmatprep.subr.bf16.mxu0 0
        %3986 = vmatpush1.bf16.msra.mxu0 %v3960
        %3987 = vmatprep.subr.bf16.mxu0 0
        %3988 = vmatpush1.bf16.msra.mxu0 %v3959
        %3989 = vmatprep.subr.bf16.mxu0 0
        %3990 = vmatpush1.bf16.msra.mxu0 %v3958
        %3991 = vmatprep.subr.bf16.mxu0 0
        %3992 = vmatpush1.bf16.msra.mxu0 %v3957
        %3993 = vmatprep.subr.bf16.mxu0 0
        %3994 = vmatpush1.bf16.msra.mxu0 %v3956
        %3995 = vmatprep.subr.bf16.mxu0 0
        %3996 = vmatpush1.bf16.msra.mxu0 %v3955
        %3997 = vmatprep.subr.bf16.mxu0 0
        %3998 = vmatpush1.bf16.msra.mxu0 %v3954
        %3999 = vmatprep.subr.bf16.mxu0 0
        %4000 = vmatpush1.bf16.msra.mxu0 %v3953
        %4001 = vmatprep.subr.bf16.mxu0 0
        %4002 = vmatpush2.bf16.msra.mxu0 %v3968
        %4003 = vmatprep.subr.bf16.mxu0 0
        %4004 = vmatpush2.bf16.msra.mxu0 %v3967
        %4005 = vmatprep.subr.bf16.mxu0 0
        %4006 = vmatpush2.bf16.msra.mxu0 %v3966
        %4007 = vmatprep.subr.bf16.mxu0 0
        %4008 = vmatpush2.bf16.msra.mxu0 %v3965
        %4009 = vmatprep.subr.bf16.mxu0 0
        %4010 = vmatpush2.bf16.msra.mxu0 %v3964
        %4011 = vmatprep.subr.bf16.mxu0 0
        %4012 = vmatpush2.bf16.msra.mxu0 %v3963
        %4013 = vmatprep.subr.bf16.mxu0 0
        %4014 = vmatpush2.bf16.msra.mxu0 %v3962
        %4015 = vmatprep.subr.bf16.mxu0 0
        %4016 = vmatpush2.bf16.msra.mxu0 %v3961
        %4017 = vmatprep.mubr.bf16.mxu0 %v3886
        %4018 = vmatmul.mubr.bf16.gmra.mxu0 %v3885
        %v4019 = vpop.f32.mrf.mxu0
        %v4020 = vadd.f32 %v3877, %v4019
        %v4021 = vpop.f32.mrf.mxu0
        %v4022 = vpop.f32.mrf.mxu0
        %v4023 = vadd.f32 %v3877, %v4022
        %v4024 = vpop.f32.mrf.mxu0
        %4025 = vdwg.mxu0
        %vm4026 = vcmp.ge.f32.partialorder %v4020, 0.0
        %vm4027 = vcmp.ge.f32.partialorder %v4023, 0.0
        %v4028 = vmul.f32 %v4020, 0.2
        %v4029 = vmul.f32 %v4023, 0.2
        %v4030 = vsel %vm4026, %v4020, %v4028
        %v4031 = vsel %vm4027, %v4023, %v4029
        %vm4032 = vcmask 261120
        %v4033 = vsel %vm4032, %v4030, 0.0
        %vm4034 = vcmask 253952
        %v4035 = vsel %vm4034, %v4031, 0.0
        %v4036 = vadd.f32 %v4033, %v4035
        %v4037 = vrot.slane %v4036, 4
        %v4038 = vadd.f32 %v4036, %v4037
        %v4039 = vrot.slane %v4038, 2
        %v4040 = vadd.f32 %v4038, %v4039
        %v4041 = vrot.slane %v4040, 1
        %v4042 = vadd.f32 %v4040, %v4041
        %v4043 = vmul.f32 %v4042, 0.11111111
        %v4044 = vsub.f32 %v4030, %v4043
        %v4045 = vsub.f32 %v4031, %v4043
        %v4046 = vmul.f32 %v4044, %v4044
        %v4047 = vmul.f32 %v4045, %v4045
        %v4048 = vsel %vm4032, %v4046, 0.0
        %v4049 = vsel %vm4034, %v4047, 0.0
        %v4050 = vadd.f32 %v4048, %v4049
        %v4051 = vrot.slane %v4050, 4
        %v4052 = vadd.f32 %v4050, %v4051
        %v4053 = vrot.slane %v4052, 2
        %v4054 = vadd.f32 %v4052, %v4053
        %v4055 = vrot.slane %v4054, 1
        %v4056 = vadd.f32 %v4054, %v4055
        %v4057 = vmul.f32 %v4056, 0.11111111
        %v4058 = vadd.f32 %v4057, 1e-05
        %v4059 = vrsqrt.pop %v4058
        %v4060 = vmul.f32 %v4044, %v4059
        %v4061 = vmul.f32 %v4045, %v4059
        %4062 = vst.msk [vmem:[%s646] sm:$0xff] %vm4032, %v4060
        %4063 = vst.msk [vmem:[%s646 + $0x8] sm:$0x1] %vm4034, %v4061
        %v4064 = vpack.c.bf16 %v4061, %v4060
        %v4065 = vld [vmem:[%s3] sm:$0x3]
        %vm4066 = vcmask 72704
        %v4068 = vsel %vm4066, %v4065, 0
        %v4071 = vand.u32 %v4064, %v2741
        %4073 = vmatprep.subr.bf16.mxu0 0
        %4074 = vmatpush1.bf16.msra.mxu0 0
        %4075 = vmatprep.subr.bf16.mxu0 0
        %4076 = vmatpush1.bf16.msra.mxu0 0
        %4077 = vmatprep.subr.bf16.mxu0 0
        %4078 = vmatpush1.bf16.msra.mxu0 0
        %4079 = vmatprep.subr.bf16.mxu0 0
        %4080 = vmatpush1.bf16.msra.mxu0 0
        %4081 = vmatprep.subr.bf16.mxu0 0
        %4082 = vmatpush1.bf16.msra.mxu0 0
        %4083 = vmatprep.subr.bf16.mxu0 0
        %4084 = vmatpush1.bf16.msra.mxu0 0
        %4085 = vmatprep.subr.bf16.mxu0 0
        %4086 = vmatpush1.bf16.msra.mxu0 0
        %4087 = vmatprep.subr.bf16.mxu0 0
        %4088 = vmatpush1.bf16.msra.mxu0 %v4071
        %4089 = vmatprep.subr.bf16.mxu0 0
        %4090 = vmatpush2.bf16.msra.mxu0 0
        %4091 = vmatprep.subr.bf16.mxu0 0
        %4092 = vmatpush2.bf16.msra.mxu0 0
        %4093 = vmatprep.subr.bf16.mxu0 0
        %4094 = vmatpush2.bf16.msra.mxu0 0
        %4095 = vmatprep.subr.bf16.mxu0 0
        %4096 = vmatpush2.bf16.msra.mxu0 0
        %4097 = vmatprep.subr.bf16.mxu0 0
        %4098 = vmatpush2.bf16.msra.mxu0 0
        %4099 = vmatprep.subr.bf16.mxu0 0
        %4100 = vmatpush2.bf16.msra.mxu0 0
        %4101 = vmatprep.subr.bf16.mxu0 0
        %4102 = vmatpush2.bf16.msra.mxu0 0
        %4103 = vmatprep.subr.bf16.mxu0 0
        %4104 = vmatpush2.bf16.msra.mxu0 0
        %4105 = vmatprep.mubr.bf16.mxu0 0
        %4106 = vmatmul.mubr.bf16.gmra.mxu0 %v4068
        %v4107 = vpop.f32.mrf.mxu0
        %v4108 = vadd.f32 0.0, %v4107
        %v4109 = vpop.f32.mrf.mxu0
        %v4110 = vpop.f32.mrf.mxu0
        %v4111 = vpop.f32.mrf.mxu0
        %4112 = vdwg.mxu0
        %v4113 = vpack.c.bf16 %v4108, %v4108
        %vm4114 = vcmask 254976
        %4115 = vst.msk [vmem:[#allocation4] sm:$0x3] %vm4114, %v4113
        %s4116 = scalar_lea.vmem %s3, 2
        %v4117 = vld [vmem:[%s4116] sm:$0x3]
        %v4119 = vsel %vm4066, %v4117, 0
        %4121 = vmatprep.subr.bf16.mxu0 0
        %4122 = vmatpush1.bf16.msra.mxu0 0
        %4123 = vmatprep.subr.bf16.mxu0 0
        %4124 = vmatpush1.bf16.msra.mxu0 0
        %4125 = vmatprep.subr.bf16.mxu0 0
        %4126 = vmatpush1.bf16.msra.mxu0 0
        %4127 = vmatprep.subr.bf16.mxu0 0
        %4128 = vmatpush1.bf16.msra.mxu0 0
        %4129 = vmatprep.subr.bf16.mxu0 0
        %4130 = vmatpush1.bf16.msra.mxu0 0
        %4131 = vmatprep.subr.bf16.mxu0 0
        %4132 = vmatpush1.bf16.msra.mxu0 0
        %4133 = vmatprep.subr.bf16.mxu0 0
        %4134 = vmatpush1.bf16.msra.mxu0 0
        %4135 = vmatprep.subr.bf16.mxu0 0
        %4136 = vmatpush1.bf16.msra.mxu0 %v4071
        %4137 = vmatprep.subr.bf16.mxu0 0
        %4138 = vmatpush2.bf16.msra.mxu0 0
        %4139 = vmatprep.subr.bf16.mxu0 0
        %4140 = vmatpush2.bf16.msra.mxu0 0
        %4141 = vmatprep.subr.bf16.mxu0 0
        %4142 = vmatpush2.bf16.msra.mxu0 0
        %4143 = vmatprep.subr.bf16.mxu0 0
        %4144 = vmatpush2.bf16.msra.mxu0 0
        %4145 = vmatprep.subr.bf16.mxu0 0
        %4146 = vmatpush2.bf16.msra.mxu0 0
        %4147 = vmatprep.subr.bf16.mxu0 0
        %4148 = vmatpush2.bf16.msra.mxu0 0
        %4149 = vmatprep.subr.bf16.mxu0 0
        %4150 = vmatpush2.bf16.msra.mxu0 0
        %4151 = vmatprep.subr.bf16.mxu0 0
        %4152 = vmatpush2.bf16.msra.mxu0 0
        %4153 = vmatprep.mubr.bf16.mxu0 0
        %4154 = vmatmul.mubr.bf16.gmra.mxu0 %v4119
        %v4155 = vpop.f32.mrf.mxu0
        %v4156 = vadd.f32 0.0, %v4155
        %v4157 = vpop.f32.mrf.mxu0
        %v4158 = vpop.f32.mrf.mxu0
        %v4159 = vpop.f32.mrf.mxu0
        %4160 = vdwg.mxu0
        %v4161 = vpack.c.bf16 %v4156, %v4156
        %v4164 = vunpack.c.l.s4 1983009808
        %v4165 = vunpack.c.0.s8 %v4164
        %v4166 = vlaneseq
        %v4167 = vshrl.u32 %v4166, 7
        %v4168 = vsub.s32 %v4165, %v4167
        %v4169 = vrot.slane %v4161, %v4168
        %4170 = vrot.lane.b32.xlu0 %v4169, 32
        %v4171 = vpop.permute.xlu0 %4170
        %vm4173 = vcmask 517376
        %4174 = vst.msk [vmem:[#allocation4] sm:$0x3] %vm4173, %v4171
        %s4175 = scalar_lea.vmem %s3, 4
        %v4176 = vld [vmem:[%s4175] sm:$0x3]
        %v4178 = vsel %vm4066, %v4176, 0
        %4180 = vmatprep.subr.bf16.mxu0 0
        %4181 = vmatpush1.bf16.msra.mxu0 0
        %4182 = vmatprep.subr.bf16.mxu0 0
        %4183 = vmatpush1.bf16.msra.mxu0 0
        %4184 = vmatprep.subr.bf16.mxu0 0
        %4185 = vmatpush1.bf16.msra.mxu0 0
        %4186 = vmatprep.subr.bf16.mxu0 0
        %4187 = vmatpush1.bf16.msra.mxu0 0
        %4188 = vmatprep.subr.bf16.mxu0 0
        %4189 = vmatpush1.bf16.msra.mxu0 0
        %4190 = vmatprep.subr.bf16.mxu0 0
        %4191 = vmatpush1.bf16.msra.mxu0 0
        %4192 = vmatprep.subr.bf16.mxu0 0
        %4193 = vmatpush1.bf16.msra.mxu0 0
        %4194 = vmatprep.subr.bf16.mxu0 0
        %4195 = vmatpush1.bf16.msra.mxu0 %v4071
        %4196 = vmatprep.subr.bf16.mxu0 0
        %4197 = vmatpush2.bf16.msra.mxu0 0
        %4198 = vmatprep.subr.bf16.mxu0 0
        %4199 = vmatpush2.bf16.msra.mxu0 0
        %4200 = vmatprep.subr.bf16.mxu0 0
        %4201 = vmatpush2.bf16.msra.mxu0 0
        %4202 = vmatprep.subr.bf16.mxu0 0
        %4203 = vmatpush2.bf16.msra.mxu0 0
        %4204 = vmatprep.subr.bf16.mxu0 0
        %4205 = vmatpush2.bf16.msra.mxu0 0
        %4206 = vmatprep.subr.bf16.mxu0 0
        %4207 = vmatpush2.bf16.msra.mxu0 0
        %4208 = vmatprep.subr.bf16.mxu0 0
        %4209 = vmatpush2.bf16.msra.mxu0 0
        %4210 = vmatprep.subr.bf16.mxu0 0
        %4211 = vmatpush2.bf16.msra.mxu0 0
        %4212 = vmatprep.mubr.bf16.mxu0 0
        %4213 = vmatmul.mubr.bf16.gmra.mxu0 %v4178
        %v4214 = vpop.f32.mrf.mxu0
        %v4215 = vadd.f32 0.0, %v4214
        %v4216 = vpop.f32.mrf.mxu0
        %v4217 = vpop.f32.mrf.mxu0
        %v4218 = vpop.f32.mrf.mxu0
        %4219 = vdwg.mxu0
        %v4220 = vpack.c.bf16 %v4215, %v4215
        %v4223 = vunpack.c.l.s4 1983009808
        %v4224 = vunpack.c.0.s8 %v4223
        %v4225 = vlaneseq
        %v4226 = vshrl.u32 %v4225, 7
        %v4227 = vsub.s32 %v4224, %v4226
        %v4228 = vrot.slane %v4220, %v4227
        %4229 = vrot.lane.b32.xlu0 %v4228, 64
        %v4230 = vpop.permute.xlu0 %4229
        %vm4232 = vcmask 779776
        %4233 = vst.msk [vmem:[#allocation4] sm:$0x3] %vm4232, %v4230
        %s4234 = scalar_lea.vmem %s3, 6
        %v4235 = vld [vmem:[%s4234] sm:$0x3]
        %v4237 = vsel %vm4066, %v4235, 0
        %4239 = vmatprep.subr.bf16.mxu0 0
        %4240 = vmatpush1.bf16.msra.mxu0 0
        %4241 = vmatprep.subr.bf16.mxu0 0
        %4242 = vmatpush1.bf16.msra.mxu0 0
        %4243 = vmatprep.subr.bf16.mxu0 0
        %4244 = vmatpush1.bf16.msra.mxu0 0
        %4245 = vmatprep.subr.bf16.mxu0 0
        %4246 = vmatpush1.bf16.msra.mxu0 0
        %4247 = vmatprep.subr.bf16.mxu0 0
        %4248 = vmatpush1.bf16.msra.mxu0 0
        %4249 = vmatprep.subr.bf16.mxu0 0
        %4250 = vmatpush1.bf16.msra.mxu0 0
        %4251 = vmatprep.subr.bf16.mxu0 0
        %4252 = vmatpush1.bf16.msra.mxu0 0
        %4253 = vmatprep.subr.bf16.mxu0 0
        %4254 = vmatpush1.bf16.msra.mxu0 %v4071
        %4255 = vmatprep.subr.bf16.mxu0 0
        %4256 = vmatpush2.bf16.msra.mxu0 0
        %4257 = vmatprep.subr.bf16.mxu0 0
        %4258 = vmatpush2.bf16.msra.mxu0 0
        %4259 = vmatprep.subr.bf16.mxu0 0
        %4260 = vmatpush2.bf16.msra.mxu0 0
        %4261 = vmatprep.subr.bf16.mxu0 0
        %4262 = vmatpush2.bf16.msra.mxu0 0
        %4263 = vmatprep.subr.bf16.mxu0 0
        %4264 = vmatpush2.bf16.msra.mxu0 0
        %4265 = vmatprep.subr.bf16.mxu0 0
        %4266 = vmatpush2.bf16.msra.mxu0 0
        %4267 = vmatprep.subr.bf16.mxu0 0
        %4268 = vmatpush2.bf16.msra.mxu0 0
        %4269 = vmatprep.subr.bf16.mxu0 0
        %4270 = vmatpush2.bf16.msra.mxu0 0
        %4271 = vmatprep.mubr.bf16.mxu0 0
        %4272 = vmatmul.mubr.bf16.gmra.mxu0 %v4237
        %v4273 = vpop.f32.mrf.mxu0
        %v4274 = vadd.f32 0.0, %v4273
        %v4275 = vpop.f32.mrf.mxu0
        %v4276 = vpop.f32.mrf.mxu0
        %v4277 = vpop.f32.mrf.mxu0
        %4278 = vdwg.mxu0
        %v4279 = vpack.c.bf16 %v4274, %v4274
        %v4282 = vunpack.c.l.s4 1983009808
        %v4283 = vunpack.c.0.s8 %v4282
        %v4284 = vlaneseq
        %v4285 = vshrl.u32 %v4284, 7
        %v4286 = vsub.s32 %v4283, %v4285
        %v4287 = vrot.slane %v4279, %v4286
        %4288 = vrot.lane.b32.xlu0 %v4287, 96
        %v4289 = vpop.permute.xlu0 %4288
        %vm4291 = vcmask 1042176
        %4292 = vst.msk [vmem:[#allocation4] sm:$0x3] %vm4291, %v4289
        %s4293 = scalar_lea.vmem %s3, 8
        %v4294 = vld [vmem:[%s4293] sm:$0x3]
        %v4296 = vsel %vm4066, %v4294, 0
        %4298 = vmatprep.subr.bf16.mxu0 0
        %4299 = vmatpush1.bf16.msra.mxu0 0
        %4300 = vmatprep.subr.bf16.mxu0 0
        %4301 = vmatpush1.bf16.msra.mxu0 0
        %4302 = vmatprep.subr.bf16.mxu0 0
        %4303 = vmatpush1.bf16.msra.mxu0 0
        %4304 = vmatprep.subr.bf16.mxu0 0
        %4305 = vmatpush1.bf16.msra.mxu0 0
        %4306 = vmatprep.subr.bf16.mxu0 0
        %4307 = vmatpush1.bf16.msra.mxu0 0
        %4308 = vmatprep.subr.bf16.mxu0 0
        %4309 = vmatpush1.bf16.msra.mxu0 0
        %4310 = vmatprep.subr.bf16.mxu0 0
        %4311 = vmatpush1.bf16.msra.mxu0 0
        %4312 = vmatprep.subr.bf16.mxu0 0
        %4313 = vmatpush1.bf16.msra.mxu0 %v4071
        %4314 = vmatprep.subr.bf16.mxu0 0
        %4315 = vmatpush2.bf16.msra.mxu0 0
        %4316 = vmatprep.subr.bf16.mxu0 0
        %4317 = vmatpush2.bf16.msra.mxu0 0
        %4318 = vmatprep.subr.bf16.mxu0 0
        %4319 = vmatpush2.bf16.msra.mxu0 0
        %4320 = vmatprep.subr.bf16.mxu0 0
        %4321 = vmatpush2.bf16.msra.mxu0 0
        %4322 = vmatprep.subr.bf16.mxu0 0
        %4323 = vmatpush2.bf16.msra.mxu0 0
        %4324 = vmatprep.subr.bf16.mxu0 0
        %4325 = vmatpush2.bf16.msra.mxu0 0
        %4326 = vmatprep.subr.bf16.mxu0 0
        %4327 = vmatpush2.bf16.msra.mxu0 0
        %4328 = vmatprep.subr.bf16.mxu0 0
        %4329 = vmatpush2.bf16.msra.mxu0 0
        %4330 = vmatprep.mubr.bf16.mxu0 0
        %4331 = vmatmul.mubr.bf16.gmra.mxu0 %v4296
        %v4332 = vpop.f32.mrf.mxu0
        %v4333 = vadd.f32 0.0, %v4332
        %v4334 = vpop.f32.mrf.mxu0
        %v4335 = vpop.f32.mrf.mxu0
        %v4336 = vpop.f32.mrf.mxu0
        %4337 = vdwg.mxu0
        %v4338 = vpack.c.bf16 %v4333, %v4333
        %4339 = vst.msk [vmem:[#allocation4 + $0x2] sm:$0x3] %vm4114, %v4338
        %s4340 = scalar_lea.vmem %s3, 10
        %v4341 = vld [vmem:[%s4340] sm:$0x3]
        %v4343 = vsel %vm4066, %v4341, 0
        %4345 = vmatprep.subr.bf16.mxu0 0
        %4346 = vmatpush1.bf16.msra.mxu0 0
        %4347 = vmatprep.subr.bf16.mxu0 0
        %4348 = vmatpush1.bf16.msra.mxu0 0
        %4349 = vmatprep.subr.bf16.mxu0 0
        %4350 = vmatpush1.bf16.msra.mxu0 0
        %4351 = vmatprep.subr.bf16.mxu0 0
        %4352 = vmatpush1.bf16.msra.mxu0 0
        %4353 = vmatprep.subr.bf16.mxu0 0
        %4354 = vmatpush1.bf16.msra.mxu0 0
        %4355 = vmatprep.subr.bf16.mxu0 0
        %4356 = vmatpush1.bf16.msra.mxu0 0
        %4357 = vmatprep.subr.bf16.mxu0 0
        %4358 = vmatpush1.bf16.msra.mxu0 0
        %4359 = vmatprep.subr.bf16.mxu0 0
        %4360 = vmatpush1.bf16.msra.mxu0 %v4071
        %4361 = vmatprep.subr.bf16.mxu0 0
        %4362 = vmatpush2.bf16.msra.mxu0 0
        %4363 = vmatprep.subr.bf16.mxu0 0
        %4364 = vmatpush2.bf16.msra.mxu0 0
        %4365 = vmatprep.subr.bf16.mxu0 0
        %4366 = vmatpush2.bf16.msra.mxu0 0
        %4367 = vmatprep.subr.bf16.mxu0 0
        %4368 = vmatpush2.bf16.msra.mxu0 0
        %4369 = vmatprep.subr.bf16.mxu0 0
        %4370 = vmatpush2.bf16.msra.mxu0 0
        %4371 = vmatprep.subr.bf16.mxu0 0
        %4372 = vmatpush2.bf16.msra.mxu0 0
        %4373 = vmatprep.subr.bf16.mxu0 0
        %4374 = vmatpush2.bf16.msra.mxu0 0
        %4375 = vmatprep.subr.bf16.mxu0 0
        %4376 = vmatpush2.bf16.msra.mxu0 0
        %4377 = vmatprep.mubr.bf16.mxu0 0
        %4378 = vmatmul.mubr.bf16.gmra.mxu0 %v4343
        %v4379 = vpop.f32.mrf.mxu0
        %v4380 = vadd.f32 0.0, %v4379
        %v4381 = vpop.f32.mrf.mxu0
        %v4382 = vpop.f32.mrf.mxu0
        %v4383 = vpop.f32.mrf.mxu0
        %4384 = vdwg.mxu0
        %v4385 = vpack.c.bf16 %v4380, %v4380
        %v4388 = vunpack.c.l.s4 1983009808
        %v4389 = vunpack.c.0.s8 %v4388
        %v4390 = vlaneseq
        %v4391 = vshrl.u32 %v4390, 7
        %v4392 = vsub.s32 %v4389, %v4391
        %v4393 = vrot.slane %v4385, %v4392
        %4394 = vrot.lane.b32.xlu0 %v4393, 32
        %v4395 = vpop.permute.xlu0 %4394
        %4397 = vst.msk [vmem:[#allocation4 + $0x2] sm:$0x3] %vm4173, %v4395
        %s4398 = scalar_lea.vmem %s3, 12
        %v4399 = vld [vmem:[%s4398] sm:$0x3]
        %v4401 = vsel %vm4066, %v4399, 0
        %4403 = vmatprep.subr.bf16.mxu0 0
        %4404 = vmatpush1.bf16.msra.mxu0 0
        %4405 = vmatprep.subr.bf16.mxu0 0
        %4406 = vmatpush1.bf16.msra.mxu0 0
        %4407 = vmatprep.subr.bf16.mxu0 0
        %4408 = vmatpush1.bf16.msra.mxu0 0
        %4409 = vmatprep.subr.bf16.mxu0 0
        %4410 = vmatpush1.bf16.msra.mxu0 0
        %4411 = vmatprep.subr.bf16.mxu0 0
        %4412 = vmatpush1.bf16.msra.mxu0 0
        %4413 = vmatprep.subr.bf16.mxu0 0
        %4414 = vmatpush1.bf16.msra.mxu0 0
        %4415 = vmatprep.subr.bf16.mxu0 0
        %4416 = vmatpush1.bf16.msra.mxu0 0
        %4417 = vmatprep.subr.bf16.mxu0 0
        %4418 = vmatpush1.bf16.msra.mxu0 %v4071
        %4419 = vmatprep.subr.bf16.mxu0 0
        %4420 = vmatpush2.bf16.msra.mxu0 0
        %4421 = vmatprep.subr.bf16.mxu0 0
        %4422 = vmatpush2.bf16.msra.mxu0 0
        %4423 = vmatprep.subr.bf16.mxu0 0
        %4424 = vmatpush2.bf16.msra.mxu0 0
        %4425 = vmatprep.subr.bf16.mxu0 0
        %4426 = vmatpush2.bf16.msra.mxu0 0
        %4427 = vmatprep.subr.bf16.mxu0 0
        %4428 = vmatpush2.bf16.msra.mxu0 0
        %4429 = vmatprep.subr.bf16.mxu0 0
        %4430 = vmatpush2.bf16.msra.mxu0 0
        %4431 = vmatprep.subr.bf16.mxu0 0
        %4432 = vmatpush2.bf16.msra.mxu0 0
        %4433 = vmatprep.subr.bf16.mxu0 0
        %4434 = vmatpush2.bf16.msra.mxu0 0
        %4435 = vmatprep.mubr.bf16.mxu0 0
        %4436 = vmatmul.mubr.bf16.gmra.mxu0 %v4401
        %v4437 = vpop.f32.mrf.mxu0
        %v4438 = vadd.f32 0.0, %v4437
        %v4439 = vpop.f32.mrf.mxu0
        %v4440 = vpop.f32.mrf.mxu0
        %v4441 = vpop.f32.mrf.mxu0
        %4442 = vdwg.mxu0
        %v4443 = vpack.c.bf16 %v4438, %v4438
        %v4446 = vunpack.c.l.s4 1983009808
        %v4447 = vunpack.c.0.s8 %v4446
        %v4448 = vlaneseq
        %v4449 = vshrl.u32 %v4448, 7
        %v4450 = vsub.s32 %v4447, %v4449
        %v4451 = vrot.slane %v4443, %v4450
        %4452 = vrot.lane.b32.xlu0 %v4451, 64
        %v4453 = vpop.permute.xlu0 %4452
        %4455 = vst.msk [vmem:[#allocation4 + $0x2] sm:$0x3] %vm4232, %v4453
        %s4456 = scalar_lea.vmem %s3, 14
        %v4457 = vld [vmem:[%s4456] sm:$0x3]
        %v4459 = vsel %vm4066, %v4457, 0
        %4461 = vmatprep.subr.bf16.mxu0 0
        %4462 = vmatpush1.bf16.msra.mxu0 0
        %4463 = vmatprep.subr.bf16.mxu0 0
        %4464 = vmatpush1.bf16.msra.mxu0 0
        %4465 = vmatprep.subr.bf16.mxu0 0
        %4466 = vmatpush1.bf16.msra.mxu0 0
        %4467 = vmatprep.subr.bf16.mxu0 0
        %4468 = vmatpush1.bf16.msra.mxu0 0
        %4469 = vmatprep.subr.bf16.mxu0 0
        %4470 = vmatpush1.bf16.msra.mxu0 0
        %4471 = vmatprep.subr.bf16.mxu0 0
        %4472 = vmatpush1.bf16.msra.mxu0 0
        %4473 = vmatprep.subr.bf16.mxu0 0
        %4474 = vmatpush1.bf16.msra.mxu0 0
        %4475 = vmatprep.subr.bf16.mxu0 0
        %4476 = vmatpush1.bf16.msra.mxu0 %v4071
        %4477 = vmatprep.subr.bf16.mxu0 0
        %4478 = vmatpush2.bf16.msra.mxu0 0
        %4479 = vmatprep.subr.bf16.mxu0 0
        %4480 = vmatpush2.bf16.msra.mxu0 0
        %4481 = vmatprep.subr.bf16.mxu0 0
        %4482 = vmatpush2.bf16.msra.mxu0 0
        %4483 = vmatprep.subr.bf16.mxu0 0
        %4484 = vmatpush2.bf16.msra.mxu0 0
        %4485 = vmatprep.subr.bf16.mxu0 0
        %4486 = vmatpush2.bf16.msra.mxu0 0
        %4487 = vmatprep.subr.bf16.mxu0 0
        %4488 = vmatpush2.bf16.msra.mxu0 0
        %4489 = vmatprep.subr.bf16.mxu0 0
        %4490 = vmatpush2.bf16.msra.mxu0 0
        %4491 = vmatprep.subr.bf16.mxu0 0
        %4492 = vmatpush2.bf16.msra.mxu0 0
        %4493 = vmatprep.mubr.bf16.mxu0 0
        %4494 = vmatmul.mubr.bf16.gmra.mxu0 %v4459
        %v4495 = vpop.f32.mrf.mxu0
        %v4496 = vadd.f32 0.0, %v4495
        %v4497 = vpop.f32.mrf.mxu0
        %v4498 = vpop.f32.mrf.mxu0
        %v4499 = vpop.f32.mrf.mxu0
        %4500 = vdwg.mxu0
        %v4501 = vpack.c.bf16 %v4496, %v4496
        %v4504 = vunpack.c.l.s4 1983009808
        %v4505 = vunpack.c.0.s8 %v4504
        %v4506 = vlaneseq
        %v4507 = vshrl.u32 %v4506, 7
        %v4508 = vsub.s32 %v4505, %v4507
        %v4509 = vrot.slane %v4501, %v4508
        %4510 = vrot.lane.b32.xlu0 %v4509, 96
        %v4511 = vpop.permute.xlu0 %4510
        %4513 = vst.msk [vmem:[#allocation4 + $0x2] sm:$0x3] %vm4291, %v4511
        %s4514 = scalar_lea.vmem %s3, 16
        %v4515 = vld [vmem:[%s4514] sm:$0x3]
        %v4517 = vsel %vm4066, %v4515, 0
        %4519 = vmatprep.subr.bf16.mxu0 0
        %4520 = vmatpush1.bf16.msra.mxu0 0
        %4521 = vmatprep.subr.bf16.mxu0 0
        %4522 = vmatpush1.bf16.msra.mxu0 0
        %4523 = vmatprep.subr.bf16.mxu0 0
        %4524 = vmatpush1.bf16.msra.mxu0 0
        %4525 = vmatprep.subr.bf16.mxu0 0
        %4526 = vmatpush1.bf16.msra.mxu0 0
        %4527 = vmatprep.subr.bf16.mxu0 0
        %4528 = vmatpush1.bf16.msra.mxu0 0
        %4529 = vmatprep.subr.bf16.mxu0 0
        %4530 = vmatpush1.bf16.msra.mxu0 0
        %4531 = vmatprep.subr.bf16.mxu0 0
        %4532 = vmatpush1.bf16.msra.mxu0 0
        %4533 = vmatprep.subr.bf16.mxu0 0
        %4534 = vmatpush1.bf16.msra.mxu0 %v4071
        %4535 = vmatprep.subr.bf16.mxu0 0
        %4536 = vmatpush2.bf16.msra.mxu0 0
        %4537 = vmatprep.subr.bf16.mxu0 0
        %4538 = vmatpush2.bf16.msra.mxu0 0
        %4539 = vmatprep.subr.bf16.mxu0 0
        %4540 = vmatpush2.bf16.msra.mxu0 0
        %4541 = vmatprep.subr.bf16.mxu0 0
        %4542 = vmatpush2.bf16.msra.mxu0 0
        %4543 = vmatprep.subr.bf16.mxu0 0
        %4544 = vmatpush2.bf16.msra.mxu0 0
        %4545 = vmatprep.subr.bf16.mxu0 0
        %4546 = vmatpush2.bf16.msra.mxu0 0
        %4547 = vmatprep.subr.bf16.mxu0 0
        %4548 = vmatpush2.bf16.msra.mxu0 0
        %4549 = vmatprep.subr.bf16.mxu0 0
        %4550 = vmatpush2.bf16.msra.mxu0 0
        %4551 = vmatprep.mubr.bf16.mxu0 0
        %4552 = vmatmul.mubr.bf16.gmra.mxu0 %v4517
        %v4553 = vpop.f32.mrf.mxu0
        %v4554 = vadd.f32 0.0, %v4553
        %v4555 = vpop.f32.mrf.mxu0
        %v4556 = vpop.f32.mrf.mxu0
        %v4557 = vpop.f32.mrf.mxu0
        %4558 = vdwg.mxu0
        %v4559 = vpack.c.bf16 %v4554, %v4554
        %4560 = vst.msk [vmem:[#allocation4 + $0x4] sm:$0x3] %vm4114, %v4559
        %s4561 = scalar_lea.vmem %s3, 18
        %v4562 = vld [vmem:[%s4561] sm:$0x3]
        %v4564 = vsel %vm4066, %v4562, 0
        %4566 = vmatprep.subr.bf16.mxu0 0
        %4567 = vmatpush1.bf16.msra.mxu0 0
        %4568 = vmatprep.subr.bf16.mxu0 0
        %4569 = vmatpush1.bf16.msra.mxu0 0
        %4570 = vmatprep.subr.bf16.mxu0 0
        %4571 = vmatpush1.bf16.msra.mxu0 0
        %4572 = vmatprep.subr.bf16.mxu0 0
        %4573 = vmatpush1.bf16.msra.mxu0 0
        %4574 = vmatprep.subr.bf16.mxu0 0
        %4575 = vmatpush1.bf16.msra.mxu0 0
        %4576 = vmatprep.subr.bf16.mxu0 0
        %4577 = vmatpush1.bf16.msra.mxu0 0
        %4578 = vmatprep.subr.bf16.mxu0 0
        %4579 = vmatpush1.bf16.msra.mxu0 0
        %4580 = vmatprep.subr.bf16.mxu0 0
        %4581 = vmatpush1.bf16.msra.mxu0 %v4071
        %4582 = vmatprep.subr.bf16.mxu0 0
        %4583 = vmatpush2.bf16.msra.mxu0 0
        %4584 = vmatprep.subr.bf16.mxu0 0
        %4585 = vmatpush2.bf16.msra.mxu0 0
        %4586 = vmatprep.subr.bf16.mxu0 0
        %4587 = vmatpush2.bf16.msra.mxu0 0
        %4588 = vmatprep.subr.bf16.mxu0 0
        %4589 = vmatpush2.bf16.msra.mxu0 0
        %4590 = vmatprep.subr.bf16.mxu0 0
        %4591 = vmatpush2.bf16.msra.mxu0 0
        %4592 = vmatprep.subr.bf16.mxu0 0
        %4593 = vmatpush2.bf16.msra.mxu0 0
        %4594 = vmatprep.subr.bf16.mxu0 0
        %4595 = vmatpush2.bf16.msra.mxu0 0
        %4596 = vmatprep.subr.bf16.mxu0 0
        %4597 = vmatpush2.bf16.msra.mxu0 0
        %4598 = vmatprep.mubr.bf16.mxu0 0
        %4599 = vmatmul.mubr.bf16.gmra.mxu0 %v4564
        %v4600 = vpop.f32.mrf.mxu0
        %v4601 = vadd.f32 0.0, %v4600
        %v4602 = vpop.f32.mrf.mxu0
        %v4603 = vpop.f32.mrf.mxu0
        %v4604 = vpop.f32.mrf.mxu0
        %4605 = vdwg.mxu0
        %v4606 = vpack.c.bf16 %v4601, %v4601
        %v4609 = vunpack.c.l.s4 1983009808
        %v4610 = vunpack.c.0.s8 %v4609
        %v4611 = vlaneseq
        %v4612 = vshrl.u32 %v4611, 7
        %v4613 = vsub.s32 %v4610, %v4612
        %v4614 = vrot.slane %v4606, %v4613
        %4615 = vrot.lane.b32.xlu0 %v4614, 32
        %v4616 = vpop.permute.xlu0 %4615
        %4618 = vst.msk [vmem:[#allocation4 + $0x4] sm:$0x3] %vm4173, %v4616
        %s4619 = scalar_lea.vmem %s3, 20
        %v4620 = vld [vmem:[%s4619] sm:$0x3]
        %v4622 = vsel %vm4066, %v4620, 0
        %4624 = vmatprep.subr.bf16.mxu0 0
        %4625 = vmatpush1.bf16.msra.mxu0 0
        %4626 = vmatprep.subr.bf16.mxu0 0
        %4627 = vmatpush1.bf16.msra.mxu0 0
        %4628 = vmatprep.subr.bf16.mxu0 0
        %4629 = vmatpush1.bf16.msra.mxu0 0
        %4630 = vmatprep.subr.bf16.mxu0 0
        %4631 = vmatpush1.bf16.msra.mxu0 0
        %4632 = vmatprep.subr.bf16.mxu0 0
        %4633 = vmatpush1.bf16.msra.mxu0 0
        %4634 = vmatprep.subr.bf16.mxu0 0
        %4635 = vmatpush1.bf16.msra.mxu0 0
        %4636 = vmatprep.subr.bf16.mxu0 0
        %4637 = vmatpush1.bf16.msra.mxu0 0
        %4638 = vmatprep.subr.bf16.mxu0 0
        %4639 = vmatpush1.bf16.msra.mxu0 %v4071
        %4640 = vmatprep.subr.bf16.mxu0 0
        %4641 = vmatpush2.bf16.msra.mxu0 0
        %4642 = vmatprep.subr.bf16.mxu0 0
        %4643 = vmatpush2.bf16.msra.mxu0 0
        %4644 = vmatprep.subr.bf16.mxu0 0
        %4645 = vmatpush2.bf16.msra.mxu0 0
        %4646 = vmatprep.subr.bf16.mxu0 0
        %4647 = vmatpush2.bf16.msra.mxu0 0
        %4648 = vmatprep.subr.bf16.mxu0 0
        %4649 = vmatpush2.bf16.msra.mxu0 0
        %4650 = vmatprep.subr.bf16.mxu0 0
        %4651 = vmatpush2.bf16.msra.mxu0 0
        %4652 = vmatprep.subr.bf16.mxu0 0
        %4653 = vmatpush2.bf16.msra.mxu0 0
        %4654 = vmatprep.subr.bf16.mxu0 0
        %4655 = vmatpush2.bf16.msra.mxu0 0
        %4656 = vmatprep.mubr.bf16.mxu0 0
        %4657 = vmatmul.mubr.bf16.gmra.mxu0 %v4622
        %v4658 = vpop.f32.mrf.mxu0
        %v4659 = vadd.f32 0.0, %v4658
        %v4660 = vpop.f32.mrf.mxu0
        %v4661 = vpop.f32.mrf.mxu0
        %v4662 = vpop.f32.mrf.mxu0
        %4663 = vdwg.mxu0
        %v4664 = vpack.c.bf16 %v4659, %v4659
        %v4667 = vunpack.c.l.s4 1983009808
        %v4668 = vunpack.c.0.s8 %v4667
        %v4669 = vlaneseq
        %v4670 = vshrl.u32 %v4669, 7
        %v4671 = vsub.s32 %v4668, %v4670
        %v4672 = vrot.slane %v4664, %v4671
        %4673 = vrot.lane.b32.xlu0 %v4672, 64
        %v4674 = vpop.permute.xlu0 %4673
        %4676 = vst.msk [vmem:[#allocation4 + $0x4] sm:$0x3] %vm4232, %v4674
        %s4677 = scalar_lea.vmem %s3, 22
        %v4678 = vld [vmem:[%s4677] sm:$0x3]
        %v4680 = vsel %vm4066, %v4678, 0
        %4682 = vmatprep.subr.bf16.mxu0 0
        %4683 = vmatpush1.bf16.msra.mxu0 0
        %4684 = vmatprep.subr.bf16.mxu0 0
        %4685 = vmatpush1.bf16.msra.mxu0 0
        %4686 = vmatprep.subr.bf16.mxu0 0
        %4687 = vmatpush1.bf16.msra.mxu0 0
        %4688 = vmatprep.subr.bf16.mxu0 0
        %4689 = vmatpush1.bf16.msra.mxu0 0
        %4690 = vmatprep.subr.bf16.mxu0 0
        %4691 = vmatpush1.bf16.msra.mxu0 0
        %4692 = vmatprep.subr.bf16.mxu0 0
        %4693 = vmatpush1.bf16.msra.mxu0 0
        %4694 = vmatprep.subr.bf16.mxu0 0
        %4695 = vmatpush1.bf16.msra.mxu0 0
        %4696 = vmatprep.subr.bf16.mxu0 0
        %4697 = vmatpush1.bf16.msra.mxu0 %v4071
        %4698 = vmatprep.subr.bf16.mxu0 0
        %4699 = vmatpush2.bf16.msra.mxu0 0
        %4700 = vmatprep.subr.bf16.mxu0 0
        %4701 = vmatpush2.bf16.msra.mxu0 0
        %4702 = vmatprep.subr.bf16.mxu0 0
        %4703 = vmatpush2.bf16.msra.mxu0 0
        %4704 = vmatprep.subr.bf16.mxu0 0
        %4705 = vmatpush2.bf16.msra.mxu0 0
        %4706 = vmatprep.subr.bf16.mxu0 0
        %4707 = vmatpush2.bf16.msra.mxu0 0
        %4708 = vmatprep.subr.bf16.mxu0 0
        %4709 = vmatpush2.bf16.msra.mxu0 0
        %4710 = vmatprep.subr.bf16.mxu0 0
        %4711 = vmatpush2.bf16.msra.mxu0 0
        %4712 = vmatprep.subr.bf16.mxu0 0
        %4713 = vmatpush2.bf16.msra.mxu0 0
        %4714 = vmatprep.mubr.bf16.mxu0 0
        %4715 = vmatmul.mubr.bf16.gmra.mxu0 %v4680
        %v4716 = vpop.f32.mrf.mxu0
        %v4717 = vadd.f32 0.0, %v4716
        %v4718 = vpop.f32.mrf.mxu0
        %v4719 = vpop.f32.mrf.mxu0
        %v4720 = vpop.f32.mrf.mxu0
        %4721 = vdwg.mxu0
        %v4722 = vpack.c.bf16 %v4717, %v4717
        %v4725 = vunpack.c.l.s4 1983009808
        %v4726 = vunpack.c.0.s8 %v4725
        %v4727 = vlaneseq
        %v4728 = vshrl.u32 %v4727, 7
        %v4729 = vsub.s32 %v4726, %v4728
        %v4730 = vrot.slane %v4722, %v4729
        %4731 = vrot.lane.b32.xlu0 %v4730, 96
        %v4732 = vpop.permute.xlu0 %4731
        %4734 = vst.msk [vmem:[#allocation4 + $0x4] sm:$0x3] %vm4291, %v4732
        %s4735 = scalar_lea.vmem %s3, 24
        %v4736 = vld [vmem:[%s4735] sm:$0x3]
        %v4738 = vsel %vm4066, %v4736, 0
        %4740 = vmatprep.subr.bf16.mxu0 0
        %4741 = vmatpush1.bf16.msra.mxu0 0
        %4742 = vmatprep.subr.bf16.mxu0 0
        %4743 = vmatpush1.bf16.msra.mxu0 0
        %4744 = vmatprep.subr.bf16.mxu0 0
        %4745 = vmatpush1.bf16.msra.mxu0 0
        %4746 = vmatprep.subr.bf16.mxu0 0
        %4747 = vmatpush1.bf16.msra.mxu0 0
        %4748 = vmatprep.subr.bf16.mxu0 0
        %4749 = vmatpush1.bf16.msra.mxu0 0
        %4750 = vmatprep.subr.bf16.mxu0 0
        %4751 = vmatpush1.bf16.msra.mxu0 0
        %4752 = vmatprep.subr.bf16.mxu0 0
        %4753 = vmatpush1.bf16.msra.mxu0 0
        %4754 = vmatprep.subr.bf16.mxu0 0
        %4755 = vmatpush1.bf16.msra.mxu0 %v4071
        %4756 = vmatprep.subr.bf16.mxu0 0
        %4757 = vmatpush2.bf16.msra.mxu0 0
        %4758 = vmatprep.subr.bf16.mxu0 0
        %4759 = vmatpush2.bf16.msra.mxu0 0
        %4760 = vmatprep.subr.bf16.mxu0 0
        %4761 = vmatpush2.bf16.msra.mxu0 0
        %4762 = vmatprep.subr.bf16.mxu0 0
        %4763 = vmatpush2.bf16.msra.mxu0 0
        %4764 = vmatprep.subr.bf16.mxu0 0
        %4765 = vmatpush2.bf16.msra.mxu0 0
        %4766 = vmatprep.subr.bf16.mxu0 0
        %4767 = vmatpush2.bf16.msra.mxu0 0
        %4768 = vmatprep.subr.bf16.mxu0 0
        %4769 = vmatpush2.bf16.msra.mxu0 0
        %4770 = vmatprep.subr.bf16.mxu0 0
        %4771 = vmatpush2.bf16.msra.mxu0 0
        %4772 = vmatprep.mubr.bf16.mxu0 0
        %4773 = vmatmul.mubr.bf16.gmra.mxu0 %v4738
        %v4774 = vpop.f32.mrf.mxu0
        %v4775 = vadd.f32 0.0, %v4774
        %v4776 = vpop.f32.mrf.mxu0
        %v4777 = vpop.f32.mrf.mxu0
        %v4778 = vpop.f32.mrf.mxu0
        %4779 = vdwg.mxu0
        %v4780 = vpack.c.bf16 %v4775, %v4775
        %4781 = vst.msk [vmem:[#allocation4 + $0x6] sm:$0x3] %vm4114, %v4780
        %s4782 = scalar_lea.vmem %s3, 26
        %v4783 = vld [vmem:[%s4782] sm:$0x3]
        %v4785 = vsel %vm4066, %v4783, 0
        %4787 = vmatprep.subr.bf16.mxu0 0
        %4788 = vmatpush1.bf16.msra.mxu0 0
        %4789 = vmatprep.subr.bf16.mxu0 0
        %4790 = vmatpush1.bf16.msra.mxu0 0
        %4791 = vmatprep.subr.bf16.mxu0 0
        %4792 = vmatpush1.bf16.msra.mxu0 0
        %4793 = vmatprep.subr.bf16.mxu0 0
        %4794 = vmatpush1.bf16.msra.mxu0 0
        %4795 = vmatprep.subr.bf16.mxu0 0
        %4796 = vmatpush1.bf16.msra.mxu0 0
        %4797 = vmatprep.subr.bf16.mxu0 0
        %4798 = vmatpush1.bf16.msra.mxu0 0
        %4799 = vmatprep.subr.bf16.mxu0 0
        %4800 = vmatpush1.bf16.msra.mxu0 0
        %4801 = vmatprep.subr.bf16.mxu0 0
        %4802 = vmatpush1.bf16.msra.mxu0 %v4071
        %4803 = vmatprep.subr.bf16.mxu0 0
        %4804 = vmatpush2.bf16.msra.mxu0 0
        %4805 = vmatprep.subr.bf16.mxu0 0
        %4806 = vmatpush2.bf16.msra.mxu0 0
        %4807 = vmatprep.subr.bf16.mxu0 0
        %4808 = vmatpush2.bf16.msra.mxu0 0
        %4809 = vmatprep.subr.bf16.mxu0 0
        %4810 = vmatpush2.bf16.msra.mxu0 0
        %4811 = vmatprep.subr.bf16.mxu0 0
        %4812 = vmatpush2.bf16.msra.mxu0 0
        %4813 = vmatprep.subr.bf16.mxu0 0
        %4814 = vmatpush2.bf16.msra.mxu0 0
        %4815 = vmatprep.subr.bf16.mxu0 0
        %4816 = vmatpush2.bf16.msra.mxu0 0
        %4817 = vmatprep.subr.bf16.mxu0 0
        %4818 = vmatpush2.bf16.msra.mxu0 0
        %4819 = vmatprep.mubr.bf16.mxu0 0
        %4820 = vmatmul.mubr.bf16.gmra.mxu0 %v4785
        %v4821 = vpop.f32.mrf.mxu0
        %v4822 = vadd.f32 0.0, %v4821
        %v4823 = vpop.f32.mrf.mxu0
        %v4824 = vpop.f32.mrf.mxu0
        %v4825 = vpop.f32.mrf.mxu0
        %4826 = vdwg.mxu0
        %v4827 = vpack.c.bf16 %v4822, %v4822
        %v4830 = vunpack.c.l.s4 1983009808
        %v4831 = vunpack.c.0.s8 %v4830
        %v4832 = vlaneseq
        %v4833 = vshrl.u32 %v4832, 7
        %v4834 = vsub.s32 %v4831, %v4833
        %v4835 = vrot.slane %v4827, %v4834
        %4836 = vrot.lane.b32.xlu0 %v4835, 32
        %v4837 = vpop.permute.xlu0 %4836
        %4839 = vst.msk [vmem:[#allocation4 + $0x6] sm:$0x3] %vm4173, %v4837
        %s4840 = scalar_lea.vmem %s3, 28
        %v4841 = vld [vmem:[%s4840] sm:$0x3]
        %v4843 = vsel %vm4066, %v4841, 0
        %4845 = vmatprep.subr.bf16.mxu0 0
        %4846 = vmatpush1.bf16.msra.mxu0 0
        %4847 = vmatprep.subr.bf16.mxu0 0
        %4848 = vmatpush1.bf16.msra.mxu0 0
        %4849 = vmatprep.subr.bf16.mxu0 0
        %4850 = vmatpush1.bf16.msra.mxu0 0
        %4851 = vmatprep.subr.bf16.mxu0 0
        %4852 = vmatpush1.bf16.msra.mxu0 0
        %4853 = vmatprep.subr.bf16.mxu0 0
        %4854 = vmatpush1.bf16.msra.mxu0 0
        %4855 = vmatprep.subr.bf16.mxu0 0
        %4856 = vmatpush1.bf16.msra.mxu0 0
        %4857 = vmatprep.subr.bf16.mxu0 0
        %4858 = vmatpush1.bf16.msra.mxu0 0
        %4859 = vmatprep.subr.bf16.mxu0 0
        %4860 = vmatpush1.bf16.msra.mxu0 %v4071
        %4861 = vmatprep.subr.bf16.mxu0 0
        %4862 = vmatpush2.bf16.msra.mxu0 0
        %4863 = vmatprep.subr.bf16.mxu0 0
        %4864 = vmatpush2.bf16.msra.mxu0 0
        %4865 = vmatprep.subr.bf16.mxu0 0
        %4866 = vmatpush2.bf16.msra.mxu0 0
        %4867 = vmatprep.subr.bf16.mxu0 0
        %4868 = vmatpush2.bf16.msra.mxu0 0
        %4869 = vmatprep.subr.bf16.mxu0 0
        %4870 = vmatpush2.bf16.msra.mxu0 0
        %4871 = vmatprep.subr.bf16.mxu0 0
        %4872 = vmatpush2.bf16.msra.mxu0 0
        %4873 = vmatprep.subr.bf16.mxu0 0
        %4874 = vmatpush2.bf16.msra.mxu0 0
        %4875 = vmatprep.subr.bf16.mxu0 0
        %4876 = vmatpush2.bf16.msra.mxu0 0
        %4877 = vmatprep.mubr.bf16.mxu0 0
        %4878 = vmatmul.mubr.bf16.gmra.mxu0 %v4843
        %v4879 = vpop.f32.mrf.mxu0
        %v4880 = vadd.f32 0.0, %v4879
        %v4881 = vpop.f32.mrf.mxu0
        %v4882 = vpop.f32.mrf.mxu0
        %v4883 = vpop.f32.mrf.mxu0
        %4884 = vdwg.mxu0
        %v4885 = vpack.c.bf16 %v4880, %v4880
        %v4888 = vunpack.c.l.s4 1983009808
        %v4889 = vunpack.c.0.s8 %v4888
        %v4890 = vlaneseq
        %v4891 = vshrl.u32 %v4890, 7
        %v4892 = vsub.s32 %v4889, %v4891
        %v4893 = vrot.slane %v4885, %v4892
        %4894 = vrot.lane.b32.xlu0 %v4893, 64
        %v4895 = vpop.permute.xlu0 %4894
        %4897 = vst.msk [vmem:[#allocation4 + $0x6] sm:$0x3] %vm4232, %v4895
        %s4898 = scalar_lea.vmem %s3, 30
        %v4899 = vld [vmem:[%s4898] sm:$0x3]
        %v4901 = vsel %vm4066, %v4899, 0
        %4903 = vmatprep.subr.bf16.mxu0 0
        %4904 = vmatpush1.bf16.msra.mxu0 0
        %4905 = vmatprep.subr.bf16.mxu0 0
        %4906 = vmatpush1.bf16.msra.mxu0 0
        %4907 = vmatprep.subr.bf16.mxu0 0
        %4908 = vmatpush1.bf16.msra.mxu0 0
        %4909 = vmatprep.subr.bf16.mxu0 0
        %4910 = vmatpush1.bf16.msra.mxu0 0
        %4911 = vmatprep.subr.bf16.mxu0 0
        %4912 = vmatpush1.bf16.msra.mxu0 0
        %4913 = vmatprep.subr.bf16.mxu0 0
        %4914 = vmatpush1.bf16.msra.mxu0 0
        %4915 = vmatprep.subr.bf16.mxu0 0
        %4916 = vmatpush1.bf16.msra.mxu0 0
        %4917 = vmatprep.subr.bf16.mxu0 0
        %4918 = vmatpush1.bf16.msra.mxu0 %v4071
        %4919 = vmatprep.subr.bf16.mxu0 0
        %4920 = vmatpush2.bf16.msra.mxu0 0
        %4921 = vmatprep.subr.bf16.mxu0 0
        %4922 = vmatpush2.bf16.msra.mxu0 0
        %4923 = vmatprep.subr.bf16.mxu0 0
        %4924 = vmatpush2.bf16.msra.mxu0 0
        %4925 = vmatprep.subr.bf16.mxu0 0
        %4926 = vmatpush2.bf16.msra.mxu0 0
        %4927 = vmatprep.subr.bf16.mxu0 0
        %4928 = vmatpush2.bf16.msra.mxu0 0
        %4929 = vmatprep.subr.bf16.mxu0 0
        %4930 = vmatpush2.bf16.msra.mxu0 0
        %4931 = vmatprep.subr.bf16.mxu0 0
        %4932 = vmatpush2.bf16.msra.mxu0 0
        %4933 = vmatprep.subr.bf16.mxu0 0
        %4934 = vmatpush2.bf16.msra.mxu0 0
        %4935 = vmatprep.mubr.bf16.mxu0 0
        %4936 = vmatmul.mubr.bf16.gmra.mxu0 %v4901
        %v4937 = vpop.f32.mrf.mxu0
        %v4938 = vadd.f32 0.0, %v4937
        %v4939 = vpop.f32.mrf.mxu0
        %v4940 = vpop.f32.mrf.mxu0
        %v4941 = vpop.f32.mrf.mxu0
        %4942 = vdwg.mxu0
        %v4943 = vpack.c.bf16 %v4938, %v4938
        %v4946 = vunpack.c.l.s4 1983009808
        %v4947 = vunpack.c.0.s8 %v4946
        %v4948 = vlaneseq
        %v4949 = vshrl.u32 %v4948, 7
        %v4950 = vsub.s32 %v4947, %v4949
        %v4951 = vrot.slane %v4943, %v4950
        %4952 = vrot.lane.b32.xlu0 %v4951, 96
        %v4953 = vpop.permute.xlu0 %4952
        %4955 = vst.msk [vmem:[#allocation4 + $0x6] sm:$0x3] %vm4291, %v4953
        %v4956 = vld [vmem:[#allocation4] sm:$0xff]
        %v4957 = vld [vmem:[%s8] sm:$0xf]
        %v4958 = vld [vmem:[%s8 + $0x4] sm:$0xf]
        %v4959 = vld [vmem:[%s8 + $0x8] sm:$0xf]
        %v4960 = vld [vmem:[%s8 + $0xc] sm:$0xf]
        %v4961 = vld [vmem:[%s8 + $0x10] sm:$0xf]
        %v4962 = vld [vmem:[%s8 + $0x14] sm:$0xf]
        %v4963 = vld [vmem:[%s8 + $0x18] sm:$0xf]
        %v4964 = vld [vmem:[%s8 + $0x1c] sm:$0xf]
        %v4965 = vld [vmem:[%s8 + $0x20] sm:$0xf]
        %v4966 = vld [vmem:[%s8 + $0x24] sm:$0xf]
        %v4967 = vld [vmem:[%s8 + $0x28] sm:$0xf]
        %v4968 = vld [vmem:[%s8 + $0x2c] sm:$0xf]
        %v4969 = vld [vmem:[%s8 + $0x30] sm:$0xf]
        %v4970 = vld [vmem:[%s8 + $0x34] sm:$0xf]
        %v4971 = vld [vmem:[%s8 + $0x38] sm:$0xf]
        %v4972 = vld [vmem:[%s8 + $0x3c] sm:$0xf]
        %v4973 = vld [vmem:[%s8 + $0x40] sm:$0xf]
        %v4974 = vld [vmem:[%s8 + $0x44] sm:$0xf]
        %v4975 = vld [vmem:[%s8 + $0x48] sm:$0xf]
        %v4976 = vld [vmem:[%s8 + $0x4c] sm:$0xf]
        %v4977 = vld [vmem:[%s8 + $0x50] sm:$0xf]
        %v4978 = vld [vmem:[%s8 + $0x54] sm:$0xf]
        %v4979 = vld [vmem:[%s8 + $0x58] sm:$0xf]
        %v4980 = vld [vmem:[%s8 + $0x5c] sm:$0xf]
        %v4981 = vld [vmem:[%s8 + $0x60] sm:$0xf]
        %v4982 = vld [vmem:[%s8 + $0x64] sm:$0xf]
        %v4983 = vld [vmem:[%s8 + $0x68] sm:$0xf]
        %v4984 = vld [vmem:[%s8 + $0x6c] sm:$0xf]
        %v4985 = vld [vmem:[%s8 + $0x70] sm:$0xf]
        %v4986 = vld [vmem:[%s8 + $0x74] sm:$0xf]
        %v4987 = vld [vmem:[%s8 + $0x78] sm:$0xf]
        %v4988 = vld [vmem:[%s8 + $0x7c] sm:$0xf]
        %v4989 = vld [vmem:[%s8 + $0x80] sm:$0xf]
        %v4990 = vld [vmem:[%s8 + $0x84] sm:$0xf]
        %v4991 = vld [vmem:[%s8 + $0x88] sm:$0xf]
        %v4992 = vld [vmem:[%s8 + $0x8c] sm:$0xf]
        %v4993 = vld [vmem:[%s8 + $0x90] sm:$0xf]
        %v4994 = vld [vmem:[%s8 + $0x94] sm:$0xf]
        %v4995 = vld [vmem:[%s8 + $0x98] sm:$0xf]
        %v4996 = vld [vmem:[%s8 + $0x9c] sm:$0xf]
        %v4997 = vld [vmem:[%s8 + $0xa0] sm:$0xf]
        %v4998 = vld [vmem:[%s8 + $0xa4] sm:$0xf]
        %v4999 = vld [vmem:[%s8 + $0xa8] sm:$0xf]
        %v5000 = vld [vmem:[%s8 + $0xac] sm:$0xf]
        %v5001 = vld [vmem:[%s8 + $0xb0] sm:$0xf]
        %v5002 = vld [vmem:[%s8 + $0xb4] sm:$0xf]
        %v5003 = vld [vmem:[%s8 + $0xb8] sm:$0xf]
        %v5004 = vld [vmem:[%s8 + $0xbc] sm:$0xf]
        %v5005 = vld [vmem:[%s8 + $0xc0] sm:$0xf]
        %v5006 = vld [vmem:[%s8 + $0xc4] sm:$0xf]
        %v5007 = vld [vmem:[%s8 + $0xc8] sm:$0xf]
        %v5008 = vld [vmem:[%s8 + $0xcc] sm:$0xf]
        %v5009 = vld [vmem:[%s8 + $0xd0] sm:$0xf]
        %v5010 = vld [vmem:[%s8 + $0xd4] sm:$0xf]
        %v5011 = vld [vmem:[%s8 + $0xd8] sm:$0xf]
        %v5012 = vld [vmem:[%s8 + $0xdc] sm:$0xf]
        %v5013 = vld [vmem:[%s8 + $0xe0] sm:$0xf]
        %v5014 = vld [vmem:[%s8 + $0xe4] sm:$0xf]
        %v5015 = vld [vmem:[%s8 + $0xe8] sm:$0xf]
        %v5016 = vld [vmem:[%s8 + $0xec] sm:$0xf]
        %v5017 = vld [vmem:[%s8 + $0xf0] sm:$0xf]
        %v5018 = vld [vmem:[%s8 + $0xf4] sm:$0xf]
        %v5019 = vld [vmem:[%s8 + $0xf8] sm:$0xf]
        %v5020 = vld [vmem:[%s8 + $0xfc] sm:$0xf]
        %v5021 = vld [vmem:[%s13] sm:$0x1]
        %v5023 = vlaneseq
        %v5024 = vshrl.u32 %v5023, 7
        %v5025 = vsub.s32 0, %v5024
        %v5026 = vrot.slane %v5021, %v5025
        %v5029 = vcombine.high %v4956, %v4956
        %v5031 = vunpack.c.l.s4 1983009808
        %v5032 = vunpack.c.0.s8 %v5031
        %v5033 = vlaneseq
        %v5034 = vshrl.u32 %v5033, 7
        %v5035 = vsub.s32 %v5032, %v5034
        %v5036 = vrot.slane %v4956, %v5035
        %v5038 = vunpack.c.l.s4 1983009808
        %v5039 = vunpack.c.0.s8 %v5038
        %v5040 = vlaneseq
        %v5041 = vshrl.u32 %v5040, 7
        %v5042 = vsub.s32 %v5039, %v5041
        %v5043 = vrot.slane %v5029, %v5042
        %v5044 = vcombine.high %v5036, %v5036
        %v5045 = vcombine.high %v5043, %v5043
        %v5114 = vunpack.c.l.b16 %v4957
        %v5115 = vunpack.c.l.b16 %v4958
        %v5116 = vunpack.c.l.b16 %v4959
        %v5117 = vunpack.c.l.b16 %v4960
        %v5118 = vunpack.c.l.b16 %v4961
        %v5119 = vunpack.c.l.b16 %v4962
        %v5120 = vunpack.c.l.b16 %v4963
        %v5121 = vunpack.c.l.b16 %v4964
        %v5122 = vunpack.c.l.b16 %v4965
        %v5123 = vunpack.c.l.b16 %v4966
        %v5124 = vunpack.c.l.b16 %v4967
        %v5125 = vunpack.c.l.b16 %v4968
        %v5126 = vunpack.c.l.b16 %v4969
        %v5127 = vunpack.c.l.b16 %v4970
        %v5128 = vunpack.c.l.b16 %v4971
        %v5129 = vunpack.c.l.b16 %v4972
        %v5130 = vunpack.c.l.b16 %v4973
        %v5131 = vunpack.c.l.b16 %v4974
        %v5132 = vunpack.c.l.b16 %v4975
        %v5133 = vunpack.c.l.b16 %v4976
        %v5134 = vunpack.c.l.b16 %v4977
        %v5135 = vunpack.c.l.b16 %v4978
        %v5136 = vunpack.c.l.b16 %v4979
        %v5137 = vunpack.c.l.b16 %v4980
        %v5138 = vunpack.c.l.b16 %v4981
        %v5139 = vunpack.c.l.b16 %v4982
        %v5140 = vunpack.c.l.b16 %v4983
        %v5141 = vunpack.c.l.b16 %v4984
        %v5142 = vunpack.c.l.b16 %v4985
        %v5143 = vunpack.c.l.b16 %v4986
        %v5144 = vunpack.c.l.b16 %v4987
        %v5145 = vunpack.c.l.b16 %v4988
        %v5146 = vunpack.c.l.b16 %v4989
        %v5147 = vunpack.c.l.b16 %v4990
        %v5148 = vunpack.c.l.b16 %v4991
        %v5149 = vunpack.c.l.b16 %v4992
        %v5150 = vunpack.c.l.b16 %v4993
        %v5151 = vunpack.c.l.b16 %v4994
        %v5152 = vunpack.c.l.b16 %v4995
        %v5153 = vunpack.c.l.b16 %v4996
        %v5154 = vunpack.c.l.b16 %v4997
        %v5155 = vunpack.c.l.b16 %v4998
        %v5156 = vunpack.c.l.b16 %v4999
        %v5157 = vunpack.c.l.b16 %v5000
        %v5158 = vunpack.c.l.b16 %v5001
        %v5159 = vunpack.c.l.b16 %v5002
        %v5160 = vunpack.c.l.b16 %v5003
        %v5161 = vunpack.c.l.b16 %v5004
        %v5162 = vunpack.c.l.b16 %v5005
        %v5163 = vunpack.c.l.b16 %v5006
        %v5164 = vunpack.c.l.b16 %v5007
        %v5165 = vunpack.c.l.b16 %v5008
        %v5166 = vunpack.c.l.b16 %v5009
        %v5167 = vunpack.c.l.b16 %v5010
        %v5168 = vunpack.c.l.b16 %v5011
        %v5169 = vunpack.c.l.b16 %v5012
        %v5170 = vunpack.c.l.b16 %v5013
        %v5171 = vunpack.c.l.b16 %v5014
        %v5172 = vunpack.c.l.b16 %v5015
        %v5173 = vunpack.c.l.b16 %v5016
        %v5174 = vunpack.c.l.b16 %v5017
        %v5175 = vunpack.c.l.b16 %v5018
        %v5176 = vunpack.c.l.b16 %v5019
        %v5177 = vunpack.c.l.b16 %v5020
        %v5178 = vpack.c.b16 %v5115, %v5114
        %v5179 = vpack.c.b16 %v5117, %v5116
        %v5180 = vpack.c.b16 %v5119, %v5118
        %v5181 = vpack.c.b16 %v5121, %v5120
        %v5182 = vpack.c.b16 %v5123, %v5122
        %v5183 = vpack.c.b16 %v5125, %v5124
        %v5184 = vpack.c.b16 %v5127, %v5126
        %v5185 = vpack.c.b16 %v5129, %v5128
        %v5186 = vpack.c.b16 %v5131, %v5130
        %v5187 = vpack.c.b16 %v5133, %v5132
        %v5188 = vpack.c.b16 %v5135, %v5134
        %v5189 = vpack.c.b16 %v5137, %v5136
        %v5190 = vpack.c.b16 %v5139, %v5138
        %v5191 = vpack.c.b16 %v5141, %v5140
        %v5192 = vpack.c.b16 %v5143, %v5142
        %v5193 = vpack.c.b16 %v5145, %v5144
        %v5194 = vpack.c.b16 %v5147, %v5146
        %v5195 = vpack.c.b16 %v5149, %v5148
        %v5196 = vpack.c.b16 %v5151, %v5150
        %v5197 = vpack.c.b16 %v5153, %v5152
        %v5198 = vpack.c.b16 %v5155, %v5154
        %v5199 = vpack.c.b16 %v5157, %v5156
        %v5200 = vpack.c.b16 %v5159, %v5158
        %v5201 = vpack.c.b16 %v5161, %v5160
        %v5202 = vpack.c.b16 %v5163, %v5162
        %v5203 = vpack.c.b16 %v5165, %v5164
        %v5204 = vpack.c.b16 %v5167, %v5166
        %v5205 = vpack.c.b16 %v5169, %v5168
        %v5206 = vpack.c.b16 %v5171, %v5170
        %v5207 = vpack.c.b16 %v5173, %v5172
        %v5208 = vpack.c.b16 %v5175, %v5174
        %v5209 = vpack.c.b16 %v5177, %v5176
        %5242 = vmatprep.subr.bf16.mxu0 0
        %5243 = vmatpush1.bf16.msra.mxu0 %v5185
        %5244 = vmatprep.subr.bf16.mxu0 0
        %5245 = vmatpush1.bf16.msra.mxu0 %v5184
        %5246 = vmatprep.subr.bf16.mxu0 0
        %5247 = vmatpush1.bf16.msra.mxu0 %v5183
        %5248 = vmatprep.subr.bf16.mxu0 0
        %5249 = vmatpush1.bf16.msra.mxu0 %v5182
        %5250 = vmatprep.subr.bf16.mxu0 0
        %5251 = vmatpush1.bf16.msra.mxu0 %v5181
        %5252 = vmatprep.subr.bf16.mxu0 0
        %5253 = vmatpush1.bf16.msra.mxu0 %v5180
        %5254 = vmatprep.subr.bf16.mxu0 0
        %5255 = vmatpush1.bf16.msra.mxu0 %v5179
        %5256 = vmatprep.subr.bf16.mxu0 0
        %5257 = vmatpush1.bf16.msra.mxu0 %v5178
        %5258 = vmatprep.subr.bf16.mxu0 0
        %5259 = vmatpush2.bf16.msra.mxu0 %v5193
        %5260 = vmatprep.subr.bf16.mxu0 0
        %5261 = vmatpush2.bf16.msra.mxu0 %v5192
        %5262 = vmatprep.subr.bf16.mxu0 0
        %5263 = vmatpush2.bf16.msra.mxu0 %v5191
        %5264 = vmatprep.subr.bf16.mxu0 0
        %5265 = vmatpush2.bf16.msra.mxu0 %v5190
        %5266 = vmatprep.subr.bf16.mxu0 0
        %5267 = vmatpush2.bf16.msra.mxu0 %v5189
        %5268 = vmatprep.subr.bf16.mxu0 0
        %5269 = vmatpush2.bf16.msra.mxu0 %v5188
        %5270 = vmatprep.subr.bf16.mxu0 0
        %5271 = vmatpush2.bf16.msra.mxu0 %v5187
        %5272 = vmatprep.subr.bf16.mxu0 0
        %5273 = vmatpush2.bf16.msra.mxu0 %v5186
        %5274 = vmatprep.mubr.bf16.mxu0 %v5044
        %5275 = vmatmul.mubr.bf16.gmra.mxu0 %v5036
        %v5276 = vpop.f32.mrf.mxu0
        %v5277 = vadd.f32 %v5026, %v5276
        %v5278 = vpop.f32.mrf.mxu0
        %v5279 = vpop.f32.mrf.mxu0
        %v5280 = vpop.f32.mrf.mxu0
        %5281 = vdwg.mxu0
        %5282 = vmatprep.subr.bf16.mxu0 0
        %5283 = vmatpush1.bf16.msra.mxu0 %v5201
        %5284 = vmatprep.subr.bf16.mxu0 0
        %5285 = vmatpush1.bf16.msra.mxu0 %v5200
        %5286 = vmatprep.subr.bf16.mxu0 0
        %5287 = vmatpush1.bf16.msra.mxu0 %v5199
        %5288 = vmatprep.subr.bf16.mxu0 0
        %5289 = vmatpush1.bf16.msra.mxu0 %v5198
        %5290 = vmatprep.subr.bf16.mxu0 0
        %5291 = vmatpush1.bf16.msra.mxu0 %v5197
        %5292 = vmatprep.subr.bf16.mxu0 0
        %5293 = vmatpush1.bf16.msra.mxu0 %v5196
        %5294 = vmatprep.subr.bf16.mxu0 0
        %5295 = vmatpush1.bf16.msra.mxu0 %v5195
        %5296 = vmatprep.subr.bf16.mxu0 0
        %5297 = vmatpush1.bf16.msra.mxu0 %v5194
        %5298 = vmatprep.subr.bf16.mxu0 0
        %5299 = vmatpush2.bf16.msra.mxu0 %v5209
        %5300 = vmatprep.subr.bf16.mxu0 0
        %5301 = vmatpush2.bf16.msra.mxu0 %v5208
        %5302 = vmatprep.subr.bf16.mxu0 0
        %5303 = vmatpush2.bf16.msra.mxu0 %v5207
        %5304 = vmatprep.subr.bf16.mxu0 0
        %5305 = vmatpush2.bf16.msra.mxu0 %v5206
        %5306 = vmatprep.subr.bf16.mxu0 0
        %5307 = vmatpush2.bf16.msra.mxu0 %v5205
        %5308 = vmatprep.subr.bf16.mxu0 0
        %5309 = vmatpush2.bf16.msra.mxu0 %v5204
        %5310 = vmatprep.subr.bf16.mxu0 0
        %5311 = vmatpush2.bf16.msra.mxu0 %v5203
        %5312 = vmatprep.subr.bf16.mxu0 0
        %5313 = vmatpush2.bf16.msra.mxu0 %v5202
        %5314 = vmatprep.mubr.bf16.mxu0 %v5045
        %5315 = vmatmul.mubr.bf16.gmra.mxu0 %v5043
        %v5316 = vpop.f32.mrf.mxu0
        %v5317 = vadd.f32 %v5277, %v5316
        %v5318 = vpop.f32.mrf.mxu0
        %v5319 = vpop.f32.mrf.mxu0
        %v5320 = vpop.f32.mrf.mxu0
        %5321 = vdwg.mxu0
        %vm5322 = vcmp.ge.f32.partialorder %v5317, 0.0
        %v5323 = vmul.f32 %v5317, 0.2
        %v5324 = vsel %vm5322, %v5317, %v5323
        %vm5325 = vcmask 519168
        %v5326 = vsel %vm5325, %v5324, 0.0
        %v5327 = vrot.slane %v5326, 4
        %v5328 = vadd.f32 %v5326, %v5327
        %v5329 = vrot.slane %v5328, 2
        %v5330 = vadd.f32 %v5328, %v5329
        %v5331 = vrot.slane %v5330, 1
        %v5332 = vadd.f32 %v5330, %v5331
        %v5333 = vmul.f32 %v5332, 0.25
        %v5334 = vsub.f32 %v5324, %v5333
        %v5335 = vmul.f32 %v5334, %v5334
        %v5336 = vsel %vm5325, %v5335, 0.0
        %v5337 = vrot.slane %v5336, 4
        %v5338 = vadd.f32 %v5336, %v5337
        %v5339 = vrot.slane %v5338, 2
        %v5340 = vadd.f32 %v5338, %v5339
        %v5341 = vrot.slane %v5340, 1
        %v5342 = vadd.f32 %v5340, %v5341
        %v5343 = vmul.f32 %v5342, 0.25
        %v5344 = vadd.f32 %v5343, 1e-05
        %v5345 = vrsqrt.pop %v5344
        %v5346 = vmul.f32 %v5334, %v5345
        %5347 = vst.msk [vmem:[%s619] sm:$0xf] %vm5325, %v5346
        %v5348 = vpack.c.bf16 %v5346, %v5346
        %v5349 = vld [vmem:[%s4] sm:$0xf]
        %v5350 = vld [vmem:[%s4 + $0x4] sm:$0x1]
        %v5353 = vunpack.c.l.b16 %v5349
        %v5354 = vunpack.c.l.b16 %v5350
        %v5355 = vpack.c.b16 %v5354, %v5353
        %vm5356 = vcmask 31744
        %v5358 = vsel %vm5356, %v5355, 0
        %vm5360 = vcmask 1041408
        %v5362 = vsel %vm5360, %v5348, 0
        %5364 = vmatprep.subr.bf16.mxu0 0
        %5365 = vmatpush1.bf16.msra.mxu0 0
        %5366 = vmatprep.subr.bf16.mxu0 0
        %5367 = vmatpush1.bf16.msra.mxu0 0
        %5368 = vmatprep.subr.bf16.mxu0 0
        %5369 = vmatpush1.bf16.msra.mxu0 0
        %5370 = vmatprep.subr.bf16.mxu0 0
        %5371 = vmatpush1.bf16.msra.mxu0 0
        %5372 = vmatprep.subr.bf16.mxu0 0
        %5373 = vmatpush1.bf16.msra.mxu0 0
        %5374 = vmatprep.subr.bf16.mxu0 0
        %5375 = vmatpush1.bf16.msra.mxu0 0
        %5376 = vmatprep.subr.bf16.mxu0 0
        %5377 = vmatpush1.bf16.msra.mxu0 0
        %5378 = vmatprep.subr.bf16.mxu0 0
        %5379 = vmatpush1.bf16.msra.mxu0 %v5362
        %5380 = vmatprep.subr.bf16.mxu0 0
        %5381 = vmatpush2.bf16.msra.mxu0 0
        %5382 = vmatprep.subr.bf16.mxu0 0
        %5383 = vmatpush2.bf16.msra.mxu0 0
        %5384 = vmatprep.subr.bf16.mxu0 0
        %5385 = vmatpush2.bf16.msra.mxu0 0
        %5386 = vmatprep.subr.bf16.mxu0 0
        %5387 = vmatpush2.bf16.msra.mxu0 0
        %5388 = vmatprep.subr.bf16.mxu0 0
        %5389 = vmatpush2.bf16.msra.mxu0 0
        %5390 = vmatprep.subr.bf16.mxu0 0
        %5391 = vmatpush2.bf16.msra.mxu0 0
        %5392 = vmatprep.subr.bf16.mxu0 0
        %5393 = vmatpush2.bf16.msra.mxu0 0
        %5394 = vmatprep.subr.bf16.mxu0 0
        %5395 = vmatpush2.bf16.msra.mxu0 0
        %5396 = vmatprep.mubr.bf16.mxu0 0
        %5397 = vmatmul.mubr.bf16.gmra.mxu0 %v5358
        %v5398 = vpop.f32.mrf.mxu0
        %v5399 = vadd.f32 0.0, %v5398
        %v5400 = vpop.f32.mrf.mxu0
        %v5401 = vpop.f32.mrf.mxu0
        %v5402 = vadd.f32 0.0, %v5401
        %v5403 = vpop.f32.mrf.mxu0
        %5404 = vdwg.mxu0
        %v5405 = vpack.c.bf16 %v5402, %v5399
        %v5407 = vunpack.c.l.b16 %v5405
        %v5408 = vunpack.c.h.b16 %v5405
        %v5409 = vpack.c.b16 %v5407, %v5407
        %v5410 = vpack.c.b16 %v5408, %v5408
        %5413 = vst.msk [vmem:[#allocation5] sm:$0xf] %vm5325, %v5409
        %vm5414 = vcmask 516096
        %vm5415 = vmand %vm5414, %vm979
        %v5416 = vld [vmem:[#allocation5 + $0x20] sm:$0x1]
        %v5417 = vsel %vm5415, %v5410, %v5416
        %5418 = vst [vmem:[#allocation5 + $0x20] sm:$0x1] %v5417
        %s5419 = scalar_lea.vmem %s4, 8
        %v5420 = vld [vmem:[%s5419] sm:$0xf]
        %v5421 = vld [vmem:[%s5419 + $0x4] sm:$0x1]
        %v5424 = vunpack.c.l.b16 %v5420
        %v5425 = vunpack.c.l.b16 %v5421
        %v5426 = vpack.c.b16 %v5425, %v5424
        %v5428 = vsel %vm5356, %v5426, 0
        %5430 = vmatprep.subr.bf16.mxu0 0
        %5431 = vmatpush1.bf16.msra.mxu0 0
        %5432 = vmatprep.subr.bf16.mxu0 0
        %5433 = vmatpush1.bf16.msra.mxu0 0
        %5434 = vmatprep.subr.bf16.mxu0 0
        %5435 = vmatpush1.bf16.msra.mxu0 0
        %5436 = vmatprep.subr.bf16.mxu0 0
        %5437 = vmatpush1.bf16.msra.mxu0 0
        %5438 = vmatprep.subr.bf16.mxu0 0
        %5439 = vmatpush1.bf16.msra.mxu0 0
        %5440 = vmatprep.subr.bf16.mxu0 0
        %5441 = vmatpush1.bf16.msra.mxu0 0
        %5442 = vmatprep.subr.bf16.mxu0 0
        %5443 = vmatpush1.bf16.msra.mxu0 0
        %5444 = vmatprep.subr.bf16.mxu0 0
        %5445 = vmatpush1.bf16.msra.mxu0 %v5362
        %5446 = vmatprep.subr.bf16.mxu0 0
        %5447 = vmatpush2.bf16.msra.mxu0 0
        %5448 = vmatprep.subr.bf16.mxu0 0
        %5449 = vmatpush2.bf16.msra.mxu0 0
        %5450 = vmatprep.subr.bf16.mxu0 0
        %5451 = vmatpush2.bf16.msra.mxu0 0
        %5452 = vmatprep.subr.bf16.mxu0 0
        %5453 = vmatpush2.bf16.msra.mxu0 0
        %5454 = vmatprep.subr.bf16.mxu0 0
        %5455 = vmatpush2.bf16.msra.mxu0 0
        %5456 = vmatprep.subr.bf16.mxu0 0
        %5457 = vmatpush2.bf16.msra.mxu0 0
        %5458 = vmatprep.subr.bf16.mxu0 0
        %5459 = vmatpush2.bf16.msra.mxu0 0
        %5460 = vmatprep.subr.bf16.mxu0 0
        %5461 = vmatpush2.bf16.msra.mxu0 0
        %5462 = vmatprep.mubr.bf16.mxu0 0
        %5463 = vmatmul.mubr.bf16.gmra.mxu0 %v5428
        %v5464 = vpop.f32.mrf.mxu0
        %v5465 = vadd.f32 0.0, %v5464
        %v5466 = vpop.f32.mrf.mxu0
        %v5467 = vpop.f32.mrf.mxu0
        %v5468 = vadd.f32 0.0, %v5467
        %v5469 = vpop.f32.mrf.mxu0
        %5470 = vdwg.mxu0
        %v5471 = vpack.c.bf16 %v5468, %v5465
        %v5473 = vunpack.c.l.b16 %v5471
        %v5474 = vunpack.c.h.b16 %v5471
        %v5475 = vpack.c.b16 %v5473, %v5473
        %v5476 = vpack.c.b16 %v5474, %v5474
        %5477 = vrot.lane.b32.xlu0 %v5475, 64
        %v5478 = vpop.permute.xlu0 %5477
        %5479 = vrot.lane.b32.xlu0 %v5476, 64
        %v5480 = vpop.permute.xlu0 %5479
        %vm5483 = vcmask 1043968
        %5484 = vst.msk [vmem:[#allocation5] sm:$0xf] %vm5483, %v5478
        %vm5485 = vcmask 1040896
        %vm5486 = vmand %vm5485, %vm979
        %v5487 = vld [vmem:[#allocation5 + $0x20] sm:$0x1]
        %v5488 = vsel %vm5486, %v5480, %v5487
        %5489 = vst [vmem:[#allocation5 + $0x20] sm:$0x1] %v5488
        %s5490 = scalar_lea.vmem %s4, 16
        %v5491 = vld [vmem:[%s5490] sm:$0xf]
        %v5492 = vld [vmem:[%s5490 + $0x4] sm:$0x1]
        %v5495 = vunpack.c.l.b16 %v5491
        %v5496 = vunpack.c.l.b16 %v5492
        %v5497 = vpack.c.b16 %v5496, %v5495
        %v5499 = vsel %vm5356, %v5497, 0
        %5501 = vmatprep.subr.bf16.mxu0 0
        %5502 = vmatpush1.bf16.msra.mxu0 0
        %5503 = vmatprep.subr.bf16.mxu0 0
        %5504 = vmatpush1.bf16.msra.mxu0 0
        %5505 = vmatprep.subr.bf16.mxu0 0
        %5506 = vmatpush1.bf16.msra.mxu0 0
        %5507 = vmatprep.subr.bf16.mxu0 0
        %5508 = vmatpush1.bf16.msra.mxu0 0
        %5509 = vmatprep.subr.bf16.mxu0 0
        %5510 = vmatpush1.bf16.msra.mxu0 0
        %5511 = vmatprep.subr.bf16.mxu0 0
        %5512 = vmatpush1.bf16.msra.mxu0 0
        %5513 = vmatprep.subr.bf16.mxu0 0
        %5514 = vmatpush1.bf16.msra.mxu0 0
        %5515 = vmatprep.subr.bf16.mxu0 0
        %5516 = vmatpush1.bf16.msra.mxu0 %v5362
        %5517 = vmatprep.subr.bf16.mxu0 0
        %5518 = vmatpush2.bf16.msra.mxu0 0
        %5519 = vmatprep.subr.bf16.mxu0 0
        %5520 = vmatpush2.bf16.msra.mxu0 0
        %5521 = vmatprep.subr.bf16.mxu0 0
        %5522 = vmatpush2.bf16.msra.mxu0 0
        %5523 = vmatprep.subr.bf16.mxu0 0
        %5524 = vmatpush2.bf16.msra.mxu0 0
        %5525 = vmatprep.subr.bf16.mxu0 0
        %5526 = vmatpush2.bf16.msra.mxu0 0
        %5527 = vmatprep.subr.bf16.mxu0 0
        %5528 = vmatpush2.bf16.msra.mxu0 0
        %5529 = vmatprep.subr.bf16.mxu0 0
        %5530 = vmatpush2.bf16.msra.mxu0 0
        %5531 = vmatprep.subr.bf16.mxu0 0
        %5532 = vmatpush2.bf16.msra.mxu0 0
        %5533 = vmatprep.mubr.bf16.mxu0 0
        %5534 = vmatmul.mubr.bf16.gmra.mxu0 %v5499
        %v5535 = vpop.f32.mrf.mxu0
        %v5536 = vadd.f32 0.0, %v5535
        %v5537 = vpop.f32.mrf.mxu0
        %v5538 = vpop.f32.mrf.mxu0
        %v5539 = vadd.f32 0.0, %v5538
        %v5540 = vpop.f32.mrf.mxu0
        %5541 = vdwg.mxu0
        %v5542 = vpack.c.bf16 %v5539, %v5536
        %v5544 = vunpack.c.l.b16 %v5542
        %v5545 = vunpack.c.h.b16 %v5542
        %v5546 = vpack.c.b16 %v5544, %v5544
        %v5547 = vpack.c.b16 %v5545, %v5545
        %5550 = vst.msk [vmem:[#allocation5 + $0x4] sm:$0xf] %vm5325, %v5546
        %v5551 = vld [vmem:[#allocation5 + $0x24] sm:$0x1]
        %v5552 = vsel %vm5415, %v5547, %v5551
        %5553 = vst [vmem:[#allocation5 + $0x24] sm:$0x1] %v5552
        %s5554 = scalar_lea.vmem %s4, 24
        %v5555 = vld [vmem:[%s5554] sm:$0xf]
        %v5556 = vld [vmem:[%s5554 + $0x4] sm:$0x1]
        %v5559 = vunpack.c.l.b16 %v5555
        %v5560 = vunpack.c.l.b16 %v5556
        %v5561 = vpack.c.b16 %v5560, %v5559
        %v5563 = vsel %vm5356, %v5561, 0
        %5565 = vmatprep.subr.bf16.mxu0 0
        %5566 = vmatpush1.bf16.msra.mxu0 0
        %5567 = vmatprep.subr.bf16.mxu0 0
        %5568 = vmatpush1.bf16.msra.mxu0 0
        %5569 = vmatprep.subr.bf16.mxu0 0
        %5570 = vmatpush1.bf16.msra.mxu0 0
        %5571 = vmatprep.subr.bf16.mxu0 0
        %5572 = vmatpush1.bf16.msra.mxu0 0
        %5573 = vmatprep.subr.bf16.mxu0 0
        %5574 = vmatpush1.bf16.msra.mxu0 0
        %5575 = vmatprep.subr.bf16.mxu0 0
        %5576 = vmatpush1.bf16.msra.mxu0 0
        %5577 = vmatprep.subr.bf16.mxu0 0
        %5578 = vmatpush1.bf16.msra.mxu0 0
        %5579 = vmatprep.subr.bf16.mxu0 0
        %5580 = vmatpush1.bf16.msra.mxu0 %v5362
        %5581 = vmatprep.subr.bf16.mxu0 0
        %5582 = vmatpush2.bf16.msra.mxu0 0
        %5583 = vmatprep.subr.bf16.mxu0 0
        %5584 = vmatpush2.bf16.msra.mxu0 0
        %5585 = vmatprep.subr.bf16.mxu0 0
        %5586 = vmatpush2.bf16.msra.mxu0 0
        %5587 = vmatprep.subr.bf16.mxu0 0
        %5588 = vmatpush2.bf16.msra.mxu0 0
        %5589 = vmatprep.subr.bf16.mxu0 0
        %5590 = vmatpush2.bf16.msra.mxu0 0
        %5591 = vmatprep.subr.bf16.mxu0 0
        %5592 = vmatpush2.bf16.msra.mxu0 0
        %5593 = vmatprep.subr.bf16.mxu0 0
        %5594 = vmatpush2.bf16.msra.mxu0 0
        %5595 = vmatprep.subr.bf16.mxu0 0
        %5596 = vmatpush2.bf16.msra.mxu0 0
        %5597 = vmatprep.mubr.bf16.mxu0 0
        %5598 = vmatmul.mubr.bf16.gmra.mxu0 %v5563
        %v5599 = vpop.f32.mrf.mxu0
        %v5600 = vadd.f32 0.0, %v5599
        %v5601 = vpop.f32.mrf.mxu0
        %v5602 = vpop.f32.mrf.mxu0
        %v5603 = vadd.f32 0.0, %v5602
        %v5604 = vpop.f32.mrf.mxu0
        %5605 = vdwg.mxu0
        %v5606 = vpack.c.bf16 %v5603, %v5600
        %v5608 = vunpack.c.l.b16 %v5606
        %v5609 = vunpack.c.h.b16 %v5606
        %v5610 = vpack.c.b16 %v5608, %v5608
        %v5611 = vpack.c.b16 %v5609, %v5609
        %5612 = vrot.lane.b32.xlu0 %v5610, 64
        %v5613 = vpop.permute.xlu0 %5612
        %5614 = vrot.lane.b32.xlu0 %v5611, 64
        %v5615 = vpop.permute.xlu0 %5614
        %5618 = vst.msk [vmem:[#allocation5 + $0x4] sm:$0xf] %vm5483, %v5613
        %v5619 = vld [vmem:[#allocation5 + $0x24] sm:$0x1]
        %v5620 = vsel %vm5486, %v5615, %v5619
        %5621 = vst [vmem:[#allocation5 + $0x24] sm:$0x1] %v5620
        %s5622 = scalar_lea.vmem %s4, 32
        %v5623 = vld [vmem:[%s5622] sm:$0xf]
        %v5624 = vld [vmem:[%s5622 + $0x4] sm:$0x1]
        %v5627 = vunpack.c.l.b16 %v5623
        %v5628 = vunpack.c.l.b16 %v5624
        %v5629 = vpack.c.b16 %v5628, %v5627
        %v5631 = vsel %vm5356, %v5629, 0
        %5633 = vmatprep.subr.bf16.mxu0 0
        %5634 = vmatpush1.bf16.msra.mxu0 0
        %5635 = vmatprep.subr.bf16.mxu0 0
        %5636 = vmatpush1.bf16.msra.mxu0 0
        %5637 = vmatprep.subr.bf16.mxu0 0
        %5638 = vmatpush1.bf16.msra.mxu0 0
        %5639 = vmatprep.subr.bf16.mxu0 0
        %5640 = vmatpush1.bf16.msra.mxu0 0
        %5641 = vmatprep.subr.bf16.mxu0 0
        %5642 = vmatpush1.bf16.msra.mxu0 0
        %5643 = vmatprep.subr.bf16.mxu0 0
        %5644 = vmatpush1.bf16.msra.mxu0 0
        %5645 = vmatprep.subr.bf16.mxu0 0
        %5646 = vmatpush1.bf16.msra.mxu0 0
        %5647 = vmatprep.subr.bf16.mxu0 0
        %5648 = vmatpush1.bf16.msra.mxu0 %v5362
        %5649 = vmatprep.subr.bf16.mxu0 0
        %5650 = vmatpush2.bf16.msra.mxu0 0
        %5651 = vmatprep.subr.bf16.mxu0 0
        %5652 = vmatpush2.bf16.msra.mxu0 0
        %5653 = vmatprep.subr.bf16.mxu0 0
        %5654 = vmatpush2.bf16.msra.mxu0 0
        %5655 = vmatprep.subr.bf16.mxu0 0
        %5656 = vmatpush2.bf16.msra.mxu0 0
        %5657 = vmatprep.subr.bf16.mxu0 0
        %5658 = vmatpush2.bf16.msra.mxu0 0
        %5659 = vmatprep.subr.bf16.mxu0 0
        %5660 = vmatpush2.bf16.msra.mxu0 0
        %5661 = vmatprep.subr.bf16.mxu0 0
        %5662 = vmatpush2.bf16.msra.mxu0 0
        %5663 = vmatprep.subr.bf16.mxu0 0
        %5664 = vmatpush2.bf16.msra.mxu0 0
        %5665 = vmatprep.mubr.bf16.mxu0 0
        %5666 = vmatmul.mubr.bf16.gmra.mxu0 %v5631
        %v5667 = vpop.f32.mrf.mxu0
        %v5668 = vadd.f32 0.0, %v5667
        %v5669 = vpop.f32.mrf.mxu0
        %v5670 = vpop.f32.mrf.mxu0
        %v5671 = vadd.f32 0.0, %v5670
        %v5672 = vpop.f32.mrf.mxu0
        %5673 = vdwg.mxu0
        %v5674 = vpack.c.bf16 %v5671, %v5668
        %v5676 = vunpack.c.l.b16 %v5674
        %v5677 = vunpack.c.h.b16 %v5674
        %v5678 = vpack.c.b16 %v5676, %v5676
        %v5679 = vpack.c.b16 %v5677, %v5677
        %5682 = vst.msk [vmem:[#allocation5 + $0x8] sm:$0xf] %vm5325, %v5678
        %v5683 = vld [vmem:[#allocation5 + $0x28] sm:$0x1]
        %v5684 = vsel %vm5415, %v5679, %v5683
        %5685 = vst [vmem:[#allocation5 + $0x28] sm:$0x1] %v5684
        %s5686 = scalar_lea.vmem %s4, 40
        %v5687 = vld [vmem:[%s5686] sm:$0xf]
        %v5688 = vld [vmem:[%s5686 + $0x4] sm:$0x1]
        %v5691 = vunpack.c.l.b16 %v5687
        %v5692 = vunpack.c.l.b16 %v5688
        %v5693 = vpack.c.b16 %v5692, %v5691
        %v5695 = vsel %vm5356, %v5693, 0
        %5697 = vmatprep.subr.bf16.mxu0 0
        %5698 = vmatpush1.bf16.msra.mxu0 0
        %5699 = vmatprep.subr.bf16.mxu0 0
        %5700 = vmatpush1.bf16.msra.mxu0 0
        %5701 = vmatprep.subr.bf16.mxu0 0
        %5702 = vmatpush1.bf16.msra.mxu0 0
        %5703 = vmatprep.subr.bf16.mxu0 0
        %5704 = vmatpush1.bf16.msra.mxu0 0
        %5705 = vmatprep.subr.bf16.mxu0 0
        %5706 = vmatpush1.bf16.msra.mxu0 0
        %5707 = vmatprep.subr.bf16.mxu0 0
        %5708 = vmatpush1.bf16.msra.mxu0 0
        %5709 = vmatprep.subr.bf16.mxu0 0
        %5710 = vmatpush1.bf16.msra.mxu0 0
        %5711 = vmatprep.subr.bf16.mxu0 0
        %5712 = vmatpush1.bf16.msra.mxu0 %v5362
        %5713 = vmatprep.subr.bf16.mxu0 0
        %5714 = vmatpush2.bf16.msra.mxu0 0
        %5715 = vmatprep.subr.bf16.mxu0 0
        %5716 = vmatpush2.bf16.msra.mxu0 0
        %5717 = vmatprep.subr.bf16.mxu0 0
        %5718 = vmatpush2.bf16.msra.mxu0 0
        %5719 = vmatprep.subr.bf16.mxu0 0
        %5720 = vmatpush2.bf16.msra.mxu0 0
        %5721 = vmatprep.subr.bf16.mxu0 0
        %5722 = vmatpush2.bf16.msra.mxu0 0
        %5723 = vmatprep.subr.bf16.mxu0 0
        %5724 = vmatpush2.bf16.msra.mxu0 0
        %5725 = vmatprep.subr.bf16.mxu0 0
        %5726 = vmatpush2.bf16.msra.mxu0 0
        %5727 = vmatprep.subr.bf16.mxu0 0
        %5728 = vmatpush2.bf16.msra.mxu0 0
        %5729 = vmatprep.mubr.bf16.mxu0 0
        %5730 = vmatmul.mubr.bf16.gmra.mxu0 %v5695
        %v5731 = vpop.f32.mrf.mxu0
        %v5732 = vadd.f32 0.0, %v5731
        %v5733 = vpop.f32.mrf.mxu0
        %v5734 = vpop.f32.mrf.mxu0
        %v5735 = vadd.f32 0.0, %v5734
        %v5736 = vpop.f32.mrf.mxu0
        %5737 = vdwg.mxu0
        %v5738 = vpack.c.bf16 %v5735, %v5732
        %v5740 = vunpack.c.l.b16 %v5738
        %v5741 = vunpack.c.h.b16 %v5738
        %v5742 = vpack.c.b16 %v5740, %v5740
        %v5743 = vpack.c.b16 %v5741, %v5741
        %5744 = vrot.lane.b32.xlu0 %v5742, 64
        %v5745 = vpop.permute.xlu0 %5744
        %5746 = vrot.lane.b32.xlu0 %v5743, 64
        %v5747 = vpop.permute.xlu0 %5746
        %5750 = vst.msk [vmem:[#allocation5 + $0x8] sm:$0xf] %vm5483, %v5745
        %v5751 = vld [vmem:[#allocation5 + $0x28] sm:$0x1]
        %v5752 = vsel %vm5486, %v5747, %v5751
        %5753 = vst [vmem:[#allocation5 + $0x28] sm:$0x1] %v5752
        %s5754 = scalar_lea.vmem %s4, 48
        %v5755 = vld [vmem:[%s5754] sm:$0xf]
        %v5756 = vld [vmem:[%s5754 + $0x4] sm:$0x1]
        %v5759 = vunpack.c.l.b16 %v5755
        %v5760 = vunpack.c.l.b16 %v5756
        %v5761 = vpack.c.b16 %v5760, %v5759
        %v5763 = vsel %vm5356, %v5761, 0
        %5765 = vmatprep.subr.bf16.mxu0 0
        %5766 = vmatpush1.bf16.msra.mxu0 0
        %5767 = vmatprep.subr.bf16.mxu0 0
        %5768 = vmatpush1.bf16.msra.mxu0 0
        %5769 = vmatprep.subr.bf16.mxu0 0
        %5770 = vmatpush1.bf16.msra.mxu0 0
        %5771 = vmatprep.subr.bf16.mxu0 0
        %5772 = vmatpush1.bf16.msra.mxu0 0
        %5773 = vmatprep.subr.bf16.mxu0 0
        %5774 = vmatpush1.bf16.msra.mxu0 0
        %5775 = vmatprep.subr.bf16.mxu0 0
        %5776 = vmatpush1.bf16.msra.mxu0 0
        %5777 = vmatprep.subr.bf16.mxu0 0
        %5778 = vmatpush1.bf16.msra.mxu0 0
        %5779 = vmatprep.subr.bf16.mxu0 0
        %5780 = vmatpush1.bf16.msra.mxu0 %v5362
        %5781 = vmatprep.subr.bf16.mxu0 0
        %5782 = vmatpush2.bf16.msra.mxu0 0
        %5783 = vmatprep.subr.bf16.mxu0 0
        %5784 = vmatpush2.bf16.msra.mxu0 0
        %5785 = vmatprep.subr.bf16.mxu0 0
        %5786 = vmatpush2.bf16.msra.mxu0 0
        %5787 = vmatprep.subr.bf16.mxu0 0
        %5788 = vmatpush2.bf16.msra.mxu0 0
        %5789 = vmatprep.subr.bf16.mxu0 0
        %5790 = vmatpush2.bf16.msra.mxu0 0
        %5791 = vmatprep.subr.bf16.mxu0 0
        %5792 = vmatpush2.bf16.msra.mxu0 0
        %5793 = vmatprep.subr.bf16.mxu0 0
        %5794 = vmatpush2.bf16.msra.mxu0 0
        %5795 = vmatprep.subr.bf16.mxu0 0
        %5796 = vmatpush2.bf16.msra.mxu0 0
        %5797 = vmatprep.mubr.bf16.mxu0 0
        %5798 = vmatmul.mubr.bf16.gmra.mxu0 %v5763
        %v5799 = vpop.f32.mrf.mxu0
        %v5800 = vadd.f32 0.0, %v5799
        %v5801 = vpop.f32.mrf.mxu0
        %v5802 = vpop.f32.mrf.mxu0
        %v5803 = vadd.f32 0.0, %v5802
        %v5804 = vpop.f32.mrf.mxu0
        %5805 = vdwg.mxu0
        %v5806 = vpack.c.bf16 %v5803, %v5800
        %v5808 = vunpack.c.l.b16 %v5806
        %v5809 = vunpack.c.h.b16 %v5806
        %v5810 = vpack.c.b16 %v5808, %v5808
        %v5811 = vpack.c.b16 %v5809, %v5809
        %5814 = vst.msk [vmem:[#allocation5 + $0xc] sm:$0xf] %vm5325, %v5810
        %v5815 = vld [vmem:[#allocation5 + $0x2c] sm:$0x1]
        %v5816 = vsel %vm5415, %v5811, %v5815
        %5817 = vst [vmem:[#allocation5 + $0x2c] sm:$0x1] %v5816
        %s5818 = scalar_lea.vmem %s4, 56
        %v5819 = vld [vmem:[%s5818] sm:$0xf]
        %v5820 = vld [vmem:[%s5818 + $0x4] sm:$0x1]
        %v5823 = vunpack.c.l.b16 %v5819
        %v5824 = vunpack.c.l.b16 %v5820
        %v5825 = vpack.c.b16 %v5824, %v5823
        %v5827 = vsel %vm5356, %v5825, 0
        %5829 = vmatprep.subr.bf16.mxu0 0
        %5830 = vmatpush1.bf16.msra.mxu0 0
        %5831 = vmatprep.subr.bf16.mxu0 0
        %5832 = vmatpush1.bf16.msra.mxu0 0
        %5833 = vmatprep.subr.bf16.mxu0 0
        %5834 = vmatpush1.bf16.msra.mxu0 0
        %5835 = vmatprep.subr.bf16.mxu0 0
        %5836 = vmatpush1.bf16.msra.mxu0 0
        %5837 = vmatprep.subr.bf16.mxu0 0
        %5838 = vmatpush1.bf16.msra.mxu0 0
        %5839 = vmatprep.subr.bf16.mxu0 0
        %5840 = vmatpush1.bf16.msra.mxu0 0
        %5841 = vmatprep.subr.bf16.mxu0 0
        %5842 = vmatpush1.bf16.msra.mxu0 0
        %5843 = vmatprep.subr.bf16.mxu0 0
        %5844 = vmatpush1.bf16.msra.mxu0 %v5362
        %5845 = vmatprep.subr.bf16.mxu0 0
        %5846 = vmatpush2.bf16.msra.mxu0 0
        %5847 = vmatprep.subr.bf16.mxu0 0
        %5848 = vmatpush2.bf16.msra.mxu0 0
        %5849 = vmatprep.subr.bf16.mxu0 0
        %5850 = vmatpush2.bf16.msra.mxu0 0
        %5851 = vmatprep.subr.bf16.mxu0 0
        %5852 = vmatpush2.bf16.msra.mxu0 0
        %5853 = vmatprep.subr.bf16.mxu0 0
        %5854 = vmatpush2.bf16.msra.mxu0 0
        %5855 = vmatprep.subr.bf16.mxu0 0
        %5856 = vmatpush2.bf16.msra.mxu0 0
        %5857 = vmatprep.subr.bf16.mxu0 0
        %5858 = vmatpush2.bf16.msra.mxu0 0
        %5859 = vmatprep.subr.bf16.mxu0 0
        %5860 = vmatpush2.bf16.msra.mxu0 0
        %5861 = vmatprep.mubr.bf16.mxu0 0
        %5862 = vmatmul.mubr.bf16.gmra.mxu0 %v5827
        %v5863 = vpop.f32.mrf.mxu0
        %v5864 = vadd.f32 0.0, %v5863
        %v5865 = vpop.f32.mrf.mxu0
        %v5866 = vpop.f32.mrf.mxu0
        %v5867 = vadd.f32 0.0, %v5866
        %v5868 = vpop.f32.mrf.mxu0
        %5869 = vdwg.mxu0
        %v5870 = vpack.c.bf16 %v5867, %v5864
        %v5872 = vunpack.c.l.b16 %v5870
        %v5873 = vunpack.c.h.b16 %v5870
        %v5874 = vpack.c.b16 %v5872, %v5872
        %v5875 = vpack.c.b16 %v5873, %v5873
        %5876 = vrot.lane.b32.xlu0 %v5874, 64
        %v5877 = vpop.permute.xlu0 %5876
        %5878 = vrot.lane.b32.xlu0 %v5875, 64
        %v5879 = vpop.permute.xlu0 %5878
        %5882 = vst.msk [vmem:[#allocation5 + $0xc] sm:$0xf] %vm5483, %v5877
        %v5883 = vld [vmem:[#allocation5 + $0x2c] sm:$0x1]
        %v5884 = vsel %vm5486, %v5879, %v5883
        %5885 = vst [vmem:[#allocation5 + $0x2c] sm:$0x1] %v5884
        %s5886 = scalar_lea.vmem %s4, 64
        %v5887 = vld [vmem:[%s5886] sm:$0xf]
        %v5888 = vld [vmem:[%s5886 + $0x4] sm:$0x1]
        %v5891 = vunpack.c.l.b16 %v5887
        %v5892 = vunpack.c.l.b16 %v5888
        %v5893 = vpack.c.b16 %v5892, %v5891
        %v5895 = vsel %vm5356, %v5893, 0
        %5897 = vmatprep.subr.bf16.mxu0 0
        %5898 = vmatpush1.bf16.msra.mxu0 0
        %5899 = vmatprep.subr.bf16.mxu0 0
        %5900 = vmatpush1.bf16.msra.mxu0 0
        %5901 = vmatprep.subr.bf16.mxu0 0
        %5902 = vmatpush1.bf16.msra.mxu0 0
        %5903 = vmatprep.subr.bf16.mxu0 0
        %5904 = vmatpush1.bf16.msra.mxu0 0
        %5905 = vmatprep.subr.bf16.mxu0 0
        %5906 = vmatpush1.bf16.msra.mxu0 0
        %5907 = vmatprep.subr.bf16.mxu0 0
        %5908 = vmatpush1.bf16.msra.mxu0 0
        %5909 = vmatprep.subr.bf16.mxu0 0
        %5910 = vmatpush1.bf16.msra.mxu0 0
        %5911 = vmatprep.subr.bf16.mxu0 0
        %5912 = vmatpush1.bf16.msra.mxu0 %v5362
        %5913 = vmatprep.subr.bf16.mxu0 0
        %5914 = vmatpush2.bf16.msra.mxu0 0
        %5915 = vmatprep.subr.bf16.mxu0 0
        %5916 = vmatpush2.bf16.msra.mxu0 0
        %5917 = vmatprep.subr.bf16.mxu0 0
        %5918 = vmatpush2.bf16.msra.mxu0 0
        %5919 = vmatprep.subr.bf16.mxu0 0
        %5920 = vmatpush2.bf16.msra.mxu0 0
        %5921 = vmatprep.subr.bf16.mxu0 0
        %5922 = vmatpush2.bf16.msra.mxu0 0
        %5923 = vmatprep.subr.bf16.mxu0 0
        %5924 = vmatpush2.bf16.msra.mxu0 0
        %5925 = vmatprep.subr.bf16.mxu0 0
        %5926 = vmatpush2.bf16.msra.mxu0 0
        %5927 = vmatprep.subr.bf16.mxu0 0
        %5928 = vmatpush2.bf16.msra.mxu0 0
        %5929 = vmatprep.mubr.bf16.mxu0 0
        %5930 = vmatmul.mubr.bf16.gmra.mxu0 %v5895
        %v5931 = vpop.f32.mrf.mxu0
        %v5932 = vadd.f32 0.0, %v5931
        %v5933 = vpop.f32.mrf.mxu0
        %v5934 = vpop.f32.mrf.mxu0
        %v5935 = vadd.f32 0.0, %v5934
        %v5936 = vpop.f32.mrf.mxu0
        %5937 = vdwg.mxu0
        %v5938 = vpack.c.bf16 %v5935, %v5932
        %v5940 = vunpack.c.l.b16 %v5938
        %v5941 = vunpack.c.h.b16 %v5938
        %v5942 = vpack.c.b16 %v5940, %v5940
        %v5943 = vpack.c.b16 %v5941, %v5941
        %5946 = vst.msk [vmem:[#allocation5 + $0x10] sm:$0xf] %vm5325, %v5942
        %v5947 = vld [vmem:[#allocation5 + $0x30] sm:$0x1]
        %v5948 = vsel %vm5415, %v5943, %v5947
        %5949 = vst [vmem:[#allocation5 + $0x30] sm:$0x1] %v5948
        %s5950 = scalar_lea.vmem %s4, 72
        %v5951 = vld [vmem:[%s5950] sm:$0xf]
        %v5952 = vld [vmem:[%s5950 + $0x4] sm:$0x1]
        %v5955 = vunpack.c.l.b16 %v5951
        %v5956 = vunpack.c.l.b16 %v5952
        %v5957 = vpack.c.b16 %v5956, %v5955
        %v5959 = vsel %vm5356, %v5957, 0
        %5961 = vmatprep.subr.bf16.mxu0 0
        %5962 = vmatpush1.bf16.msra.mxu0 0
        %5963 = vmatprep.subr.bf16.mxu0 0
        %5964 = vmatpush1.bf16.msra.mxu0 0
        %5965 = vmatprep.subr.bf16.mxu0 0
        %5966 = vmatpush1.bf16.msra.mxu0 0
        %5967 = vmatprep.subr.bf16.mxu0 0
        %5968 = vmatpush1.bf16.msra.mxu0 0
        %5969 = vmatprep.subr.bf16.mxu0 0
        %5970 = vmatpush1.bf16.msra.mxu0 0
        %5971 = vmatprep.subr.bf16.mxu0 0
        %5972 = vmatpush1.bf16.msra.mxu0 0
        %5973 = vmatprep.subr.bf16.mxu0 0
        %5974 = vmatpush1.bf16.msra.mxu0 0
        %5975 = vmatprep.subr.bf16.mxu0 0
        %5976 = vmatpush1.bf16.msra.mxu0 %v5362
        %5977 = vmatprep.subr.bf16.mxu0 0
        %5978 = vmatpush2.bf16.msra.mxu0 0
        %5979 = vmatprep.subr.bf16.mxu0 0
        %5980 = vmatpush2.bf16.msra.mxu0 0
        %5981 = vmatprep.subr.bf16.mxu0 0
        %5982 = vmatpush2.bf16.msra.mxu0 0
        %5983 = vmatprep.subr.bf16.mxu0 0
        %5984 = vmatpush2.bf16.msra.mxu0 0
        %5985 = vmatprep.subr.bf16.mxu0 0
        %5986 = vmatpush2.bf16.msra.mxu0 0
        %5987 = vmatprep.subr.bf16.mxu0 0
        %5988 = vmatpush2.bf16.msra.mxu0 0
        %5989 = vmatprep.subr.bf16.mxu0 0
        %5990 = vmatpush2.bf16.msra.mxu0 0
        %5991 = vmatprep.subr.bf16.mxu0 0
        %5992 = vmatpush2.bf16.msra.mxu0 0
        %5993 = vmatprep.mubr.bf16.mxu0 0
        %5994 = vmatmul.mubr.bf16.gmra.mxu0 %v5959
        %v5995 = vpop.f32.mrf.mxu0
        %v5996 = vadd.f32 0.0, %v5995
        %v5997 = vpop.f32.mrf.mxu0
        %v5998 = vpop.f32.mrf.mxu0
        %v5999 = vadd.f32 0.0, %v5998
        %v6000 = vpop.f32.mrf.mxu0
        %6001 = vdwg.mxu0
        %v6002 = vpack.c.bf16 %v5999, %v5996
        %v6004 = vunpack.c.l.b16 %v6002
        %v6005 = vunpack.c.h.b16 %v6002
        %v6006 = vpack.c.b16 %v6004, %v6004
        %v6007 = vpack.c.b16 %v6005, %v6005
        %6008 = vrot.lane.b32.xlu0 %v6006, 64
        %v6009 = vpop.permute.xlu0 %6008
        %6010 = vrot.lane.b32.xlu0 %v6007, 64
        %v6011 = vpop.permute.xlu0 %6010
        %6014 = vst.msk [vmem:[#allocation5 + $0x10] sm:$0xf] %vm5483, %v6009
        %v6015 = vld [vmem:[#allocation5 + $0x30] sm:$0x1]
        %v6016 = vsel %vm5486, %v6011, %v6015
        %6017 = vst [vmem:[#allocation5 + $0x30] sm:$0x1] %v6016
        %s6018 = scalar_lea.vmem %s4, 80
        %v6019 = vld [vmem:[%s6018] sm:$0xf]
        %v6020 = vld [vmem:[%s6018 + $0x4] sm:$0x1]
        %v6023 = vunpack.c.l.b16 %v6019
        %v6024 = vunpack.c.l.b16 %v6020
        %v6025 = vpack.c.b16 %v6024, %v6023
        %v6027 = vsel %vm5356, %v6025, 0
        %6029 = vmatprep.subr.bf16.mxu0 0
        %6030 = vmatpush1.bf16.msra.mxu0 0
        %6031 = vmatprep.subr.bf16.mxu0 0
        %6032 = vmatpush1.bf16.msra.mxu0 0
        %6033 = vmatprep.subr.bf16.mxu0 0
        %6034 = vmatpush1.bf16.msra.mxu0 0
        %6035 = vmatprep.subr.bf16.mxu0 0
        %6036 = vmatpush1.bf16.msra.mxu0 0
        %6037 = vmatprep.subr.bf16.mxu0 0
        %6038 = vmatpush1.bf16.msra.mxu0 0
        %6039 = vmatprep.subr.bf16.mxu0 0
        %6040 = vmatpush1.bf16.msra.mxu0 0
        %6041 = vmatprep.subr.bf16.mxu0 0
        %6042 = vmatpush1.bf16.msra.mxu0 0
        %6043 = vmatprep.subr.bf16.mxu0 0
        %6044 = vmatpush1.bf16.msra.mxu0 %v5362
        %6045 = vmatprep.subr.bf16.mxu0 0
        %6046 = vmatpush2.bf16.msra.mxu0 0
        %6047 = vmatprep.subr.bf16.mxu0 0
        %6048 = vmatpush2.bf16.msra.mxu0 0
        %6049 = vmatprep.subr.bf16.mxu0 0
        %6050 = vmatpush2.bf16.msra.mxu0 0
        %6051 = vmatprep.subr.bf16.mxu0 0
        %6052 = vmatpush2.bf16.msra.mxu0 0
        %6053 = vmatprep.subr.bf16.mxu0 0
        %6054 = vmatpush2.bf16.msra.mxu0 0
        %6055 = vmatprep.subr.bf16.mxu0 0
        %6056 = vmatpush2.bf16.msra.mxu0 0
        %6057 = vmatprep.subr.bf16.mxu0 0
        %6058 = vmatpush2.bf16.msra.mxu0 0
        %6059 = vmatprep.subr.bf16.mxu0 0
        %6060 = vmatpush2.bf16.msra.mxu0 0
        %6061 = vmatprep.mubr.bf16.mxu0 0
        %6062 = vmatmul.mubr.bf16.gmra.mxu0 %v6027
        %v6063 = vpop.f32.mrf.mxu0
        %v6064 = vadd.f32 0.0, %v6063
        %v6065 = vpop.f32.mrf.mxu0
        %v6066 = vpop.f32.mrf.mxu0
        %v6067 = vadd.f32 0.0, %v6066
        %v6068 = vpop.f32.mrf.mxu0
        %6069 = vdwg.mxu0
        %v6070 = vpack.c.bf16 %v6067, %v6064
        %v6072 = vunpack.c.l.b16 %v6070
        %v6073 = vunpack.c.h.b16 %v6070
        %v6074 = vpack.c.b16 %v6072, %v6072
        %v6075 = vpack.c.b16 %v6073, %v6073
        %6078 = vst.msk [vmem:[#allocation5 + $0x14] sm:$0xf] %vm5325, %v6074
        %v6079 = vld [vmem:[#allocation5 + $0x34] sm:$0x1]
        %v6080 = vsel %vm5415, %v6075, %v6079
        %6081 = vst [vmem:[#allocation5 + $0x34] sm:$0x1] %v6080
        %s6082 = scalar_lea.vmem %s4, 88
        %v6083 = vld [vmem:[%s6082] sm:$0xf]
        %v6084 = vld [vmem:[%s6082 + $0x4] sm:$0x1]
        %v6087 = vunpack.c.l.b16 %v6083
        %v6088 = vunpack.c.l.b16 %v6084
        %v6089 = vpack.c.b16 %v6088, %v6087
        %v6091 = vsel %vm5356, %v6089, 0
        %6093 = vmatprep.subr.bf16.mxu0 0
        %6094 = vmatpush1.bf16.msra.mxu0 0
        %6095 = vmatprep.subr.bf16.mxu0 0
        %6096 = vmatpush1.bf16.msra.mxu0 0
        %6097 = vmatprep.subr.bf16.mxu0 0
        %6098 = vmatpush1.bf16.msra.mxu0 0
        %6099 = vmatprep.subr.bf16.mxu0 0
        %6100 = vmatpush1.bf16.msra.mxu0 0
        %6101 = vmatprep.subr.bf16.mxu0 0
        %6102 = vmatpush1.bf16.msra.mxu0 0
        %6103 = vmatprep.subr.bf16.mxu0 0
        %6104 = vmatpush1.bf16.msra.mxu0 0
        %6105 = vmatprep.subr.bf16.mxu0 0
        %6106 = vmatpush1.bf16.msra.mxu0 0
        %6107 = vmatprep.subr.bf16.mxu0 0
        %6108 = vmatpush1.bf16.msra.mxu0 %v5362
        %6109 = vmatprep.subr.bf16.mxu0 0
        %6110 = vmatpush2.bf16.msra.mxu0 0
        %6111 = vmatprep.subr.bf16.mxu0 0
        %6112 = vmatpush2.bf16.msra.mxu0 0
        %6113 = vmatprep.subr.bf16.mxu0 0
        %6114 = vmatpush2.bf16.msra.mxu0 0
        %6115 = vmatprep.subr.bf16.mxu0 0
        %6116 = vmatpush2.bf16.msra.mxu0 0
        %6117 = vmatprep.subr.bf16.mxu0 0
        %6118 = vmatpush2.bf16.msra.mxu0 0
        %6119 = vmatprep.subr.bf16.mxu0 0
        %6120 = vmatpush2.bf16.msra.mxu0 0
        %6121 = vmatprep.subr.bf16.mxu0 0
        %6122 = vmatpush2.bf16.msra.mxu0 0
        %6123 = vmatprep.subr.bf16.mxu0 0
        %6124 = vmatpush2.bf16.msra.mxu0 0
        %6125 = vmatprep.mubr.bf16.mxu0 0
        %6126 = vmatmul.mubr.bf16.gmra.mxu0 %v6091
        %v6127 = vpop.f32.mrf.mxu0
        %v6128 = vadd.f32 0.0, %v6127
        %v6129 = vpop.f32.mrf.mxu0
        %v6130 = vpop.f32.mrf.mxu0
        %v6131 = vadd.f32 0.0, %v6130
        %v6132 = vpop.f32.mrf.mxu0
        %6133 = vdwg.mxu0
        %v6134 = vpack.c.bf16 %v6131, %v6128
        %v6136 = vunpack.c.l.b16 %v6134
        %v6137 = vunpack.c.h.b16 %v6134
        %v6138 = vpack.c.b16 %v6136, %v6136
        %v6139 = vpack.c.b16 %v6137, %v6137
        %6140 = vrot.lane.b32.xlu0 %v6138, 64
        %v6141 = vpop.permute.xlu0 %6140
        %6142 = vrot.lane.b32.xlu0 %v6139, 64
        %v6143 = vpop.permute.xlu0 %6142
        %6146 = vst.msk [vmem:[#allocation5 + $0x14] sm:$0xf] %vm5483, %v6141
        %v6147 = vld [vmem:[#allocation5 + $0x34] sm:$0x1]
        %v6148 = vsel %vm5486, %v6143, %v6147
        %6149 = vst [vmem:[#allocation5 + $0x34] sm:$0x1] %v6148
        %s6150 = scalar_lea.vmem %s4, 96
        %v6151 = vld [vmem:[%s6150] sm:$0xf]
        %v6152 = vld [vmem:[%s6150 + $0x4] sm:$0x1]
        %v6155 = vunpack.c.l.b16 %v6151
        %v6156 = vunpack.c.l.b16 %v6152
        %v6157 = vpack.c.b16 %v6156, %v6155
        %v6159 = vsel %vm5356, %v6157, 0
        %6161 = vmatprep.subr.bf16.mxu0 0
        %6162 = vmatpush1.bf16.msra.mxu0 0
        %6163 = vmatprep.subr.bf16.mxu0 0
        %6164 = vmatpush1.bf16.msra.mxu0 0
        %6165 = vmatprep.subr.bf16.mxu0 0
        %6166 = vmatpush1.bf16.msra.mxu0 0
        %6167 = vmatprep.subr.bf16.mxu0 0
        %6168 = vmatpush1.bf16.msra.mxu0 0
        %6169 = vmatprep.subr.bf16.mxu0 0
        %6170 = vmatpush1.bf16.msra.mxu0 0
        %6171 = vmatprep.subr.bf16.mxu0 0
        %6172 = vmatpush1.bf16.msra.mxu0 0
        %6173 = vmatprep.subr.bf16.mxu0 0
        %6174 = vmatpush1.bf16.msra.mxu0 0
        %6175 = vmatprep.subr.bf16.mxu0 0
        %6176 = vmatpush1.bf16.msra.mxu0 %v5362
        %6177 = vmatprep.subr.bf16.mxu0 0
        %6178 = vmatpush2.bf16.msra.mxu0 0
        %6179 = vmatprep.subr.bf16.mxu0 0
        %6180 = vmatpush2.bf16.msra.mxu0 0
        %6181 = vmatprep.subr.bf16.mxu0 0
        %6182 = vmatpush2.bf16.msra.mxu0 0
        %6183 = vmatprep.subr.bf16.mxu0 0
        %6184 = vmatpush2.bf16.msra.mxu0 0
        %6185 = vmatprep.subr.bf16.mxu0 0
        %6186 = vmatpush2.bf16.msra.mxu0 0
        %6187 = vmatprep.subr.bf16.mxu0 0
        %6188 = vmatpush2.bf16.msra.mxu0 0
        %6189 = vmatprep.subr.bf16.mxu0 0
        %6190 = vmatpush2.bf16.msra.mxu0 0
        %6191 = vmatprep.subr.bf16.mxu0 0
        %6192 = vmatpush2.bf16.msra.mxu0 0
        %6193 = vmatprep.mubr.bf16.mxu0 0
        %6194 = vmatmul.mubr.bf16.gmra.mxu0 %v6159
        %v6195 = vpop.f32.mrf.mxu0
        %v6196 = vadd.f32 0.0, %v6195
        %v6197 = vpop.f32.mrf.mxu0
        %v6198 = vpop.f32.mrf.mxu0
        %v6199 = vadd.f32 0.0, %v6198
        %v6200 = vpop.f32.mrf.mxu0
        %6201 = vdwg.mxu0
        %v6202 = vpack.c.bf16 %v6199, %v6196
        %v6204 = vunpack.c.l.b16 %v6202
        %v6205 = vunpack.c.h.b16 %v6202
        %v6206 = vpack.c.b16 %v6204, %v6204
        %v6207 = vpack.c.b16 %v6205, %v6205
        %6210 = vst.msk [vmem:[#allocation5 + $0x18] sm:$0xf] %vm5325, %v6206
        %v6211 = vld [vmem:[#allocation5 + $0x38] sm:$0x1]
        %v6212 = vsel %vm5415, %v6207, %v6211
        %6213 = vst [vmem:[#allocation5 + $0x38] sm:$0x1] %v6212
        %s6214 = scalar_lea.vmem %s4, 104
        %v6215 = vld [vmem:[%s6214] sm:$0xf]
        %v6216 = vld [vmem:[%s6214 + $0x4] sm:$0x1]
        %v6219 = vunpack.c.l.b16 %v6215
        %v6220 = vunpack.c.l.b16 %v6216
        %v6221 = vpack.c.b16 %v6220, %v6219
        %v6223 = vsel %vm5356, %v6221, 0
        %6225 = vmatprep.subr.bf16.mxu0 0
        %6226 = vmatpush1.bf16.msra.mxu0 0
        %6227 = vmatprep.subr.bf16.mxu0 0
        %6228 = vmatpush1.bf16.msra.mxu0 0
        %6229 = vmatprep.subr.bf16.mxu0 0
        %6230 = vmatpush1.bf16.msra.mxu0 0
        %6231 = vmatprep.subr.bf16.mxu0 0
        %6232 = vmatpush1.bf16.msra.mxu0 0
        %6233 = vmatprep.subr.bf16.mxu0 0
        %6234 = vmatpush1.bf16.msra.mxu0 0
        %6235 = vmatprep.subr.bf16.mxu0 0
        %6236 = vmatpush1.bf16.msra.mxu0 0
        %6237 = vmatprep.subr.bf16.mxu0 0
        %6238 = vmatpush1.bf16.msra.mxu0 0
        %6239 = vmatprep.subr.bf16.mxu0 0
        %6240 = vmatpush1.bf16.msra.mxu0 %v5362
        %6241 = vmatprep.subr.bf16.mxu0 0
        %6242 = vmatpush2.bf16.msra.mxu0 0
        %6243 = vmatprep.subr.bf16.mxu0 0
        %6244 = vmatpush2.bf16.msra.mxu0 0
        %6245 = vmatprep.subr.bf16.mxu0 0
        %6246 = vmatpush2.bf16.msra.mxu0 0
        %6247 = vmatprep.subr.bf16.mxu0 0
        %6248 = vmatpush2.bf16.msra.mxu0 0
        %6249 = vmatprep.subr.bf16.mxu0 0
        %6250 = vmatpush2.bf16.msra.mxu0 0
        %6251 = vmatprep.subr.bf16.mxu0 0
        %6252 = vmatpush2.bf16.msra.mxu0 0
        %6253 = vmatprep.subr.bf16.mxu0 0
        %6254 = vmatpush2.bf16.msra.mxu0 0
        %6255 = vmatprep.subr.bf16.mxu0 0
        %6256 = vmatpush2.bf16.msra.mxu0 0
        %6257 = vmatprep.mubr.bf16.mxu0 0
        %6258 = vmatmul.mubr.bf16.gmra.mxu0 %v6223
        %v6259 = vpop.f32.mrf.mxu0
        %v6260 = vadd.f32 0.0, %v6259
        %v6261 = vpop.f32.mrf.mxu0
        %v6262 = vpop.f32.mrf.mxu0
        %v6263 = vadd.f32 0.0, %v6262
        %v6264 = vpop.f32.mrf.mxu0
        %6265 = vdwg.mxu0
        %v6266 = vpack.c.bf16 %v6263, %v6260
        %v6268 = vunpack.c.l.b16 %v6266
        %v6269 = vunpack.c.h.b16 %v6266
        %v6270 = vpack.c.b16 %v6268, %v6268
        %v6271 = vpack.c.b16 %v6269, %v6269
        %6272 = vrot.lane.b32.xlu0 %v6270, 64
        %v6273 = vpop.permute.xlu0 %6272
        %6274 = vrot.lane.b32.xlu0 %v6271, 64
        %v6275 = vpop.permute.xlu0 %6274
        %6278 = vst.msk [vmem:[#allocation5 + $0x18] sm:$0xf] %vm5483, %v6273
        %v6279 = vld [vmem:[#allocation5 + $0x38] sm:$0x1]
        %v6280 = vsel %vm5486, %v6275, %v6279
        %6281 = vst [vmem:[#allocation5 + $0x38] sm:$0x1] %v6280
        %s6282 = scalar_lea.vmem %s4, 112
        %v6283 = vld [vmem:[%s6282] sm:$0xf]
        %v6284 = vld [vmem:[%s6282 + $0x4] sm:$0x1]
        %v6287 = vunpack.c.l.b16 %v6283
        %v6288 = vunpack.c.l.b16 %v6284
        %v6289 = vpack.c.b16 %v6288, %v6287
        %v6291 = vsel %vm5356, %v6289, 0
        %6293 = vmatprep.subr.bf16.mxu0 0
        %6294 = vmatpush1.bf16.msra.mxu0 0
        %6295 = vmatprep.subr.bf16.mxu0 0
        %6296 = vmatpush1.bf16.msra.mxu0 0
        %6297 = vmatprep.subr.bf16.mxu0 0
        %6298 = vmatpush1.bf16.msra.mxu0 0
        %6299 = vmatprep.subr.bf16.mxu0 0
        %6300 = vmatpush1.bf16.msra.mxu0 0
        %6301 = vmatprep.subr.bf16.mxu0 0
        %6302 = vmatpush1.bf16.msra.mxu0 0
        %6303 = vmatprep.subr.bf16.mxu0 0
        %6304 = vmatpush1.bf16.msra.mxu0 0
        %6305 = vmatprep.subr.bf16.mxu0 0
        %6306 = vmatpush1.bf16.msra.mxu0 0
        %6307 = vmatprep.subr.bf16.mxu0 0
        %6308 = vmatpush1.bf16.msra.mxu0 %v5362
        %6309 = vmatprep.subr.bf16.mxu0 0
        %6310 = vmatpush2.bf16.msra.mxu0 0
        %6311 = vmatprep.subr.bf16.mxu0 0
        %6312 = vmatpush2.bf16.msra.mxu0 0
        %6313 = vmatprep.subr.bf16.mxu0 0
        %6314 = vmatpush2.bf16.msra.mxu0 0
        %6315 = vmatprep.subr.bf16.mxu0 0
        %6316 = vmatpush2.bf16.msra.mxu0 0
        %6317 = vmatprep.subr.bf16.mxu0 0
        %6318 = vmatpush2.bf16.msra.mxu0 0
        %6319 = vmatprep.subr.bf16.mxu0 0
        %6320 = vmatpush2.bf16.msra.mxu0 0
        %6321 = vmatprep.subr.bf16.mxu0 0
        %6322 = vmatpush2.bf16.msra.mxu0 0
        %6323 = vmatprep.subr.bf16.mxu0 0
        %6324 = vmatpush2.bf16.msra.mxu0 0
        %6325 = vmatprep.mubr.bf16.mxu0 0
        %6326 = vmatmul.mubr.bf16.gmra.mxu0 %v6291
        %v6327 = vpop.f32.mrf.mxu0
        %v6328 = vadd.f32 0.0, %v6327
        %v6329 = vpop.f32.mrf.mxu0
        %v6330 = vpop.f32.mrf.mxu0
        %v6331 = vadd.f32 0.0, %v6330
        %v6332 = vpop.f32.mrf.mxu0
        %6333 = vdwg.mxu0
        %v6334 = vpack.c.bf16 %v6331, %v6328
        %v6336 = vunpack.c.l.b16 %v6334
        %v6337 = vunpack.c.h.b16 %v6334
        %v6338 = vpack.c.b16 %v6336, %v6336
        %v6339 = vpack.c.b16 %v6337, %v6337
        %6342 = vst.msk [vmem:[#allocation5 + $0x1c] sm:$0xf] %vm5325, %v6338
        %v6343 = vld [vmem:[#allocation5 + $0x3c] sm:$0x1]
        %v6344 = vsel %vm5415, %v6339, %v6343
        %6345 = vst [vmem:[#allocation5 + $0x3c] sm:$0x1] %v6344
        %s6346 = scalar_lea.vmem %s4, 120
        %v6347 = vld [vmem:[%s6346] sm:$0xf]
        %v6348 = vld [vmem:[%s6346 + $0x4] sm:$0x1]
        %v6351 = vunpack.c.l.b16 %v6347
        %v6352 = vunpack.c.l.b16 %v6348
        %v6353 = vpack.c.b16 %v6352, %v6351
        %v6355 = vsel %vm5356, %v6353, 0
        %6357 = vmatprep.subr.bf16.mxu0 0
        %6358 = vmatpush1.bf16.msra.mxu0 0
        %6359 = vmatprep.subr.bf16.mxu0 0
        %6360 = vmatpush1.bf16.msra.mxu0 0
        %6361 = vmatprep.subr.bf16.mxu0 0
        %6362 = vmatpush1.bf16.msra.mxu0 0
        %6363 = vmatprep.subr.bf16.mxu0 0
        %6364 = vmatpush1.bf16.msra.mxu0 0
        %6365 = vmatprep.subr.bf16.mxu0 0
        %6366 = vmatpush1.bf16.msra.mxu0 0
        %6367 = vmatprep.subr.bf16.mxu0 0
        %6368 = vmatpush1.bf16.msra.mxu0 0
        %6369 = vmatprep.subr.bf16.mxu0 0
        %6370 = vmatpush1.bf16.msra.mxu0 0
        %6371 = vmatprep.subr.bf16.mxu0 0
        %6372 = vmatpush1.bf16.msra.mxu0 %v5362
        %6373 = vmatprep.subr.bf16.mxu0 0
        %6374 = vmatpush2.bf16.msra.mxu0 0
        %6375 = vmatprep.subr.bf16.mxu0 0
        %6376 = vmatpush2.bf16.msra.mxu0 0
        %6377 = vmatprep.subr.bf16.mxu0 0
        %6378 = vmatpush2.bf16.msra.mxu0 0
        %6379 = vmatprep.subr.bf16.mxu0 0
        %6380 = vmatpush2.bf16.msra.mxu0 0
        %6381 = vmatprep.subr.bf16.mxu0 0
        %6382 = vmatpush2.bf16.msra.mxu0 0
        %6383 = vmatprep.subr.bf16.mxu0 0
        %6384 = vmatpush2.bf16.msra.mxu0 0
        %6385 = vmatprep.subr.bf16.mxu0 0
        %6386 = vmatpush2.bf16.msra.mxu0 0
        %6387 = vmatprep.subr.bf16.mxu0 0
        %6388 = vmatpush2.bf16.msra.mxu0 0
        %6389 = vmatprep.mubr.bf16.mxu0 0
        %6390 = vmatmul.mubr.bf16.gmra.mxu0 %v6355
        %v6391 = vpop.f32.mrf.mxu0
        %v6392 = vadd.f32 0.0, %v6391
        %v6393 = vpop.f32.mrf.mxu0
        %v6394 = vpop.f32.mrf.mxu0
        %v6395 = vadd.f32 0.0, %v6394
        %v6396 = vpop.f32.mrf.mxu0
        %6397 = vdwg.mxu0
        %v6398 = vpack.c.bf16 %v6395, %v6392
        %v6400 = vunpack.c.l.b16 %v6398
        %v6401 = vunpack.c.h.b16 %v6398
        %v6402 = vpack.c.b16 %v6400, %v6400
        %v6403 = vpack.c.b16 %v6401, %v6401
        %6404 = vrot.lane.b32.xlu0 %v6402, 64
        %v6405 = vpop.permute.xlu0 %6404
        %6406 = vrot.lane.b32.xlu0 %v6403, 64
        %v6407 = vpop.permute.xlu0 %6406
        %6410 = vst.msk [vmem:[#allocation5 + $0x1c] sm:$0xf] %vm5483, %v6405
        %v6411 = vld [vmem:[#allocation5 + $0x3c] sm:$0x1]
        %v6412 = vsel %vm5486, %v6407, %v6411
        %6413 = vst [vmem:[#allocation5 + $0x3c] sm:$0x1] %v6412
        %v6414 = vld [vmem:[#allocation5] sm:$0xff]
        %v6415 = vld [vmem:[#allocation5 + $0x8] sm:$0xff]
        %v6416 = vld [vmem:[#allocation5 + $0x10] sm:$0xff]
        %v6417 = vld [vmem:[#allocation5 + $0x18] sm:$0xff]
        %v6418 = vld [vmem:[#allocation5 + $0x20] sm:$0x11]
        %v6419 = vld [vmem:[#allocation5 + $0x28] sm:$0x11]
        %v6420 = vld [vmem:[#allocation5 + $0x30] sm:$0x11]
        %v6421 = vld [vmem:[#allocation5 + $0x38] sm:$0x11]
        %v6422 = vld [vmem:[%s9] sm:$0xf]
        %v6423 = vld [vmem:[%s9 + $0x4] sm:$0xf]
        %v6424 = vld [vmem:[%s9 + $0x8] sm:$0xf]
        %v6425 = vld [vmem:[%s9 + $0xc] sm:$0xf]
        %v6426 = vld [vmem:[%s9 + $0x10] sm:$0xf]
        %v6427 = vld [vmem:[%s9 + $0x14] sm:$0xf]
        %v6428 = vld [vmem:[%s9 + $0x18] sm:$0xf]
        %v6429 = vld [vmem:[%s9 + $0x1c] sm:$0xf]
        %v6430 = vld [vmem:[%s9 + $0x20] sm:$0xf]
        %v6431 = vld [vmem:[%s9 + $0x24] sm:$0xf]
        %v6432 = vld [vmem:[%s9 + $0x28] sm:$0xf]
        %v6433 = vld [vmem:[%s9 + $0x2c] sm:$0xf]
        %v6434 = vld [vmem:[%s9 + $0x30] sm:$0xf]
        %v6435 = vld [vmem:[%s9 + $0x34] sm:$0xf]
        %v6436 = vld [vmem:[%s9 + $0x38] sm:$0xf]
        %v6437 = vld [vmem:[%s9 + $0x3c] sm:$0xf]
        %v6438 = vld [vmem:[%s9 + $0x40] sm:$0xf]
        %v6439 = vld [vmem:[%s9 + $0x44] sm:$0xf]
        %v6440 = vld [vmem:[%s9 + $0x48] sm:$0xf]
        %v6441 = vld [vmem:[%s9 + $0x4c] sm:$0xf]
        %v6442 = vld [vmem:[%s9 + $0x50] sm:$0xf]
        %v6443 = vld [vmem:[%s9 + $0x54] sm:$0xf]
        %v6444 = vld [vmem:[%s9 + $0x58] sm:$0xf]
        %v6445 = vld [vmem:[%s9 + $0x5c] sm:$0xf]
        %v6446 = vld [vmem:[%s9 + $0x60] sm:$0xf]
        %v6447 = vld [vmem:[%s9 + $0x64] sm:$0xf]
        %v6448 = vld [vmem:[%s9 + $0x68] sm:$0xf]
        %v6449 = vld [vmem:[%s9 + $0x6c] sm:$0xf]
        %v6450 = vld [vmem:[%s9 + $0x70] sm:$0xf]
        %v6451 = vld [vmem:[%s9 + $0x74] sm:$0xf]
        %v6452 = vld [vmem:[%s9 + $0x78] sm:$0xf]
        %v6453 = vld [vmem:[%s9 + $0x7c] sm:$0xf]
        %v6454 = vld [vmem:[%s9 + $0x80] sm:$0xf]
        %v6455 = vld [vmem:[%s9 + $0x84] sm:$0xf]
        %v6456 = vld [vmem:[%s9 + $0x88] sm:$0xf]
        %v6457 = vld [vmem:[%s9 + $0x8c] sm:$0xf]
        %v6458 = vld [vmem:[%s9 + $0x90] sm:$0xf]
        %v6459 = vld [vmem:[%s9 + $0x94] sm:$0xf]
        %v6460 = vld [vmem:[%s9 + $0x98] sm:$0xf]
        %v6461 = vld [vmem:[%s9 + $0x9c] sm:$0xf]
        %v6462 = vld [vmem:[%s9 + $0xa0] sm:$0xf]
        %v6463 = vld [vmem:[%s9 + $0xa4] sm:$0xf]
        %v6464 = vld [vmem:[%s9 + $0xa8] sm:$0xf]
        %v6465 = vld [vmem:[%s9 + $0xac] sm:$0xf]
        %v6466 = vld [vmem:[%s9 + $0xb0] sm:$0xf]
        %v6467 = vld [vmem:[%s9 + $0xb4] sm:$0xf]
        %v6468 = vld [vmem:[%s9 + $0xb8] sm:$0xf]
        %v6469 = vld [vmem:[%s9 + $0xbc] sm:$0xf]
        %v6470 = vld [vmem:[%s9 + $0xc0] sm:$0xf]
        %v6471 = vld [vmem:[%s9 + $0xc4] sm:$0xf]
        %v6472 = vld [vmem:[%s9 + $0xc8] sm:$0xf]
        %v6473 = vld [vmem:[%s9 + $0xcc] sm:$0xf]
        %v6474 = vld [vmem:[%s9 + $0xd0] sm:$0xf]
        %v6475 = vld [vmem:[%s9 + $0xd4] sm:$0xf]
        %v6476 = vld [vmem:[%s9 + $0xd8] sm:$0xf]
        %v6477 = vld [vmem:[%s9 + $0xdc] sm:$0xf]
        %v6478 = vld [vmem:[%s9 + $0xe0] sm:$0xf]
        %v6479 = vld [vmem:[%s9 + $0xe4] sm:$0xf]
        %v6480 = vld [vmem:[%s9 + $0xe8] sm:$0xf]
        %v6481 = vld [vmem:[%s9 + $0xec] sm:$0xf]
        %v6482 = vld [vmem:[%s9 + $0xf0] sm:$0xf]
        %v6483 = vld [vmem:[%s9 + $0xf4] sm:$0xf]
        %v6484 = vld [vmem:[%s9 + $0xf8] sm:$0xf]
        %v6485 = vld [vmem:[%s9 + $0xfc] sm:$0xf]
        %v6486 = vld [vmem:[%s9 + $0x100] sm:$0xf]
        %v6487 = vld [vmem:[%s9 + $0x104] sm:$0xf]
        %v6488 = vld [vmem:[%s9 + $0x108] sm:$0xf]
        %v6489 = vld [vmem:[%s9 + $0x10c] sm:$0xf]
        %v6490 = vld [vmem:[%s9 + $0x110] sm:$0xf]
        %v6491 = vld [vmem:[%s9 + $0x114] sm:$0xf]
        %v6492 = vld [vmem:[%s9 + $0x118] sm:$0xf]
        %v6493 = vld [vmem:[%s9 + $0x11c] sm:$0xf]
        %v6494 = vld [vmem:[%s9 + $0x120] sm:$0xf]
        %v6495 = vld [vmem:[%s9 + $0x124] sm:$0xf]
        %v6496 = vld [vmem:[%s9 + $0x128] sm:$0xf]
        %v6497 = vld [vmem:[%s9 + $0x12c] sm:$0xf]
        %v6498 = vld [vmem:[%s9 + $0x130] sm:$0xf]
        %v6499 = vld [vmem:[%s9 + $0x134] sm:$0xf]
        %v6500 = vld [vmem:[%s9 + $0x138] sm:$0xf]
        %v6501 = vld [vmem:[%s9 + $0x13c] sm:$0xf]
        %v6502 = vld [vmem:[%s9 + $0x140] sm:$0xf]
        %v6503 = vld [vmem:[%s9 + $0x144] sm:$0xf]
        %v6504 = vld [vmem:[%s9 + $0x148] sm:$0xf]
        %v6505 = vld [vmem:[%s9 + $0x14c] sm:$0xf]
        %v6506 = vld [vmem:[%s9 + $0x150] sm:$0xf]
        %v6507 = vld [vmem:[%s9 + $0x154] sm:$0xf]
        %v6508 = vld [vmem:[%s9 + $0x158] sm:$0xf]
        %v6509 = vld [vmem:[%s9 + $0x15c] sm:$0xf]
        %v6510 = vld [vmem:[%s9 + $0x160] sm:$0xf]
        %v6511 = vld [vmem:[%s9 + $0x164] sm:$0xf]
        %v6512 = vld [vmem:[%s9 + $0x168] sm:$0xf]
        %v6513 = vld [vmem:[%s9 + $0x16c] sm:$0xf]
        %v6514 = vld [vmem:[%s9 + $0x170] sm:$0xf]
        %v6515 = vld [vmem:[%s9 + $0x174] sm:$0xf]
        %v6516 = vld [vmem:[%s9 + $0x178] sm:$0xf]
        %v6517 = vld [vmem:[%s9 + $0x17c] sm:$0xf]
        %v6518 = vld [vmem:[%s9 + $0x180] sm:$0xf]
        %v6519 = vld [vmem:[%s9 + $0x184] sm:$0xf]
        %v6520 = vld [vmem:[%s9 + $0x188] sm:$0xf]
        %v6521 = vld [vmem:[%s9 + $0x18c] sm:$0xf]
        %v6522 = vld [vmem:[%s9 + $0x190] sm:$0xf]
        %v6523 = vld [vmem:[%s9 + $0x194] sm:$0xf]
        %v6524 = vld [vmem:[%s9 + $0x198] sm:$0xf]
        %v6525 = vld [vmem:[%s9 + $0x19c] sm:$0xf]
        %v6526 = vld [vmem:[%s9 + $0x1a0] sm:$0xf]
        %v6527 = vld [vmem:[%s9 + $0x1a4] sm:$0xf]
        %v6528 = vld [vmem:[%s9 + $0x1a8] sm:$0xf]
        %v6529 = vld [vmem:[%s9 + $0x1ac] sm:$0xf]
        %v6530 = vld [vmem:[%s9 + $0x1b0] sm:$0xf]
        %v6531 = vld [vmem:[%s9 + $0x1b4] sm:$0xf]
        %v6532 = vld [vmem:[%s9 + $0x1b8] sm:$0xf]
        %v6533 = vld [vmem:[%s9 + $0x1bc] sm:$0xf]
        %v6534 = vld [vmem:[%s9 + $0x1c0] sm:$0xf]
        %v6535 = vld [vmem:[%s9 + $0x1c4] sm:$0xf]
        %v6536 = vld [vmem:[%s9 + $0x1c8] sm:$0xf]
        %v6537 = vld [vmem:[%s9 + $0x1cc] sm:$0xf]
        %v6538 = vld [vmem:[%s9 + $0x1d0] sm:$0xf]
        %v6539 = vld [vmem:[%s9 + $0x1d4] sm:$0xf]
        %v6540 = vld [vmem:[%s9 + $0x1d8] sm:$0xf]
        %v6541 = vld [vmem:[%s9 + $0x1dc] sm:$0xf]
        %v6542 = vld [vmem:[%s9 + $0x1e0] sm:$0xf]
        %v6543 = vld [vmem:[%s9 + $0x1e4] sm:$0xf]
        %v6544 = vld [vmem:[%s9 + $0x1e8] sm:$0xf]
        %v6545 = vld [vmem:[%s9 + $0x1ec] sm:$0xf]
        %v6546 = vld [vmem:[%s9 + $0x1f0] sm:$0xf]
        %v6547 = vld [vmem:[%s9 + $0x1f4] sm:$0xf]
        %v6548 = vld [vmem:[%s9 + $0x1f8] sm:$0xf]
        %v6549 = vld [vmem:[%s9 + $0x1fc] sm:$0xf]
        %v6550 = vld [vmem:[#allocation6] sm:$0x1]
        %v6552 = vlaneseq
        %v6553 = vshrl.u32 %v6552, 7
        %v6554 = vsub.s32 0, %v6553
        %v6555 = vrot.slane %v6550, %v6554
        %v6565 = vunpack.c.l.b16 %v6414
        %v6566 = vunpack.c.h.b16 %v6414
        %v6567 = vunpack.c.l.b16 %v6415
        %v6568 = vunpack.c.h.b16 %v6415
        %v6569 = vunpack.c.l.b16 %v6416
        %v6570 = vunpack.c.h.b16 %v6416
        %v6571 = vunpack.c.l.b16 %v6417
        %v6572 = vunpack.c.h.b16 %v6417
        %v6573 = vunpack.c.l.b16 %v6418
        %v6574 = vunpack.c.h.b16 %v6418
        %v6575 = vunpack.c.l.b16 %v6419
        %v6576 = vunpack.c.h.b16 %v6419
        %v6577 = vunpack.c.l.b16 %v6420
        %v6578 = vunpack.c.h.b16 %v6420
        %v6579 = vunpack.c.l.b16 %v6421
        %v6580 = vunpack.c.h.b16 %v6421
        %v6581 = vpack.c.b16 %v6573, %v6565
        %v6582 = vpack.c.b16 %v6574, %v6566
        %v6583 = vpack.c.b16 %v6575, %v6567
        %v6584 = vpack.c.b16 %v6576, %v6568
        %v6585 = vpack.c.b16 %v6577, %v6569
        %v6586 = vpack.c.b16 %v6578, %v6570
        %v6587 = vpack.c.b16 %v6579, %v6571
        %v6588 = vpack.c.b16 %v6580, %v6572
        %v6725 = vunpack.c.l.b16 %v6422
        %v6726 = vunpack.c.l.b16 %v6423
        %v6727 = vunpack.c.l.b16 %v6424
        %v6728 = vunpack.c.l.b16 %v6425
        %v6729 = vunpack.c.l.b16 %v6426
        %v6730 = vunpack.c.l.b16 %v6427
        %v6731 = vunpack.c.l.b16 %v6428
        %v6732 = vunpack.c.l.b16 %v6429
        %v6733 = vunpack.c.l.b16 %v6430
        %v6734 = vunpack.c.l.b16 %v6431
        %v6735 = vunpack.c.l.b16 %v6432
        %v6736 = vunpack.c.l.b16 %v6433
        %v6737 = vunpack.c.l.b16 %v6434
        %v6738 = vunpack.c.l.b16 %v6435
        %v6739 = vunpack.c.l.b16 %v6436
        %v6740 = vunpack.c.l.b16 %v6437
        %v6741 = vunpack.c.l.b16 %v6438
        %v6742 = vunpack.c.l.b16 %v6439
        %v6743 = vunpack.c.l.b16 %v6440
        %v6744 = vunpack.c.l.b16 %v6441
        %v6745 = vunpack.c.l.b16 %v6442
        %v6746 = vunpack.c.l.b16 %v6443
        %v6747 = vunpack.c.l.b16 %v6444
        %v6748 = vunpack.c.l.b16 %v6445
        %v6749 = vunpack.c.l.b16 %v6446
        %v6750 = vunpack.c.l.b16 %v6447
        %v6751 = vunpack.c.l.b16 %v6448
        %v6752 = vunpack.c.l.b16 %v6449
        %v6753 = vunpack.c.l.b16 %v6450
        %v6754 = vunpack.c.l.b16 %v6451
        %v6755 = vunpack.c.l.b16 %v6452
        %v6756 = vunpack.c.l.b16 %v6453
        %v6757 = vunpack.c.l.b16 %v6454
        %v6758 = vunpack.c.l.b16 %v6455
        %v6759 = vunpack.c.l.b16 %v6456
        %v6760 = vunpack.c.l.b16 %v6457
        %v6761 = vunpack.c.l.b16 %v6458
        %v6762 = vunpack.c.l.b16 %v6459
        %v6763 = vunpack.c.l.b16 %v6460
        %v6764 = vunpack.c.l.b16 %v6461
        %v6765 = vunpack.c.l.b16 %v6462
        %v6766 = vunpack.c.l.b16 %v6463
        %v6767 = vunpack.c.l.b16 %v6464
        %v6768 = vunpack.c.l.b16 %v6465
        %v6769 = vunpack.c.l.b16 %v6466
        %v6770 = vunpack.c.l.b16 %v6467
        %v6771 = vunpack.c.l.b16 %v6468
        %v6772 = vunpack.c.l.b16 %v6469
        %v6773 = vunpack.c.l.b16 %v6470
        %v6774 = vunpack.c.l.b16 %v6471
        %v6775 = vunpack.c.l.b16 %v6472
        %v6776 = vunpack.c.l.b16 %v6473
        %v6777 = vunpack.c.l.b16 %v6474
        %v6778 = vunpack.c.l.b16 %v6475
        %v6779 = vunpack.c.l.b16 %v6476
        %v6780 = vunpack.c.l.b16 %v6477
        %v6781 = vunpack.c.l.b16 %v6478
        %v6782 = vunpack.c.l.b16 %v6479
        %v6783 = vunpack.c.l.b16 %v6480
        %v6784 = vunpack.c.l.b16 %v6481
        %v6785 = vunpack.c.l.b16 %v6482
        %v6786 = vunpack.c.l.b16 %v6483
        %v6787 = vunpack.c.l.b16 %v6484
        %v6788 = vunpack.c.l.b16 %v6485
        %v6789 = vunpack.c.l.b16 %v6486
        %v6790 = vunpack.c.l.b16 %v6487
        %v6791 = vunpack.c.l.b16 %v6488
        %v6792 = vunpack.c.l.b16 %v6489
        %v6793 = vunpack.c.l.b16 %v6490
        %v6794 = vunpack.c.l.b16 %v6491
        %v6795 = vunpack.c.l.b16 %v6492
        %v6796 = vunpack.c.l.b16 %v6493
        %v6797 = vunpack.c.l.b16 %v6494
        %v6798 = vunpack.c.l.b16 %v6495
        %v6799 = vunpack.c.l.b16 %v6496
        %v6800 = vunpack.c.l.b16 %v6497
        %v6801 = vunpack.c.l.b16 %v6498
        %v6802 = vunpack.c.l.b16 %v6499
        %v6803 = vunpack.c.l.b16 %v6500
        %v6804 = vunpack.c.l.b16 %v6501
        %v6805 = vunpack.c.l.b16 %v6502
        %v6806 = vunpack.c.l.b16 %v6503
        %v6807 = vunpack.c.l.b16 %v6504
        %v6808 = vunpack.c.l.b16 %v6505
        %v6809 = vunpack.c.l.b16 %v6506
        %v6810 = vunpack.c.l.b16 %v6507
        %v6811 = vunpack.c.l.b16 %v6508
        %v6812 = vunpack.c.l.b16 %v6509
        %v6813 = vunpack.c.l.b16 %v6510
        %v6814 = vunpack.c.l.b16 %v6511
        %v6815 = vunpack.c.l.b16 %v6512
        %v6816 = vunpack.c.l.b16 %v6513
        %v6817 = vunpack.c.l.b16 %v6514
        %v6818 = vunpack.c.l.b16 %v6515
        %v6819 = vunpack.c.l.b16 %v6516
        %v6820 = vunpack.c.l.b16 %v6517
        %v6821 = vunpack.c.l.b16 %v6518
        %v6822 = vunpack.c.l.b16 %v6519
        %v6823 = vunpack.c.l.b16 %v6520
        %v6824 = vunpack.c.l.b16 %v6521
        %v6825 = vunpack.c.l.b16 %v6522
        %v6826 = vunpack.c.l.b16 %v6523
        %v6827 = vunpack.c.l.b16 %v6524
        %v6828 = vunpack.c.l.b16 %v6525
        %v6829 = vunpack.c.l.b16 %v6526
        %v6830 = vunpack.c.l.b16 %v6527
        %v6831 = vunpack.c.l.b16 %v6528
        %v6832 = vunpack.c.l.b16 %v6529
        %v6833 = vunpack.c.l.b16 %v6530
        %v6834 = vunpack.c.l.b16 %v6531
        %v6835 = vunpack.c.l.b16 %v6532
        %v6836 = vunpack.c.l.b16 %v6533
        %v6837 = vunpack.c.l.b16 %v6534
        %v6838 = vunpack.c.l.b16 %v6535
        %v6839 = vunpack.c.l.b16 %v6536
        %v6840 = vunpack.c.l.b16 %v6537
        %v6841 = vunpack.c.l.b16 %v6538
        %v6842 = vunpack.c.l.b16 %v6539
        %v6843 = vunpack.c.l.b16 %v6540
        %v6844 = vunpack.c.l.b16 %v6541
        %v6845 = vunpack.c.l.b16 %v6542
        %v6846 = vunpack.c.l.b16 %v6543
        %v6847 = vunpack.c.l.b16 %v6544
        %v6848 = vunpack.c.l.b16 %v6545
        %v6849 = vunpack.c.l.b16 %v6546
        %v6850 = vunpack.c.l.b16 %v6547
        %v6851 = vunpack.c.l.b16 %v6548
        %v6852 = vunpack.c.l.b16 %v6549
        %v6853 = vpack.c.b16 %v6726, %v6725
        %v6854 = vpack.c.b16 %v6728, %v6727
        %v6855 = vpack.c.b16 %v6730, %v6729
        %v6856 = vpack.c.b16 %v6732, %v6731
        %v6857 = vpack.c.b16 %v6734, %v6733
        %v6858 = vpack.c.b16 %v6736, %v6735
        %v6859 = vpack.c.b16 %v6738, %v6737
        %v6860 = vpack.c.b16 %v6740, %v6739
        %v6861 = vpack.c.b16 %v6742, %v6741
        %v6862 = vpack.c.b16 %v6744, %v6743
        %v6863 = vpack.c.b16 %v6746, %v6745
        %v6864 = vpack.c.b16 %v6748, %v6747
        %v6865 = vpack.c.b16 %v6750, %v6749
        %v6866 = vpack.c.b16 %v6752, %v6751
        %v6867 = vpack.c.b16 %v6754, %v6753
        %v6868 = vpack.c.b16 %v6756, %v6755
        %v6869 = vpack.c.b16 %v6758, %v6757
        %v6870 = vpack.c.b16 %v6760, %v6759
        %v6871 = vpack.c.b16 %v6762, %v6761
        %v6872 = vpack.c.b16 %v6764, %v6763
        %v6873 = vpack.c.b16 %v6766, %v6765
        %v6874 = vpack.c.b16 %v6768, %v6767
        %v6875 = vpack.c.b16 %v6770, %v6769
        %v6876 = vpack.c.b16 %v6772, %v6771
        %v6877 = vpack.c.b16 %v6774, %v6773
        %v6878 = vpack.c.b16 %v6776, %v6775
        %v6879 = vpack.c.b16 %v6778, %v6777
        %v6880 = vpack.c.b16 %v6780, %v6779
        %v6881 = vpack.c.b16 %v6782, %v6781
        %v6882 = vpack.c.b16 %v6784, %v6783
        %v6883 = vpack.c.b16 %v6786, %v6785
        %v6884 = vpack.c.b16 %v6788, %v6787
        %v6885 = vpack.c.b16 %v6790, %v6789
        %v6886 = vpack.c.b16 %v6792, %v6791
        %v6887 = vpack.c.b16 %v6794, %v6793
        %v6888 = vpack.c.b16 %v6796, %v6795
        %v6889 = vpack.c.b16 %v6798, %v6797
        %v6890 = vpack.c.b16 %v6800, %v6799
        %v6891 = vpack.c.b16 %v6802, %v6801
        %v6892 = vpack.c.b16 %v6804, %v6803
        %v6893 = vpack.c.b16 %v6806, %v6805
        %v6894 = vpack.c.b16 %v6808, %v6807
        %v6895 = vpack.c.b16 %v6810, %v6809
        %v6896 = vpack.c.b16 %v6812, %v6811
        %v6897 = vpack.c.b16 %v6814, %v6813
        %v6898 = vpack.c.b16 %v6816, %v6815
        %v6899 = vpack.c.b16 %v6818, %v6817
        %v6900 = vpack.c.b16 %v6820, %v6819
        %v6901 = vpack.c.b16 %v6822, %v6821
        %v6902 = vpack.c.b16 %v6824, %v6823
        %v6903 = vpack.c.b16 %v6826, %v6825
        %v6904 = vpack.c.b16 %v6828, %v6827
        %v6905 = vpack.c.b16 %v6830, %v6829
        %v6906 = vpack.c.b16 %v6832, %v6831
        %v6907 = vpack.c.b16 %v6834, %v6833
        %v6908 = vpack.c.b16 %v6836, %v6835
        %v6909 = vpack.c.b16 %v6838, %v6837
        %v6910 = vpack.c.b16 %v6840, %v6839
        %v6911 = vpack.c.b16 %v6842, %v6841
        %v6912 = vpack.c.b16 %v6844, %v6843
        %v6913 = vpack.c.b16 %v6846, %v6845
        %v6914 = vpack.c.b16 %v6848, %v6847
        %v6915 = vpack.c.b16 %v6850, %v6849
        %v6916 = vpack.c.b16 %v6852, %v6851
        %6981 = vmatprep.subr.bf16.mxu0 0
        %6982 = vmatpush1.bf16.msra.mxu0 %v6860
        %6983 = vmatprep.subr.bf16.mxu0 0
        %6984 = vmatpush1.bf16.msra.mxu0 %v6859
        %6985 = vmatprep.subr.bf16.mxu0 0
        %6986 = vmatpush1.bf16.msra.mxu0 %v6858
        %6987 = vmatprep.subr.bf16.mxu0 0
        %6988 = vmatpush1.bf16.msra.mxu0 %v6857
        %6989 = vmatprep.subr.bf16.mxu0 0
        %6990 = vmatpush1.bf16.msra.mxu0 %v6856
        %6991 = vmatprep.subr.bf16.mxu0 0
        %6992 = vmatpush1.bf16.msra.mxu0 %v6855
        %6993 = vmatprep.subr.bf16.mxu0 0
        %6994 = vmatpush1.bf16.msra.mxu0 %v6854
        %6995 = vmatprep.subr.bf16.mxu0 0
        %6996 = vmatpush1.bf16.msra.mxu0 %v6853
        %6997 = vmatprep.subr.bf16.mxu0 0
        %6998 = vmatpush2.bf16.msra.mxu0 %v6868
        %6999 = vmatprep.subr.bf16.mxu0 0
        %7000 = vmatpush2.bf16.msra.mxu0 %v6867
        %7001 = vmatprep.subr.bf16.mxu0 0
        %7002 = vmatpush2.bf16.msra.mxu0 %v6866
        %7003 = vmatprep.subr.bf16.mxu0 0
        %7004 = vmatpush2.bf16.msra.mxu0 %v6865
        %7005 = vmatprep.subr.bf16.mxu0 0
        %7006 = vmatpush2.bf16.msra.mxu0 %v6864
        %7007 = vmatprep.subr.bf16.mxu0 0
        %7008 = vmatpush2.bf16.msra.mxu0 %v6863
        %7009 = vmatprep.subr.bf16.mxu0 0
        %7010 = vmatpush2.bf16.msra.mxu0 %v6862
        %7011 = vmatprep.subr.bf16.mxu0 0
        %7012 = vmatpush2.bf16.msra.mxu0 %v6861
        %7013 = vmatprep.mubr.bf16.mxu0 %v6582
        %7014 = vmatmul.mubr.bf16.gmra.mxu0 %v6581
        %v7015 = vpop.f32.mrf.mxu0
        %v7016 = vadd.f32 %v6555, %v7015
        %v7017 = vpop.f32.mrf.mxu0
        %v7018 = vpop.f32.mrf.mxu0
        %v7019 = vadd.f32 %v6555, %v7018
        %v7020 = vpop.f32.mrf.mxu0
        %7021 = vdwg.mxu0
        %7022 = vmatprep.subr.bf16.mxu0 0
        %7023 = vmatpush1.bf16.msra.mxu0 %v6876
        %7024 = vmatprep.subr.bf16.mxu0 0
        %7025 = vmatpush1.bf16.msra.mxu0 %v6875
        %7026 = vmatprep.subr.bf16.mxu0 0
        %7027 = vmatpush1.bf16.msra.mxu0 %v6874
        %7028 = vmatprep.subr.bf16.mxu0 0
        %7029 = vmatpush1.bf16.msra.mxu0 %v6873
        %7030 = vmatprep.subr.bf16.mxu0 0
        %7031 = vmatpush1.bf16.msra.mxu0 %v6872
        %7032 = vmatprep.subr.bf16.mxu0 0
        %7033 = vmatpush1.bf16.msra.mxu0 %v6871
        %7034 = vmatprep.subr.bf16.mxu0 0
        %7035 = vmatpush1.bf16.msra.mxu0 %v6870
        %7036 = vmatprep.subr.bf16.mxu0 0
        %7037 = vmatpush1.bf16.msra.mxu0 %v6869
        %7038 = vmatprep.subr.bf16.mxu0 0
        %7039 = vmatpush2.bf16.msra.mxu0 %v6884
        %7040 = vmatprep.subr.bf16.mxu0 0
        %7041 = vmatpush2.bf16.msra.mxu0 %v6883
        %7042 = vmatprep.subr.bf16.mxu0 0
        %7043 = vmatpush2.bf16.msra.mxu0 %v6882
        %7044 = vmatprep.subr.bf16.mxu0 0
        %7045 = vmatpush2.bf16.msra.mxu0 %v6881
        %7046 = vmatprep.subr.bf16.mxu0 0
        %7047 = vmatpush2.bf16.msra.mxu0 %v6880
        %7048 = vmatprep.subr.bf16.mxu0 0
        %7049 = vmatpush2.bf16.msra.mxu0 %v6879
        %7050 = vmatprep.subr.bf16.mxu0 0
        %7051 = vmatpush2.bf16.msra.mxu0 %v6878
        %7052 = vmatprep.subr.bf16.mxu0 0
        %7053 = vmatpush2.bf16.msra.mxu0 %v6877
        %7054 = vmatprep.mubr.bf16.mxu0 %v6584
        %7055 = vmatmul.mubr.bf16.gmra.mxu0 %v6583
        %v7056 = vpop.f32.mrf.mxu0
        %v7057 = vadd.f32 %v7016, %v7056
        %v7058 = vpop.f32.mrf.mxu0
        %v7059 = vpop.f32.mrf.mxu0
        %v7060 = vadd.f32 %v7019, %v7059
        %v7061 = vpop.f32.mrf.mxu0
        %7062 = vdwg.mxu0
        %7063 = vmatprep.subr.bf16.mxu0 0
        %7064 = vmatpush1.bf16.msra.mxu0 %v6892
        %7065 = vmatprep.subr.bf16.mxu0 0
        %7066 = vmatpush1.bf16.msra.mxu0 %v6891
        %7067 = vmatprep.subr.bf16.mxu0 0
        %7068 = vmatpush1.bf16.msra.mxu0 %v6890
        %7069 = vmatprep.subr.bf16.mxu0 0
        %7070 = vmatpush1.bf16.msra.mxu0 %v6889
        %7071 = vmatprep.subr.bf16.mxu0 0
        %7072 = vmatpush1.bf16.msra.mxu0 %v6888
        %7073 = vmatprep.subr.bf16.mxu0 0
        %7074 = vmatpush1.bf16.msra.mxu0 %v6887
        %7075 = vmatprep.subr.bf16.mxu0 0
        %7076 = vmatpush1.bf16.msra.mxu0 %v6886
        %7077 = vmatprep.subr.bf16.mxu0 0
        %7078 = vmatpush1.bf16.msra.mxu0 %v6885
        %7079 = vmatprep.subr.bf16.mxu0 0
        %7080 = vmatpush2.bf16.msra.mxu0 %v6900
        %7081 = vmatprep.subr.bf16.mxu0 0
        %7082 = vmatpush2.bf16.msra.mxu0 %v6899
        %7083 = vmatprep.subr.bf16.mxu0 0
        %7084 = vmatpush2.bf16.msra.mxu0 %v6898
        %7085 = vmatprep.subr.bf16.mxu0 0
        %7086 = vmatpush2.bf16.msra.mxu0 %v6897
        %7087 = vmatprep.subr.bf16.mxu0 0
        %7088 = vmatpush2.bf16.msra.mxu0 %v6896
        %7089 = vmatprep.subr.bf16.mxu0 0
        %7090 = vmatpush2.bf16.msra.mxu0 %v6895
        %7091 = vmatprep.subr.bf16.mxu0 0
        %7092 = vmatpush2.bf16.msra.mxu0 %v6894
        %7093 = vmatprep.subr.bf16.mxu0 0
        %7094 = vmatpush2.bf16.msra.mxu0 %v6893
        %7095 = vmatprep.mubr.bf16.mxu0 %v6586
        %7096 = vmatmul.mubr.bf16.gmra.mxu0 %v6585
        %v7097 = vpop.f32.mrf.mxu0
        %v7098 = vadd.f32 %v7057, %v7097
        %v7099 = vpop.f32.mrf.mxu0
        %v7100 = vpop.f32.mrf.mxu0
        %v7101 = vadd.f32 %v7060, %v7100
        %v7102 = vpop.f32.mrf.mxu0
        %7103 = vdwg.mxu0
        %7104 = vmatprep.subr.bf16.mxu0 0
        %7105 = vmatpush1.bf16.msra.mxu0 %v6908
        %7106 = vmatprep.subr.bf16.mxu0 0
        %7107 = vmatpush1.bf16.msra.mxu0 %v6907
        %7108 = vmatprep.subr.bf16.mxu0 0
        %7109 = vmatpush1.bf16.msra.mxu0 %v6906
        %7110 = vmatprep.subr.bf16.mxu0 0
        %7111 = vmatpush1.bf16.msra.mxu0 %v6905
        %7112 = vmatprep.subr.bf16.mxu0 0
        %7113 = vmatpush1.bf16.msra.mxu0 %v6904
        %7114 = vmatprep.subr.bf16.mxu0 0
        %7115 = vmatpush1.bf16.msra.mxu0 %v6903
        %7116 = vmatprep.subr.bf16.mxu0 0
        %7117 = vmatpush1.bf16.msra.mxu0 %v6902
        %7118 = vmatprep.subr.bf16.mxu0 0
        %7119 = vmatpush1.bf16.msra.mxu0 %v6901
        %7120 = vmatprep.subr.bf16.mxu0 0
        %7121 = vmatpush2.bf16.msra.mxu0 %v6916
        %7122 = vmatprep.subr.bf16.mxu0 0
        %7123 = vmatpush2.bf16.msra.mxu0 %v6915
        %7124 = vmatprep.subr.bf16.mxu0 0
        %7125 = vmatpush2.bf16.msra.mxu0 %v6914
        %7126 = vmatprep.subr.bf16.mxu0 0
        %7127 = vmatpush2.bf16.msra.mxu0 %v6913
        %7128 = vmatprep.subr.bf16.mxu0 0
        %7129 = vmatpush2.bf16.msra.mxu0 %v6912
        %7130 = vmatprep.subr.bf16.mxu0 0
        %7131 = vmatpush2.bf16.msra.mxu0 %v6911
        %7132 = vmatprep.subr.bf16.mxu0 0
        %7133 = vmatpush2.bf16.msra.mxu0 %v6910
        %7134 = vmatprep.subr.bf16.mxu0 0
        %7135 = vmatpush2.bf16.msra.mxu0 %v6909
        %7136 = vmatprep.mubr.bf16.mxu0 %v6588
        %7137 = vmatmul.mubr.bf16.gmra.mxu0 %v6587
        %v7138 = vpop.f32.mrf.mxu0
        %v7139 = vadd.f32 %v7098, %v7138
        %v7140 = vpop.f32.mrf.mxu0
        %v7141 = vpop.f32.mrf.mxu0
        %v7142 = vadd.f32 %v7101, %v7141
        %v7143 = vpop.f32.mrf.mxu0
        %7144 = vdwg.mxu0
        %vm7145 = vcmask 7168
        %7146 = vst.msk [vmem:[%s651] sm:$0xff] %vm7145, %v7139
        %vm7147 = vcmask 0
        %7148 = vst.msk [vmem:[%s651 + $0x8] sm:$0x1] %vm7147, %v7142
        %p7149 = scmp.lt.s32.totalorder %s36, 1
        %s7150 = scalar_select %p7149, %s36, 1
        %s7151 = smul.addr %s7150, 11
        %s7152 = smul.addr %s7151, 8
        %s7153 = scalar_lea.vmem %s15, %s7152
        %p7154 = scmp.lt.s32.totalorder %s36, 1
        %s7155 = scalar_select %p7154, %s36, 1
        %s7156 = smul.addr %s7155, 4
        %s7157 = smul.addr %s7156, 8
        %s7158 = scalar_lea.vmem %s16, %s7157
        %p7159 = scmp.lt.s32.totalorder %s36, 1
        %s7160 = scalar_select %p7159, %s36, 1
        %s7161 = smul.addr %s7160, 2
        %s7162 = smul.addr %s7161, 8
        %s7163 = scalar_lea.vmem %s17, %s7162
        %s7164 = sand.u32 %s442, 1
        %s7165 = scalar_lea.sflag [#allocation8], %s7164
        %s7166 = sand.u32 %s442, 1
        %s7167 = smul.addr %s7166, 4
        %s7168 = scalar_lea.vmem [#allocation7], %s7167
        %p7169 = scmp.lt.s32.totalorder %s36, 1
        %s7170 = scalar_select %p7169, %s36, 1
        %s7171 = smul.addr %s7170, 2
        %s7172 = smul.addr %s7171, 8
        %s7173 = scalar_lea.vmem %s19, %s7172
        // Predicated region
        $region81: #{patch_dis_net_forward.1} parent=79 // pred_check
          %p7174 = pneg %p374
        $region82: #{patch_dis_net_forward.1} parent=79 // pred_check_branch
          %7176 = sbr.rel (%p7174) target = $region84
        $region83: #{patch_dis_net_forward.1} parent=79 // pred_region
          _
        $region84: #{patch_dis_net_forward.1} parent=79 // pred_fallthru
          _
        // Predicated region
        $region85: #{patch_dis_net_forward.1} parent=79 // pred_check
          %p7177 = pneg %p400
        $region86: #{patch_dis_net_forward.1} parent=79 // pred_check_branch
          %7179 = sbr.rel (%p7177) target = $region88
        $region87: #{patch_dis_net_forward.1} parent=79 // pred_region
          _
        $region88: #{patch_dis_net_forward.1} parent=79 // pred_fallthru
          _
        // Predicated region
        $region89: #{patch_dis_net_forward.1} parent=79 // pred_check
          %p7180 = pneg %p426
        $region90: #{patch_dis_net_forward.1} parent=79 // pred_check_branch
          %7182 = sbr.rel (%p7180) target = $region92
        $region91: #{patch_dis_net_forward.1} parent=79 // pred_region
          _
        $region92: #{patch_dis_net_forward.1} parent=79 // pred_fallthru
          _
        // Predicated region
        $region93: #{patch_dis_net_forward.1} parent=79 // pred_check
          %p7183 = pneg %p452
        $region94: #{patch_dis_net_forward.1} parent=79 // pred_check_branch
          %7185 = sbr.rel (%p7183) target = $region96
        $region95: #{patch_dis_net_forward.1} parent=79 // pred_region
          %s7187 = ssub.s32 64, 64
          %7188 = vsyncadd %s7165, %s7187
          %s7189 = smul.addr %s36, 64
          %s7190 = scalar_lea.hbm %s18, %s7189
          %s7192 = sshll.u32 %s7168, 4
          %s7193 = int_to_ptr.vmem [resolvable:$true] %s7192
          %7195 = dma.vmem_to_hbm [thread:$0]  %s7193, 64, %s7190, %s7165
        $region96: #{patch_dis_net_forward.1} parent=79 // pred_fallthru
          _
        // Predicated region
        $region97: #{patch_dis_net_forward.1} parent=79 // pred_check
          %p7196 = pneg %p478
        $region98: #{patch_dis_net_forward.1} parent=79 // pred_check_branch
          %7198 = sbr.rel (%p7196) target = $region100
        $region99: #{patch_dis_net_forward.1} parent=79 // pred_region
          _
        $region100: #{patch_dis_net_forward.1} parent=79 // pred_fallthru
          _
      $region80: #{patch_dis_net_forward.1} parent=5 // pred_fallthru
        _
      %p7199 = scmp.le.s32.totalorder 2, %s31
      // Predicated region
      $region101: #{patch_dis_net_forward.1} parent=5 // pred_check
        %p7200 = pneg %p7199
      $region102: #{patch_dis_net_forward.1} parent=5 // pred_check_branch
        %7202 = sbr.rel (%p7200) target = $region104
      $region103: #{patch_dis_net_forward.1} parent=5 // pred_region
        %s7203 = ssub.s32 %s31, 2
        // Predicated region
        $region105: #{patch_dis_net_forward.1} parent=103 // pred_check
          %p7204 = pneg %p380
        $region106: #{patch_dis_net_forward.1} parent=103 // pred_check_branch
          %7206 = sbr.rel (%p7204) target = $region108
        $region107: #{patch_dis_net_forward.1} parent=103 // pred_region
          %p7207 = scmp.lt.s32.totalorder %s37, 1
          %s7208 = scalar_select %p7207, %s37, 1
          %s7209 = smul.addr %s7208, 11
          %s7210 = smul.addr %s7209, 8
          %s7211 = scalar_lea.vmem %s15, %s7210
        $region108: #{patch_dis_net_forward.1} parent=103 // pred_fallthru
          _
        // Predicated region
        $region109: #{patch_dis_net_forward.1} parent=103 // pred_check
          %p7212 = pneg %p406
        $region110: #{patch_dis_net_forward.1} parent=103 // pred_check_branch
          %7214 = sbr.rel (%p7212) target = $region112
        $region111: #{patch_dis_net_forward.1} parent=103 // pred_region
          %p7215 = scmp.lt.s32.totalorder %s37, 1
          %s7216 = scalar_select %p7215, %s37, 1
          %s7217 = smul.addr %s7216, 4
          %s7218 = smul.addr %s7217, 8
          %s7219 = scalar_lea.vmem %s16, %s7218
        $region112: #{patch_dis_net_forward.1} parent=103 // pred_fallthru
          _
        // Predicated region
        $region113: #{patch_dis_net_forward.1} parent=103 // pred_check
          %p7220 = pneg %p432
        $region114: #{patch_dis_net_forward.1} parent=103 // pred_check_branch
          %7222 = sbr.rel (%p7220) target = $region116
        $region115: #{patch_dis_net_forward.1} parent=103 // pred_region
          %p7223 = scmp.lt.s32.totalorder %s37, 1
          %s7224 = scalar_select %p7223, %s37, 1
          %s7225 = smul.addr %s7224, 2
          %s7226 = smul.addr %s7225, 8
          %s7227 = scalar_lea.vmem %s17, %s7226
        $region116: #{patch_dis_net_forward.1} parent=103 // pred_fallthru
          _
        // Predicated region
        $region117: #{patch_dis_net_forward.1} parent=103 // pred_check
          %p7228 = pneg %p458
        $region118: #{patch_dis_net_forward.1} parent=103 // pred_check_branch
          %7230 = sbr.rel (%p7228) target = $region120
        $region119: #{patch_dis_net_forward.1} parent=103 // pred_region
          %s7231 = sand.u32 %s443, 1
          %s7232 = scalar_lea.sflag [#allocation8], %s7231
          %s7233 = sand.u32 %s443, 1
          %s7234 = smul.addr %s7233, 4
          %s7235 = scalar_lea.vmem [#allocation7], %s7234
          %7236 = dma.done %s7232, 64
        $region120: #{patch_dis_net_forward.1} parent=103 // pred_fallthru
          _
        // Predicated region
        $region121: #{patch_dis_net_forward.1} parent=103 // pred_check
          %p7237 = pneg %p484
        $region122: #{patch_dis_net_forward.1} parent=103 // pred_check_branch
          %7239 = sbr.rel (%p7237) target = $region124
        $region123: #{patch_dis_net_forward.1} parent=103 // pred_region
          %p7240 = scmp.lt.s32.totalorder %s37, 1
          %s7241 = scalar_select %p7240, %s37, 1
          %s7242 = smul.addr %s7241, 2
          %s7243 = smul.addr %s7242, 8
          %s7244 = scalar_lea.vmem %s19, %s7243
        $region124: #{patch_dis_net_forward.1} parent=103 // pred_fallthru
          _
      $region104: #{patch_dis_net_forward.1} parent=5 // pred_fallthru
        _
    $region6: #{patch_dis_net_forward.1} parent=1 // loop_footer
      %s35 = sadd.s32 1, %s31
    $region7: #{patch_dis_net_forward.1} parent=1 // loop_footer_branch
      %30 = sbr.rel target = $region3
    $region8: #{patch_dis_net_forward.1} parent=1 // loop_exit
      _
    %7245 = vsyncpa [#allocation8], 1
    %s7246 = scalar_lea.sflag [#allocation8], 1
    %7247 = vsyncpa %s7246, 1

</llo_original>
